<compile_context>
chip_gen: v5e
topology: v5e:2x2
jax: 0.10.0
libtpu: 0.0.40
codegen_flags: <defaults>
</compile_context>

<pallas_src>
import jax
import jax.numpy as jnp
from jax.experimental import pallas as pl
from jax.experimental.pallas import tpu as pltpu

MORGAN_DIM, MACCS_DIM, RDKIT_DIM = 2048, 167, 2048
BN_EPS = 1e-5


# ----------------------------------------------------------------------------
# Kernel: relu( bn2_affine( relu( relu(x@W1+b1) @ W2_folded + b2_folded ) ) )
# ----------------------------------------------------------------------------
def fp_encoder_kernel(x_ref, w1_ref, b1_ref, w2_ref, b2_ref, s2_ref, t2_ref,
                      out_ref):
    # fc2[0] Linear(init_dim, 512) ; fc2[1] Dropout == identity ; fc2[2] ReLU
    h = jnp.dot(x_ref[...], w1_ref[...], preferred_element_type=jnp.float32)
    h = jnp.maximum(h + b1_ref[...], 0.0)

    # fc2[3] BatchNorm1d(512) has been folded into fc2[4] Linear(512, 512)
    # wrapper-side; fc2[5] ReLU.
    h = jnp.dot(h, w2_ref[...], preferred_element_type=jnp.float32)
    h = jnp.maximum(h + b2_ref[...], 0.0)

    # outer BatchNorm1d(emb_dim) (inference affine) followed by outer ReLU.
    out_ref[...] = jnp.maximum(h * s2_ref[...] + t2_ref[...], 0.0)


# ----------------------------------------------------------------------------
# Wrapper: weight repacking + pallas_call
# ----------------------------------------------------------------------------
def fp_encoder_forward(fp, params, *, block_b=8):
    B, D = fp.shape
    E = params["w1"].shape[1]

    # ---- wrapper-side parameter repacking (zero per-step cost inside kernel) ----
    # BN1 inference affine: bn1(z) = z * s1 + t1
    s1 = params["bn1_gamma"] / jnp.sqrt(params["bn1_var"] + BN_EPS)
    t1 = params["bn1_beta"] - params["bn1_mean"] * s1
    # Fold BN1 into the second Linear: (z*s1 + t1) @ W2 + b2
    w2f = s1[:, None] * params["w2"]                       # [E, E]
    b2f = t1 @ params["w2"] + params["b2"]                 # [E]
    # BN2 inference affine (applied after the last fc2 ReLU, before outer ReLU)
    s2 = params["bn2_gamma"] / jnp.sqrt(params["bn2_var"] + BN_EPS)
    t2 = params["bn2_beta"] - params["bn2_mean"] * s2

    b1 = params["b1"].reshape(1, E)
    b2f = b2f.reshape(1, E)
    s2 = s2.reshape(1, E)
    t2 = t2.reshape(1, E)

    # Pad batch to a multiple of the batch tile.
    pad = (-B) % block_b
    if pad:
        fp = jnp.pad(fp, ((0, pad), (0, 0)))
    bp = B + pad
    grid = (bp // block_b,)

    flops = 2 * bp * D * E + 2 * bp * E * E + 6 * bp * E
    bytes_accessed = 4 * (bp * D + D * E + E * E + bp * E + 4 * E)

    out = pl.pallas_call(
        fp_encoder_kernel,
        out_shape=jax.ShapeDtypeStruct((bp, E), jnp.float32),
        grid_spec=pltpu.PrefetchScalarGridSpec(
            num_scalar_prefetch=0,
            grid=grid,
            in_specs=[
                # activations: pipelined over the batch grid
                pl.BlockSpec((block_b, D), lambda i: (i, 0)),
                # weights / biases / BN affines: VMEM-resident (constant block)
                pl.BlockSpec((D, E), lambda i: (0, 0)),
                pl.BlockSpec((1, E), lambda i: (0, 0)),
                pl.BlockSpec((E, E), lambda i: (0, 0)),
                pl.BlockSpec((1, E), lambda i: (0, 0)),
                pl.BlockSpec((1, E), lambda i: (0, 0)),
                pl.BlockSpec((1, E), lambda i: (0, 0)),
            ],
            out_specs=pl.BlockSpec((block_b, E), lambda i: (i, 0)),
        ),
        compiler_params=pltpu.CompilerParams(
            dimension_semantics=("parallel",),
            vmem_limit_bytes=32 * 1024 * 1024,
        ),
        cost_estimate=pl.CostEstimate(
            flops=flops, transcendentals=0, bytes_accessed=bytes_accessed),
    )(fp, params["w1"], b1, w2f, b2f, s2, t2)

    return out[:B]


# ----------------------------------------------------------------------------
# Plain-JAX reference (unfused, mirrors the PyTorch forward in eval mode)
# ----------------------------------------------------------------------------
def fp_encoder_reference(fp, p):
    def bn(x, gamma, beta, mean, var):
        return (x - mean) / jnp.sqrt(var + BN_EPS) * gamma + beta

    h = fp @ p["w1"] + p["b1"]                     # Linear(init_dim, 512)
    h = jax.nn.relu(h)                             # Dropout (identity) + ReLU
    h = bn(h, p["bn1_gamma"], p["bn1_beta"], p["bn1_mean"], p["bn1_var"])
    h = h @ p["w2"] + p["b2"]                      # Linear(512, 512)
    h = jax.nn.relu(h)                             # ReLU (end of fc2)
    h = bn(h, p["bn2_gamma"], p["bn2_beta"], p["bn2_mean"], p["bn2_var"])
    return jax.nn.relu(h)                          # outer act_func


# ----------------------------------------------------------------------------
# Parameter construction (xavier_uniform weights, zero biases as in init_emb;
# non-default BatchNorm running stats to exercise the BN-folding path).
# ----------------------------------------------------------------------------
def init_params(key, init_dim, emb_dim):
    ks = jax.random.split(key, 10)

    def xavier(k, shape):
        fan_in, fan_out = shape
        bound = jnp.sqrt(6.0 / (fan_in + fan_out))
        return jax.random.uniform(k, shape, jnp.float32, -bound, bound)

    D, E = init_dim, emb_dim
    return {
        "w1": xavier(ks[0], (D, E)),               # Linear(init_dim, 512), [in,out]
        "b1": jnp.zeros((E,), jnp.float32),
        "w2": xavier(ks[1], (E, E)),               # Linear(512, 512), [in,out]
        "b2": jnp.zeros((E,), jnp.float32),
        # BatchNorm1d inside fc2 (inference running stats)
        "bn1_gamma": jax.random.uniform(ks[2], (E,), jnp.float32, 0.5, 1.5),
        "bn1_beta": 0.1 * jax.random.normal(ks[3], (E,), jnp.float32),
        "bn1_mean": 0.1 * jax.random.normal(ks[4], (E,), jnp.float32),
        "bn1_var": jax.random.uniform(ks[5], (E,), jnp.float32, 0.5, 1.5),
        # outer BatchNorm1d(emb_dim)
        "bn2_gamma": jax.random.uniform(ks[6], (E,), jnp.float32, 0.5, 1.5),
        "bn2_beta": 0.1 * jax.random.normal(ks[7], (E,), jnp.float32),
        "bn2_mean": 0.1 * jax.random.normal(ks[8], (E,), jnp.float32),
        "bn2_var": jax.random.uniform(ks[9], (E,), jnp.float32, 0.5, 1.5),
    }


if __name__ == "__main__":
    # fp_type = ['morgan', 'maccs', 'rdkit']  ->  init_dim = 2048 + 167 + 2048
    init_dim = MORGAN_DIM + MACCS_DIM + RDKIT_DIM      # 4263
    emb_dim = 512          # fc2 outputs 512; outer BatchNorm1d(emb_dim) => emb_dim == 512
    B = 16
    block_b = 8

    key = jax.random.PRNGKey(0)
    kx, kp = jax.random.split(key)
    # Deterministic stand-in for generate_fingerprints(): binary bit vector.
    fp = jax.random.bernoulli(kx, 0.1, (B, init_dim)).astype(jnp.float32)
    params = init_params(kp, init_dim, emb_dim)

    out = fp_encoder_forward(fp, params, block_b=block_b)
    out = jax.block_until_ready(out)

    ref = fp_encoder_reference(fp, params)
    assert out.shape == (B, emb_dim)
    assert bool(jnp.allclose(out, ref, atol=5e-3, rtol=5e-3)), (
        float(jnp.max(jnp.abs(out - ref))))

    print("KERNEL_OK")
</pallas_src>

<mosaic_0001>
module attributes {stable_mosaic.version = 11 : i64} {
  func.func @fp_encoder_kernel(%arg0: i32, %arg1: memref<8x4263xf32, #tpu.memory_space<vmem>>, %arg2: memref<4263x512xf32, #tpu.memory_space<vmem>>, %arg3: memref<1x512xf32, #tpu.memory_space<vmem>>, %arg4: memref<512x512xf32, #tpu.memory_space<vmem>>, %arg5: memref<1x512xf32, #tpu.memory_space<vmem>>, %arg6: memref<1x512xf32, #tpu.memory_space<vmem>>, %arg7: memref<1x512xf32, #tpu.memory_space<vmem>>, %arg8: memref<8x512xf32, #tpu.memory_space<vmem>>) attributes {dimension_semantics = [#tpu.dimension_semantics<parallel>], iteration_bounds = array<i64: 2>, scalar_prefetch = 0 : i64, scratch_operands = 0 : i64, tpu.core_type = #tpu.core_type<tc>, window_params = [{transform_indices = @transform_0, window_bounds = array<i64: 8, 4263>}, {pipeline_mode = #tpu.pipeline_mode<synchronous>, transform_indices = @transform_1, window_bounds = array<i64: 4263, 512>}, {pipeline_mode = #tpu.pipeline_mode<synchronous>, transform_indices = @transform_2, window_bounds = array<i64: 1, 512>}, {pipeline_mode = #tpu.pipeline_mode<synchronous>, transform_indices = @transform_3, window_bounds = array<i64: 512, 512>}, {pipeline_mode = #tpu.pipeline_mode<synchronous>, transform_indices = @transform_4, window_bounds = array<i64: 1, 512>}, {pipeline_mode = #tpu.pipeline_mode<synchronous>, transform_indices = @transform_5, window_bounds = array<i64: 1, 512>}, {pipeline_mode = #tpu.pipeline_mode<synchronous>, transform_indices = @transform_6, window_bounds = array<i64: 1, 512>}, {transform_indices = @transform_7, window_bounds = array<i64: 8, 512>}]} {
    %c0 = arith.constant 0 : index
    %c0_0 = arith.constant 0 : index
    %0 = vector.load %arg1[%c0, %c0_0] : memref<8x4263xf32, #tpu.memory_space<vmem>>, vector<8x4263xf32>
    %c0_1 = arith.constant 0 : index
    %c0_2 = arith.constant 0 : index
    %1 = vector.load %arg2[%c0_1, %c0_2] : memref<4263x512xf32, #tpu.memory_space<vmem>>, vector<4263x512xf32>
    %cst = arith.constant dense<0.000000e+00> : vector<8x512xf32>
    %2 = tpu.matmul %0, %1, %cst {dimension_numbers = #tpu.dot_dimension_numbers<[1], [0], [0], [1], [0, 0, 1, 1], [], []>} : vector<8x4263xf32>, vector<4263x512xf32>, vector<8x512xf32> -> vector<8x512xf32>
    %c0_3 = arith.constant 0 : index
    %c0_4 = arith.constant 0 : index
    %3 = vector.load %arg3[%c0_3, %c0_4] : memref<1x512xf32, #tpu.memory_space<vmem>>, vector<1x512xf32>
    %4 = vector.broadcast %3 : vector<1x512xf32> to vector<8x512xf32>
    %5 = arith.addf %2, %4 : vector<8x512xf32>
    %cst_5 = arith.constant 0.000000e+00 : f32
    %6 = vector.broadcast %cst_5 : f32 to vector<8x512xf32>
    %7 = arith.maximumf %5, %6 : vector<8x512xf32>
    %c0_6 = arith.constant 0 : index
    %c0_7 = arith.constant 0 : index
    %8 = vector.load %arg4[%c0_6, %c0_7] : memref<512x512xf32, #tpu.memory_space<vmem>>, vector<512x512xf32>
    %cst_8 = arith.constant dense<0.000000e+00> : vector<8x512xf32>
    %9 = tpu.matmul %7, %8, %cst_8 {dimension_numbers = #tpu.dot_dimension_numbers<[1], [0], [0], [1], [0, 0, 1, 1], [], []>} : vector<8x512xf32>, vector<512x512xf32>, vector<8x512xf32> -> vector<8x512xf32>
    %c0_9 = arith.constant 0 : index
    %c0_10 = arith.constant 0 : index
    %10 = vector.load %arg5[%c0_9, %c0_10] : memref<1x512xf32, #tpu.memory_space<vmem>>, vector<1x512xf32>
    %11 = vector.broadcast %10 : vector<1x512xf32> to vector<8x512xf32>
    %12 = arith.addf %9, %11 : vector<8x512xf32>
    %cst_11 = arith.constant 0.000000e+00 : f32
    %13 = vector.broadcast %cst_11 : f32 to vector<8x512xf32>
    %14 = arith.maximumf %12, %13 : vector<8x512xf32>
    %c0_12 = arith.constant 0 : index
    %c0_13 = arith.constant 0 : index
    %15 = vector.load %arg6[%c0_12, %c0_13] : memref<1x512xf32, #tpu.memory_space<vmem>>, vector<1x512xf32>
    %16 = vector.broadcast %15 : vector<1x512xf32> to vector<8x512xf32>
    %17 = arith.mulf %14, %16 : vector<8x512xf32>
    %c0_14 = arith.constant 0 : index
    %c0_15 = arith.constant 0 : index
    %18 = vector.load %arg7[%c0_14, %c0_15] : memref<1x512xf32, #tpu.memory_space<vmem>>, vector<1x512xf32>
    %19 = vector.broadcast %18 : vector<1x512xf32> to vector<8x512xf32>
    %20 = arith.addf %17, %19 : vector<8x512xf32>
    %cst_16 = arith.constant 0.000000e+00 : f32
    %21 = vector.broadcast %cst_16 : f32 to vector<8x512xf32>
    %22 = arith.maximumf %20, %21 : vector<8x512xf32>
    %c0_17 = arith.constant 0 : index
    %c0_18 = arith.constant 0 : index
    %23 = vector.load %arg8[%c0_17, %c0_18] : memref<8x512xf32, #tpu.memory_space<vmem>>, vector<8x512xf32>
    tpu.vector_store %arg8[%c0_17, %c0_18], %22 {strides = array<i32>} : memref<8x512xf32, #tpu.memory_space<vmem>>, vector<8x512xf32>,
    return
  }
  func.func @transform_0(%arg0: i32) -> (i32, i32) {
    %c0_i32 = arith.constant 0 : i32
    %c0_i32_0 = arith.constant 0 : i32
    return %arg0, %c0_i32 : i32, i32
  }
  func.func @transform_1(%arg0: i32) -> (i32, i32) {
    %c0_i32 = arith.constant 0 : i32
    %c0_i32_0 = arith.constant 0 : i32
    %c0_i32_1 = arith.constant 0 : i32
    return %c0_i32, %c0_i32_0 : i32, i32
  }
  func.func @transform_2(%arg0: i32) -> (i32, i32) {
    %c0_i32 = arith.constant 0 : i32
    %c0_i32_0 = arith.constant 0 : i32
    %c0_i32_1 = arith.constant 0 : i32
    return %c0_i32, %c0_i32_0 : i32, i32
  }
  func.func @transform_3(%arg0: i32) -> (i32, i32) {
    %c0_i32 = arith.constant 0 : i32
    %c0_i32_0 = arith.constant 0 : i32
    %c0_i32_1 = arith.constant 0 : i32
    return %c0_i32, %c0_i32_0 : i32, i32
  }
  func.func @transform_4(%arg0: i32) -> (i32, i32) {
    %c0_i32 = arith.constant 0 : i32
    %c0_i32_0 = arith.constant 0 : i32
    %c0_i32_1 = arith.constant 0 : i32
    return %c0_i32, %c0_i32_0 : i32, i32
  }
  func.func @transform_5(%arg0: i32) -> (i32, i32) {
    %c0_i32 = arith.constant 0 : i32
    %c0_i32_0 = arith.constant 0 : i32
    %c0_i32_1 = arith.constant 0 : i32
    return %c0_i32, %c0_i32_0 : i32, i32
  }
  func.func @transform_6(%arg0: i32) -> (i32, i32) {
    %c0_i32 = arith.constant 0 : i32
    %c0_i32_0 = arith.constant 0 : i32
    %c0_i32_1 = arith.constant 0 : i32
    return %c0_i32, %c0_i32_0 : i32, i32
  }
  func.func @transform_7(%arg0: i32) -> (i32, i32) {
    %c0_i32 = arith.constant 0 : i32
    %c0_i32_0 = arith.constant 0 : i32
    return %arg0, %c0_i32 : i32, i32
  }
}

</mosaic_0001>

<llo_original>
// kernel: tpu_custom_call.1
$region0: #{tpu_custom_call.1}
  #allocation0 [shape = 'u32[]', space=smem, size = 0x4, offset = 0x4, fixed_abs, tag = 'smem constant byte address 0x4 - core index']
  #allocation1 [shape = 'u32[72,128]{1,0:T(1,128)}', space=vmem, size = 0x9000, scoped, tag = 'internal scratch']
  %s0 = inlined_call_operand.hbm [shape: f32[16,4263], index: 0, kind: input, shape index: {}]
  %s1 = inlined_call_operand.hbm [shape: f32[4263,512], index: 1, kind: input, shape index: {}]
  %s2 = inlined_call_operand.hbm [shape: f32[1,512], index: 2, kind: input, shape index: {}]
  %s3 = inlined_call_operand.hbm [shape: f32[512,512], index: 3, kind: input, shape index: {}]
  %s4 = inlined_call_operand.hbm [shape: f32[1,512], index: 4, kind: input, shape index: {}]
  %s5 = inlined_call_operand.hbm [shape: f32[1,512], index: 5, kind: input, shape index: {}]
  %s6 = inlined_call_operand.hbm [shape: f32[1,512], index: 6, kind: input, shape index: {}]
  %s7 = inlined_call_operand.hbm [shape: f32[16,512], index: 7, kind: output, shape index: {}]
  %s8 = sld [smem:[#allocation0]]
  $region89: #{tpu_custom_call.1} parent=0
    _
  %s10 = ssub.s32 1, %s8
  %s11 = scalar_select 0, %s10, %s8
  $region1: #{tpu_custom_call.1} parent=0
    #allocation2 [shape = 'u8[278528]{0}', space=vmem, size = 0x44000, scoped, tag = 'input window, operand 0']
    #allocation3 [shape = 's32[2]{0}', space=sflag, size = 0x8, scoped, tag = 'scoped memory for tpu_custom_call.1']
    #allocation4 [shape = 's32[2]{0}', space=sflag, size = 0x8, scoped, tag = 'scoped memory for tpu_custom_call.1']
    #allocation5 [shape = 'u8[8732672]{0}', space=vmem, size = 0x854000, scoped, tag = 'input window, operand 1, single buffered']
    #allocation6 [shape = 's32[1]{0}', space=sflag, size = 0x4, scoped, tag = 'scoped memory for tpu_custom_call.1']
    #allocation7 [shape = 'u8[2048]{0}', space=vmem, size = 0x800, scoped, tag = 'input window, operand 2, single buffered']
    #allocation8 [shape = 'u8[1048576]{0}', space=vmem, size = 0x100000, scoped, tag = 'input window, operand 3, single buffered']
    #allocation9 [shape = 's32[1]{0}', space=sflag, size = 0x4, scoped, tag = 'scoped memory for tpu_custom_call.1']
    #allocation10 [shape = 'u8[2048]{0}', space=vmem, size = 0x800, scoped, tag = 'input window, operand 4, single buffered']
    #allocation11 [shape = 'u8[2048]{0}', space=vmem, size = 0x800, scoped, tag = 'input window, operand 5, single buffered']
    #allocation12 [shape = 's32[1]{0}', space=sflag, size = 0x4, scoped, tag = 'scoped memory for tpu_custom_call.1']
    #allocation13 [shape = 'u8[2048]{0}', space=vmem, size = 0x800, scoped, tag = 'input window, operand 6, single buffered']
    #allocation14 [shape = 'u8[32768]{0}', space=vmem, size = 0x8000, scoped, tag = 'output window, operand 0']
    %12 = vsyncpa [#allocation3], 0
    %s13 = scalar_lea.sflag [#allocation3], 1
    %14 = vsyncpa %s13, 0
    %15 = vsyncpa [#allocation6], 0
    %16 = vsyncpa [#allocation9], 0
    %17 = vsyncpa [#allocation12], 0
    %18 = vsyncpa [#allocation4], 0
    %s19 = scalar_lea.sflag [#allocation4], 1
    %20 = vsyncpa %s19, 0
    loop: start=0, step=1, limit=4
    $region2: #{tpu_custom_call.1} parent=1 // loop_pre_header
      _
    $region3: #{tpu_custom_call.1} parent=1 // loop_header
      %s22 = sphi 0, %s26
      %p23 = scmp.ge.s32.totalorder %s22, 4
      %s32 = sphi 0, %s34
      %s35 = sphi 0, %s32
      %s36 = sphi 0, %s35
      %s52 = sphi 0, %s36
      %s56 = sphi 0, %s56
      %s58 = sphi 0, %s56
      %s59 = sphi 0, %s58
      %s73 = sphi 0, %s59
      %s77 = sphi 0, %s77
      %s79 = sphi 0, %s77
      %s80 = sphi 0, %s79
      %s94 = sphi 0, %s80
      %s98 = sphi 0, %s98
      %s100 = sphi 0, %s98
      %s101 = sphi 0, %s100
      %s115 = sphi 0, %s101
      %s119 = sphi 0, %s119
      %s121 = sphi 0, %s119
      %s122 = sphi 0, %s121
      %s136 = sphi 0, %s122
      %s140 = sphi 0, %s140
      %s142 = sphi 0, %s140
      %s143 = sphi 0, %s142
      %s157 = sphi 0, %s143
      %s161 = sphi 0, %s161
      %s163 = sphi 0, %s161
      %s164 = sphi 0, %s163
      %s178 = sphi 0, %s164
      %s184 = sphi 0, %s186
      %s187 = sphi 0, %s184
      %s188 = sphi 0, %s187
      %s204 = sphi 0, %s188
    $region4: #{tpu_custom_call.1} parent=1 // loop_header_branch
      %25 = sbr.rel (%p23) target = $region8
    $region5: #{tpu_custom_call.1} parent=1 // loop_body
      %s27 = ssub.s32 %s22, 1
      %s28 = ssub.s32 %s22, 2
      %s29 = sadd.s32 %s22, 1
      %s30 = ssub.s32 %s22, %s29
      %p31 = scmp.eq.s32.totalorder %s30, 0
      %s33 = sadd.s32 %s32, 1
      %s34 = scalar_select %p31, %s32, %s33
      %p37 = pneg %p31
      %p38 = scmp.eq.s32.totalorder %s22, 1
      %p39 = por %p37, %p38
      %p40 = scmp.ne.s32.totalorder %s32, %s35
      %p41 = scmp.eq.s32.totalorder %s22, 0
      %p42 = por %p40, %p41
      %p43 = scmp.ne.s32.totalorder %s32, %s35
      %p44 = scmp.eq.s32.totalorder %s27, 1
      %p45 = por %p43, %p44
      %p46 = scmp.ne.s32.totalorder %s35, %s36
      %p47 = scmp.eq.s32.totalorder %s27, 0
      %p48 = por %p46, %p47
      %p49 = scmp.ne.s32.totalorder %s35, %s36
      %p50 = scmp.eq.s32.totalorder %s28, 1
      %p51 = por %p49, %p50
      %p53 = scmp.ne.s32.totalorder %s36, %s52
      %p54 = scmp.eq.s32.totalorder %s28, 0
      %p55 = por %p53, %p54
      %s57 = sadd.s32 %s56, 1
      %p60 = scmp.eq.s32.totalorder %s22, 1
      %p61 = scmp.ne.s32.totalorder %s56, %s58
      %p62 = scmp.eq.s32.totalorder %s22, 0
      %p63 = por %p61, %p62
      %p64 = scmp.ne.s32.totalorder %s56, %s58
      %p65 = scmp.eq.s32.totalorder %s27, 1
      %p66 = por %p64, %p65
      %p67 = scmp.ne.s32.totalorder %s58, %s59
      %p68 = scmp.eq.s32.totalorder %s27, 0
      %p69 = por %p67, %p68
      %p70 = scmp.ne.s32.totalorder %s58, %s59
      %p71 = scmp.eq.s32.totalorder %s28, 1
      %p72 = por %p70, %p71
      %p74 = scmp.ne.s32.totalorder %s59, %s73
      %p75 = scmp.eq.s32.totalorder %s28, 0
      %p76 = por %p74, %p75
      %s78 = sadd.s32 %s77, 1
      %p81 = scmp.eq.s32.totalorder %s22, 1
      %p82 = scmp.ne.s32.totalorder %s77, %s79
      %p83 = scmp.eq.s32.totalorder %s22, 0
      %p84 = por %p82, %p83
      %p85 = scmp.ne.s32.totalorder %s77, %s79
      %p86 = scmp.eq.s32.totalorder %s27, 1
      %p87 = por %p85, %p86
      %p88 = scmp.ne.s32.totalorder %s79, %s80
      %p89 = scmp.eq.s32.totalorder %s27, 0
      %p90 = por %p88, %p89
      %p91 = scmp.ne.s32.totalorder %s79, %s80
      %p92 = scmp.eq.s32.totalorder %s28, 1
      %p93 = por %p91, %p92
      %p95 = scmp.ne.s32.totalorder %s80, %s94
      %p96 = scmp.eq.s32.totalorder %s28, 0
      %p97 = por %p95, %p96
      %s99 = sadd.s32 %s98, 1
      %p102 = scmp.eq.s32.totalorder %s22, 1
      %p103 = scmp.ne.s32.totalorder %s98, %s100
      %p104 = scmp.eq.s32.totalorder %s22, 0
      %p105 = por %p103, %p104
      %p106 = scmp.ne.s32.totalorder %s98, %s100
      %p107 = scmp.eq.s32.totalorder %s27, 1
      %p108 = por %p106, %p107
      %p109 = scmp.ne.s32.totalorder %s100, %s101
      %p110 = scmp.eq.s32.totalorder %s27, 0
      %p111 = por %p109, %p110
      %p112 = scmp.ne.s32.totalorder %s100, %s101
      %p113 = scmp.eq.s32.totalorder %s28, 1
      %p114 = por %p112, %p113
      %p116 = scmp.ne.s32.totalorder %s101, %s115
      %p117 = scmp.eq.s32.totalorder %s28, 0
      %p118 = por %p116, %p117
      %s120 = sadd.s32 %s119, 1
      %p123 = scmp.eq.s32.totalorder %s22, 1
      %p124 = scmp.ne.s32.totalorder %s119, %s121
      %p125 = scmp.eq.s32.totalorder %s22, 0
      %p126 = por %p124, %p125
      %p127 = scmp.ne.s32.totalorder %s119, %s121
      %p128 = scmp.eq.s32.totalorder %s27, 1
      %p129 = por %p127, %p128
      %p130 = scmp.ne.s32.totalorder %s121, %s122
      %p131 = scmp.eq.s32.totalorder %s27, 0
      %p132 = por %p130, %p131
      %p133 = scmp.ne.s32.totalorder %s121, %s122
      %p134 = scmp.eq.s32.totalorder %s28, 1
      %p135 = por %p133, %p134
      %p137 = scmp.ne.s32.totalorder %s122, %s136
      %p138 = scmp.eq.s32.totalorder %s28, 0
      %p139 = por %p137, %p138
      %s141 = sadd.s32 %s140, 1
      %p144 = scmp.eq.s32.totalorder %s22, 1
      %p145 = scmp.ne.s32.totalorder %s140, %s142
      %p146 = scmp.eq.s32.totalorder %s22, 0
      %p147 = por %p145, %p146
      %p148 = scmp.ne.s32.totalorder %s140, %s142
      %p149 = scmp.eq.s32.totalorder %s27, 1
      %p150 = por %p148, %p149
      %p151 = scmp.ne.s32.totalorder %s142, %s143
      %p152 = scmp.eq.s32.totalorder %s27, 0
      %p153 = por %p151, %p152
      %p154 = scmp.ne.s32.totalorder %s142, %s143
      %p155 = scmp.eq.s32.totalorder %s28, 1
      %p156 = por %p154, %p155
      %p158 = scmp.ne.s32.totalorder %s143, %s157
      %p159 = scmp.eq.s32.totalorder %s28, 0
      %p160 = por %p158, %p159
      %s162 = sadd.s32 %s161, 1
      %p165 = scmp.eq.s32.totalorder %s22, 1
      %p166 = scmp.ne.s32.totalorder %s161, %s163
      %p167 = scmp.eq.s32.totalorder %s22, 0
      %p168 = por %p166, %p167
      %p169 = scmp.ne.s32.totalorder %s161, %s163
      %p170 = scmp.eq.s32.totalorder %s27, 1
      %p171 = por %p169, %p170
      %p172 = scmp.ne.s32.totalorder %s163, %s164
      %p173 = scmp.eq.s32.totalorder %s27, 0
      %p174 = por %p172, %p173
      %p175 = scmp.ne.s32.totalorder %s163, %s164
      %p176 = scmp.eq.s32.totalorder %s28, 1
      %p177 = por %p175, %p176
      %p179 = scmp.ne.s32.totalorder %s164, %s178
      %p180 = scmp.eq.s32.totalorder %s28, 0
      %p181 = por %p179, %p180
      %s182 = ssub.s32 %s22, %s29
      %p183 = scmp.eq.s32.totalorder %s182, 0
      %s185 = sadd.s32 %s184, 1
      %s186 = scalar_select %p183, %s184, %s185
      %p189 = pneg %p183
      %p190 = scmp.eq.s32.totalorder %s22, 1
      %p191 = por %p189, %p190
      %p192 = scmp.ne.s32.totalorder %s184, %s187
      %p193 = scmp.eq.s32.totalorder %s22, 0
      %p194 = por %p192, %p193
      %p195 = scmp.ne.s32.totalorder %s184, %s187
      %p196 = scmp.eq.s32.totalorder %s27, 1
      %p197 = por %p195, %p196
      %p198 = scmp.ne.s32.totalorder %s187, %s188
      %p199 = scmp.eq.s32.totalorder %s27, 0
      %p200 = por %p198, %p199
      %p201 = scmp.ne.s32.totalorder %s187, %s188
      %p202 = scmp.eq.s32.totalorder %s28, 1
      %p203 = por %p201, %p202
      %p205 = scmp.ne.s32.totalorder %s188, %s204
      %p206 = scmp.eq.s32.totalorder %s28, 0
      %p207 = por %p205, %p206
      %p208 = scmp.le.s32.totalorder 1, %s22
      %p209 = scmp.lt.s32.totalorder %s22, 3
      %p210 = pnand %p208, %p209
      %p211 = pneg %p210
      // Predicated region
      $region9: #{tpu_custom_call.1} parent=5 // pred_check
        _
      $region10: #{tpu_custom_call.1} parent=5 // pred_check_branch
        %213 = sbr.rel (%p210) target = $region12
      $region11: #{tpu_custom_call.1} parent=5 // pred_region
        %s214 = ssub.s32 %s22, 1
        // Predicated region
        $region13: #{tpu_custom_call.1} parent=11 // pred_check
          %p215 = pneg %p69
        $region14: #{tpu_custom_call.1} parent=11 // pred_check_branch
          %217 = sbr.rel (%p215) target = $region16
        $region15: #{tpu_custom_call.1} parent=11 // pred_region
          %219 = vsyncadd [#allocation6], 0
          %s220 = sshll.u32 %s1, 4
          %s221 = int_to_ptr.hbm [resolvable:$true] %s220
          %s222 = sshll.u32 [#allocation5], 4
          %s223 = int_to_ptr.vmem [resolvable:$true] %s222
          %228 = dma.hbm_to_vmem [thread:$0]  %s221, 272896, %s223, [#allocation6], 512, 512, 32
        $region16: #{tpu_custom_call.1} parent=11 // pred_fallthru
          _
        // Predicated region
        $region17: #{tpu_custom_call.1} parent=11 // pred_check
          %p229 = pneg %p90
        $region18: #{tpu_custom_call.1} parent=11 // pred_check_branch
          %231 = sbr.rel (%p229) target = $region20
        $region19: #{tpu_custom_call.1} parent=11 // pred_region
          %233 = vsyncadd [#allocation6], 0
          %s235 = sshll.u32 %s2, 4
          %s236 = int_to_ptr.hbm [resolvable:$true] %s235
          %s237 = sshll.u32 [#allocation7], 4
          %s238 = int_to_ptr.vmem [resolvable:$true] %s237
          %240 = dma.hbm_to_vmem [thread:$0]  %s236, 64, %s238, [#allocation6]
        $region20: #{tpu_custom_call.1} parent=11 // pred_fallthru
          _
        // Predicated region
        $region21: #{tpu_custom_call.1} parent=11 // pred_check
          %p241 = pneg %p111
        $region22: #{tpu_custom_call.1} parent=11 // pred_check_branch
          %243 = sbr.rel (%p241) target = $region24
        $region23: #{tpu_custom_call.1} parent=11 // pred_region
          %245 = vsyncadd [#allocation9], 0
          %s246 = sshll.u32 %s3, 4
          %s247 = int_to_ptr.hbm [resolvable:$true] %s246
          %s248 = sshll.u32 [#allocation8], 4
          %s249 = int_to_ptr.vmem [resolvable:$true] %s248
          %254 = dma.hbm_to_vmem [thread:$0]  %s247, 32768, %s249, [#allocation9], 512, 512, 32
        $region24: #{tpu_custom_call.1} parent=11 // pred_fallthru
          _
        // Predicated region
        $region25: #{tpu_custom_call.1} parent=11 // pred_check
          %p255 = pneg %p132
        $region26: #{tpu_custom_call.1} parent=11 // pred_check_branch
          %257 = sbr.rel (%p255) target = $region28
        $region27: #{tpu_custom_call.1} parent=11 // pred_region
          %259 = vsyncadd [#allocation9], 0
          %s261 = sshll.u32 %s4, 4
          %s262 = int_to_ptr.hbm [resolvable:$true] %s261
          %s263 = sshll.u32 [#allocation10], 4
          %s264 = int_to_ptr.vmem [resolvable:$true] %s263
          %266 = dma.hbm_to_vmem [thread:$0]  %s262, 64, %s264, [#allocation9]
        $region28: #{tpu_custom_call.1} parent=11 // pred_fallthru
          _
        // Predicated region
        $region29: #{tpu_custom_call.1} parent=11 // pred_check
          %p267 = pneg %p153
        $region30: #{tpu_custom_call.1} parent=11 // pred_check_branch
          %269 = sbr.rel (%p267) target = $region32
        $region31: #{tpu_custom_call.1} parent=11 // pred_region
          %271 = vsyncadd [#allocation12], 0
          %s273 = sshll.u32 %s5, 4
          %s274 = int_to_ptr.hbm [resolvable:$true] %s273
          %s275 = sshll.u32 [#allocation11], 4
          %s276 = int_to_ptr.vmem [resolvable:$true] %s275
          %278 = dma.hbm_to_vmem [thread:$0]  %s274, 64, %s276, [#allocation12]
        $region32: #{tpu_custom_call.1} parent=11 // pred_fallthru
          _
        // Predicated region
        $region33: #{tpu_custom_call.1} parent=11 // pred_check
          %p279 = pneg %p174
        $region34: #{tpu_custom_call.1} parent=11 // pred_check_branch
          %281 = sbr.rel (%p279) target = $region36
        $region35: #{tpu_custom_call.1} parent=11 // pred_region
          %283 = vsyncadd [#allocation12], 0
          %s285 = sshll.u32 %s6, 4
          %s286 = int_to_ptr.hbm [resolvable:$true] %s285
          %s287 = sshll.u32 [#allocation13], 4
          %s288 = int_to_ptr.vmem [resolvable:$true] %s287
          %290 = dma.hbm_to_vmem [thread:$0]  %s286, 64, %s288, [#allocation12]
        $region36: #{tpu_custom_call.1} parent=11 // pred_fallthru
          _
      $region12: #{tpu_custom_call.1} parent=5 // pred_fallthru
        _
      %p291 = scmp.lt.s32.totalorder %s22, 2
      // Predicated region
      $region37: #{tpu_custom_call.1} parent=5 // pred_check
        %p292 = pneg %p291
      $region38: #{tpu_custom_call.1} parent=5 // pred_check_branch
        %294 = sbr.rel (%p292) target = $region40
      $region39: #{tpu_custom_call.1} parent=5 // pred_region
        // Predicated region
        $region41: #{tpu_custom_call.1} parent=39 // pred_check
          %p295 = pneg %p42
        $region42: #{tpu_custom_call.1} parent=39 // pred_check_branch
          %297 = sbr.rel (%p295) target = $region44
        $region43: #{tpu_custom_call.1} parent=39 // pred_region
          %s298 = sand.u32 %s32, 1
          %s299 = scalar_lea.sflag [#allocation3], %s298
          %s300 = sand.u32 %s32, 1
          %s301 = smul.addr %s300, 272
          %s302 = scalar_lea.vmem [#allocation2], %s301
          %304 = vsyncadd %s299, 0
          %s305 = smul.addr %s22, 34
          %s306 = smul.addr %s305, 8
          %s307 = scalar_lea.hbm %s0, %s306
          %s309 = sshll.u32 %s307, 4
          %s310 = int_to_ptr.hbm [resolvable:$true] %s309
          %s311 = sshll.u32 %s302, 4
          %s312 = int_to_ptr.vmem [resolvable:$true] %s311
          %314 = dma.hbm_to_vmem [thread:$0]  %s310, 4352, %s312, %s299
        $region44: #{tpu_custom_call.1} parent=39 // pred_fallthru
          _
      $region40: #{tpu_custom_call.1} parent=5 // pred_fallthru
        _
      %p315 = scmp.le.s32.totalorder 1, %s22
      %p316 = scmp.lt.s32.totalorder %s22, 3
      %p317 = pnand %p315, %p316
      %p318 = pneg %p317
      // Predicated region
      $region45: #{tpu_custom_call.1} parent=5 // pred_check
        _
      $region46: #{tpu_custom_call.1} parent=5 // pred_check_branch
        %320 = sbr.rel (%p317) target = $region48
      $region47: #{tpu_custom_call.1} parent=5 // pred_region
        %s321 = ssub.s32 %s22, 1
        %s322 = sand.u32 %s35, 1
        %s323 = scalar_lea.sflag [#allocation3], %s322
        %s324 = sand.u32 %s35, 1
        %s325 = smul.addr %s324, 272
        %s326 = scalar_lea.vmem [#allocation2], %s325
        // Predicated region
        $region49: #{tpu_custom_call.1} parent=47 // pred_check
          %p327 = pneg %p48
        $region50: #{tpu_custom_call.1} parent=47 // pred_check_branch
          %329 = sbr.rel (%p327) target = $region52
        $region51: #{tpu_custom_call.1} parent=47 // pred_region
          %331 = dma.done %s323, 4352
        $region52: #{tpu_custom_call.1} parent=47 // pred_fallthru
          _
        // Predicated region
        $region53: #{tpu_custom_call.1} parent=47 // pred_check
          %p332 = pneg %p69
        $region54: #{tpu_custom_call.1} parent=47 // pred_check_branch
          %334 = sbr.rel (%p332) target = $region56
        $region55: #{tpu_custom_call.1} parent=47 // pred_region
          %336 = dma.done [#allocation6], 272896
        $region56: #{tpu_custom_call.1} parent=47 // pred_fallthru
          _
        // Predicated region
        $region57: #{tpu_custom_call.1} parent=47 // pred_check
          %p337 = pneg %p90
        $region58: #{tpu_custom_call.1} parent=47 // pred_check_branch
          %339 = sbr.rel (%p337) target = $region60
        $region59: #{tpu_custom_call.1} parent=47 // pred_region
          %341 = dma.done [#allocation6], 64
        $region60: #{tpu_custom_call.1} parent=47 // pred_fallthru
          _
        // Predicated region
        $region61: #{tpu_custom_call.1} parent=47 // pred_check
          %p342 = pneg %p111
        $region62: #{tpu_custom_call.1} parent=47 // pred_check_branch
          %344 = sbr.rel (%p342) target = $region64
        $region63: #{tpu_custom_call.1} parent=47 // pred_region
          %346 = dma.done [#allocation9], 32768
        $region64: #{tpu_custom_call.1} parent=47 // pred_fallthru
          _
        // Predicated region
        $region65: #{tpu_custom_call.1} parent=47 // pred_check
          %p347 = pneg %p132
        $region66: #{tpu_custom_call.1} parent=47 // pred_check_branch
          %349 = sbr.rel (%p347) target = $region68
        $region67: #{tpu_custom_call.1} parent=47 // pred_region
          %351 = dma.done [#allocation9], 64
        $region68: #{tpu_custom_call.1} parent=47 // pred_fallthru
          _
        // Predicated region
        $region69: #{tpu_custom_call.1} parent=47 // pred_check
          %p352 = pneg %p153
        $region70: #{tpu_custom_call.1} parent=47 // pred_check_branch
          %354 = sbr.rel (%p352) target = $region72
        $region71: #{tpu_custom_call.1} parent=47 // pred_region
          %356 = dma.done [#allocation12], 64
        $region72: #{tpu_custom_call.1} parent=47 // pred_fallthru
          _
        // Predicated region
        $region73: #{tpu_custom_call.1} parent=47 // pred_check
          %p357 = pneg %p174
        $region74: #{tpu_custom_call.1} parent=47 // pred_check_branch
          %359 = sbr.rel (%p357) target = $region76
        $region75: #{tpu_custom_call.1} parent=47 // pred_region
          %361 = dma.done [#allocation12], 64
        $region76: #{tpu_custom_call.1} parent=47 // pred_fallthru
          _
        %s362 = sand.u32 %s35, 1
        %s363 = scalar_lea.sflag [#allocation3], %s362
        %s364 = sand.u32 %s35, 1
        %s365 = smul.addr %s364, 272
        %s366 = scalar_lea.vmem [#allocation2], %s365
        %p367 = pneg %p48
        %p368 = pneg %p45
        %p369 = pneg %p69
        %p370 = pneg %p66
        %p371 = pneg %p90
        %p372 = pneg %p87
        %p373 = pneg %p111
        %p374 = pneg %p108
        %p375 = pneg %p132
        %p376 = pneg %p129
        %p377 = pneg %p153
        %p378 = pneg %p150
        %p379 = pneg %p174
        %p380 = pneg %p171
        %p381 = pneg %p200
        %p382 = pneg %p197
        %s383 = sand.u32 %s187, 1
        %s384 = scalar_lea.sflag [#allocation4], %s383
        %s385 = sand.u32 %s187, 1
        %s386 = smul.addr %s385, 32
        %s387 = scalar_lea.vmem [#allocation14], %s386
        %v388 = vld [vmem:[%s326] sm:$0xff]
        %v389 = vld [vmem:[%s326 + $0x8] sm:$0xff]
        %v390 = vld [vmem:[%s326 + $0x10] sm:$0xff]
        %v391 = vld [vmem:[%s326 + $0x18] sm:$0xff]
        %v392 = vld [vmem:[%s326 + $0x20] sm:$0xff]
        %v393 = vld [vmem:[%s326 + $0x28] sm:$0xff]
        %v394 = vld [vmem:[%s326 + $0x30] sm:$0xff]
        %v395 = vld [vmem:[%s326 + $0x38] sm:$0xff]
        %v396 = vld [vmem:[%s326 + $0x40] sm:$0xff]
        %v397 = vld [vmem:[%s326 + $0x48] sm:$0xff]
        %v398 = vld [vmem:[%s326 + $0x50] sm:$0xff]
        %v399 = vld [vmem:[%s326 + $0x58] sm:$0xff]
        %v400 = vld [vmem:[%s326 + $0x60] sm:$0xff]
        %v401 = vld [vmem:[%s326 + $0x68] sm:$0xff]
        %v402 = vld [vmem:[%s326 + $0x70] sm:$0xff]
        %v403 = vld [vmem:[%s326 + $0x78] sm:$0xff]
        %v404 = vld [vmem:[%s326 + $0x80] sm:$0xff]
        %v405 = vld [vmem:[%s326 + $0x88] sm:$0xff]
        %v406 = vld [vmem:[%s326 + $0x90] sm:$0xff]
        %v407 = vld [vmem:[%s326 + $0x98] sm:$0xff]
        %v408 = vld [vmem:[%s326 + $0xa0] sm:$0xff]
        %v409 = vld [vmem:[%s326 + $0xa8] sm:$0xff]
        %v410 = vld [vmem:[%s326 + $0xb0] sm:$0xff]
        %v411 = vld [vmem:[%s326 + $0xb8] sm:$0xff]
        %v412 = vld [vmem:[%s326 + $0xc0] sm:$0xff]
        %v413 = vld [vmem:[%s326 + $0xc8] sm:$0xff]
        %v414 = vld [vmem:[%s326 + $0xd0] sm:$0xff]
        %v415 = vld [vmem:[%s326 + $0xd8] sm:$0xff]
        %v416 = vld [vmem:[%s326 + $0xe0] sm:$0xff]
        %v417 = vld [vmem:[%s326 + $0xe8] sm:$0xff]
        %v418 = vld [vmem:[%s326 + $0xf0] sm:$0xff]
        %v419 = vld [vmem:[%s326 + $0xf8] sm:$0xff]
        %v420 = vld [vmem:[%s326 + $0x100] sm:$0xff]
        %v421 = vld [vmem:[%s326 + $0x108] sm:$0xff]
        %v422 = vld [vmem:[#allocation5] sm:$0xff]
        %v423 = vld [vmem:[#allocation5 + $0x8] sm:$0xff]
        %v424 = vld [vmem:[#allocation5 + $0x10] sm:$0xff]
        %v425 = vld [vmem:[#allocation5 + $0x18] sm:$0xff]
        %v426 = vld [vmem:[#allocation5 + $0x20] sm:$0xff]
        %v427 = vld [vmem:[#allocation5 + $0x28] sm:$0xff]
        %v428 = vld [vmem:[#allocation5 + $0x30] sm:$0xff]
        %v429 = vld [vmem:[#allocation5 + $0x38] sm:$0xff]
        %v430 = vld [vmem:[#allocation5 + $0x40] sm:$0xff]
        %v431 = vld [vmem:[#allocation5 + $0x48] sm:$0xff]
        %v432 = vld [vmem:[#allocation5 + $0x50] sm:$0xff]
        %v433 = vld [vmem:[#allocation5 + $0x58] sm:$0xff]
        %v434 = vld [vmem:[#allocation5 + $0x60] sm:$0xff]
        %v435 = vld [vmem:[#allocation5 + $0x68] sm:$0xff]
        %v436 = vld [vmem:[#allocation5 + $0x70] sm:$0xff]
        %v437 = vld [vmem:[#allocation5 + $0x78] sm:$0xff]
        %v438 = vld [vmem:[#allocation5 + $0x80] sm:$0xff]
        %v439 = vld [vmem:[#allocation5 + $0x88] sm:$0xff]
        %v440 = vld [vmem:[#allocation5 + $0x90] sm:$0xff]
        %v441 = vld [vmem:[#allocation5 + $0x98] sm:$0xff]
        %v442 = vld [vmem:[#allocation5 + $0xa0] sm:$0xff]
        %v443 = vld [vmem:[#allocation5 + $0xa8] sm:$0xff]
        %v444 = vld [vmem:[#allocation5 + $0xb0] sm:$0xff]
        %v445 = vld [vmem:[#allocation5 + $0xb8] sm:$0xff]
        %v446 = vld [vmem:[#allocation5 + $0xc0] sm:$0xff]
        %v447 = vld [vmem:[#allocation5 + $0xc8] sm:$0xff]
        %v448 = vld [vmem:[#allocation5 + $0xd0] sm:$0xff]
        %v449 = vld [vmem:[#allocation5 + $0xd8] sm:$0xff]
        %v450 = vld [vmem:[#allocation5 + $0xe0] sm:$0xff]
        %v451 = vld [vmem:[#allocation5 + $0xe8] sm:$0xff]
        %v452 = vld [vmem:[#allocation5 + $0xf0] sm:$0xff]
        %v453 = vld [vmem:[#allocation5 + $0xf8] sm:$0xff]
        %v454 = vld [vmem:[#allocation5 + $0x100] sm:$0xff]
        %v455 = vld [vmem:[#allocation5 + $0x108] sm:$0xff]
        %v456 = vld [vmem:[#allocation5 + $0x110] sm:$0xff]
        %v457 = vld [vmem:[#allocation5 + $0x118] sm:$0xff]
        %v458 = vld [vmem:[#allocation5 + $0x120] sm:$0xff]
        %v459 = vld [vmem:[#allocation5 + $0x128] sm:$0xff]
        %v460 = vld [vmem:[#allocation5 + $0x130] sm:$0xff]
        %v461 = vld [vmem:[#allocation5 + $0x138] sm:$0xff]
        %v462 = vld [vmem:[#allocation5 + $0x140] sm:$0xff]
        %v463 = vld [vmem:[#allocation5 + $0x148] sm:$0xff]
        %v464 = vld [vmem:[#allocation5 + $0x150] sm:$0xff]
        %v465 = vld [vmem:[#allocation5 + $0x158] sm:$0xff]
        %v466 = vld [vmem:[#allocation5 + $0x160] sm:$0xff]
        %v467 = vld [vmem:[#allocation5 + $0x168] sm:$0xff]
        %v468 = vld [vmem:[#allocation5 + $0x170] sm:$0xff]
        %v469 = vld [vmem:[#allocation5 + $0x178] sm:$0xff]
        %v470 = vld [vmem:[#allocation5 + $0x180] sm:$0xff]
        %v471 = vld [vmem:[#allocation5 + $0x188] sm:$0xff]
        %v472 = vld [vmem:[#allocation5 + $0x190] sm:$0xff]
        %v473 = vld [vmem:[#allocation5 + $0x198] sm:$0xff]
        %v474 = vld [vmem:[#allocation5 + $0x1a0] sm:$0xff]
        %v475 = vld [vmem:[#allocation5 + $0x1a8] sm:$0xff]
        %v476 = vld [vmem:[#allocation5 + $0x1b0] sm:$0xff]
        %v477 = vld [vmem:[#allocation5 + $0x1b8] sm:$0xff]
        %v478 = vld [vmem:[#allocation5 + $0x1c0] sm:$0xff]
        %v479 = vld [vmem:[#allocation5 + $0x1c8] sm:$0xff]
        %v480 = vld [vmem:[#allocation5 + $0x1d0] sm:$0xff]
        %v481 = vld [vmem:[#allocation5 + $0x1d8] sm:$0xff]
        %v482 = vld [vmem:[#allocation5 + $0x1e0] sm:$0xff]
        %v483 = vld [vmem:[#allocation5 + $0x1e8] sm:$0xff]
        %v484 = vld [vmem:[#allocation5 + $0x1f0] sm:$0xff]
        %v485 = vld [vmem:[#allocation5 + $0x1f8] sm:$0xff]
        %v486 = vld [vmem:[#allocation5 + $0x200] sm:$0xff]
        %v487 = vld [vmem:[#allocation5 + $0x208] sm:$0xff]
        %v488 = vld [vmem:[#allocation5 + $0x210] sm:$0xff]
        %v489 = vld [vmem:[#allocation5 + $0x218] sm:$0xff]
        %v490 = vld [vmem:[#allocation5 + $0x220] sm:$0xff]
        %v491 = vld [vmem:[#allocation5 + $0x228] sm:$0xff]
        %v492 = vld [vmem:[#allocation5 + $0x230] sm:$0xff]
        %v493 = vld [vmem:[#allocation5 + $0x238] sm:$0xff]
        %v494 = vld [vmem:[#allocation5 + $0x240] sm:$0xff]
        %v495 = vld [vmem:[#allocation5 + $0x248] sm:$0xff]
        %v496 = vld [vmem:[#allocation5 + $0x250] sm:$0xff]
        %v497 = vld [vmem:[#allocation5 + $0x258] sm:$0xff]
        %v498 = vld [vmem:[#allocation5 + $0x260] sm:$0xff]
        %v499 = vld [vmem:[#allocation5 + $0x268] sm:$0xff]
        %v500 = vld [vmem:[#allocation5 + $0x270] sm:$0xff]
        %v501 = vld [vmem:[#allocation5 + $0x278] sm:$0xff]
        %v502 = vld [vmem:[#allocation5 + $0x280] sm:$0xff]
        %v503 = vld [vmem:[#allocation5 + $0x288] sm:$0xff]
        %v504 = vld [vmem:[#allocation5 + $0x290] sm:$0xff]
        %v505 = vld [vmem:[#allocation5 + $0x298] sm:$0xff]
        %v506 = vld [vmem:[#allocation5 + $0x2a0] sm:$0xff]
        %v507 = vld [vmem:[#allocation5 + $0x2a8] sm:$0xff]
        %v508 = vld [vmem:[#allocation5 + $0x2b0] sm:$0xff]
        %v509 = vld [vmem:[#allocation5 + $0x2b8] sm:$0xff]
        %v510 = vld [vmem:[#allocation5 + $0x2c0] sm:$0xff]
        %v511 = vld [vmem:[#allocation5 + $0x2c8] sm:$0xff]
        %v512 = vld [vmem:[#allocation5 + $0x2d0] sm:$0xff]
        %v513 = vld [vmem:[#allocation5 + $0x2d8] sm:$0xff]
        %v514 = vld [vmem:[#allocation5 + $0x2e0] sm:$0xff]
        %v515 = vld [vmem:[#allocation5 + $0x2e8] sm:$0xff]
        %v516 = vld [vmem:[#allocation5 + $0x2f0] sm:$0xff]
        %v517 = vld [vmem:[#allocation5 + $0x2f8] sm:$0xff]
        %v518 = vld [vmem:[#allocation5 + $0x300] sm:$0xff]
        %v519 = vld [vmem:[#allocation5 + $0x308] sm:$0xff]
        %v520 = vld [vmem:[#allocation5 + $0x310] sm:$0xff]
        %v521 = vld [vmem:[#allocation5 + $0x318] sm:$0xff]
        %v522 = vld [vmem:[#allocation5 + $0x320] sm:$0xff]
        %v523 = vld [vmem:[#allocation5 + $0x328] sm:$0xff]
        %v524 = vld [vmem:[#allocation5 + $0x330] sm:$0xff]
        %v525 = vld [vmem:[#allocation5 + $0x338] sm:$0xff]
        %v526 = vld [vmem:[#allocation5 + $0x340] sm:$0xff]
        %v527 = vld [vmem:[#allocation5 + $0x348] sm:$0xff]
        %v528 = vld [vmem:[#allocation5 + $0x350] sm:$0xff]
        %v529 = vld [vmem:[#allocation5 + $0x358] sm:$0xff]
        %v530 = vld [vmem:[#allocation5 + $0x360] sm:$0xff]
        %v531 = vld [vmem:[#allocation5 + $0x368] sm:$0xff]
        %v532 = vld [vmem:[#allocation5 + $0x370] sm:$0xff]
        %v533 = vld [vmem:[#allocation5 + $0x378] sm:$0xff]
        %v534 = vld [vmem:[#allocation5 + $0x380] sm:$0xff]
        %v535 = vld [vmem:[#allocation5 + $0x388] sm:$0xff]
        %v536 = vld [vmem:[#allocation5 + $0x390] sm:$0xff]
        %v537 = vld [vmem:[#allocation5 + $0x398] sm:$0xff]
        %v538 = vld [vmem:[#allocation5 + $0x3a0] sm:$0xff]
        %v539 = vld [vmem:[#allocation5 + $0x3a8] sm:$0xff]
        %v540 = vld [vmem:[#allocation5 + $0x3b0] sm:$0xff]
        %v541 = vld [vmem:[#allocation5 + $0x3b8] sm:$0xff]
        %v542 = vld [vmem:[#allocation5 + $0x3c0] sm:$0xff]
        %v543 = vld [vmem:[#allocation5 + $0x3c8] sm:$0xff]
        %v544 = vld [vmem:[#allocation5 + $0x3d0] sm:$0xff]
        %v545 = vld [vmem:[#allocation5 + $0x3d8] sm:$0xff]
        %v546 = vld [vmem:[#allocation5 + $0x3e0] sm:$0xff]
        %v547 = vld [vmem:[#allocation5 + $0x3e8] sm:$0xff]
        %v548 = vld [vmem:[#allocation5 + $0x3f0] sm:$0xff]
        %v549 = vld [vmem:[#allocation5 + $0x3f8] sm:$0xff]
        %v550 = vld [vmem:[#allocation5 + $0x400] sm:$0xff]
        %v551 = vld [vmem:[#allocation5 + $0x408] sm:$0xff]
        %v552 = vld [vmem:[#allocation5 + $0x410] sm:$0xff]
        %v553 = vld [vmem:[#allocation5 + $0x418] sm:$0xff]
        %v554 = vld [vmem:[#allocation5 + $0x420] sm:$0xff]
        %v555 = vld [vmem:[#allocation5 + $0x428] sm:$0xff]
        %v556 = vld [vmem:[#allocation5 + $0x430] sm:$0xff]
        %v557 = vld [vmem:[#allocation5 + $0x438] sm:$0xff]
        %v558 = vld [vmem:[#allocation5 + $0x440] sm:$0xff]
        %v559 = vld [vmem:[#allocation5 + $0x448] sm:$0xff]
        %v560 = vld [vmem:[#allocation5 + $0x450] sm:$0xff]
        %v561 = vld [vmem:[#allocation5 + $0x458] sm:$0xff]
        %v562 = vld [vmem:[#allocation5 + $0x460] sm:$0xff]
        %v563 = vld [vmem:[#allocation5 + $0x468] sm:$0xff]
        %v564 = vld [vmem:[#allocation5 + $0x470] sm:$0xff]
        %v565 = vld [vmem:[#allocation5 + $0x478] sm:$0xff]
        %v566 = vld [vmem:[#allocation5 + $0x480] sm:$0xff]
        %v567 = vld [vmem:[#allocation5 + $0x488] sm:$0xff]
        %v568 = vld [vmem:[#allocation5 + $0x490] sm:$0xff]
        %v569 = vld [vmem:[#allocation5 + $0x498] sm:$0xff]
        %v570 = vld [vmem:[#allocation5 + $0x4a0] sm:$0xff]
        %v571 = vld [vmem:[#allocation5 + $0x4a8] sm:$0xff]
        %v572 = vld [vmem:[#allocation5 + $0x4b0] sm:$0xff]
        %v573 = vld [vmem:[#allocation5 + $0x4b8] sm:$0xff]
        %v574 = vld [vmem:[#allocation5 + $0x4c0] sm:$0xff]
        %v575 = vld [vmem:[#allocation5 + $0x4c8] sm:$0xff]
        %v576 = vld [vmem:[#allocation5 + $0x4d0] sm:$0xff]
        %v577 = vld [vmem:[#allocation5 + $0x4d8] sm:$0xff]
        %v578 = vld [vmem:[#allocation5 + $0x4e0] sm:$0xff]
        %v579 = vld [vmem:[#allocation5 + $0x4e8] sm:$0xff]
        %v580 = vld [vmem:[#allocation5 + $0x4f0] sm:$0xff]
        %v581 = vld [vmem:[#allocation5 + $0x4f8] sm:$0xff]
        %v582 = vld [vmem:[#allocation5 + $0x500] sm:$0xff]
        %v583 = vld [vmem:[#allocation5 + $0x508] sm:$0xff]
        %v584 = vld [vmem:[#allocation5 + $0x510] sm:$0xff]
        %v585 = vld [vmem:[#allocation5 + $0x518] sm:$0xff]
        %v586 = vld [vmem:[#allocation5 + $0x520] sm:$0xff]
        %v587 = vld [vmem:[#allocation5 + $0x528] sm:$0xff]
        %v588 = vld [vmem:[#allocation5 + $0x530] sm:$0xff]
        %v589 = vld [vmem:[#allocation5 + $0x538] sm:$0xff]
        %v590 = vld [vmem:[#allocation5 + $0x540] sm:$0xff]
        %v591 = vld [vmem:[#allocation5 + $0x548] sm:$0xff]
        %v592 = vld [vmem:[#allocation5 + $0x550] sm:$0xff]
        %v593 = vld [vmem:[#allocation5 + $0x558] sm:$0xff]
        %v594 = vld [vmem:[#allocation5 + $0x560] sm:$0xff]
        %v595 = vld [vmem:[#allocation5 + $0x568] sm:$0xff]
        %v596 = vld [vmem:[#allocation5 + $0x570] sm:$0xff]
        %v597 = vld [vmem:[#allocation5 + $0x578] sm:$0xff]
        %v598 = vld [vmem:[#allocation5 + $0x580] sm:$0xff]
        %v599 = vld [vmem:[#allocation5 + $0x588] sm:$0xff]
        %v600 = vld [vmem:[#allocation5 + $0x590] sm:$0xff]
        %v601 = vld [vmem:[#allocation5 + $0x598] sm:$0xff]
        %v602 = vld [vmem:[#allocation5 + $0x5a0] sm:$0xff]
        %v603 = vld [vmem:[#allocation5 + $0x5a8] sm:$0xff]
        %v604 = vld [vmem:[#allocation5 + $0x5b0] sm:$0xff]
        %v605 = vld [vmem:[#allocation5 + $0x5b8] sm:$0xff]
        %v606 = vld [vmem:[#allocation5 + $0x5c0] sm:$0xff]
        %v607 = vld [vmem:[#allocation5 + $0x5c8] sm:$0xff]
        %v608 = vld [vmem:[#allocation5 + $0x5d0] sm:$0xff]
        %v609 = vld [vmem:[#allocation5 + $0x5d8] sm:$0xff]
        %v610 = vld [vmem:[#allocation5 + $0x5e0] sm:$0xff]
        %v611 = vld [vmem:[#allocation5 + $0x5e8] sm:$0xff]
        %v612 = vld [vmem:[#allocation5 + $0x5f0] sm:$0xff]
        %v613 = vld [vmem:[#allocation5 + $0x5f8] sm:$0xff]
        %v614 = vld [vmem:[#allocation5 + $0x600] sm:$0xff]
        %v615 = vld [vmem:[#allocation5 + $0x608] sm:$0xff]
        %v616 = vld [vmem:[#allocation5 + $0x610] sm:$0xff]
        %v617 = vld [vmem:[#allocation5 + $0x618] sm:$0xff]
        %v618 = vld [vmem:[#allocation5 + $0x620] sm:$0xff]
        %v619 = vld [vmem:[#allocation5 + $0x628] sm:$0xff]
        %v620 = vld [vmem:[#allocation5 + $0x630] sm:$0xff]
        %v621 = vld [vmem:[#allocation5 + $0x638] sm:$0xff]
        %v622 = vld [vmem:[#allocation5 + $0x640] sm:$0xff]
        %v623 = vld [vmem:[#allocation5 + $0x648] sm:$0xff]
        %v624 = vld [vmem:[#allocation5 + $0x650] sm:$0xff]
        %v625 = vld [vmem:[#allocation5 + $0x658] sm:$0xff]
        %v626 = vld [vmem:[#allocation5 + $0x660] sm:$0xff]
        %v627 = vld [vmem:[#allocation5 + $0x668] sm:$0xff]
        %v628 = vld [vmem:[#allocation5 + $0x670] sm:$0xff]
        %v629 = vld [vmem:[#allocation5 + $0x678] sm:$0xff]
        %v630 = vld [vmem:[#allocation5 + $0x680] sm:$0xff]
        %v631 = vld [vmem:[#allocation5 + $0x688] sm:$0xff]
        %v632 = vld [vmem:[#allocation5 + $0x690] sm:$0xff]
        %v633 = vld [vmem:[#allocation5 + $0x698] sm:$0xff]
        %v634 = vld [vmem:[#allocation5 + $0x6a0] sm:$0xff]
        %v635 = vld [vmem:[#allocation5 + $0x6a8] sm:$0xff]
        %v636 = vld [vmem:[#allocation5 + $0x6b0] sm:$0xff]
        %v637 = vld [vmem:[#allocation5 + $0x6b8] sm:$0xff]
        %v638 = vld [vmem:[#allocation5 + $0x6c0] sm:$0xff]
        %v639 = vld [vmem:[#allocation5 + $0x6c8] sm:$0xff]
        %v640 = vld [vmem:[#allocation5 + $0x6d0] sm:$0xff]
        %v641 = vld [vmem:[#allocation5 + $0x6d8] sm:$0xff]
        %v642 = vld [vmem:[#allocation5 + $0x6e0] sm:$0xff]
        %v643 = vld [vmem:[#allocation5 + $0x6e8] sm:$0xff]
        %v644 = vld [vmem:[#allocation5 + $0x6f0] sm:$0xff]
        %v645 = vld [vmem:[#allocation5 + $0x6f8] sm:$0xff]
        %v646 = vld [vmem:[#allocation5 + $0x700] sm:$0xff]
        %v647 = vld [vmem:[#allocation5 + $0x708] sm:$0xff]
        %v648 = vld [vmem:[#allocation5 + $0x710] sm:$0xff]
        %v649 = vld [vmem:[#allocation5 + $0x718] sm:$0xff]
        %v650 = vld [vmem:[#allocation5 + $0x720] sm:$0xff]
        %v651 = vld [vmem:[#allocation5 + $0x728] sm:$0xff]
        %v652 = vld [vmem:[#allocation5 + $0x730] sm:$0xff]
        %v653 = vld [vmem:[#allocation5 + $0x738] sm:$0xff]
        %v654 = vld [vmem:[#allocation5 + $0x740] sm:$0xff]
        %v655 = vld [vmem:[#allocation5 + $0x748] sm:$0xff]
        %v656 = vld [vmem:[#allocation5 + $0x750] sm:$0xff]
        %v657 = vld [vmem:[#allocation5 + $0x758] sm:$0xff]
        %v658 = vld [vmem:[#allocation5 + $0x760] sm:$0xff]
        %v659 = vld [vmem:[#allocation5 + $0x768] sm:$0xff]
        %v660 = vld [vmem:[#allocation5 + $0x770] sm:$0xff]
        %v661 = vld [vmem:[#allocation5 + $0x778] sm:$0xff]
        %v662 = vld [vmem:[#allocation5 + $0x780] sm:$0xff]
        %v663 = vld [vmem:[#allocation5 + $0x788] sm:$0xff]
        %v664 = vld [vmem:[#allocation5 + $0x790] sm:$0xff]
        %v665 = vld [vmem:[#allocation5 + $0x798] sm:$0xff]
        %v666 = vld [vmem:[#allocation5 + $0x7a0] sm:$0xff]
        %v667 = vld [vmem:[#allocation5 + $0x7a8] sm:$0xff]
        %v668 = vld [vmem:[#allocation5 + $0x7b0] sm:$0xff]
        %v669 = vld [vmem:[#allocation5 + $0x7b8] sm:$0xff]
        %v670 = vld [vmem:[#allocation5 + $0x7c0] sm:$0xff]
        %v671 = vld [vmem:[#allocation5 + $0x7c8] sm:$0xff]
        %v672 = vld [vmem:[#allocation5 + $0x7d0] sm:$0xff]
        %v673 = vld [vmem:[#allocation5 + $0x7d8] sm:$0xff]
        %v674 = vld [vmem:[#allocation5 + $0x7e0] sm:$0xff]
        %v675 = vld [vmem:[#allocation5 + $0x7e8] sm:$0xff]
        %v676 = vld [vmem:[#allocation5 + $0x7f0] sm:$0xff]
        %v677 = vld [vmem:[#allocation5 + $0x7f8] sm:$0xff]
        %v678 = vld [vmem:[#allocation5 + $0x800] sm:$0xff]
        %v679 = vld [vmem:[#allocation5 + $0x808] sm:$0xff]
        %v680 = vld [vmem:[#allocation5 + $0x810] sm:$0xff]
        %v681 = vld [vmem:[#allocation5 + $0x818] sm:$0xff]
        %v682 = vld [vmem:[#allocation5 + $0x820] sm:$0xff]
        %v683 = vld [vmem:[#allocation5 + $0x828] sm:$0xff]
        %v684 = vld [vmem:[#allocation5 + $0x830] sm:$0xff]
        %v685 = vld [vmem:[#allocation5 + $0x838] sm:$0xff]
        %v686 = vld [vmem:[#allocation5 + $0x840] sm:$0xff]
        %v687 = vld [vmem:[#allocation5 + $0x848] sm:$0xff]
        %v688 = vld [vmem:[#allocation5 + $0x850] sm:$0xff]
        %v689 = vld [vmem:[#allocation5 + $0x858] sm:$0xff]
        %v690 = vld [vmem:[#allocation5 + $0x860] sm:$0xff]
        %v691 = vld [vmem:[#allocation5 + $0x868] sm:$0xff]
        %v692 = vld [vmem:[#allocation5 + $0x870] sm:$0xff]
        %v693 = vld [vmem:[#allocation5 + $0x878] sm:$0xff]
        %v694 = vld [vmem:[#allocation5 + $0x880] sm:$0xff]
        %v695 = vld [vmem:[#allocation5 + $0x888] sm:$0xff]
        %v696 = vld [vmem:[#allocation5 + $0x890] sm:$0xff]
        %v697 = vld [vmem:[#allocation5 + $0x898] sm:$0xff]
        %v698 = vld [vmem:[#allocation5 + $0x8a0] sm:$0xff]
        %v699 = vld [vmem:[#allocation5 + $0x8a8] sm:$0xff]
        %v700 = vld [vmem:[#allocation5 + $0x8b0] sm:$0xff]
        %v701 = vld [vmem:[#allocation5 + $0x8b8] sm:$0xff]
        %v702 = vld [vmem:[#allocation5 + $0x8c0] sm:$0xff]
        %v703 = vld [vmem:[#allocation5 + $0x8c8] sm:$0xff]
        %v704 = vld [vmem:[#allocation5 + $0x8d0] sm:$0xff]
        %v705 = vld [vmem:[#allocation5 + $0x8d8] sm:$0xff]
        %v706 = vld [vmem:[#allocation5 + $0x8e0] sm:$0xff]
        %v707 = vld [vmem:[#allocation5 + $0x8e8] sm:$0xff]
        %v708 = vld [vmem:[#allocation5 + $0x8f0] sm:$0xff]
        %v709 = vld [vmem:[#allocation5 + $0x8f8] sm:$0xff]
        %v710 = vld [vmem:[#allocation5 + $0x900] sm:$0xff]
        %v711 = vld [vmem:[#allocation5 + $0x908] sm:$0xff]
        %v712 = vld [vmem:[#allocation5 + $0x910] sm:$0xff]
        %v713 = vld [vmem:[#allocation5 + $0x918] sm:$0xff]
        %v714 = vld [vmem:[#allocation5 + $0x920] sm:$0xff]
        %v715 = vld [vmem:[#allocation5 + $0x928] sm:$0xff]
        %v716 = vld [vmem:[#allocation5 + $0x930] sm:$0xff]
        %v717 = vld [vmem:[#allocation5 + $0x938] sm:$0xff]
        %v718 = vld [vmem:[#allocation5 + $0x940] sm:$0xff]
        %v719 = vld [vmem:[#allocation5 + $0x948] sm:$0xff]
        %v720 = vld [vmem:[#allocation5 + $0x950] sm:$0xff]
        %v721 = vld [vmem:[#allocation5 + $0x958] sm:$0xff]
        %v722 = vld [vmem:[#allocation5 + $0x960] sm:$0xff]
        %v723 = vld [vmem:[#allocation5 + $0x968] sm:$0xff]
        %v724 = vld [vmem:[#allocation5 + $0x970] sm:$0xff]
        %v725 = vld [vmem:[#allocation5 + $0x978] sm:$0xff]
        %v726 = vld [vmem:[#allocation5 + $0x980] sm:$0xff]
        %v727 = vld [vmem:[#allocation5 + $0x988] sm:$0xff]
        %v728 = vld [vmem:[#allocation5 + $0x990] sm:$0xff]
        %v729 = vld [vmem:[#allocation5 + $0x998] sm:$0xff]
        %v730 = vld [vmem:[#allocation5 + $0x9a0] sm:$0xff]
        %v731 = vld [vmem:[#allocation5 + $0x9a8] sm:$0xff]
        %v732 = vld [vmem:[#allocation5 + $0x9b0] sm:$0xff]
        %v733 = vld [vmem:[#allocation5 + $0x9b8] sm:$0xff]
        %v734 = vld [vmem:[#allocation5 + $0x9c0] sm:$0xff]
        %v735 = vld [vmem:[#allocation5 + $0x9c8] sm:$0xff]
        %v736 = vld [vmem:[#allocation5 + $0x9d0] sm:$0xff]
        %v737 = vld [vmem:[#allocation5 + $0x9d8] sm:$0xff]
        %v738 = vld [vmem:[#allocation5 + $0x9e0] sm:$0xff]
        %v739 = vld [vmem:[#allocation5 + $0x9e8] sm:$0xff]
        %v740 = vld [vmem:[#allocation5 + $0x9f0] sm:$0xff]
        %v741 = vld [vmem:[#allocation5 + $0x9f8] sm:$0xff]
        %v742 = vld [vmem:[#allocation5 + $0xa00] sm:$0xff]
        %v743 = vld [vmem:[#allocation5 + $0xa08] sm:$0xff]
        %v744 = vld [vmem:[#allocation5 + $0xa10] sm:$0xff]
        %v745 = vld [vmem:[#allocation5 + $0xa18] sm:$0xff]
        %v746 = vld [vmem:[#allocation5 + $0xa20] sm:$0xff]
        %v747 = vld [vmem:[#allocation5 + $0xa28] sm:$0xff]
        %v748 = vld [vmem:[#allocation5 + $0xa30] sm:$0xff]
        %v749 = vld [vmem:[#allocation5 + $0xa38] sm:$0xff]
        %v750 = vld [vmem:[#allocation5 + $0xa40] sm:$0xff]
        %v751 = vld [vmem:[#allocation5 + $0xa48] sm:$0xff]
        %v752 = vld [vmem:[#allocation5 + $0xa50] sm:$0xff]
        %v753 = vld [vmem:[#allocation5 + $0xa58] sm:$0xff]
        %v754 = vld [vmem:[#allocation5 + $0xa60] sm:$0xff]
        %v755 = vld [vmem:[#allocation5 + $0xa68] sm:$0xff]
        %v756 = vld [vmem:[#allocation5 + $0xa70] sm:$0xff]
        %v757 = vld [vmem:[#allocation5 + $0xa78] sm:$0xff]
        %v758 = vld [vmem:[#allocation5 + $0xa80] sm:$0xff]
        %v759 = vld [vmem:[#allocation5 + $0xa88] sm:$0xff]
        %v760 = vld [vmem:[#allocation5 + $0xa90] sm:$0xff]
        %v761 = vld [vmem:[#allocation5 + $0xa98] sm:$0xff]
        %v762 = vld [vmem:[#allocation5 + $0xaa0] sm:$0xff]
        %v763 = vld [vmem:[#allocation5 + $0xaa8] sm:$0xff]
        %v764 = vld [vmem:[#allocation5 + $0xab0] sm:$0xff]
        %v765 = vld [vmem:[#allocation5 + $0xab8] sm:$0xff]
        %v766 = vld [vmem:[#allocation5 + $0xac0] sm:$0xff]
        %v767 = vld [vmem:[#allocation5 + $0xac8] sm:$0xff]
        %v768 = vld [vmem:[#allocation5 + $0xad0] sm:$0xff]
        %v769 = vld [vmem:[#allocation5 + $0xad8] sm:$0xff]
        %v770 = vld [vmem:[#allocation5 + $0xae0] sm:$0xff]
        %v771 = vld [vmem:[#allocation5 + $0xae8] sm:$0xff]
        %v772 = vld [vmem:[#allocation5 + $0xaf0] sm:$0xff]
        %v773 = vld [vmem:[#allocation5 + $0xaf8] sm:$0xff]
        %v774 = vld [vmem:[#allocation5 + $0xb00] sm:$0xff]
        %v775 = vld [vmem:[#allocation5 + $0xb08] sm:$0xff]
        %v776 = vld [vmem:[#allocation5 + $0xb10] sm:$0xff]
        %v777 = vld [vmem:[#allocation5 + $0xb18] sm:$0xff]
        %v778 = vld [vmem:[#allocation5 + $0xb20] sm:$0xff]
        %v779 = vld [vmem:[#allocation5 + $0xb28] sm:$0xff]
        %v780 = vld [vmem:[#allocation5 + $0xb30] sm:$0xff]
        %v781 = vld [vmem:[#allocation5 + $0xb38] sm:$0xff]
        %v782 = vld [vmem:[#allocation5 + $0xb40] sm:$0xff]
        %v783 = vld [vmem:[#allocation5 + $0xb48] sm:$0xff]
        %v784 = vld [vmem:[#allocation5 + $0xb50] sm:$0xff]
        %v785 = vld [vmem:[#allocation5 + $0xb58] sm:$0xff]
        %v786 = vld [vmem:[#allocation5 + $0xb60] sm:$0xff]
        %v787 = vld [vmem:[#allocation5 + $0xb68] sm:$0xff]
        %v788 = vld [vmem:[#allocation5 + $0xb70] sm:$0xff]
        %v789 = vld [vmem:[#allocation5 + $0xb78] sm:$0xff]
        %v790 = vld [vmem:[#allocation5 + $0xb80] sm:$0xff]
        %v791 = vld [vmem:[#allocation5 + $0xb88] sm:$0xff]
        %v792 = vld [vmem:[#allocation5 + $0xb90] sm:$0xff]
        %v793 = vld [vmem:[#allocation5 + $0xb98] sm:$0xff]
        %v794 = vld [vmem:[#allocation5 + $0xba0] sm:$0xff]
        %v795 = vld [vmem:[#allocation5 + $0xba8] sm:$0xff]
        %v796 = vld [vmem:[#allocation5 + $0xbb0] sm:$0xff]
        %v797 = vld [vmem:[#allocation5 + $0xbb8] sm:$0xff]
        %v798 = vld [vmem:[#allocation5 + $0xbc0] sm:$0xff]
        %v799 = vld [vmem:[#allocation5 + $0xbc8] sm:$0xff]
        %v800 = vld [vmem:[#allocation5 + $0xbd0] sm:$0xff]
        %v801 = vld [vmem:[#allocation5 + $0xbd8] sm:$0xff]
        %v802 = vld [vmem:[#allocation5 + $0xbe0] sm:$0xff]
        %v803 = vld [vmem:[#allocation5 + $0xbe8] sm:$0xff]
        %v804 = vld [vmem:[#allocation5 + $0xbf0] sm:$0xff]
        %v805 = vld [vmem:[#allocation5 + $0xbf8] sm:$0xff]
        %v806 = vld [vmem:[#allocation5 + $0xc00] sm:$0xff]
        %v807 = vld [vmem:[#allocation5 + $0xc08] sm:$0xff]
        %v808 = vld [vmem:[#allocation5 + $0xc10] sm:$0xff]
        %v809 = vld [vmem:[#allocation5 + $0xc18] sm:$0xff]
        %v810 = vld [vmem:[#allocation5 + $0xc20] sm:$0xff]
        %v811 = vld [vmem:[#allocation5 + $0xc28] sm:$0xff]
        %v812 = vld [vmem:[#allocation5 + $0xc30] sm:$0xff]
        %v813 = vld [vmem:[#allocation5 + $0xc38] sm:$0xff]
        %v814 = vld [vmem:[#allocation5 + $0xc40] sm:$0xff]
        %v815 = vld [vmem:[#allocation5 + $0xc48] sm:$0xff]
        %v816 = vld [vmem:[#allocation5 + $0xc50] sm:$0xff]
        %v817 = vld [vmem:[#allocation5 + $0xc58] sm:$0xff]
        %v818 = vld [vmem:[#allocation5 + $0xc60] sm:$0xff]
        %v819 = vld [vmem:[#allocation5 + $0xc68] sm:$0xff]
        %v820 = vld [vmem:[#allocation5 + $0xc70] sm:$0xff]
        %v821 = vld [vmem:[#allocation5 + $0xc78] sm:$0xff]
        %v822 = vld [vmem:[#allocation5 + $0xc80] sm:$0xff]
        %v823 = vld [vmem:[#allocation5 + $0xc88] sm:$0xff]
        %v824 = vld [vmem:[#allocation5 + $0xc90] sm:$0xff]
        %v825 = vld [vmem:[#allocation5 + $0xc98] sm:$0xff]
        %v826 = vld [vmem:[#allocation5 + $0xca0] sm:$0xff]
        %v827 = vld [vmem:[#allocation5 + $0xca8] sm:$0xff]
        %v828 = vld [vmem:[#allocation5 + $0xcb0] sm:$0xff]
        %v829 = vld [vmem:[#allocation5 + $0xcb8] sm:$0xff]
        %v830 = vld [vmem:[#allocation5 + $0xcc0] sm:$0xff]
        %v831 = vld [vmem:[#allocation5 + $0xcc8] sm:$0xff]
        %v832 = vld [vmem:[#allocation5 + $0xcd0] sm:$0xff]
        %v833 = vld [vmem:[#allocation5 + $0xcd8] sm:$0xff]
        %v834 = vld [vmem:[#allocation5 + $0xce0] sm:$0xff]
        %v835 = vld [vmem:[#allocation5 + $0xce8] sm:$0xff]
        %v836 = vld [vmem:[#allocation5 + $0xcf0] sm:$0xff]
        %v837 = vld [vmem:[#allocation5 + $0xcf8] sm:$0xff]
        %v838 = vld [vmem:[#allocation5 + $0xd00] sm:$0xff]
        %v839 = vld [vmem:[#allocation5 + $0xd08] sm:$0xff]
        %v840 = vld [vmem:[#allocation5 + $0xd10] sm:$0xff]
        %v841 = vld [vmem:[#allocation5 + $0xd18] sm:$0xff]
        %v842 = vld [vmem:[#allocation5 + $0xd20] sm:$0xff]
        %v843 = vld [vmem:[#allocation5 + $0xd28] sm:$0xff]
        %v844 = vld [vmem:[#allocation5 + $0xd30] sm:$0xff]
        %v845 = vld [vmem:[#allocation5 + $0xd38] sm:$0xff]
        %v846 = vld [vmem:[#allocation5 + $0xd40] sm:$0xff]
        %v847 = vld [vmem:[#allocation5 + $0xd48] sm:$0xff]
        %v848 = vld [vmem:[#allocation5 + $0xd50] sm:$0xff]
        %v849 = vld [vmem:[#allocation5 + $0xd58] sm:$0xff]
        %v850 = vld [vmem:[#allocation5 + $0xd60] sm:$0xff]
        %v851 = vld [vmem:[#allocation5 + $0xd68] sm:$0xff]
        %v852 = vld [vmem:[#allocation5 + $0xd70] sm:$0xff]
        %v853 = vld [vmem:[#allocation5 + $0xd78] sm:$0xff]
        %v854 = vld [vmem:[#allocation5 + $0xd80] sm:$0xff]
        %v855 = vld [vmem:[#allocation5 + $0xd88] sm:$0xff]
        %v856 = vld [vmem:[#allocation5 + $0xd90] sm:$0xff]
        %v857 = vld [vmem:[#allocation5 + $0xd98] sm:$0xff]
        %v858 = vld [vmem:[#allocation5 + $0xda0] sm:$0xff]
        %v859 = vld [vmem:[#allocation5 + $0xda8] sm:$0xff]
        %v860 = vld [vmem:[#allocation5 + $0xdb0] sm:$0xff]
        %v861 = vld [vmem:[#allocation5 + $0xdb8] sm:$0xff]
        %v862 = vld [vmem:[#allocation5 + $0xdc0] sm:$0xff]
        %v863 = vld [vmem:[#allocation5 + $0xdc8] sm:$0xff]
        %v864 = vld [vmem:[#allocation5 + $0xdd0] sm:$0xff]
        %v865 = vld [vmem:[#allocation5 + $0xdd8] sm:$0xff]
        %v866 = vld [vmem:[#allocation5 + $0xde0] sm:$0xff]
        %v867 = vld [vmem:[#allocation5 + $0xde8] sm:$0xff]
        %v868 = vld [vmem:[#allocation5 + $0xdf0] sm:$0xff]
        %v869 = vld [vmem:[#allocation5 + $0xdf8] sm:$0xff]
        %v870 = vld [vmem:[#allocation5 + $0xe00] sm:$0xff]
        %v871 = vld [vmem:[#allocation5 + $0xe08] sm:$0xff]
        %v872 = vld [vmem:[#allocation5 + $0xe10] sm:$0xff]
        %v873 = vld [vmem:[#allocation5 + $0xe18] sm:$0xff]
        %v874 = vld [vmem:[#allocation5 + $0xe20] sm:$0xff]
        %v875 = vld [vmem:[#allocation5 + $0xe28] sm:$0xff]
        %v876 = vld [vmem:[#allocation5 + $0xe30] sm:$0xff]
        %v877 = vld [vmem:[#allocation5 + $0xe38] sm:$0xff]
        %v878 = vld [vmem:[#allocation5 + $0xe40] sm:$0xff]
        %v879 = vld [vmem:[#allocation5 + $0xe48] sm:$0xff]
        %v880 = vld [vmem:[#allocation5 + $0xe50] sm:$0xff]
        %v881 = vld [vmem:[#allocation5 + $0xe58] sm:$0xff]
        %v882 = vld [vmem:[#allocation5 + $0xe60] sm:$0xff]
        %v883 = vld [vmem:[#allocation5 + $0xe68] sm:$0xff]
        %v884 = vld [vmem:[#allocation5 + $0xe70] sm:$0xff]
        %v885 = vld [vmem:[#allocation5 + $0xe78] sm:$0xff]
        %v886 = vld [vmem:[#allocation5 + $0xe80] sm:$0xff]
        %v887 = vld [vmem:[#allocation5 + $0xe88] sm:$0xff]
        %v888 = vld [vmem:[#allocation5 + $0xe90] sm:$0xff]
        %v889 = vld [vmem:[#allocation5 + $0xe98] sm:$0xff]
        %v890 = vld [vmem:[#allocation5 + $0xea0] sm:$0xff]
        %v891 = vld [vmem:[#allocation5 + $0xea8] sm:$0xff]
        %v892 = vld [vmem:[#allocation5 + $0xeb0] sm:$0xff]
        %v893 = vld [vmem:[#allocation5 + $0xeb8] sm:$0xff]
        %v894 = vld [vmem:[#allocation5 + $0xec0] sm:$0xff]
        %v895 = vld [vmem:[#allocation5 + $0xec8] sm:$0xff]
        %v896 = vld [vmem:[#allocation5 + $0xed0] sm:$0xff]
        %v897 = vld [vmem:[#allocation5 + $0xed8] sm:$0xff]
        %v898 = vld [vmem:[#allocation5 + $0xee0] sm:$0xff]
        %v899 = vld [vmem:[#allocation5 + $0xee8] sm:$0xff]
        %v900 = vld [vmem:[#allocation5 + $0xef0] sm:$0xff]
        %v901 = vld [vmem:[#allocation5 + $0xef8] sm:$0xff]
        %v902 = vld [vmem:[#allocation5 + $0xf00] sm:$0xff]
        %v903 = vld [vmem:[#allocation5 + $0xf08] sm:$0xff]
        %v904 = vld [vmem:[#allocation5 + $0xf10] sm:$0xff]
        %v905 = vld [vmem:[#allocation5 + $0xf18] sm:$0xff]
        %v906 = vld [vmem:[#allocation5 + $0xf20] sm:$0xff]
        %v907 = vld [vmem:[#allocation5 + $0xf28] sm:$0xff]
        %v908 = vld [vmem:[#allocation5 + $0xf30] sm:$0xff]
        %v909 = vld [vmem:[#allocation5 + $0xf38] sm:$0xff]
        %v910 = vld [vmem:[#allocation5 + $0xf40] sm:$0xff]
        %v911 = vld [vmem:[#allocation5 + $0xf48] sm:$0xff]
        %v912 = vld [vmem:[#allocation5 + $0xf50] sm:$0xff]
        %v913 = vld [vmem:[#allocation5 + $0xf58] sm:$0xff]
        %v914 = vld [vmem:[#allocation5 + $0xf60] sm:$0xff]
        %v915 = vld [vmem:[#allocation5 + $0xf68] sm:$0xff]
        %v916 = vld [vmem:[#allocation5 + $0xf70] sm:$0xff]
        %v917 = vld [vmem:[#allocation5 + $0xf78] sm:$0xff]
        %v918 = vld [vmem:[#allocation5 + $0xf80] sm:$0xff]
        %v919 = vld [vmem:[#allocation5 + $0xf88] sm:$0xff]
        %v920 = vld [vmem:[#allocation5 + $0xf90] sm:$0xff]
        %v921 = vld [vmem:[#allocation5 + $0xf98] sm:$0xff]
        %v922 = vld [vmem:[#allocation5 + $0xfa0] sm:$0xff]
        %v923 = vld [vmem:[#allocation5 + $0xfa8] sm:$0xff]
        %v924 = vld [vmem:[#allocation5 + $0xfb0] sm:$0xff]
        %v925 = vld [vmem:[#allocation5 + $0xfb8] sm:$0xff]
        %v926 = vld [vmem:[#allocation5 + $0xfc0] sm:$0xff]
        %v927 = vld [vmem:[#allocation5 + $0xfc8] sm:$0xff]
        %v928 = vld [vmem:[#allocation5 + $0xfd0] sm:$0xff]
        %v929 = vld [vmem:[#allocation5 + $0xfd8] sm:$0xff]
        %v930 = vld [vmem:[#allocation5 + $0xfe0] sm:$0xff]
        %v931 = vld [vmem:[#allocation5 + $0xfe8] sm:$0xff]
        %v932 = vld [vmem:[#allocation5 + $0xff0] sm:$0xff]
        %v933 = vld [vmem:[#allocation5 + $0xff8] sm:$0xff]
        %v934 = vld [vmem:[#allocation5 + $0x1000] sm:$0xff]
        %v935 = vld [vmem:[#allocation5 + $0x1008] sm:$0xff]
        %v936 = vld [vmem:[#allocation5 + $0x1010] sm:$0xff]
        %v937 = vld [vmem:[#allocation5 + $0x1018] sm:$0xff]
        %v938 = vld [vmem:[#allocation5 + $0x1020] sm:$0xff]
        %v939 = vld [vmem:[#allocation5 + $0x1028] sm:$0xff]
        %v940 = vld [vmem:[#allocation5 + $0x1030] sm:$0xff]
        %v941 = vld [vmem:[#allocation5 + $0x1038] sm:$0xff]
        %v942 = vld [vmem:[#allocation5 + $0x1040] sm:$0xff]
        %v943 = vld [vmem:[#allocation5 + $0x1048] sm:$0xff]
        %v944 = vld [vmem:[#allocation5 + $0x1050] sm:$0xff]
        %v945 = vld [vmem:[#allocation5 + $0x1058] sm:$0xff]
        %v946 = vld [vmem:[#allocation5 + $0x1060] sm:$0xff]
        %v947 = vld [vmem:[#allocation5 + $0x1068] sm:$0xff]
        %v948 = vld [vmem:[#allocation5 + $0x1070] sm:$0xff]
        %v949 = vld [vmem:[#allocation5 + $0x1078] sm:$0xff]
        %v950 = vld [vmem:[#allocation5 + $0x1080] sm:$0xff]
        %v951 = vld [vmem:[#allocation5 + $0x1088] sm:$0xff]
        %v952 = vld [vmem:[#allocation5 + $0x1090] sm:$0xff]
        %v953 = vld [vmem:[#allocation5 + $0x1098] sm:$0xff]
        %v954 = vld [vmem:[#allocation5 + $0x10a0] sm:$0xff]
        %v955 = vld [vmem:[#allocation5 + $0x10a8] sm:$0xff]
        %v956 = vld [vmem:[#allocation5 + $0x10b0] sm:$0xff]
        %v957 = vld [vmem:[#allocation5 + $0x10b8] sm:$0xff]
        %v958 = vld [vmem:[#allocation5 + $0x10c0] sm:$0xff]
        %v959 = vld [vmem:[#allocation5 + $0x10c8] sm:$0xff]
        %v960 = vld [vmem:[#allocation5 + $0x10d0] sm:$0xff]
        %v961 = vld [vmem:[#allocation5 + $0x10d8] sm:$0xff]
        %v962 = vld [vmem:[#allocation5 + $0x10e0] sm:$0xff]
        %v963 = vld [vmem:[#allocation5 + $0x10e8] sm:$0xff]
        %v964 = vld [vmem:[#allocation5 + $0x10f0] sm:$0xff]
        %v965 = vld [vmem:[#allocation5 + $0x10f8] sm:$0xff]
        %v966 = vld [vmem:[#allocation5 + $0x1100] sm:$0xff]
        %v967 = vld [vmem:[#allocation5 + $0x1108] sm:$0xff]
        %v968 = vld [vmem:[#allocation5 + $0x1110] sm:$0xff]
        %v969 = vld [vmem:[#allocation5 + $0x1118] sm:$0xff]
        %v970 = vld [vmem:[#allocation5 + $0x1120] sm:$0xff]
        %v971 = vld [vmem:[#allocation5 + $0x1128] sm:$0xff]
        %v972 = vld [vmem:[#allocation5 + $0x1130] sm:$0xff]
        %v973 = vld [vmem:[#allocation5 + $0x1138] sm:$0xff]
        %v974 = vld [vmem:[#allocation5 + $0x1140] sm:$0xff]
        %v975 = vld [vmem:[#allocation5 + $0x1148] sm:$0xff]
        %v976 = vld [vmem:[#allocation5 + $0x1150] sm:$0xff]
        %v977 = vld [vmem:[#allocation5 + $0x1158] sm:$0xff]
        %v978 = vld [vmem:[#allocation5 + $0x1160] sm:$0xff]
        %v979 = vld [vmem:[#allocation5 + $0x1168] sm:$0xff]
        %v980 = vld [vmem:[#allocation5 + $0x1170] sm:$0xff]
        %v981 = vld [vmem:[#allocation5 + $0x1178] sm:$0xff]
        %v982 = vld [vmem:[#allocation5 + $0x1180] sm:$0xff]
        %v983 = vld [vmem:[#allocation5 + $0x1188] sm:$0xff]
        %v984 = vld [vmem:[#allocation5 + $0x1190] sm:$0xff]
        %v985 = vld [vmem:[#allocation5 + $0x1198] sm:$0xff]
        %v986 = vld [vmem:[#allocation5 + $0x11a0] sm:$0xff]
        %v987 = vld [vmem:[#allocation5 + $0x11a8] sm:$0xff]
        %v988 = vld [vmem:[#allocation5 + $0x11b0] sm:$0xff]
        %v989 = vld [vmem:[#allocation5 + $0x11b8] sm:$0xff]
        %v990 = vld [vmem:[#allocation5 + $0x11c0] sm:$0xff]
        %v991 = vld [vmem:[#allocation5 + $0x11c8] sm:$0xff]
        %v992 = vld [vmem:[#allocation5 + $0x11d0] sm:$0xff]
        %v993 = vld [vmem:[#allocation5 + $0x11d8] sm:$0xff]
        %v994 = vld [vmem:[#allocation5 + $0x11e0] sm:$0xff]
        %v995 = vld [vmem:[#allocation5 + $0x11e8] sm:$0xff]
        %v996 = vld [vmem:[#allocation5 + $0x11f0] sm:$0xff]
        %v997 = vld [vmem:[#allocation5 + $0x11f8] sm:$0xff]
        %v998 = vld [vmem:[#allocation5 + $0x1200] sm:$0xff]
        %v999 = vld [vmem:[#allocation5 + $0x1208] sm:$0xff]
        %v1000 = vld [vmem:[#allocation5 + $0x1210] sm:$0xff]
        %v1001 = vld [vmem:[#allocation5 + $0x1218] sm:$0xff]
        %v1002 = vld [vmem:[#allocation5 + $0x1220] sm:$0xff]
        %v1003 = vld [vmem:[#allocation5 + $0x1228] sm:$0xff]
        %v1004 = vld [vmem:[#allocation5 + $0x1230] sm:$0xff]
        %v1005 = vld [vmem:[#allocation5 + $0x1238] sm:$0xff]
        %v1006 = vld [vmem:[#allocation5 + $0x1240] sm:$0xff]
        %v1007 = vld [vmem:[#allocation5 + $0x1248] sm:$0xff]
        %v1008 = vld [vmem:[#allocation5 + $0x1250] sm:$0xff]
        %v1009 = vld [vmem:[#allocation5 + $0x1258] sm:$0xff]
        %v1010 = vld [vmem:[#allocation5 + $0x1260] sm:$0xff]
        %v1011 = vld [vmem:[#allocation5 + $0x1268] sm:$0xff]
        %v1012 = vld [vmem:[#allocation5 + $0x1270] sm:$0xff]
        %v1013 = vld [vmem:[#allocation5 + $0x1278] sm:$0xff]
        %v1014 = vld [vmem:[#allocation5 + $0x1280] sm:$0xff]
        %v1015 = vld [vmem:[#allocation5 + $0x1288] sm:$0xff]
        %v1016 = vld [vmem:[#allocation5 + $0x1290] sm:$0xff]
        %v1017 = vld [vmem:[#allocation5 + $0x1298] sm:$0xff]
        %v1018 = vld [vmem:[#allocation5 + $0x12a0] sm:$0xff]
        %v1019 = vld [vmem:[#allocation5 + $0x12a8] sm:$0xff]
        %v1020 = vld [vmem:[#allocation5 + $0x12b0] sm:$0xff]
        %v1021 = vld [vmem:[#allocation5 + $0x12b8] sm:$0xff]
        %v1022 = vld [vmem:[#allocation5 + $0x12c0] sm:$0xff]
        %v1023 = vld [vmem:[#allocation5 + $0x12c8] sm:$0xff]
        %v1024 = vld [vmem:[#allocation5 + $0x12d0] sm:$0xff]
        %v1025 = vld [vmem:[#allocation5 + $0x12d8] sm:$0xff]
        %v1026 = vld [vmem:[#allocation5 + $0x12e0] sm:$0xff]
        %v1027 = vld [vmem:[#allocation5 + $0x12e8] sm:$0xff]
        %v1028 = vld [vmem:[#allocation5 + $0x12f0] sm:$0xff]
        %v1029 = vld [vmem:[#allocation5 + $0x12f8] sm:$0xff]
        %v1030 = vld [vmem:[#allocation5 + $0x1300] sm:$0xff]
        %v1031 = vld [vmem:[#allocation5 + $0x1308] sm:$0xff]
        %v1032 = vld [vmem:[#allocation5 + $0x1310] sm:$0xff]
        %v1033 = vld [vmem:[#allocation5 + $0x1318] sm:$0xff]
        %v1034 = vld [vmem:[#allocation5 + $0x1320] sm:$0xff]
        %v1035 = vld [vmem:[#allocation5 + $0x1328] sm:$0xff]
        %v1036 = vld [vmem:[#allocation5 + $0x1330] sm:$0xff]
        %v1037 = vld [vmem:[#allocation5 + $0x1338] sm:$0xff]
        %v1038 = vld [vmem:[#allocation5 + $0x1340] sm:$0xff]
        %v1039 = vld [vmem:[#allocation5 + $0x1348] sm:$0xff]
        %v1040 = vld [vmem:[#allocation5 + $0x1350] sm:$0xff]
        %v1041 = vld [vmem:[#allocation5 + $0x1358] sm:$0xff]
        %v1042 = vld [vmem:[#allocation5 + $0x1360] sm:$0xff]
        %v1043 = vld [vmem:[#allocation5 + $0x1368] sm:$0xff]
        %v1044 = vld [vmem:[#allocation5 + $0x1370] sm:$0xff]
        %v1045 = vld [vmem:[#allocation5 + $0x1378] sm:$0xff]
        %v1046 = vld [vmem:[#allocation5 + $0x1380] sm:$0xff]
        %v1047 = vld [vmem:[#allocation5 + $0x1388] sm:$0xff]
        %v1048 = vld [vmem:[#allocation5 + $0x1390] sm:$0xff]
        %v1049 = vld [vmem:[#allocation5 + $0x1398] sm:$0xff]
        %v1050 = vld [vmem:[#allocation5 + $0x13a0] sm:$0xff]
        %v1051 = vld [vmem:[#allocation5 + $0x13a8] sm:$0xff]
        %v1052 = vld [vmem:[#allocation5 + $0x13b0] sm:$0xff]
        %v1053 = vld [vmem:[#allocation5 + $0x13b8] sm:$0xff]
        %v1054 = vld [vmem:[#allocation5 + $0x13c0] sm:$0xff]
        %v1055 = vld [vmem:[#allocation5 + $0x13c8] sm:$0xff]
        %v1056 = vld [vmem:[#allocation5 + $0x13d0] sm:$0xff]
        %v1057 = vld [vmem:[#allocation5 + $0x13d8] sm:$0xff]
        %v1058 = vld [vmem:[#allocation5 + $0x13e0] sm:$0xff]
        %v1059 = vld [vmem:[#allocation5 + $0x13e8] sm:$0xff]
        %v1060 = vld [vmem:[#allocation5 + $0x13f0] sm:$0xff]
        %v1061 = vld [vmem:[#allocation5 + $0x13f8] sm:$0xff]
        %v1062 = vld [vmem:[#allocation5 + $0x1400] sm:$0xff]
        %v1063 = vld [vmem:[#allocation5 + $0x1408] sm:$0xff]
        %v1064 = vld [vmem:[#allocation5 + $0x1410] sm:$0xff]
        %v1065 = vld [vmem:[#allocation5 + $0x1418] sm:$0xff]
        %v1066 = vld [vmem:[#allocation5 + $0x1420] sm:$0xff]
        %v1067 = vld [vmem:[#allocation5 + $0x1428] sm:$0xff]
        %v1068 = vld [vmem:[#allocation5 + $0x1430] sm:$0xff]
        %v1069 = vld [vmem:[#allocation5 + $0x1438] sm:$0xff]
        %v1070 = vld [vmem:[#allocation5 + $0x1440] sm:$0xff]
        %v1071 = vld [vmem:[#allocation5 + $0x1448] sm:$0xff]
        %v1072 = vld [vmem:[#allocation5 + $0x1450] sm:$0xff]
        %v1073 = vld [vmem:[#allocation5 + $0x1458] sm:$0xff]
        %v1074 = vld [vmem:[#allocation5 + $0x1460] sm:$0xff]
        %v1075 = vld [vmem:[#allocation5 + $0x1468] sm:$0xff]
        %v1076 = vld [vmem:[#allocation5 + $0x1470] sm:$0xff]
        %v1077 = vld [vmem:[#allocation5 + $0x1478] sm:$0xff]
        %v1078 = vld [vmem:[#allocation5 + $0x1480] sm:$0xff]
        %v1079 = vld [vmem:[#allocation5 + $0x1488] sm:$0xff]
        %v1080 = vld [vmem:[#allocation5 + $0x1490] sm:$0xff]
        %v1081 = vld [vmem:[#allocation5 + $0x1498] sm:$0xff]
        %v1082 = vld [vmem:[#allocation5 + $0x14a0] sm:$0xff]
        %v1083 = vld [vmem:[#allocation5 + $0x14a8] sm:$0xff]
        %v1084 = vld [vmem:[#allocation5 + $0x14b0] sm:$0xff]
        %v1085 = vld [vmem:[#allocation5 + $0x14b8] sm:$0xff]
        %v1086 = vld [vmem:[#allocation5 + $0x14c0] sm:$0xff]
        %v1087 = vld [vmem:[#allocation5 + $0x14c8] sm:$0xff]
        %v1088 = vld [vmem:[#allocation5 + $0x14d0] sm:$0xff]
        %v1089 = vld [vmem:[#allocation5 + $0x14d8] sm:$0xff]
        %v1090 = vld [vmem:[#allocation5 + $0x14e0] sm:$0xff]
        %v1091 = vld [vmem:[#allocation5 + $0x14e8] sm:$0xff]
        %v1092 = vld [vmem:[#allocation5 + $0x14f0] sm:$0xff]
        %v1093 = vld [vmem:[#allocation5 + $0x14f8] sm:$0xff]
        %v1094 = vld [vmem:[#allocation5 + $0x1500] sm:$0xff]
        %v1095 = vld [vmem:[#allocation5 + $0x1508] sm:$0xff]
        %v1096 = vld [vmem:[#allocation5 + $0x1510] sm:$0xff]
        %v1097 = vld [vmem:[#allocation5 + $0x1518] sm:$0xff]
        %v1098 = vld [vmem:[#allocation5 + $0x1520] sm:$0xff]
        %v1099 = vld [vmem:[#allocation5 + $0x1528] sm:$0xff]
        %v1100 = vld [vmem:[#allocation5 + $0x1530] sm:$0xff]
        %v1101 = vld [vmem:[#allocation5 + $0x1538] sm:$0xff]
        %v1102 = vld [vmem:[#allocation5 + $0x1540] sm:$0xff]
        %v1103 = vld [vmem:[#allocation5 + $0x1548] sm:$0xff]
        %v1104 = vld [vmem:[#allocation5 + $0x1550] sm:$0xff]
        %v1105 = vld [vmem:[#allocation5 + $0x1558] sm:$0xff]
        %v1106 = vld [vmem:[#allocation5 + $0x1560] sm:$0xff]
        %v1107 = vld [vmem:[#allocation5 + $0x1568] sm:$0xff]
        %v1108 = vld [vmem:[#allocation5 + $0x1570] sm:$0xff]
        %v1109 = vld [vmem:[#allocation5 + $0x1578] sm:$0xff]
        %v1110 = vld [vmem:[#allocation5 + $0x1580] sm:$0xff]
        %v1111 = vld [vmem:[#allocation5 + $0x1588] sm:$0xff]
        %v1112 = vld [vmem:[#allocation5 + $0x1590] sm:$0xff]
        %v1113 = vld [vmem:[#allocation5 + $0x1598] sm:$0xff]
        %v1114 = vld [vmem:[#allocation5 + $0x15a0] sm:$0xff]
        %v1115 = vld [vmem:[#allocation5 + $0x15a8] sm:$0xff]
        %v1116 = vld [vmem:[#allocation5 + $0x15b0] sm:$0xff]
        %v1117 = vld [vmem:[#allocation5 + $0x15b8] sm:$0xff]
        %v1118 = vld [vmem:[#allocation5 + $0x15c0] sm:$0xff]
        %v1119 = vld [vmem:[#allocation5 + $0x15c8] sm:$0xff]
        %v1120 = vld [vmem:[#allocation5 + $0x15d0] sm:$0xff]
        %v1121 = vld [vmem:[#allocation5 + $0x15d8] sm:$0xff]
        %v1122 = vld [vmem:[#allocation5 + $0x15e0] sm:$0xff]
        %v1123 = vld [vmem:[#allocation5 + $0x15e8] sm:$0xff]
        %v1124 = vld [vmem:[#allocation5 + $0x15f0] sm:$0xff]
        %v1125 = vld [vmem:[#allocation5 + $0x15f8] sm:$0xff]
        %v1126 = vld [vmem:[#allocation5 + $0x1600] sm:$0xff]
        %v1127 = vld [vmem:[#allocation5 + $0x1608] sm:$0xff]
        %v1128 = vld [vmem:[#allocation5 + $0x1610] sm:$0xff]
        %v1129 = vld [vmem:[#allocation5 + $0x1618] sm:$0xff]
        %v1130 = vld [vmem:[#allocation5 + $0x1620] sm:$0xff]
        %v1131 = vld [vmem:[#allocation5 + $0x1628] sm:$0xff]
        %v1132 = vld [vmem:[#allocation5 + $0x1630] sm:$0xff]
        %v1133 = vld [vmem:[#allocation5 + $0x1638] sm:$0xff]
        %v1134 = vld [vmem:[#allocation5 + $0x1640] sm:$0xff]
        %v1135 = vld [vmem:[#allocation5 + $0x1648] sm:$0xff]
        %v1136 = vld [vmem:[#allocation5 + $0x1650] sm:$0xff]
        %v1137 = vld [vmem:[#allocation5 + $0x1658] sm:$0xff]
        %v1138 = vld [vmem:[#allocation5 + $0x1660] sm:$0xff]
        %v1139 = vld [vmem:[#allocation5 + $0x1668] sm:$0xff]
        %v1140 = vld [vmem:[#allocation5 + $0x1670] sm:$0xff]
        %v1141 = vld [vmem:[#allocation5 + $0x1678] sm:$0xff]
        %v1142 = vld [vmem:[#allocation5 + $0x1680] sm:$0xff]
        %v1143 = vld [vmem:[#allocation5 + $0x1688] sm:$0xff]
        %v1144 = vld [vmem:[#allocation5 + $0x1690] sm:$0xff]
        %v1145 = vld [vmem:[#allocation5 + $0x1698] sm:$0xff]
        %v1146 = vld [vmem:[#allocation5 + $0x16a0] sm:$0xff]
        %v1147 = vld [vmem:[#allocation5 + $0x16a8] sm:$0xff]
        %v1148 = vld [vmem:[#allocation5 + $0x16b0] sm:$0xff]
        %v1149 = vld [vmem:[#allocation5 + $0x16b8] sm:$0xff]
        %v1150 = vld [vmem:[#allocation5 + $0x16c0] sm:$0xff]
        %v1151 = vld [vmem:[#allocation5 + $0x16c8] sm:$0xff]
        %v1152 = vld [vmem:[#allocation5 + $0x16d0] sm:$0xff]
        %v1153 = vld [vmem:[#allocation5 + $0x16d8] sm:$0xff]
        %v1154 = vld [vmem:[#allocation5 + $0x16e0] sm:$0xff]
        %v1155 = vld [vmem:[#allocation5 + $0x16e8] sm:$0xff]
        %v1156 = vld [vmem:[#allocation5 + $0x16f0] sm:$0xff]
        %v1157 = vld [vmem:[#allocation5 + $0x16f8] sm:$0xff]
        %v1158 = vld [vmem:[#allocation5 + $0x1700] sm:$0xff]
        %v1159 = vld [vmem:[#allocation5 + $0x1708] sm:$0xff]
        %v1160 = vld [vmem:[#allocation5 + $0x1710] sm:$0xff]
        %v1161 = vld [vmem:[#allocation5 + $0x1718] sm:$0xff]
        %v1162 = vld [vmem:[#allocation5 + $0x1720] sm:$0xff]
        %v1163 = vld [vmem:[#allocation5 + $0x1728] sm:$0xff]
        %v1164 = vld [vmem:[#allocation5 + $0x1730] sm:$0xff]
        %v1165 = vld [vmem:[#allocation5 + $0x1738] sm:$0xff]
        %v1166 = vld [vmem:[#allocation5 + $0x1740] sm:$0xff]
        %v1167 = vld [vmem:[#allocation5 + $0x1748] sm:$0xff]
        %v1168 = vld [vmem:[#allocation5 + $0x1750] sm:$0xff]
        %v1169 = vld [vmem:[#allocation5 + $0x1758] sm:$0xff]
        %v1170 = vld [vmem:[#allocation5 + $0x1760] sm:$0xff]
        %v1171 = vld [vmem:[#allocation5 + $0x1768] sm:$0xff]
        %v1172 = vld [vmem:[#allocation5 + $0x1770] sm:$0xff]
        %v1173 = vld [vmem:[#allocation5 + $0x1778] sm:$0xff]
        %v1174 = vld [vmem:[#allocation5 + $0x1780] sm:$0xff]
        %v1175 = vld [vmem:[#allocation5 + $0x1788] sm:$0xff]
        %v1176 = vld [vmem:[#allocation5 + $0x1790] sm:$0xff]
        %v1177 = vld [vmem:[#allocation5 + $0x1798] sm:$0xff]
        %v1178 = vld [vmem:[#allocation5 + $0x17a0] sm:$0xff]
        %v1179 = vld [vmem:[#allocation5 + $0x17a8] sm:$0xff]
        %v1180 = vld [vmem:[#allocation5 + $0x17b0] sm:$0xff]
        %v1181 = vld [vmem:[#allocation5 + $0x17b8] sm:$0xff]
        %v1182 = vld [vmem:[#allocation5 + $0x17c0] sm:$0xff]
        %v1183 = vld [vmem:[#allocation5 + $0x17c8] sm:$0xff]
        %v1184 = vld [vmem:[#allocation5 + $0x17d0] sm:$0xff]
        %v1185 = vld [vmem:[#allocation5 + $0x17d8] sm:$0xff]
        %v1186 = vld [vmem:[#allocation5 + $0x17e0] sm:$0xff]
        %v1187 = vld [vmem:[#allocation5 + $0x17e8] sm:$0xff]
        %v1188 = vld [vmem:[#allocation5 + $0x17f0] sm:$0xff]
        %v1189 = vld [vmem:[#allocation5 + $0x17f8] sm:$0xff]
        %v1190 = vld [vmem:[#allocation5 + $0x1800] sm:$0xff]
        %v1191 = vld [vmem:[#allocation5 + $0x1808] sm:$0xff]
        %v1192 = vld [vmem:[#allocation5 + $0x1810] sm:$0xff]
        %v1193 = vld [vmem:[#allocation5 + $0x1818] sm:$0xff]
        %v1194 = vld [vmem:[#allocation5 + $0x1820] sm:$0xff]
        %v1195 = vld [vmem:[#allocation5 + $0x1828] sm:$0xff]
        %v1196 = vld [vmem:[#allocation5 + $0x1830] sm:$0xff]
        %v1197 = vld [vmem:[#allocation5 + $0x1838] sm:$0xff]
        %v1198 = vld [vmem:[#allocation5 + $0x1840] sm:$0xff]
        %v1199 = vld [vmem:[#allocation5 + $0x1848] sm:$0xff]
        %v1200 = vld [vmem:[#allocation5 + $0x1850] sm:$0xff]
        %v1201 = vld [vmem:[#allocation5 + $0x1858] sm:$0xff]
        %v1202 = vld [vmem:[#allocation5 + $0x1860] sm:$0xff]
        %v1203 = vld [vmem:[#allocation5 + $0x1868] sm:$0xff]
        %v1204 = vld [vmem:[#allocation5 + $0x1870] sm:$0xff]
        %v1205 = vld [vmem:[#allocation5 + $0x1878] sm:$0xff]
        %v1206 = vld [vmem:[#allocation5 + $0x1880] sm:$0xff]
        %v1207 = vld [vmem:[#allocation5 + $0x1888] sm:$0xff]
        %v1208 = vld [vmem:[#allocation5 + $0x1890] sm:$0xff]
        %v1209 = vld [vmem:[#allocation5 + $0x1898] sm:$0xff]
        %v1210 = vld [vmem:[#allocation5 + $0x18a0] sm:$0xff]
        %v1211 = vld [vmem:[#allocation5 + $0x18a8] sm:$0xff]
        %v1212 = vld [vmem:[#allocation5 + $0x18b0] sm:$0xff]
        %v1213 = vld [vmem:[#allocation5 + $0x18b8] sm:$0xff]
        %v1214 = vld [vmem:[#allocation5 + $0x18c0] sm:$0xff]
        %v1215 = vld [vmem:[#allocation5 + $0x18c8] sm:$0xff]
        %v1216 = vld [vmem:[#allocation5 + $0x18d0] sm:$0xff]
        %v1217 = vld [vmem:[#allocation5 + $0x18d8] sm:$0xff]
        %v1218 = vld [vmem:[#allocation5 + $0x18e0] sm:$0xff]
        %v1219 = vld [vmem:[#allocation5 + $0x18e8] sm:$0xff]
        %v1220 = vld [vmem:[#allocation5 + $0x18f0] sm:$0xff]
        %v1221 = vld [vmem:[#allocation5 + $0x18f8] sm:$0xff]
        %v1222 = vld [vmem:[#allocation5 + $0x1900] sm:$0xff]
        %v1223 = vld [vmem:[#allocation5 + $0x1908] sm:$0xff]
        %v1224 = vld [vmem:[#allocation5 + $0x1910] sm:$0xff]
        %v1225 = vld [vmem:[#allocation5 + $0x1918] sm:$0xff]
        %v1226 = vld [vmem:[#allocation5 + $0x1920] sm:$0xff]
        %v1227 = vld [vmem:[#allocation5 + $0x1928] sm:$0xff]
        %v1228 = vld [vmem:[#allocation5 + $0x1930] sm:$0xff]
        %v1229 = vld [vmem:[#allocation5 + $0x1938] sm:$0xff]
        %v1230 = vld [vmem:[#allocation5 + $0x1940] sm:$0xff]
        %v1231 = vld [vmem:[#allocation5 + $0x1948] sm:$0xff]
        %v1232 = vld [vmem:[#allocation5 + $0x1950] sm:$0xff]
        %v1233 = vld [vmem:[#allocation5 + $0x1958] sm:$0xff]
        %v1234 = vld [vmem:[#allocation5 + $0x1960] sm:$0xff]
        %v1235 = vld [vmem:[#allocation5 + $0x1968] sm:$0xff]
        %v1236 = vld [vmem:[#allocation5 + $0x1970] sm:$0xff]
        %v1237 = vld [vmem:[#allocation5 + $0x1978] sm:$0xff]
        %v1238 = vld [vmem:[#allocation5 + $0x1980] sm:$0xff]
        %v1239 = vld [vmem:[#allocation5 + $0x1988] sm:$0xff]
        %v1240 = vld [vmem:[#allocation5 + $0x1990] sm:$0xff]
        %v1241 = vld [vmem:[#allocation5 + $0x1998] sm:$0xff]
        %v1242 = vld [vmem:[#allocation5 + $0x19a0] sm:$0xff]
        %v1243 = vld [vmem:[#allocation5 + $0x19a8] sm:$0xff]
        %v1244 = vld [vmem:[#allocation5 + $0x19b0] sm:$0xff]
        %v1245 = vld [vmem:[#allocation5 + $0x19b8] sm:$0xff]
        %v1246 = vld [vmem:[#allocation5 + $0x19c0] sm:$0xff]
        %v1247 = vld [vmem:[#allocation5 + $0x19c8] sm:$0xff]
        %v1248 = vld [vmem:[#allocation5 + $0x19d0] sm:$0xff]
        %v1249 = vld [vmem:[#allocation5 + $0x19d8] sm:$0xff]
        %v1250 = vld [vmem:[#allocation5 + $0x19e0] sm:$0xff]
        %v1251 = vld [vmem:[#allocation5 + $0x19e8] sm:$0xff]
        %v1252 = vld [vmem:[#allocation5 + $0x19f0] sm:$0xff]
        %v1253 = vld [vmem:[#allocation5 + $0x19f8] sm:$0xff]
        %v1254 = vld [vmem:[#allocation5 + $0x1a00] sm:$0xff]
        %v1255 = vld [vmem:[#allocation5 + $0x1a08] sm:$0xff]
        %v1256 = vld [vmem:[#allocation5 + $0x1a10] sm:$0xff]
        %v1257 = vld [vmem:[#allocation5 + $0x1a18] sm:$0xff]
        %v1258 = vld [vmem:[#allocation5 + $0x1a20] sm:$0xff]
        %v1259 = vld [vmem:[#allocation5 + $0x1a28] sm:$0xff]
        %v1260 = vld [vmem:[#allocation5 + $0x1a30] sm:$0xff]
        %v1261 = vld [vmem:[#allocation5 + $0x1a38] sm:$0xff]
        %v1262 = vld [vmem:[#allocation5 + $0x1a40] sm:$0xff]
        %v1263 = vld [vmem:[#allocation5 + $0x1a48] sm:$0xff]
        %v1264 = vld [vmem:[#allocation5 + $0x1a50] sm:$0xff]
        %v1265 = vld [vmem:[#allocation5 + $0x1a58] sm:$0xff]
        %v1266 = vld [vmem:[#allocation5 + $0x1a60] sm:$0xff]
        %v1267 = vld [vmem:[#allocation5 + $0x1a68] sm:$0xff]
        %v1268 = vld [vmem:[#allocation5 + $0x1a70] sm:$0xff]
        %v1269 = vld [vmem:[#allocation5 + $0x1a78] sm:$0xff]
        %v1270 = vld [vmem:[#allocation5 + $0x1a80] sm:$0xff]
        %v1271 = vld [vmem:[#allocation5 + $0x1a88] sm:$0xff]
        %v1272 = vld [vmem:[#allocation5 + $0x1a90] sm:$0xff]
        %v1273 = vld [vmem:[#allocation5 + $0x1a98] sm:$0xff]
        %v1274 = vld [vmem:[#allocation5 + $0x1aa0] sm:$0xff]
        %v1275 = vld [vmem:[#allocation5 + $0x1aa8] sm:$0xff]
        %v1276 = vld [vmem:[#allocation5 + $0x1ab0] sm:$0xff]
        %v1277 = vld [vmem:[#allocation5 + $0x1ab8] sm:$0xff]
        %v1278 = vld [vmem:[#allocation5 + $0x1ac0] sm:$0xff]
        %v1279 = vld [vmem:[#allocation5 + $0x1ac8] sm:$0xff]
        %v1280 = vld [vmem:[#allocation5 + $0x1ad0] sm:$0xff]
        %v1281 = vld [vmem:[#allocation5 + $0x1ad8] sm:$0xff]
        %v1282 = vld [vmem:[#allocation5 + $0x1ae0] sm:$0xff]
        %v1283 = vld [vmem:[#allocation5 + $0x1ae8] sm:$0xff]
        %v1284 = vld [vmem:[#allocation5 + $0x1af0] sm:$0xff]
        %v1285 = vld [vmem:[#allocation5 + $0x1af8] sm:$0xff]
        %v1286 = vld [vmem:[#allocation5 + $0x1b00] sm:$0xff]
        %v1287 = vld [vmem:[#allocation5 + $0x1b08] sm:$0xff]
        %v1288 = vld [vmem:[#allocation5 + $0x1b10] sm:$0xff]
        %v1289 = vld [vmem:[#allocation5 + $0x1b18] sm:$0xff]
        %v1290 = vld [vmem:[#allocation5 + $0x1b20] sm:$0xff]
        %v1291 = vld [vmem:[#allocation5 + $0x1b28] sm:$0xff]
        %v1292 = vld [vmem:[#allocation5 + $0x1b30] sm:$0xff]
        %v1293 = vld [vmem:[#allocation5 + $0x1b38] sm:$0xff]
        %v1294 = vld [vmem:[#allocation5 + $0x1b40] sm:$0xff]
        %v1295 = vld [vmem:[#allocation5 + $0x1b48] sm:$0xff]
        %v1296 = vld [vmem:[#allocation5 + $0x1b50] sm:$0xff]
        %v1297 = vld [vmem:[#allocation5 + $0x1b58] sm:$0xff]
        %v1298 = vld [vmem:[#allocation5 + $0x1b60] sm:$0xff]
        %v1299 = vld [vmem:[#allocation5 + $0x1b68] sm:$0xff]
        %v1300 = vld [vmem:[#allocation5 + $0x1b70] sm:$0xff]
        %v1301 = vld [vmem:[#allocation5 + $0x1b78] sm:$0xff]
        %v1302 = vld [vmem:[#allocation5 + $0x1b80] sm:$0xff]
        %v1303 = vld [vmem:[#allocation5 + $0x1b88] sm:$0xff]
        %v1304 = vld [vmem:[#allocation5 + $0x1b90] sm:$0xff]
        %v1305 = vld [vmem:[#allocation5 + $0x1b98] sm:$0xff]
        %v1306 = vld [vmem:[#allocation5 + $0x1ba0] sm:$0xff]
        %v1307 = vld [vmem:[#allocation5 + $0x1ba8] sm:$0xff]
        %v1308 = vld [vmem:[#allocation5 + $0x1bb0] sm:$0xff]
        %v1309 = vld [vmem:[#allocation5 + $0x1bb8] sm:$0xff]
        %v1310 = vld [vmem:[#allocation5 + $0x1bc0] sm:$0xff]
        %v1311 = vld [vmem:[#allocation5 + $0x1bc8] sm:$0xff]
        %v1312 = vld [vmem:[#allocation5 + $0x1bd0] sm:$0xff]
        %v1313 = vld [vmem:[#allocation5 + $0x1bd8] sm:$0xff]
        %v1314 = vld [vmem:[#allocation5 + $0x1be0] sm:$0xff]
        %v1315 = vld [vmem:[#allocation5 + $0x1be8] sm:$0xff]
        %v1316 = vld [vmem:[#allocation5 + $0x1bf0] sm:$0xff]
        %v1317 = vld [vmem:[#allocation5 + $0x1bf8] sm:$0xff]
        %v1318 = vld [vmem:[#allocation5 + $0x1c00] sm:$0xff]
        %v1319 = vld [vmem:[#allocation5 + $0x1c08] sm:$0xff]
        %v1320 = vld [vmem:[#allocation5 + $0x1c10] sm:$0xff]
        %v1321 = vld [vmem:[#allocation5 + $0x1c18] sm:$0xff]
        %v1322 = vld [vmem:[#allocation5 + $0x1c20] sm:$0xff]
        %v1323 = vld [vmem:[#allocation5 + $0x1c28] sm:$0xff]
        %v1324 = vld [vmem:[#allocation5 + $0x1c30] sm:$0xff]
        %v1325 = vld [vmem:[#allocation5 + $0x1c38] sm:$0xff]
        %v1326 = vld [vmem:[#allocation5 + $0x1c40] sm:$0xff]
        %v1327 = vld [vmem:[#allocation5 + $0x1c48] sm:$0xff]
        %v1328 = vld [vmem:[#allocation5 + $0x1c50] sm:$0xff]
        %v1329 = vld [vmem:[#allocation5 + $0x1c58] sm:$0xff]
        %v1330 = vld [vmem:[#allocation5 + $0x1c60] sm:$0xff]
        %v1331 = vld [vmem:[#allocation5 + $0x1c68] sm:$0xff]
        %v1332 = vld [vmem:[#allocation5 + $0x1c70] sm:$0xff]
        %v1333 = vld [vmem:[#allocation5 + $0x1c78] sm:$0xff]
        %v1334 = vld [vmem:[#allocation5 + $0x1c80] sm:$0xff]
        %v1335 = vld [vmem:[#allocation5 + $0x1c88] sm:$0xff]
        %v1336 = vld [vmem:[#allocation5 + $0x1c90] sm:$0xff]
        %v1337 = vld [vmem:[#allocation5 + $0x1c98] sm:$0xff]
        %v1338 = vld [vmem:[#allocation5 + $0x1ca0] sm:$0xff]
        %v1339 = vld [vmem:[#allocation5 + $0x1ca8] sm:$0xff]
        %v1340 = vld [vmem:[#allocation5 + $0x1cb0] sm:$0xff]
        %v1341 = vld [vmem:[#allocation5 + $0x1cb8] sm:$0xff]
        %v1342 = vld [vmem:[#allocation5 + $0x1cc0] sm:$0xff]
        %v1343 = vld [vmem:[#allocation5 + $0x1cc8] sm:$0xff]
        %v1344 = vld [vmem:[#allocation5 + $0x1cd0] sm:$0xff]
        %v1345 = vld [vmem:[#allocation5 + $0x1cd8] sm:$0xff]
        %v1346 = vld [vmem:[#allocation5 + $0x1ce0] sm:$0xff]
        %v1347 = vld [vmem:[#allocation5 + $0x1ce8] sm:$0xff]
        %v1348 = vld [vmem:[#allocation5 + $0x1cf0] sm:$0xff]
        %v1349 = vld [vmem:[#allocation5 + $0x1cf8] sm:$0xff]
        %v1350 = vld [vmem:[#allocation5 + $0x1d00] sm:$0xff]
        %v1351 = vld [vmem:[#allocation5 + $0x1d08] sm:$0xff]
        %v1352 = vld [vmem:[#allocation5 + $0x1d10] sm:$0xff]
        %v1353 = vld [vmem:[#allocation5 + $0x1d18] sm:$0xff]
        %v1354 = vld [vmem:[#allocation5 + $0x1d20] sm:$0xff]
        %v1355 = vld [vmem:[#allocation5 + $0x1d28] sm:$0xff]
        %v1356 = vld [vmem:[#allocation5 + $0x1d30] sm:$0xff]
        %v1357 = vld [vmem:[#allocation5 + $0x1d38] sm:$0xff]
        %v1358 = vld [vmem:[#allocation5 + $0x1d40] sm:$0xff]
        %v1359 = vld [vmem:[#allocation5 + $0x1d48] sm:$0xff]
        %v1360 = vld [vmem:[#allocation5 + $0x1d50] sm:$0xff]
        %v1361 = vld [vmem:[#allocation5 + $0x1d58] sm:$0xff]
        %v1362 = vld [vmem:[#allocation5 + $0x1d60] sm:$0xff]
        %v1363 = vld [vmem:[#allocation5 + $0x1d68] sm:$0xff]
        %v1364 = vld [vmem:[#allocation5 + $0x1d70] sm:$0xff]
        %v1365 = vld [vmem:[#allocation5 + $0x1d78] sm:$0xff]
        %v1366 = vld [vmem:[#allocation5 + $0x1d80] sm:$0xff]
        %v1367 = vld [vmem:[#allocation5 + $0x1d88] sm:$0xff]
        %v1368 = vld [vmem:[#allocation5 + $0x1d90] sm:$0xff]
        %v1369 = vld [vmem:[#allocation5 + $0x1d98] sm:$0xff]
        %v1370 = vld [vmem:[#allocation5 + $0x1da0] sm:$0xff]
        %v1371 = vld [vmem:[#allocation5 + $0x1da8] sm:$0xff]
        %v1372 = vld [vmem:[#allocation5 + $0x1db0] sm:$0xff]
        %v1373 = vld [vmem:[#allocation5 + $0x1db8] sm:$0xff]
        %v1374 = vld [vmem:[#allocation5 + $0x1dc0] sm:$0xff]
        %v1375 = vld [vmem:[#allocation5 + $0x1dc8] sm:$0xff]
        %v1376 = vld [vmem:[#allocation5 + $0x1dd0] sm:$0xff]
        %v1377 = vld [vmem:[#allocation5 + $0x1dd8] sm:$0xff]
        %v1378 = vld [vmem:[#allocation5 + $0x1de0] sm:$0xff]
        %v1379 = vld [vmem:[#allocation5 + $0x1de8] sm:$0xff]
        %v1380 = vld [vmem:[#allocation5 + $0x1df0] sm:$0xff]
        %v1381 = vld [vmem:[#allocation5 + $0x1df8] sm:$0xff]
        %v1382 = vld [vmem:[#allocation5 + $0x1e00] sm:$0xff]
        %v1383 = vld [vmem:[#allocation5 + $0x1e08] sm:$0xff]
        %v1384 = vld [vmem:[#allocation5 + $0x1e10] sm:$0xff]
        %v1385 = vld [vmem:[#allocation5 + $0x1e18] sm:$0xff]
        %v1386 = vld [vmem:[#allocation5 + $0x1e20] sm:$0xff]
        %v1387 = vld [vmem:[#allocation5 + $0x1e28] sm:$0xff]
        %v1388 = vld [vmem:[#allocation5 + $0x1e30] sm:$0xff]
        %v1389 = vld [vmem:[#allocation5 + $0x1e38] sm:$0xff]
        %v1390 = vld [vmem:[#allocation5 + $0x1e40] sm:$0xff]
        %v1391 = vld [vmem:[#allocation5 + $0x1e48] sm:$0xff]
        %v1392 = vld [vmem:[#allocation5 + $0x1e50] sm:$0xff]
        %v1393 = vld [vmem:[#allocation5 + $0x1e58] sm:$0xff]
        %v1394 = vld [vmem:[#allocation5 + $0x1e60] sm:$0xff]
        %v1395 = vld [vmem:[#allocation5 + $0x1e68] sm:$0xff]
        %v1396 = vld [vmem:[#allocation5 + $0x1e70] sm:$0xff]
        %v1397 = vld [vmem:[#allocation5 + $0x1e78] sm:$0xff]
        %v1398 = vld [vmem:[#allocation5 + $0x1e80] sm:$0xff]
        %v1399 = vld [vmem:[#allocation5 + $0x1e88] sm:$0xff]
        %v1400 = vld [vmem:[#allocation5 + $0x1e90] sm:$0xff]
        %v1401 = vld [vmem:[#allocation5 + $0x1e98] sm:$0xff]
        %v1402 = vld [vmem:[#allocation5 + $0x1ea0] sm:$0xff]
        %v1403 = vld [vmem:[#allocation5 + $0x1ea8] sm:$0xff]
        %v1404 = vld [vmem:[#allocation5 + $0x1eb0] sm:$0xff]
        %v1405 = vld [vmem:[#allocation5 + $0x1eb8] sm:$0xff]
        %v1406 = vld [vmem:[#allocation5 + $0x1ec0] sm:$0xff]
        %v1407 = vld [vmem:[#allocation5 + $0x1ec8] sm:$0xff]
        %v1408 = vld [vmem:[#allocation5 + $0x1ed0] sm:$0xff]
        %v1409 = vld [vmem:[#allocation5 + $0x1ed8] sm:$0xff]
        %v1410 = vld [vmem:[#allocation5 + $0x1ee0] sm:$0xff]
        %v1411 = vld [vmem:[#allocation5 + $0x1ee8] sm:$0xff]
        %v1412 = vld [vmem:[#allocation5 + $0x1ef0] sm:$0xff]
        %v1413 = vld [vmem:[#allocation5 + $0x1ef8] sm:$0xff]
        %v1414 = vld [vmem:[#allocation5 + $0x1f00] sm:$0xff]
        %v1415 = vld [vmem:[#allocation5 + $0x1f08] sm:$0xff]
        %v1416 = vld [vmem:[#allocation5 + $0x1f10] sm:$0xff]
        %v1417 = vld [vmem:[#allocation5 + $0x1f18] sm:$0xff]
        %v1418 = vld [vmem:[#allocation5 + $0x1f20] sm:$0xff]
        %v1419 = vld [vmem:[#allocation5 + $0x1f28] sm:$0xff]
        %v1420 = vld [vmem:[#allocation5 + $0x1f30] sm:$0xff]
        %v1421 = vld [vmem:[#allocation5 + $0x1f38] sm:$0xff]
        %v1422 = vld [vmem:[#allocation5 + $0x1f40] sm:$0xff]
        %v1423 = vld [vmem:[#allocation5 + $0x1f48] sm:$0xff]
        %v1424 = vld [vmem:[#allocation5 + $0x1f50] sm:$0xff]
        %v1425 = vld [vmem:[#allocation5 + $0x1f58] sm:$0xff]
        %v1426 = vld [vmem:[#allocation5 + $0x1f60] sm:$0xff]
        %v1427 = vld [vmem:[#allocation5 + $0x1f68] sm:$0xff]
        %v1428 = vld [vmem:[#allocation5 + $0x1f70] sm:$0xff]
        %v1429 = vld [vmem:[#allocation5 + $0x1f78] sm:$0xff]
        %v1430 = vld [vmem:[#allocation5 + $0x1f80] sm:$0xff]
        %v1431 = vld [vmem:[#allocation5 + $0x1f88] sm:$0xff]
        %v1432 = vld [vmem:[#allocation5 + $0x1f90] sm:$0xff]
        %v1433 = vld [vmem:[#allocation5 + $0x1f98] sm:$0xff]
        %v1434 = vld [vmem:[#allocation5 + $0x1fa0] sm:$0xff]
        %v1435 = vld [vmem:[#allocation5 + $0x1fa8] sm:$0xff]
        %v1436 = vld [vmem:[#allocation5 + $0x1fb0] sm:$0xff]
        %v1437 = vld [vmem:[#allocation5 + $0x1fb8] sm:$0xff]
        %v1438 = vld [vmem:[#allocation5 + $0x1fc0] sm:$0xff]
        %v1439 = vld [vmem:[#allocation5 + $0x1fc8] sm:$0xff]
        %v1440 = vld [vmem:[#allocation5 + $0x1fd0] sm:$0xff]
        %v1441 = vld [vmem:[#allocation5 + $0x1fd8] sm:$0xff]
        %v1442 = vld [vmem:[#allocation5 + $0x1fe0] sm:$0xff]
        %v1443 = vld [vmem:[#allocation5 + $0x1fe8] sm:$0xff]
        %v1444 = vld [vmem:[#allocation5 + $0x1ff0] sm:$0xff]
        %v1445 = vld [vmem:[#allocation5 + $0x1ff8] sm:$0xff]
        %v1446 = vld [vmem:[#allocation5 + $0x2000] sm:$0xff]
        %v1447 = vld [vmem:[#allocation5 + $0x2008] sm:$0xff]
        %v1448 = vld [vmem:[#allocation5 + $0x2010] sm:$0xff]
        %v1449 = vld [vmem:[#allocation5 + $0x2018] sm:$0xff]
        %v1450 = vld [vmem:[#allocation5 + $0x2020] sm:$0xff]
        %v1451 = vld [vmem:[#allocation5 + $0x2028] sm:$0xff]
        %v1452 = vld [vmem:[#allocation5 + $0x2030] sm:$0xff]
        %v1453 = vld [vmem:[#allocation5 + $0x2038] sm:$0xff]
        %v1454 = vld [vmem:[#allocation5 + $0x2040] sm:$0xff]
        %v1455 = vld [vmem:[#allocation5 + $0x2048] sm:$0xff]
        %v1456 = vld [vmem:[#allocation5 + $0x2050] sm:$0xff]
        %v1457 = vld [vmem:[#allocation5 + $0x2058] sm:$0xff]
        %v1458 = vld [vmem:[#allocation5 + $0x2060] sm:$0xff]
        %v1459 = vld [vmem:[#allocation5 + $0x2068] sm:$0xff]
        %v1460 = vld [vmem:[#allocation5 + $0x2070] sm:$0xff]
        %v1461 = vld [vmem:[#allocation5 + $0x2078] sm:$0xff]
        %v1462 = vld [vmem:[#allocation5 + $0x2080] sm:$0xff]
        %v1463 = vld [vmem:[#allocation5 + $0x2088] sm:$0xff]
        %v1464 = vld [vmem:[#allocation5 + $0x2090] sm:$0xff]
        %v1465 = vld [vmem:[#allocation5 + $0x2098] sm:$0xff]
        %v1466 = vld [vmem:[#allocation5 + $0x20a0] sm:$0xff]
        %v1467 = vld [vmem:[#allocation5 + $0x20a8] sm:$0xff]
        %v1468 = vld [vmem:[#allocation5 + $0x20b0] sm:$0xff]
        %v1469 = vld [vmem:[#allocation5 + $0x20b8] sm:$0xff]
        %v1470 = vld [vmem:[#allocation5 + $0x20c0] sm:$0xff]
        %v1471 = vld [vmem:[#allocation5 + $0x20c8] sm:$0xff]
        %v1472 = vld [vmem:[#allocation5 + $0x20d0] sm:$0xff]
        %v1473 = vld [vmem:[#allocation5 + $0x20d8] sm:$0xff]
        %v1474 = vld [vmem:[#allocation5 + $0x20e0] sm:$0xff]
        %v1475 = vld [vmem:[#allocation5 + $0x20e8] sm:$0xff]
        %v1476 = vld [vmem:[#allocation5 + $0x20f0] sm:$0xff]
        %v1477 = vld [vmem:[#allocation5 + $0x20f8] sm:$0xff]
        %v1478 = vld [vmem:[#allocation5 + $0x2100] sm:$0xff]
        %v1479 = vld [vmem:[#allocation5 + $0x2108] sm:$0xff]
        %v1480 = vld [vmem:[#allocation5 + $0x2110] sm:$0xff]
        %v1481 = vld [vmem:[#allocation5 + $0x2118] sm:$0xff]
        %v1482 = vld [vmem:[#allocation5 + $0x2120] sm:$0xff]
        %v1483 = vld [vmem:[#allocation5 + $0x2128] sm:$0xff]
        %v1484 = vld [vmem:[#allocation5 + $0x2130] sm:$0xff]
        %v1485 = vld [vmem:[#allocation5 + $0x2138] sm:$0xff]
        %v1486 = vld [vmem:[#allocation5 + $0x2140] sm:$0xff]
        %v1487 = vld [vmem:[#allocation5 + $0x2148] sm:$0xff]
        %v1488 = vld [vmem:[#allocation5 + $0x2150] sm:$0xff]
        %v1489 = vld [vmem:[#allocation5 + $0x2158] sm:$0xff]
        %v1490 = vld [vmem:[#allocation5 + $0x2160] sm:$0xff]
        %v1491 = vld [vmem:[#allocation5 + $0x2168] sm:$0xff]
        %v1492 = vld [vmem:[#allocation5 + $0x2170] sm:$0xff]
        %v1493 = vld [vmem:[#allocation5 + $0x2178] sm:$0xff]
        %v1494 = vld [vmem:[#allocation5 + $0x2180] sm:$0xff]
        %v1495 = vld [vmem:[#allocation5 + $0x2188] sm:$0xff]
        %v1496 = vld [vmem:[#allocation5 + $0x2190] sm:$0xff]
        %v1497 = vld [vmem:[#allocation5 + $0x2198] sm:$0xff]
        %v1498 = vld [vmem:[#allocation5 + $0x21a0] sm:$0xff]
        %v1499 = vld [vmem:[#allocation5 + $0x21a8] sm:$0xff]
        %v1500 = vld [vmem:[#allocation5 + $0x21b0] sm:$0xff]
        %v1501 = vld [vmem:[#allocation5 + $0x21b8] sm:$0xff]
        %v1502 = vld [vmem:[#allocation5 + $0x21c0] sm:$0xff]
        %v1503 = vld [vmem:[#allocation5 + $0x21c8] sm:$0xff]
        %v1504 = vld [vmem:[#allocation5 + $0x21d0] sm:$0xff]
        %v1505 = vld [vmem:[#allocation5 + $0x21d8] sm:$0xff]
        %v1506 = vld [vmem:[#allocation5 + $0x21e0] sm:$0xff]
        %v1507 = vld [vmem:[#allocation5 + $0x21e8] sm:$0xff]
        %v1508 = vld [vmem:[#allocation5 + $0x21f0] sm:$0xff]
        %v1509 = vld [vmem:[#allocation5 + $0x21f8] sm:$0xff]
        %v1510 = vld [vmem:[#allocation5 + $0x2200] sm:$0xff]
        %v1511 = vld [vmem:[#allocation5 + $0x2208] sm:$0xff]
        %v1512 = vld [vmem:[#allocation5 + $0x2210] sm:$0xff]
        %v1513 = vld [vmem:[#allocation5 + $0x2218] sm:$0xff]
        %v1514 = vld [vmem:[#allocation5 + $0x2220] sm:$0xff]
        %v1515 = vld [vmem:[#allocation5 + $0x2228] sm:$0xff]
        %v1516 = vld [vmem:[#allocation5 + $0x2230] sm:$0xff]
        %v1517 = vld [vmem:[#allocation5 + $0x2238] sm:$0xff]
        %v1518 = vld [vmem:[#allocation5 + $0x2240] sm:$0xff]
        %v1519 = vld [vmem:[#allocation5 + $0x2248] sm:$0xff]
        %v1520 = vld [vmem:[#allocation5 + $0x2250] sm:$0xff]
        %v1521 = vld [vmem:[#allocation5 + $0x2258] sm:$0xff]
        %v1522 = vld [vmem:[#allocation5 + $0x2260] sm:$0xff]
        %v1523 = vld [vmem:[#allocation5 + $0x2268] sm:$0xff]
        %v1524 = vld [vmem:[#allocation5 + $0x2270] sm:$0xff]
        %v1525 = vld [vmem:[#allocation5 + $0x2278] sm:$0xff]
        %v1526 = vld [vmem:[#allocation5 + $0x2280] sm:$0xff]
        %v1527 = vld [vmem:[#allocation5 + $0x2288] sm:$0xff]
        %v1528 = vld [vmem:[#allocation5 + $0x2290] sm:$0xff]
        %v1529 = vld [vmem:[#allocation5 + $0x2298] sm:$0xff]
        %v1530 = vld [vmem:[#allocation5 + $0x22a0] sm:$0xff]
        %v1531 = vld [vmem:[#allocation5 + $0x22a8] sm:$0xff]
        %v1532 = vld [vmem:[#allocation5 + $0x22b0] sm:$0xff]
        %v1533 = vld [vmem:[#allocation5 + $0x22b8] sm:$0xff]
        %v1534 = vld [vmem:[#allocation5 + $0x22c0] sm:$0xff]
        %v1535 = vld [vmem:[#allocation5 + $0x22c8] sm:$0xff]
        %v1536 = vld [vmem:[#allocation5 + $0x22d0] sm:$0xff]
        %v1537 = vld [vmem:[#allocation5 + $0x22d8] sm:$0xff]
        %v1538 = vld [vmem:[#allocation5 + $0x22e0] sm:$0xff]
        %v1539 = vld [vmem:[#allocation5 + $0x22e8] sm:$0xff]
        %v1540 = vld [vmem:[#allocation5 + $0x22f0] sm:$0xff]
        %v1541 = vld [vmem:[#allocation5 + $0x22f8] sm:$0xff]
        %v1542 = vld [vmem:[#allocation5 + $0x2300] sm:$0xff]
        %v1543 = vld [vmem:[#allocation5 + $0x2308] sm:$0xff]
        %v1544 = vld [vmem:[#allocation5 + $0x2310] sm:$0xff]
        %v1545 = vld [vmem:[#allocation5 + $0x2318] sm:$0xff]
        %v1546 = vld [vmem:[#allocation5 + $0x2320] sm:$0xff]
        %v1547 = vld [vmem:[#allocation5 + $0x2328] sm:$0xff]
        %v1548 = vld [vmem:[#allocation5 + $0x2330] sm:$0xff]
        %v1549 = vld [vmem:[#allocation5 + $0x2338] sm:$0xff]
        %v1550 = vld [vmem:[#allocation5 + $0x2340] sm:$0xff]
        %v1551 = vld [vmem:[#allocation5 + $0x2348] sm:$0xff]
        %v1552 = vld [vmem:[#allocation5 + $0x2350] sm:$0xff]
        %v1553 = vld [vmem:[#allocation5 + $0x2358] sm:$0xff]
        %v1554 = vld [vmem:[#allocation5 + $0x2360] sm:$0xff]
        %v1555 = vld [vmem:[#allocation5 + $0x2368] sm:$0xff]
        %v1556 = vld [vmem:[#allocation5 + $0x2370] sm:$0xff]
        %v1557 = vld [vmem:[#allocation5 + $0x2378] sm:$0xff]
        %v1558 = vld [vmem:[#allocation5 + $0x2380] sm:$0xff]
        %v1559 = vld [vmem:[#allocation5 + $0x2388] sm:$0xff]
        %v1560 = vld [vmem:[#allocation5 + $0x2390] sm:$0xff]
        %v1561 = vld [vmem:[#allocation5 + $0x2398] sm:$0xff]
        %v1562 = vld [vmem:[#allocation5 + $0x23a0] sm:$0xff]
        %v1563 = vld [vmem:[#allocation5 + $0x23a8] sm:$0xff]
        %v1564 = vld [vmem:[#allocation5 + $0x23b0] sm:$0xff]
        %v1565 = vld [vmem:[#allocation5 + $0x23b8] sm:$0xff]
        %v1566 = vld [vmem:[#allocation5 + $0x23c0] sm:$0xff]
        %v1567 = vld [vmem:[#allocation5 + $0x23c8] sm:$0xff]
        %v1568 = vld [vmem:[#allocation5 + $0x23d0] sm:$0xff]
        %v1569 = vld [vmem:[#allocation5 + $0x23d8] sm:$0xff]
        %v1570 = vld [vmem:[#allocation5 + $0x23e0] sm:$0xff]
        %v1571 = vld [vmem:[#allocation5 + $0x23e8] sm:$0xff]
        %v1572 = vld [vmem:[#allocation5 + $0x23f0] sm:$0xff]
        %v1573 = vld [vmem:[#allocation5 + $0x23f8] sm:$0xff]
        %v1574 = vld [vmem:[#allocation5 + $0x2400] sm:$0xff]
        %v1575 = vld [vmem:[#allocation5 + $0x2408] sm:$0xff]
        %v1576 = vld [vmem:[#allocation5 + $0x2410] sm:$0xff]
        %v1577 = vld [vmem:[#allocation5 + $0x2418] sm:$0xff]
        %v1578 = vld [vmem:[#allocation5 + $0x2420] sm:$0xff]
        %v1579 = vld [vmem:[#allocation5 + $0x2428] sm:$0xff]
        %v1580 = vld [vmem:[#allocation5 + $0x2430] sm:$0xff]
        %v1581 = vld [vmem:[#allocation5 + $0x2438] sm:$0xff]
        %v1582 = vld [vmem:[#allocation5 + $0x2440] sm:$0xff]
        %v1583 = vld [vmem:[#allocation5 + $0x2448] sm:$0xff]
        %v1584 = vld [vmem:[#allocation5 + $0x2450] sm:$0xff]
        %v1585 = vld [vmem:[#allocation5 + $0x2458] sm:$0xff]
        %v1586 = vld [vmem:[#allocation5 + $0x2460] sm:$0xff]
        %v1587 = vld [vmem:[#allocation5 + $0x2468] sm:$0xff]
        %v1588 = vld [vmem:[#allocation5 + $0x2470] sm:$0xff]
        %v1589 = vld [vmem:[#allocation5 + $0x2478] sm:$0xff]
        %v1590 = vld [vmem:[#allocation5 + $0x2480] sm:$0xff]
        %v1591 = vld [vmem:[#allocation5 + $0x2488] sm:$0xff]
        %v1592 = vld [vmem:[#allocation5 + $0x2490] sm:$0xff]
        %v1593 = vld [vmem:[#allocation5 + $0x2498] sm:$0xff]
        %v1594 = vld [vmem:[#allocation5 + $0x24a0] sm:$0xff]
        %v1595 = vld [vmem:[#allocation5 + $0x24a8] sm:$0xff]
        %v1596 = vld [vmem:[#allocation5 + $0x24b0] sm:$0xff]
        %v1597 = vld [vmem:[#allocation5 + $0x24b8] sm:$0xff]
        %v1598 = vld [vmem:[#allocation5 + $0x24c0] sm:$0xff]
        %v1599 = vld [vmem:[#allocation5 + $0x24c8] sm:$0xff]
        %v1600 = vld [vmem:[#allocation5 + $0x24d0] sm:$0xff]
        %v1601 = vld [vmem:[#allocation5 + $0x24d8] sm:$0xff]
        %v1602 = vld [vmem:[#allocation5 + $0x24e0] sm:$0xff]
        %v1603 = vld [vmem:[#allocation5 + $0x24e8] sm:$0xff]
        %v1604 = vld [vmem:[#allocation5 + $0x24f0] sm:$0xff]
        %v1605 = vld [vmem:[#allocation5 + $0x24f8] sm:$0xff]
        %v1606 = vld [vmem:[#allocation5 + $0x2500] sm:$0xff]
        %v1607 = vld [vmem:[#allocation5 + $0x2508] sm:$0xff]
        %v1608 = vld [vmem:[#allocation5 + $0x2510] sm:$0xff]
        %v1609 = vld [vmem:[#allocation5 + $0x2518] sm:$0xff]
        %v1610 = vld [vmem:[#allocation5 + $0x2520] sm:$0xff]
        %v1611 = vld [vmem:[#allocation5 + $0x2528] sm:$0xff]
        %v1612 = vld [vmem:[#allocation5 + $0x2530] sm:$0xff]
        %v1613 = vld [vmem:[#allocation5 + $0x2538] sm:$0xff]
        %v1614 = vld [vmem:[#allocation5 + $0x2540] sm:$0xff]
        %v1615 = vld [vmem:[#allocation5 + $0x2548] sm:$0xff]
        %v1616 = vld [vmem:[#allocation5 + $0x2550] sm:$0xff]
        %v1617 = vld [vmem:[#allocation5 + $0x2558] sm:$0xff]
        %v1618 = vld [vmem:[#allocation5 + $0x2560] sm:$0xff]
        %v1619 = vld [vmem:[#allocation5 + $0x2568] sm:$0xff]
        %v1620 = vld [vmem:[#allocation5 + $0x2570] sm:$0xff]
        %v1621 = vld [vmem:[#allocation5 + $0x2578] sm:$0xff]
        %v1622 = vld [vmem:[#allocation5 + $0x2580] sm:$0xff]
        %v1623 = vld [vmem:[#allocation5 + $0x2588] sm:$0xff]
        %v1624 = vld [vmem:[#allocation5 + $0x2590] sm:$0xff]
        %v1625 = vld [vmem:[#allocation5 + $0x2598] sm:$0xff]
        %v1626 = vld [vmem:[#allocation5 + $0x25a0] sm:$0xff]
        %v1627 = vld [vmem:[#allocation5 + $0x25a8] sm:$0xff]
        %v1628 = vld [vmem:[#allocation5 + $0x25b0] sm:$0xff]
        %v1629 = vld [vmem:[#allocation5 + $0x25b8] sm:$0xff]
        %v1630 = vld [vmem:[#allocation5 + $0x25c0] sm:$0xff]
        %v1631 = vld [vmem:[#allocation5 + $0x25c8] sm:$0xff]
        %v1632 = vld [vmem:[#allocation5 + $0x25d0] sm:$0xff]
        %v1633 = vld [vmem:[#allocation5 + $0x25d8] sm:$0xff]
        %v1634 = vld [vmem:[#allocation5 + $0x25e0] sm:$0xff]
        %v1635 = vld [vmem:[#allocation5 + $0x25e8] sm:$0xff]
        %v1636 = vld [vmem:[#allocation5 + $0x25f0] sm:$0xff]
        %v1637 = vld [vmem:[#allocation5 + $0x25f8] sm:$0xff]
        %v1638 = vld [vmem:[#allocation5 + $0x2600] sm:$0xff]
        %v1639 = vld [vmem:[#allocation5 + $0x2608] sm:$0xff]
        %v1640 = vld [vmem:[#allocation5 + $0x2610] sm:$0xff]
        %v1641 = vld [vmem:[#allocation5 + $0x2618] sm:$0xff]
        %v1642 = vld [vmem:[#allocation5 + $0x2620] sm:$0xff]
        %v1643 = vld [vmem:[#allocation5 + $0x2628] sm:$0xff]
        %v1644 = vld [vmem:[#allocation5 + $0x2630] sm:$0xff]
        %v1645 = vld [vmem:[#allocation5 + $0x2638] sm:$0xff]
        %v1646 = vld [vmem:[#allocation5 + $0x2640] sm:$0xff]
        %v1647 = vld [vmem:[#allocation5 + $0x2648] sm:$0xff]
        %v1648 = vld [vmem:[#allocation5 + $0x2650] sm:$0xff]
        %v1649 = vld [vmem:[#allocation5 + $0x2658] sm:$0xff]
        %v1650 = vld [vmem:[#allocation5 + $0x2660] sm:$0xff]
        %v1651 = vld [vmem:[#allocation5 + $0x2668] sm:$0xff]
        %v1652 = vld [vmem:[#allocation5 + $0x2670] sm:$0xff]
        %v1653 = vld [vmem:[#allocation5 + $0x2678] sm:$0xff]
        %v1654 = vld [vmem:[#allocation5 + $0x2680] sm:$0xff]
        %v1655 = vld [vmem:[#allocation5 + $0x2688] sm:$0xff]
        %v1656 = vld [vmem:[#allocation5 + $0x2690] sm:$0xff]
        %v1657 = vld [vmem:[#allocation5 + $0x2698] sm:$0xff]
        %v1658 = vld [vmem:[#allocation5 + $0x26a0] sm:$0xff]
        %v1659 = vld [vmem:[#allocation5 + $0x26a8] sm:$0xff]
        %v1660 = vld [vmem:[#allocation5 + $0x26b0] sm:$0xff]
        %v1661 = vld [vmem:[#allocation5 + $0x26b8] sm:$0xff]
        %v1662 = vld [vmem:[#allocation5 + $0x26c0] sm:$0xff]
        %v1663 = vld [vmem:[#allocation5 + $0x26c8] sm:$0xff]
        %v1664 = vld [vmem:[#allocation5 + $0x26d0] sm:$0xff]
        %v1665 = vld [vmem:[#allocation5 + $0x26d8] sm:$0xff]
        %v1666 = vld [vmem:[#allocation5 + $0x26e0] sm:$0xff]
        %v1667 = vld [vmem:[#allocation5 + $0x26e8] sm:$0xff]
        %v1668 = vld [vmem:[#allocation5 + $0x26f0] sm:$0xff]
        %v1669 = vld [vmem:[#allocation5 + $0x26f8] sm:$0xff]
        %v1670 = vld [vmem:[#allocation5 + $0x2700] sm:$0xff]
        %v1671 = vld [vmem:[#allocation5 + $0x2708] sm:$0xff]
        %v1672 = vld [vmem:[#allocation5 + $0x2710] sm:$0xff]
        %v1673 = vld [vmem:[#allocation5 + $0x2718] sm:$0xff]
        %v1674 = vld [vmem:[#allocation5 + $0x2720] sm:$0xff]
        %v1675 = vld [vmem:[#allocation5 + $0x2728] sm:$0xff]
        %v1676 = vld [vmem:[#allocation5 + $0x2730] sm:$0xff]
        %v1677 = vld [vmem:[#allocation5 + $0x2738] sm:$0xff]
        %v1678 = vld [vmem:[#allocation5 + $0x2740] sm:$0xff]
        %v1679 = vld [vmem:[#allocation5 + $0x2748] sm:$0xff]
        %v1680 = vld [vmem:[#allocation5 + $0x2750] sm:$0xff]
        %v1681 = vld [vmem:[#allocation5 + $0x2758] sm:$0xff]
        %v1682 = vld [vmem:[#allocation5 + $0x2760] sm:$0xff]
        %v1683 = vld [vmem:[#allocation5 + $0x2768] sm:$0xff]
        %v1684 = vld [vmem:[#allocation5 + $0x2770] sm:$0xff]
        %v1685 = vld [vmem:[#allocation5 + $0x2778] sm:$0xff]
        %v1686 = vld [vmem:[#allocation5 + $0x2780] sm:$0xff]
        %v1687 = vld [vmem:[#allocation5 + $0x2788] sm:$0xff]
        %v1688 = vld [vmem:[#allocation5 + $0x2790] sm:$0xff]
        %v1689 = vld [vmem:[#allocation5 + $0x2798] sm:$0xff]
        %v1690 = vld [vmem:[#allocation5 + $0x27a0] sm:$0xff]
        %v1691 = vld [vmem:[#allocation5 + $0x27a8] sm:$0xff]
        %v1692 = vld [vmem:[#allocation5 + $0x27b0] sm:$0xff]
        %v1693 = vld [vmem:[#allocation5 + $0x27b8] sm:$0xff]
        %v1694 = vld [vmem:[#allocation5 + $0x27c0] sm:$0xff]
        %v1695 = vld [vmem:[#allocation5 + $0x27c8] sm:$0xff]
        %v1696 = vld [vmem:[#allocation5 + $0x27d0] sm:$0xff]
        %v1697 = vld [vmem:[#allocation5 + $0x27d8] sm:$0xff]
        %v1698 = vld [vmem:[#allocation5 + $0x27e0] sm:$0xff]
        %v1699 = vld [vmem:[#allocation5 + $0x27e8] sm:$0xff]
        %v1700 = vld [vmem:[#allocation5 + $0x27f0] sm:$0xff]
        %v1701 = vld [vmem:[#allocation5 + $0x27f8] sm:$0xff]
        %v1702 = vld [vmem:[#allocation5 + $0x2800] sm:$0xff]
        %v1703 = vld [vmem:[#allocation5 + $0x2808] sm:$0xff]
        %v1704 = vld [vmem:[#allocation5 + $0x2810] sm:$0xff]
        %v1705 = vld [vmem:[#allocation5 + $0x2818] sm:$0xff]
        %v1706 = vld [vmem:[#allocation5 + $0x2820] sm:$0xff]
        %v1707 = vld [vmem:[#allocation5 + $0x2828] sm:$0xff]
        %v1708 = vld [vmem:[#allocation5 + $0x2830] sm:$0xff]
        %v1709 = vld [vmem:[#allocation5 + $0x2838] sm:$0xff]
        %v1710 = vld [vmem:[#allocation5 + $0x2840] sm:$0xff]
        %v1711 = vld [vmem:[#allocation5 + $0x2848] sm:$0xff]
        %v1712 = vld [vmem:[#allocation5 + $0x2850] sm:$0xff]
        %v1713 = vld [vmem:[#allocation5 + $0x2858] sm:$0xff]
        %v1714 = vld [vmem:[#allocation5 + $0x2860] sm:$0xff]
        %v1715 = vld [vmem:[#allocation5 + $0x2868] sm:$0xff]
        %v1716 = vld [vmem:[#allocation5 + $0x2870] sm:$0xff]
        %v1717 = vld [vmem:[#allocation5 + $0x2878] sm:$0xff]
        %v1718 = vld [vmem:[#allocation5 + $0x2880] sm:$0xff]
        %v1719 = vld [vmem:[#allocation5 + $0x2888] sm:$0xff]
        %v1720 = vld [vmem:[#allocation5 + $0x2890] sm:$0xff]
        %v1721 = vld [vmem:[#allocation5 + $0x2898] sm:$0xff]
        %v1722 = vld [vmem:[#allocation5 + $0x28a0] sm:$0xff]
        %v1723 = vld [vmem:[#allocation5 + $0x28a8] sm:$0xff]
        %v1724 = vld [vmem:[#allocation5 + $0x28b0] sm:$0xff]
        %v1725 = vld [vmem:[#allocation5 + $0x28b8] sm:$0xff]
        %v1726 = vld [vmem:[#allocation5 + $0x28c0] sm:$0xff]
        %v1727 = vld [vmem:[#allocation5 + $0x28c8] sm:$0xff]
        %v1728 = vld [vmem:[#allocation5 + $0x28d0] sm:$0xff]
        %v1729 = vld [vmem:[#allocation5 + $0x28d8] sm:$0xff]
        %v1730 = vld [vmem:[#allocation5 + $0x28e0] sm:$0xff]
        %v1731 = vld [vmem:[#allocation5 + $0x28e8] sm:$0xff]
        %v1732 = vld [vmem:[#allocation5 + $0x28f0] sm:$0xff]
        %v1733 = vld [vmem:[#allocation5 + $0x28f8] sm:$0xff]
        %v1734 = vld [vmem:[#allocation5 + $0x2900] sm:$0xff]
        %v1735 = vld [vmem:[#allocation5 + $0x2908] sm:$0xff]
        %v1736 = vld [vmem:[#allocation5 + $0x2910] sm:$0xff]
        %v1737 = vld [vmem:[#allocation5 + $0x2918] sm:$0xff]
        %v1738 = vld [vmem:[#allocation5 + $0x2920] sm:$0xff]
        %v1739 = vld [vmem:[#allocation5 + $0x2928] sm:$0xff]
        %v1740 = vld [vmem:[#allocation5 + $0x2930] sm:$0xff]
        %v1741 = vld [vmem:[#allocation5 + $0x2938] sm:$0xff]
        %v1742 = vld [vmem:[#allocation5 + $0x2940] sm:$0xff]
        %v1743 = vld [vmem:[#allocation5 + $0x2948] sm:$0xff]
        %v1744 = vld [vmem:[#allocation5 + $0x2950] sm:$0xff]
        %v1745 = vld [vmem:[#allocation5 + $0x2958] sm:$0xff]
        %v1746 = vld [vmem:[#allocation5 + $0x2960] sm:$0xff]
        %v1747 = vld [vmem:[#allocation5 + $0x2968] sm:$0xff]
        %v1748 = vld [vmem:[#allocation5 + $0x2970] sm:$0xff]
        %v1749 = vld [vmem:[#allocation5 + $0x2978] sm:$0xff]
        %v1750 = vld [vmem:[#allocation5 + $0x2980] sm:$0xff]
        %v1751 = vld [vmem:[#allocation5 + $0x2988] sm:$0xff]
        %v1752 = vld [vmem:[#allocation5 + $0x2990] sm:$0xff]
        %v1753 = vld [vmem:[#allocation5 + $0x2998] sm:$0xff]
        %v1754 = vld [vmem:[#allocation5 + $0x29a0] sm:$0xff]
        %v1755 = vld [vmem:[#allocation5 + $0x29a8] sm:$0xff]
        %v1756 = vld [vmem:[#allocation5 + $0x29b0] sm:$0xff]
        %v1757 = vld [vmem:[#allocation5 + $0x29b8] sm:$0xff]
        %v1758 = vld [vmem:[#allocation5 + $0x29c0] sm:$0xff]
        %v1759 = vld [vmem:[#allocation5 + $0x29c8] sm:$0xff]
        %v1760 = vld [vmem:[#allocation5 + $0x29d0] sm:$0xff]
        %v1761 = vld [vmem:[#allocation5 + $0x29d8] sm:$0xff]
        %v1762 = vld [vmem:[#allocation5 + $0x29e0] sm:$0xff]
        %v1763 = vld [vmem:[#allocation5 + $0x29e8] sm:$0xff]
        %v1764 = vld [vmem:[#allocation5 + $0x29f0] sm:$0xff]
        %v1765 = vld [vmem:[#allocation5 + $0x29f8] sm:$0xff]
        %v1766 = vld [vmem:[#allocation5 + $0x2a00] sm:$0xff]
        %v1767 = vld [vmem:[#allocation5 + $0x2a08] sm:$0xff]
        %v1768 = vld [vmem:[#allocation5 + $0x2a10] sm:$0xff]
        %v1769 = vld [vmem:[#allocation5 + $0x2a18] sm:$0xff]
        %v1770 = vld [vmem:[#allocation5 + $0x2a20] sm:$0xff]
        %v1771 = vld [vmem:[#allocation5 + $0x2a28] sm:$0xff]
        %v1772 = vld [vmem:[#allocation5 + $0x2a30] sm:$0xff]
        %v1773 = vld [vmem:[#allocation5 + $0x2a38] sm:$0xff]
        %v1774 = vld [vmem:[#allocation5 + $0x2a40] sm:$0xff]
        %v1775 = vld [vmem:[#allocation5 + $0x2a48] sm:$0xff]
        %v1776 = vld [vmem:[#allocation5 + $0x2a50] sm:$0xff]
        %v1777 = vld [vmem:[#allocation5 + $0x2a58] sm:$0xff]
        %v1778 = vld [vmem:[#allocation5 + $0x2a60] sm:$0xff]
        %v1779 = vld [vmem:[#allocation5 + $0x2a68] sm:$0xff]
        %v1780 = vld [vmem:[#allocation5 + $0x2a70] sm:$0xff]
        %v1781 = vld [vmem:[#allocation5 + $0x2a78] sm:$0xff]
        %v1782 = vld [vmem:[#allocation5 + $0x2a80] sm:$0xff]
        %v1783 = vld [vmem:[#allocation5 + $0x2a88] sm:$0xff]
        %v1784 = vld [vmem:[#allocation5 + $0x2a90] sm:$0xff]
        %v1785 = vld [vmem:[#allocation5 + $0x2a98] sm:$0xff]
        %v1786 = vld [vmem:[#allocation5 + $0x2aa0] sm:$0xff]
        %v1787 = vld [vmem:[#allocation5 + $0x2aa8] sm:$0xff]
        %v1788 = vld [vmem:[#allocation5 + $0x2ab0] sm:$0xff]
        %v1789 = vld [vmem:[#allocation5 + $0x2ab8] sm:$0xff]
        %v1790 = vld [vmem:[#allocation5 + $0x2ac0] sm:$0xff]
        %v1791 = vld [vmem:[#allocation5 + $0x2ac8] sm:$0xff]
        %v1792 = vld [vmem:[#allocation5 + $0x2ad0] sm:$0xff]
        %v1793 = vld [vmem:[#allocation5 + $0x2ad8] sm:$0xff]
        %v1794 = vld [vmem:[#allocation5 + $0x2ae0] sm:$0xff]
        %v1795 = vld [vmem:[#allocation5 + $0x2ae8] sm:$0xff]
        %v1796 = vld [vmem:[#allocation5 + $0x2af0] sm:$0xff]
        %v1797 = vld [vmem:[#allocation5 + $0x2af8] sm:$0xff]
        %v1798 = vld [vmem:[#allocation5 + $0x2b00] sm:$0xff]
        %v1799 = vld [vmem:[#allocation5 + $0x2b08] sm:$0xff]
        %v1800 = vld [vmem:[#allocation5 + $0x2b10] sm:$0xff]
        %v1801 = vld [vmem:[#allocation5 + $0x2b18] sm:$0xff]
        %v1802 = vld [vmem:[#allocation5 + $0x2b20] sm:$0xff]
        %v1803 = vld [vmem:[#allocation5 + $0x2b28] sm:$0xff]
        %v1804 = vld [vmem:[#allocation5 + $0x2b30] sm:$0xff]
        %v1805 = vld [vmem:[#allocation5 + $0x2b38] sm:$0xff]
        %v1806 = vld [vmem:[#allocation5 + $0x2b40] sm:$0xff]
        %v1807 = vld [vmem:[#allocation5 + $0x2b48] sm:$0xff]
        %v1808 = vld [vmem:[#allocation5 + $0x2b50] sm:$0xff]
        %v1809 = vld [vmem:[#allocation5 + $0x2b58] sm:$0xff]
        %v1810 = vld [vmem:[#allocation5 + $0x2b60] sm:$0xff]
        %v1811 = vld [vmem:[#allocation5 + $0x2b68] sm:$0xff]
        %v1812 = vld [vmem:[#allocation5 + $0x2b70] sm:$0xff]
        %v1813 = vld [vmem:[#allocation5 + $0x2b78] sm:$0xff]
        %v1814 = vld [vmem:[#allocation5 + $0x2b80] sm:$0xff]
        %v1815 = vld [vmem:[#allocation5 + $0x2b88] sm:$0xff]
        %v1816 = vld [vmem:[#allocation5 + $0x2b90] sm:$0xff]
        %v1817 = vld [vmem:[#allocation5 + $0x2b98] sm:$0xff]
        %v1818 = vld [vmem:[#allocation5 + $0x2ba0] sm:$0xff]
        %v1819 = vld [vmem:[#allocation5 + $0x2ba8] sm:$0xff]
        %v1820 = vld [vmem:[#allocation5 + $0x2bb0] sm:$0xff]
        %v1821 = vld [vmem:[#allocation5 + $0x2bb8] sm:$0xff]
        %v1822 = vld [vmem:[#allocation5 + $0x2bc0] sm:$0xff]
        %v1823 = vld [vmem:[#allocation5 + $0x2bc8] sm:$0xff]
        %v1824 = vld [vmem:[#allocation5 + $0x2bd0] sm:$0xff]
        %v1825 = vld [vmem:[#allocation5 + $0x2bd8] sm:$0xff]
        %v1826 = vld [vmem:[#allocation5 + $0x2be0] sm:$0xff]
        %v1827 = vld [vmem:[#allocation5 + $0x2be8] sm:$0xff]
        %v1828 = vld [vmem:[#allocation5 + $0x2bf0] sm:$0xff]
        %v1829 = vld [vmem:[#allocation5 + $0x2bf8] sm:$0xff]
        %v1830 = vld [vmem:[#allocation5 + $0x2c00] sm:$0xff]
        %v1831 = vld [vmem:[#allocation5 + $0x2c08] sm:$0xff]
        %v1832 = vld [vmem:[#allocation5 + $0x2c10] sm:$0xff]
        %v1833 = vld [vmem:[#allocation5 + $0x2c18] sm:$0xff]
        %v1834 = vld [vmem:[#allocation5 + $0x2c20] sm:$0xff]
        %v1835 = vld [vmem:[#allocation5 + $0x2c28] sm:$0xff]
        %v1836 = vld [vmem:[#allocation5 + $0x2c30] sm:$0xff]
        %v1837 = vld [vmem:[#allocation5 + $0x2c38] sm:$0xff]
        %v1838 = vld [vmem:[#allocation5 + $0x2c40] sm:$0xff]
        %v1839 = vld [vmem:[#allocation5 + $0x2c48] sm:$0xff]
        %v1840 = vld [vmem:[#allocation5 + $0x2c50] sm:$0xff]
        %v1841 = vld [vmem:[#allocation5 + $0x2c58] sm:$0xff]
        %v1842 = vld [vmem:[#allocation5 + $0x2c60] sm:$0xff]
        %v1843 = vld [vmem:[#allocation5 + $0x2c68] sm:$0xff]
        %v1844 = vld [vmem:[#allocation5 + $0x2c70] sm:$0xff]
        %v1845 = vld [vmem:[#allocation5 + $0x2c78] sm:$0xff]
        %v1846 = vld [vmem:[#allocation5 + $0x2c80] sm:$0xff]
        %v1847 = vld [vmem:[#allocation5 + $0x2c88] sm:$0xff]
        %v1848 = vld [vmem:[#allocation5 + $0x2c90] sm:$0xff]
        %v1849 = vld [vmem:[#allocation5 + $0x2c98] sm:$0xff]
        %v1850 = vld [vmem:[#allocation5 + $0x2ca0] sm:$0xff]
        %v1851 = vld [vmem:[#allocation5 + $0x2ca8] sm:$0xff]
        %v1852 = vld [vmem:[#allocation5 + $0x2cb0] sm:$0xff]
        %v1853 = vld [vmem:[#allocation5 + $0x2cb8] sm:$0xff]
        %v1854 = vld [vmem:[#allocation5 + $0x2cc0] sm:$0xff]
        %v1855 = vld [vmem:[#allocation5 + $0x2cc8] sm:$0xff]
        %v1856 = vld [vmem:[#allocation5 + $0x2cd0] sm:$0xff]
        %v1857 = vld [vmem:[#allocation5 + $0x2cd8] sm:$0xff]
        %v1858 = vld [vmem:[#allocation5 + $0x2ce0] sm:$0xff]
        %v1859 = vld [vmem:[#allocation5 + $0x2ce8] sm:$0xff]
        %v1860 = vld [vmem:[#allocation5 + $0x2cf0] sm:$0xff]
        %v1861 = vld [vmem:[#allocation5 + $0x2cf8] sm:$0xff]
        %v1862 = vld [vmem:[#allocation5 + $0x2d00] sm:$0xff]
        %v1863 = vld [vmem:[#allocation5 + $0x2d08] sm:$0xff]
        %v1864 = vld [vmem:[#allocation5 + $0x2d10] sm:$0xff]
        %v1865 = vld [vmem:[#allocation5 + $0x2d18] sm:$0xff]
        %v1866 = vld [vmem:[#allocation5 + $0x2d20] sm:$0xff]
        %v1867 = vld [vmem:[#allocation5 + $0x2d28] sm:$0xff]
        %v1868 = vld [vmem:[#allocation5 + $0x2d30] sm:$0xff]
        %v1869 = vld [vmem:[#allocation5 + $0x2d38] sm:$0xff]
        %v1870 = vld [vmem:[#allocation5 + $0x2d40] sm:$0xff]
        %v1871 = vld [vmem:[#allocation5 + $0x2d48] sm:$0xff]
        %v1872 = vld [vmem:[#allocation5 + $0x2d50] sm:$0xff]
        %v1873 = vld [vmem:[#allocation5 + $0x2d58] sm:$0xff]
        %v1874 = vld [vmem:[#allocation5 + $0x2d60] sm:$0xff]
        %v1875 = vld [vmem:[#allocation5 + $0x2d68] sm:$0xff]
        %v1876 = vld [vmem:[#allocation5 + $0x2d70] sm:$0xff]
        %v1877 = vld [vmem:[#allocation5 + $0x2d78] sm:$0xff]
        %v1878 = vld [vmem:[#allocation5 + $0x2d80] sm:$0xff]
        %v1879 = vld [vmem:[#allocation5 + $0x2d88] sm:$0xff]
        %v1880 = vld [vmem:[#allocation5 + $0x2d90] sm:$0xff]
        %v1881 = vld [vmem:[#allocation5 + $0x2d98] sm:$0xff]
        %v1882 = vld [vmem:[#allocation5 + $0x2da0] sm:$0xff]
        %v1883 = vld [vmem:[#allocation5 + $0x2da8] sm:$0xff]
        %v1884 = vld [vmem:[#allocation5 + $0x2db0] sm:$0xff]
        %v1885 = vld [vmem:[#allocation5 + $0x2db8] sm:$0xff]
        %v1886 = vld [vmem:[#allocation5 + $0x2dc0] sm:$0xff]
        %v1887 = vld [vmem:[#allocation5 + $0x2dc8] sm:$0xff]
        %v1888 = vld [vmem:[#allocation5 + $0x2dd0] sm:$0xff]
        %v1889 = vld [vmem:[#allocation5 + $0x2dd8] sm:$0xff]
        %v1890 = vld [vmem:[#allocation5 + $0x2de0] sm:$0xff]
        %v1891 = vld [vmem:[#allocation5 + $0x2de8] sm:$0xff]
        %v1892 = vld [vmem:[#allocation5 + $0x2df0] sm:$0xff]
        %v1893 = vld [vmem:[#allocation5 + $0x2df8] sm:$0xff]
        %v1894 = vld [vmem:[#allocation5 + $0x2e00] sm:$0xff]
        %v1895 = vld [vmem:[#allocation5 + $0x2e08] sm:$0xff]
        %v1896 = vld [vmem:[#allocation5 + $0x2e10] sm:$0xff]
        %v1897 = vld [vmem:[#allocation5 + $0x2e18] sm:$0xff]
        %v1898 = vld [vmem:[#allocation5 + $0x2e20] sm:$0xff]
        %v1899 = vld [vmem:[#allocation5 + $0x2e28] sm:$0xff]
        %v1900 = vld [vmem:[#allocation5 + $0x2e30] sm:$0xff]
        %v1901 = vld [vmem:[#allocation5 + $0x2e38] sm:$0xff]
        %v1902 = vld [vmem:[#allocation5 + $0x2e40] sm:$0xff]
        %v1903 = vld [vmem:[#allocation5 + $0x2e48] sm:$0xff]
        %v1904 = vld [vmem:[#allocation5 + $0x2e50] sm:$0xff]
        %v1905 = vld [vmem:[#allocation5 + $0x2e58] sm:$0xff]
        %v1906 = vld [vmem:[#allocation5 + $0x2e60] sm:$0xff]
        %v1907 = vld [vmem:[#allocation5 + $0x2e68] sm:$0xff]
        %v1908 = vld [vmem:[#allocation5 + $0x2e70] sm:$0xff]
        %v1909 = vld [vmem:[#allocation5 + $0x2e78] sm:$0xff]
        %v1910 = vld [vmem:[#allocation5 + $0x2e80] sm:$0xff]
        %v1911 = vld [vmem:[#allocation5 + $0x2e88] sm:$0xff]
        %v1912 = vld [vmem:[#allocation5 + $0x2e90] sm:$0xff]
        %v1913 = vld [vmem:[#allocation5 + $0x2e98] sm:$0xff]
        %v1914 = vld [vmem:[#allocation5 + $0x2ea0] sm:$0xff]
        %v1915 = vld [vmem:[#allocation5 + $0x2ea8] sm:$0xff]
        %v1916 = vld [vmem:[#allocation5 + $0x2eb0] sm:$0xff]
        %v1917 = vld [vmem:[#allocation5 + $0x2eb8] sm:$0xff]
        %v1918 = vld [vmem:[#allocation5 + $0x2ec0] sm:$0xff]
        %v1919 = vld [vmem:[#allocation5 + $0x2ec8] sm:$0xff]
        %v1920 = vld [vmem:[#allocation5 + $0x2ed0] sm:$0xff]
        %v1921 = vld [vmem:[#allocation5 + $0x2ed8] sm:$0xff]
        %v1922 = vld [vmem:[#allocation5 + $0x2ee0] sm:$0xff]
        %v1923 = vld [vmem:[#allocation5 + $0x2ee8] sm:$0xff]
        %v1924 = vld [vmem:[#allocation5 + $0x2ef0] sm:$0xff]
        %v1925 = vld [vmem:[#allocation5 + $0x2ef8] sm:$0xff]
        %v1926 = vld [vmem:[#allocation5 + $0x2f00] sm:$0xff]
        %v1927 = vld [vmem:[#allocation5 + $0x2f08] sm:$0xff]
        %v1928 = vld [vmem:[#allocation5 + $0x2f10] sm:$0xff]
        %v1929 = vld [vmem:[#allocation5 + $0x2f18] sm:$0xff]
        %v1930 = vld [vmem:[#allocation5 + $0x2f20] sm:$0xff]
        %v1931 = vld [vmem:[#allocation5 + $0x2f28] sm:$0xff]
        %v1932 = vld [vmem:[#allocation5 + $0x2f30] sm:$0xff]
        %v1933 = vld [vmem:[#allocation5 + $0x2f38] sm:$0xff]
        %v1934 = vld [vmem:[#allocation5 + $0x2f40] sm:$0xff]
        %v1935 = vld [vmem:[#allocation5 + $0x2f48] sm:$0xff]
        %v1936 = vld [vmem:[#allocation5 + $0x2f50] sm:$0xff]
        %v1937 = vld [vmem:[#allocation5 + $0x2f58] sm:$0xff]
        %v1938 = vld [vmem:[#allocation5 + $0x2f60] sm:$0xff]
        %v1939 = vld [vmem:[#allocation5 + $0x2f68] sm:$0xff]
        %v1940 = vld [vmem:[#allocation5 + $0x2f70] sm:$0xff]
        %v1941 = vld [vmem:[#allocation5 + $0x2f78] sm:$0xff]
        %v1942 = vld [vmem:[#allocation5 + $0x2f80] sm:$0xff]
        %v1943 = vld [vmem:[#allocation5 + $0x2f88] sm:$0xff]
        %v1944 = vld [vmem:[#allocation5 + $0x2f90] sm:$0xff]
        %v1945 = vld [vmem:[#allocation5 + $0x2f98] sm:$0xff]
        %v1946 = vld [vmem:[#allocation5 + $0x2fa0] sm:$0xff]
        %v1947 = vld [vmem:[#allocation5 + $0x2fa8] sm:$0xff]
        %v1948 = vld [vmem:[#allocation5 + $0x2fb0] sm:$0xff]
        %v1949 = vld [vmem:[#allocation5 + $0x2fb8] sm:$0xff]
        %v1950 = vld [vmem:[#allocation5 + $0x2fc0] sm:$0xff]
        %v1951 = vld [vmem:[#allocation5 + $0x2fc8] sm:$0xff]
        %v1952 = vld [vmem:[#allocation5 + $0x2fd0] sm:$0xff]
        %v1953 = vld [vmem:[#allocation5 + $0x2fd8] sm:$0xff]
        %v1954 = vld [vmem:[#allocation5 + $0x2fe0] sm:$0xff]
        %v1955 = vld [vmem:[#allocation5 + $0x2fe8] sm:$0xff]
        %v1956 = vld [vmem:[#allocation5 + $0x2ff0] sm:$0xff]
        %v1957 = vld [vmem:[#allocation5 + $0x2ff8] sm:$0xff]
        %v1958 = vld [vmem:[#allocation5 + $0x3000] sm:$0xff]
        %v1959 = vld [vmem:[#allocation5 + $0x3008] sm:$0xff]
        %v1960 = vld [vmem:[#allocation5 + $0x3010] sm:$0xff]
        %v1961 = vld [vmem:[#allocation5 + $0x3018] sm:$0xff]
        %v1962 = vld [vmem:[#allocation5 + $0x3020] sm:$0xff]
        %v1963 = vld [vmem:[#allocation5 + $0x3028] sm:$0xff]
        %v1964 = vld [vmem:[#allocation5 + $0x3030] sm:$0xff]
        %v1965 = vld [vmem:[#allocation5 + $0x3038] sm:$0xff]
        %v1966 = vld [vmem:[#allocation5 + $0x3040] sm:$0xff]
        %v1967 = vld [vmem:[#allocation5 + $0x3048] sm:$0xff]
        %v1968 = vld [vmem:[#allocation5 + $0x3050] sm:$0xff]
        %v1969 = vld [vmem:[#allocation5 + $0x3058] sm:$0xff]
        %v1970 = vld [vmem:[#allocation5 + $0x3060] sm:$0xff]
        %v1971 = vld [vmem:[#allocation5 + $0x3068] sm:$0xff]
        %v1972 = vld [vmem:[#allocation5 + $0x3070] sm:$0xff]
        %v1973 = vld [vmem:[#allocation5 + $0x3078] sm:$0xff]
        %v1974 = vld [vmem:[#allocation5 + $0x3080] sm:$0xff]
        %v1975 = vld [vmem:[#allocation5 + $0x3088] sm:$0xff]
        %v1976 = vld [vmem:[#allocation5 + $0x3090] sm:$0xff]
        %v1977 = vld [vmem:[#allocation5 + $0x3098] sm:$0xff]
        %v1978 = vld [vmem:[#allocation5 + $0x30a0] sm:$0xff]
        %v1979 = vld [vmem:[#allocation5 + $0x30a8] sm:$0xff]
        %v1980 = vld [vmem:[#allocation5 + $0x30b0] sm:$0xff]
        %v1981 = vld [vmem:[#allocation5 + $0x30b8] sm:$0xff]
        %v1982 = vld [vmem:[#allocation5 + $0x30c0] sm:$0xff]
        %v1983 = vld [vmem:[#allocation5 + $0x30c8] sm:$0xff]
        %v1984 = vld [vmem:[#allocation5 + $0x30d0] sm:$0xff]
        %v1985 = vld [vmem:[#allocation5 + $0x30d8] sm:$0xff]
        %v1986 = vld [vmem:[#allocation5 + $0x30e0] sm:$0xff]
        %v1987 = vld [vmem:[#allocation5 + $0x30e8] sm:$0xff]
        %v1988 = vld [vmem:[#allocation5 + $0x30f0] sm:$0xff]
        %v1989 = vld [vmem:[#allocation5 + $0x30f8] sm:$0xff]
        %v1990 = vld [vmem:[#allocation5 + $0x3100] sm:$0xff]
        %v1991 = vld [vmem:[#allocation5 + $0x3108] sm:$0xff]
        %v1992 = vld [vmem:[#allocation5 + $0x3110] sm:$0xff]
        %v1993 = vld [vmem:[#allocation5 + $0x3118] sm:$0xff]
        %v1994 = vld [vmem:[#allocation5 + $0x3120] sm:$0xff]
        %v1995 = vld [vmem:[#allocation5 + $0x3128] sm:$0xff]
        %v1996 = vld [vmem:[#allocation5 + $0x3130] sm:$0xff]
        %v1997 = vld [vmem:[#allocation5 + $0x3138] sm:$0xff]
        %v1998 = vld [vmem:[#allocation5 + $0x3140] sm:$0xff]
        %v1999 = vld [vmem:[#allocation5 + $0x3148] sm:$0xff]
        %v2000 = vld [vmem:[#allocation5 + $0x3150] sm:$0xff]
        %v2001 = vld [vmem:[#allocation5 + $0x3158] sm:$0xff]
        %v2002 = vld [vmem:[#allocation5 + $0x3160] sm:$0xff]
        %v2003 = vld [vmem:[#allocation5 + $0x3168] sm:$0xff]
        %v2004 = vld [vmem:[#allocation5 + $0x3170] sm:$0xff]
        %v2005 = vld [vmem:[#allocation5 + $0x3178] sm:$0xff]
        %v2006 = vld [vmem:[#allocation5 + $0x3180] sm:$0xff]
        %v2007 = vld [vmem:[#allocation5 + $0x3188] sm:$0xff]
        %v2008 = vld [vmem:[#allocation5 + $0x3190] sm:$0xff]
        %v2009 = vld [vmem:[#allocation5 + $0x3198] sm:$0xff]
        %v2010 = vld [vmem:[#allocation5 + $0x31a0] sm:$0xff]
        %v2011 = vld [vmem:[#allocation5 + $0x31a8] sm:$0xff]
        %v2012 = vld [vmem:[#allocation5 + $0x31b0] sm:$0xff]
        %v2013 = vld [vmem:[#allocation5 + $0x31b8] sm:$0xff]
        %v2014 = vld [vmem:[#allocation5 + $0x31c0] sm:$0xff]
        %v2015 = vld [vmem:[#allocation5 + $0x31c8] sm:$0xff]
        %v2016 = vld [vmem:[#allocation5 + $0x31d0] sm:$0xff]
        %v2017 = vld [vmem:[#allocation5 + $0x31d8] sm:$0xff]
        %v2018 = vld [vmem:[#allocation5 + $0x31e0] sm:$0xff]
        %v2019 = vld [vmem:[#allocation5 + $0x31e8] sm:$0xff]
        %v2020 = vld [vmem:[#allocation5 + $0x31f0] sm:$0xff]
        %v2021 = vld [vmem:[#allocation5 + $0x31f8] sm:$0xff]
        %v2022 = vld [vmem:[#allocation5 + $0x3200] sm:$0xff]
        %v2023 = vld [vmem:[#allocation5 + $0x3208] sm:$0xff]
        %v2024 = vld [vmem:[#allocation5 + $0x3210] sm:$0xff]
        %v2025 = vld [vmem:[#allocation5 + $0x3218] sm:$0xff]
        %v2026 = vld [vmem:[#allocation5 + $0x3220] sm:$0xff]
        %v2027 = vld [vmem:[#allocation5 + $0x3228] sm:$0xff]
        %v2028 = vld [vmem:[#allocation5 + $0x3230] sm:$0xff]
        %v2029 = vld [vmem:[#allocation5 + $0x3238] sm:$0xff]
        %v2030 = vld [vmem:[#allocation5 + $0x3240] sm:$0xff]
        %v2031 = vld [vmem:[#allocation5 + $0x3248] sm:$0xff]
        %v2032 = vld [vmem:[#allocation5 + $0x3250] sm:$0xff]
        %v2033 = vld [vmem:[#allocation5 + $0x3258] sm:$0xff]
        %v2034 = vld [vmem:[#allocation5 + $0x3260] sm:$0xff]
        %v2035 = vld [vmem:[#allocation5 + $0x3268] sm:$0xff]
        %v2036 = vld [vmem:[#allocation5 + $0x3270] sm:$0xff]
        %v2037 = vld [vmem:[#allocation5 + $0x3278] sm:$0xff]
        %v2038 = vld [vmem:[#allocation5 + $0x3280] sm:$0xff]
        %v2039 = vld [vmem:[#allocation5 + $0x3288] sm:$0xff]
        %v2040 = vld [vmem:[#allocation5 + $0x3290] sm:$0xff]
        %v2041 = vld [vmem:[#allocation5 + $0x3298] sm:$0xff]
        %v2042 = vld [vmem:[#allocation5 + $0x32a0] sm:$0xff]
        %v2043 = vld [vmem:[#allocation5 + $0x32a8] sm:$0xff]
        %v2044 = vld [vmem:[#allocation5 + $0x32b0] sm:$0xff]
        %v2045 = vld [vmem:[#allocation5 + $0x32b8] sm:$0xff]
        %v2046 = vld [vmem:[#allocation5 + $0x32c0] sm:$0xff]
        %v2047 = vld [vmem:[#allocation5 + $0x32c8] sm:$0xff]
        %v2048 = vld [vmem:[#allocation5 + $0x32d0] sm:$0xff]
        %v2049 = vld [vmem:[#allocation5 + $0x32d8] sm:$0xff]
        %v2050 = vld [vmem:[#allocation5 + $0x32e0] sm:$0xff]
        %v2051 = vld [vmem:[#allocation5 + $0x32e8] sm:$0xff]
        %v2052 = vld [vmem:[#allocation5 + $0x32f0] sm:$0xff]
        %v2053 = vld [vmem:[#allocation5 + $0x32f8] sm:$0xff]
        %v2054 = vld [vmem:[#allocation5 + $0x3300] sm:$0xff]
        %v2055 = vld [vmem:[#allocation5 + $0x3308] sm:$0xff]
        %v2056 = vld [vmem:[#allocation5 + $0x3310] sm:$0xff]
        %v2057 = vld [vmem:[#allocation5 + $0x3318] sm:$0xff]
        %v2058 = vld [vmem:[#allocation5 + $0x3320] sm:$0xff]
        %v2059 = vld [vmem:[#allocation5 + $0x3328] sm:$0xff]
        %v2060 = vld [vmem:[#allocation5 + $0x3330] sm:$0xff]
        %v2061 = vld [vmem:[#allocation5 + $0x3338] sm:$0xff]
        %v2062 = vld [vmem:[#allocation5 + $0x3340] sm:$0xff]
        %v2063 = vld [vmem:[#allocation5 + $0x3348] sm:$0xff]
        %v2064 = vld [vmem:[#allocation5 + $0x3350] sm:$0xff]
        %v2065 = vld [vmem:[#allocation5 + $0x3358] sm:$0xff]
        %v2066 = vld [vmem:[#allocation5 + $0x3360] sm:$0xff]
        %v2067 = vld [vmem:[#allocation5 + $0x3368] sm:$0xff]
        %v2068 = vld [vmem:[#allocation5 + $0x3370] sm:$0xff]
        %v2069 = vld [vmem:[#allocation5 + $0x3378] sm:$0xff]
        %v2070 = vld [vmem:[#allocation5 + $0x3380] sm:$0xff]
        %v2071 = vld [vmem:[#allocation5 + $0x3388] sm:$0xff]
        %v2072 = vld [vmem:[#allocation5 + $0x3390] sm:$0xff]
        %v2073 = vld [vmem:[#allocation5 + $0x3398] sm:$0xff]
        %v2074 = vld [vmem:[#allocation5 + $0x33a0] sm:$0xff]
        %v2075 = vld [vmem:[#allocation5 + $0x33a8] sm:$0xff]
        %v2076 = vld [vmem:[#allocation5 + $0x33b0] sm:$0xff]
        %v2077 = vld [vmem:[#allocation5 + $0x33b8] sm:$0xff]
        %v2078 = vld [vmem:[#allocation5 + $0x33c0] sm:$0xff]
        %v2079 = vld [vmem:[#allocation5 + $0x33c8] sm:$0xff]
        %v2080 = vld [vmem:[#allocation5 + $0x33d0] sm:$0xff]
        %v2081 = vld [vmem:[#allocation5 + $0x33d8] sm:$0xff]
        %v2082 = vld [vmem:[#allocation5 + $0x33e0] sm:$0xff]
        %v2083 = vld [vmem:[#allocation5 + $0x33e8] sm:$0xff]
        %v2084 = vld [vmem:[#allocation5 + $0x33f0] sm:$0xff]
        %v2085 = vld [vmem:[#allocation5 + $0x33f8] sm:$0xff]
        %v2086 = vld [vmem:[#allocation5 + $0x3400] sm:$0xff]
        %v2087 = vld [vmem:[#allocation5 + $0x3408] sm:$0xff]
        %v2088 = vld [vmem:[#allocation5 + $0x3410] sm:$0xff]
        %v2089 = vld [vmem:[#allocation5 + $0x3418] sm:$0xff]
        %v2090 = vld [vmem:[#allocation5 + $0x3420] sm:$0xff]
        %v2091 = vld [vmem:[#allocation5 + $0x3428] sm:$0xff]
        %v2092 = vld [vmem:[#allocation5 + $0x3430] sm:$0xff]
        %v2093 = vld [vmem:[#allocation5 + $0x3438] sm:$0xff]
        %v2094 = vld [vmem:[#allocation5 + $0x3440] sm:$0xff]
        %v2095 = vld [vmem:[#allocation5 + $0x3448] sm:$0xff]
        %v2096 = vld [vmem:[#allocation5 + $0x3450] sm:$0xff]
        %v2097 = vld [vmem:[#allocation5 + $0x3458] sm:$0xff]
        %v2098 = vld [vmem:[#allocation5 + $0x3460] sm:$0xff]
        %v2099 = vld [vmem:[#allocation5 + $0x3468] sm:$0xff]
        %v2100 = vld [vmem:[#allocation5 + $0x3470] sm:$0xff]
        %v2101 = vld [vmem:[#allocation5 + $0x3478] sm:$0xff]
        %v2102 = vld [vmem:[#allocation5 + $0x3480] sm:$0xff]
        %v2103 = vld [vmem:[#allocation5 + $0x3488] sm:$0xff]
        %v2104 = vld [vmem:[#allocation5 + $0x3490] sm:$0xff]
        %v2105 = vld [vmem:[#allocation5 + $0x3498] sm:$0xff]
        %v2106 = vld [vmem:[#allocation5 + $0x34a0] sm:$0xff]
        %v2107 = vld [vmem:[#allocation5 + $0x34a8] sm:$0xff]
        %v2108 = vld [vmem:[#allocation5 + $0x34b0] sm:$0xff]
        %v2109 = vld [vmem:[#allocation5 + $0x34b8] sm:$0xff]
        %v2110 = vld [vmem:[#allocation5 + $0x34c0] sm:$0xff]
        %v2111 = vld [vmem:[#allocation5 + $0x34c8] sm:$0xff]
        %v2112 = vld [vmem:[#allocation5 + $0x34d0] sm:$0xff]
        %v2113 = vld [vmem:[#allocation5 + $0x34d8] sm:$0xff]
        %v2114 = vld [vmem:[#allocation5 + $0x34e0] sm:$0xff]
        %v2115 = vld [vmem:[#allocation5 + $0x34e8] sm:$0xff]
        %v2116 = vld [vmem:[#allocation5 + $0x34f0] sm:$0xff]
        %v2117 = vld [vmem:[#allocation5 + $0x34f8] sm:$0xff]
        %v2118 = vld [vmem:[#allocation5 + $0x3500] sm:$0xff]
        %v2119 = vld [vmem:[#allocation5 + $0x3508] sm:$0xff]
        %v2120 = vld [vmem:[#allocation5 + $0x3510] sm:$0xff]
        %v2121 = vld [vmem:[#allocation5 + $0x3518] sm:$0xff]
        %v2122 = vld [vmem:[#allocation5 + $0x3520] sm:$0xff]
        %v2123 = vld [vmem:[#allocation5 + $0x3528] sm:$0xff]
        %v2124 = vld [vmem:[#allocation5 + $0x3530] sm:$0xff]
        %v2125 = vld [vmem:[#allocation5 + $0x3538] sm:$0xff]
        %v2126 = vld [vmem:[#allocation5 + $0x3540] sm:$0xff]
        %v2127 = vld [vmem:[#allocation5 + $0x3548] sm:$0xff]
        %v2128 = vld [vmem:[#allocation5 + $0x3550] sm:$0xff]
        %v2129 = vld [vmem:[#allocation5 + $0x3558] sm:$0xff]
        %v2130 = vld [vmem:[#allocation5 + $0x3560] sm:$0xff]
        %v2131 = vld [vmem:[#allocation5 + $0x3568] sm:$0xff]
        %v2132 = vld [vmem:[#allocation5 + $0x3570] sm:$0xff]
        %v2133 = vld [vmem:[#allocation5 + $0x3578] sm:$0xff]
        %v2134 = vld [vmem:[#allocation5 + $0x3580] sm:$0xff]
        %v2135 = vld [vmem:[#allocation5 + $0x3588] sm:$0xff]
        %v2136 = vld [vmem:[#allocation5 + $0x3590] sm:$0xff]
        %v2137 = vld [vmem:[#allocation5 + $0x3598] sm:$0xff]
        %v2138 = vld [vmem:[#allocation5 + $0x35a0] sm:$0xff]
        %v2139 = vld [vmem:[#allocation5 + $0x35a8] sm:$0xff]
        %v2140 = vld [vmem:[#allocation5 + $0x35b0] sm:$0xff]
        %v2141 = vld [vmem:[#allocation5 + $0x35b8] sm:$0xff]
        %v2142 = vld [vmem:[#allocation5 + $0x35c0] sm:$0xff]
        %v2143 = vld [vmem:[#allocation5 + $0x35c8] sm:$0xff]
        %v2144 = vld [vmem:[#allocation5 + $0x35d0] sm:$0xff]
        %v2145 = vld [vmem:[#allocation5 + $0x35d8] sm:$0xff]
        %v2146 = vld [vmem:[#allocation5 + $0x35e0] sm:$0xff]
        %v2147 = vld [vmem:[#allocation5 + $0x35e8] sm:$0xff]
        %v2148 = vld [vmem:[#allocation5 + $0x35f0] sm:$0xff]
        %v2149 = vld [vmem:[#allocation5 + $0x35f8] sm:$0xff]
        %v2150 = vld [vmem:[#allocation5 + $0x3600] sm:$0xff]
        %v2151 = vld [vmem:[#allocation5 + $0x3608] sm:$0xff]
        %v2152 = vld [vmem:[#allocation5 + $0x3610] sm:$0xff]
        %v2153 = vld [vmem:[#allocation5 + $0x3618] sm:$0xff]
        %v2154 = vld [vmem:[#allocation5 + $0x3620] sm:$0xff]
        %v2155 = vld [vmem:[#allocation5 + $0x3628] sm:$0xff]
        %v2156 = vld [vmem:[#allocation5 + $0x3630] sm:$0xff]
        %v2157 = vld [vmem:[#allocation5 + $0x3638] sm:$0xff]
        %v2158 = vld [vmem:[#allocation5 + $0x3640] sm:$0xff]
        %v2159 = vld [vmem:[#allocation5 + $0x3648] sm:$0xff]
        %v2160 = vld [vmem:[#allocation5 + $0x3650] sm:$0xff]
        %v2161 = vld [vmem:[#allocation5 + $0x3658] sm:$0xff]
        %v2162 = vld [vmem:[#allocation5 + $0x3660] sm:$0xff]
        %v2163 = vld [vmem:[#allocation5 + $0x3668] sm:$0xff]
        %v2164 = vld [vmem:[#allocation5 + $0x3670] sm:$0xff]
        %v2165 = vld [vmem:[#allocation5 + $0x3678] sm:$0xff]
        %v2166 = vld [vmem:[#allocation5 + $0x3680] sm:$0xff]
        %v2167 = vld [vmem:[#allocation5 + $0x3688] sm:$0xff]
        %v2168 = vld [vmem:[#allocation5 + $0x3690] sm:$0xff]
        %v2169 = vld [vmem:[#allocation5 + $0x3698] sm:$0xff]
        %v2170 = vld [vmem:[#allocation5 + $0x36a0] sm:$0xff]
        %v2171 = vld [vmem:[#allocation5 + $0x36a8] sm:$0xff]
        %v2172 = vld [vmem:[#allocation5 + $0x36b0] sm:$0xff]
        %v2173 = vld [vmem:[#allocation5 + $0x36b8] sm:$0xff]
        %v2174 = vld [vmem:[#allocation5 + $0x36c0] sm:$0xff]
        %v2175 = vld [vmem:[#allocation5 + $0x36c8] sm:$0xff]
        %v2176 = vld [vmem:[#allocation5 + $0x36d0] sm:$0xff]
        %v2177 = vld [vmem:[#allocation5 + $0x36d8] sm:$0xff]
        %v2178 = vld [vmem:[#allocation5 + $0x36e0] sm:$0xff]
        %v2179 = vld [vmem:[#allocation5 + $0x36e8] sm:$0xff]
        %v2180 = vld [vmem:[#allocation5 + $0x36f0] sm:$0xff]
        %v2181 = vld [vmem:[#allocation5 + $0x36f8] sm:$0xff]
        %v2182 = vld [vmem:[#allocation5 + $0x3700] sm:$0xff]
        %v2183 = vld [vmem:[#allocation5 + $0x3708] sm:$0xff]
        %v2184 = vld [vmem:[#allocation5 + $0x3710] sm:$0xff]
        %v2185 = vld [vmem:[#allocation5 + $0x3718] sm:$0xff]
        %v2186 = vld [vmem:[#allocation5 + $0x3720] sm:$0xff]
        %v2187 = vld [vmem:[#allocation5 + $0x3728] sm:$0xff]
        %v2188 = vld [vmem:[#allocation5 + $0x3730] sm:$0xff]
        %v2189 = vld [vmem:[#allocation5 + $0x3738] sm:$0xff]
        %v2190 = vld [vmem:[#allocation5 + $0x3740] sm:$0xff]
        %v2191 = vld [vmem:[#allocation5 + $0x3748] sm:$0xff]
        %v2192 = vld [vmem:[#allocation5 + $0x3750] sm:$0xff]
        %v2193 = vld [vmem:[#allocation5 + $0x3758] sm:$0xff]
        %v2194 = vld [vmem:[#allocation5 + $0x3760] sm:$0xff]
        %v2195 = vld [vmem:[#allocation5 + $0x3768] sm:$0xff]
        %v2196 = vld [vmem:[#allocation5 + $0x3770] sm:$0xff]
        %v2197 = vld [vmem:[#allocation5 + $0x3778] sm:$0xff]
        %v2198 = vld [vmem:[#allocation5 + $0x3780] sm:$0xff]
        %v2199 = vld [vmem:[#allocation5 + $0x3788] sm:$0xff]
        %v2200 = vld [vmem:[#allocation5 + $0x3790] sm:$0xff]
        %v2201 = vld [vmem:[#allocation5 + $0x3798] sm:$0xff]
        %v2202 = vld [vmem:[#allocation5 + $0x37a0] sm:$0xff]
        %v2203 = vld [vmem:[#allocation5 + $0x37a8] sm:$0xff]
        %v2204 = vld [vmem:[#allocation5 + $0x37b0] sm:$0xff]
        %v2205 = vld [vmem:[#allocation5 + $0x37b8] sm:$0xff]
        %v2206 = vld [vmem:[#allocation5 + $0x37c0] sm:$0xff]
        %v2207 = vld [vmem:[#allocation5 + $0x37c8] sm:$0xff]
        %v2208 = vld [vmem:[#allocation5 + $0x37d0] sm:$0xff]
        %v2209 = vld [vmem:[#allocation5 + $0x37d8] sm:$0xff]
        %v2210 = vld [vmem:[#allocation5 + $0x37e0] sm:$0xff]
        %v2211 = vld [vmem:[#allocation5 + $0x37e8] sm:$0xff]
        %v2212 = vld [vmem:[#allocation5 + $0x37f0] sm:$0xff]
        %v2213 = vld [vmem:[#allocation5 + $0x37f8] sm:$0xff]
        %v2214 = vld [vmem:[#allocation5 + $0x3800] sm:$0xff]
        %v2215 = vld [vmem:[#allocation5 + $0x3808] sm:$0xff]
        %v2216 = vld [vmem:[#allocation5 + $0x3810] sm:$0xff]
        %v2217 = vld [vmem:[#allocation5 + $0x3818] sm:$0xff]
        %v2218 = vld [vmem:[#allocation5 + $0x3820] sm:$0xff]
        %v2219 = vld [vmem:[#allocation5 + $0x3828] sm:$0xff]
        %v2220 = vld [vmem:[#allocation5 + $0x3830] sm:$0xff]
        %v2221 = vld [vmem:[#allocation5 + $0x3838] sm:$0xff]
        %v2222 = vld [vmem:[#allocation5 + $0x3840] sm:$0xff]
        %v2223 = vld [vmem:[#allocation5 + $0x3848] sm:$0xff]
        %v2224 = vld [vmem:[#allocation5 + $0x3850] sm:$0xff]
        %v2225 = vld [vmem:[#allocation5 + $0x3858] sm:$0xff]
        %v2226 = vld [vmem:[#allocation5 + $0x3860] sm:$0xff]
        %v2227 = vld [vmem:[#allocation5 + $0x3868] sm:$0xff]
        %v2228 = vld [vmem:[#allocation5 + $0x3870] sm:$0xff]
        %v2229 = vld [vmem:[#allocation5 + $0x3878] sm:$0xff]
        %v2230 = vld [vmem:[#allocation5 + $0x3880] sm:$0xff]
        %v2231 = vld [vmem:[#allocation5 + $0x3888] sm:$0xff]
        %v2232 = vld [vmem:[#allocation5 + $0x3890] sm:$0xff]
        %v2233 = vld [vmem:[#allocation5 + $0x3898] sm:$0xff]
        %v2234 = vld [vmem:[#allocation5 + $0x38a0] sm:$0xff]
        %v2235 = vld [vmem:[#allocation5 + $0x38a8] sm:$0xff]
        %v2236 = vld [vmem:[#allocation5 + $0x38b0] sm:$0xff]
        %v2237 = vld [vmem:[#allocation5 + $0x38b8] sm:$0xff]
        %v2238 = vld [vmem:[#allocation5 + $0x38c0] sm:$0xff]
        %v2239 = vld [vmem:[#allocation5 + $0x38c8] sm:$0xff]
        %v2240 = vld [vmem:[#allocation5 + $0x38d0] sm:$0xff]
        %v2241 = vld [vmem:[#allocation5 + $0x38d8] sm:$0xff]
        %v2242 = vld [vmem:[#allocation5 + $0x38e0] sm:$0xff]
        %v2243 = vld [vmem:[#allocation5 + $0x38e8] sm:$0xff]
        %v2244 = vld [vmem:[#allocation5 + $0x38f0] sm:$0xff]
        %v2245 = vld [vmem:[#allocation5 + $0x38f8] sm:$0xff]
        %v2246 = vld [vmem:[#allocation5 + $0x3900] sm:$0xff]
        %v2247 = vld [vmem:[#allocation5 + $0x3908] sm:$0xff]
        %v2248 = vld [vmem:[#allocation5 + $0x3910] sm:$0xff]
        %v2249 = vld [vmem:[#allocation5 + $0x3918] sm:$0xff]
        %v2250 = vld [vmem:[#allocation5 + $0x3920] sm:$0xff]
        %v2251 = vld [vmem:[#allocation5 + $0x3928] sm:$0xff]
        %v2252 = vld [vmem:[#allocation5 + $0x3930] sm:$0xff]
        %v2253 = vld [vmem:[#allocation5 + $0x3938] sm:$0xff]
        %v2254 = vld [vmem:[#allocation5 + $0x3940] sm:$0xff]
        %v2255 = vld [vmem:[#allocation5 + $0x3948] sm:$0xff]
        %v2256 = vld [vmem:[#allocation5 + $0x3950] sm:$0xff]
        %v2257 = vld [vmem:[#allocation5 + $0x3958] sm:$0xff]
        %v2258 = vld [vmem:[#allocation5 + $0x3960] sm:$0xff]
        %v2259 = vld [vmem:[#allocation5 + $0x3968] sm:$0xff]
        %v2260 = vld [vmem:[#allocation5 + $0x3970] sm:$0xff]
        %v2261 = vld [vmem:[#allocation5 + $0x3978] sm:$0xff]
        %v2262 = vld [vmem:[#allocation5 + $0x3980] sm:$0xff]
        %v2263 = vld [vmem:[#allocation5 + $0x3988] sm:$0xff]
        %v2264 = vld [vmem:[#allocation5 + $0x3990] sm:$0xff]
        %v2265 = vld [vmem:[#allocation5 + $0x3998] sm:$0xff]
        %v2266 = vld [vmem:[#allocation5 + $0x39a0] sm:$0xff]
        %v2267 = vld [vmem:[#allocation5 + $0x39a8] sm:$0xff]
        %v2268 = vld [vmem:[#allocation5 + $0x39b0] sm:$0xff]
        %v2269 = vld [vmem:[#allocation5 + $0x39b8] sm:$0xff]
        %v2270 = vld [vmem:[#allocation5 + $0x39c0] sm:$0xff]
        %v2271 = vld [vmem:[#allocation5 + $0x39c8] sm:$0xff]
        %v2272 = vld [vmem:[#allocation5 + $0x39d0] sm:$0xff]
        %v2273 = vld [vmem:[#allocation5 + $0x39d8] sm:$0xff]
        %v2274 = vld [vmem:[#allocation5 + $0x39e0] sm:$0xff]
        %v2275 = vld [vmem:[#allocation5 + $0x39e8] sm:$0xff]
        %v2276 = vld [vmem:[#allocation5 + $0x39f0] sm:$0xff]
        %v2277 = vld [vmem:[#allocation5 + $0x39f8] sm:$0xff]
        %v2278 = vld [vmem:[#allocation5 + $0x3a00] sm:$0xff]
        %v2279 = vld [vmem:[#allocation5 + $0x3a08] sm:$0xff]
        %v2280 = vld [vmem:[#allocation5 + $0x3a10] sm:$0xff]
        %v2281 = vld [vmem:[#allocation5 + $0x3a18] sm:$0xff]
        %v2282 = vld [vmem:[#allocation5 + $0x3a20] sm:$0xff]
        %v2283 = vld [vmem:[#allocation5 + $0x3a28] sm:$0xff]
        %v2284 = vld [vmem:[#allocation5 + $0x3a30] sm:$0xff]
        %v2285 = vld [vmem:[#allocation5 + $0x3a38] sm:$0xff]
        %v2286 = vld [vmem:[#allocation5 + $0x3a40] sm:$0xff]
        %v2287 = vld [vmem:[#allocation5 + $0x3a48] sm:$0xff]
        %v2288 = vld [vmem:[#allocation5 + $0x3a50] sm:$0xff]
        %v2289 = vld [vmem:[#allocation5 + $0x3a58] sm:$0xff]
        %v2290 = vld [vmem:[#allocation5 + $0x3a60] sm:$0xff]
        %v2291 = vld [vmem:[#allocation5 + $0x3a68] sm:$0xff]
        %v2292 = vld [vmem:[#allocation5 + $0x3a70] sm:$0xff]
        %v2293 = vld [vmem:[#allocation5 + $0x3a78] sm:$0xff]
        %v2294 = vld [vmem:[#allocation5 + $0x3a80] sm:$0xff]
        %v2295 = vld [vmem:[#allocation5 + $0x3a88] sm:$0xff]
        %v2296 = vld [vmem:[#allocation5 + $0x3a90] sm:$0xff]
        %v2297 = vld [vmem:[#allocation5 + $0x3a98] sm:$0xff]
        %v2298 = vld [vmem:[#allocation5 + $0x3aa0] sm:$0xff]
        %v2299 = vld [vmem:[#allocation5 + $0x3aa8] sm:$0xff]
        %v2300 = vld [vmem:[#allocation5 + $0x3ab0] sm:$0xff]
        %v2301 = vld [vmem:[#allocation5 + $0x3ab8] sm:$0xff]
        %v2302 = vld [vmem:[#allocation5 + $0x3ac0] sm:$0xff]
        %v2303 = vld [vmem:[#allocation5 + $0x3ac8] sm:$0xff]
        %v2304 = vld [vmem:[#allocation5 + $0x3ad0] sm:$0xff]
        %v2305 = vld [vmem:[#allocation5 + $0x3ad8] sm:$0xff]
        %v2306 = vld [vmem:[#allocation5 + $0x3ae0] sm:$0xff]
        %v2307 = vld [vmem:[#allocation5 + $0x3ae8] sm:$0xff]
        %v2308 = vld [vmem:[#allocation5 + $0x3af0] sm:$0xff]
        %v2309 = vld [vmem:[#allocation5 + $0x3af8] sm:$0xff]
        %v2310 = vld [vmem:[#allocation5 + $0x3b00] sm:$0xff]
        %v2311 = vld [vmem:[#allocation5 + $0x3b08] sm:$0xff]
        %v2312 = vld [vmem:[#allocation5 + $0x3b10] sm:$0xff]
        %v2313 = vld [vmem:[#allocation5 + $0x3b18] sm:$0xff]
        %v2314 = vld [vmem:[#allocation5 + $0x3b20] sm:$0xff]
        %v2315 = vld [vmem:[#allocation5 + $0x3b28] sm:$0xff]
        %v2316 = vld [vmem:[#allocation5 + $0x3b30] sm:$0xff]
        %v2317 = vld [vmem:[#allocation5 + $0x3b38] sm:$0xff]
        %v2318 = vld [vmem:[#allocation5 + $0x3b40] sm:$0xff]
        %v2319 = vld [vmem:[#allocation5 + $0x3b48] sm:$0xff]
        %v2320 = vld [vmem:[#allocation5 + $0x3b50] sm:$0xff]
        %v2321 = vld [vmem:[#allocation5 + $0x3b58] sm:$0xff]
        %v2322 = vld [vmem:[#allocation5 + $0x3b60] sm:$0xff]
        %v2323 = vld [vmem:[#allocation5 + $0x3b68] sm:$0xff]
        %v2324 = vld [vmem:[#allocation5 + $0x3b70] sm:$0xff]
        %v2325 = vld [vmem:[#allocation5 + $0x3b78] sm:$0xff]
        %v2326 = vld [vmem:[#allocation5 + $0x3b80] sm:$0xff]
        %v2327 = vld [vmem:[#allocation5 + $0x3b88] sm:$0xff]
        %v2328 = vld [vmem:[#allocation5 + $0x3b90] sm:$0xff]
        %v2329 = vld [vmem:[#allocation5 + $0x3b98] sm:$0xff]
        %v2330 = vld [vmem:[#allocation5 + $0x3ba0] sm:$0xff]
        %v2331 = vld [vmem:[#allocation5 + $0x3ba8] sm:$0xff]
        %v2332 = vld [vmem:[#allocation5 + $0x3bb0] sm:$0xff]
        %v2333 = vld [vmem:[#allocation5 + $0x3bb8] sm:$0xff]
        %v2334 = vld [vmem:[#allocation5 + $0x3bc0] sm:$0xff]
        %v2335 = vld [vmem:[#allocation5 + $0x3bc8] sm:$0xff]
        %v2336 = vld [vmem:[#allocation5 + $0x3bd0] sm:$0xff]
        %v2337 = vld [vmem:[#allocation5 + $0x3bd8] sm:$0xff]
        %v2338 = vld [vmem:[#allocation5 + $0x3be0] sm:$0xff]
        %v2339 = vld [vmem:[#allocation5 + $0x3be8] sm:$0xff]
        %v2340 = vld [vmem:[#allocation5 + $0x3bf0] sm:$0xff]
        %v2341 = vld [vmem:[#allocation5 + $0x3bf8] sm:$0xff]
        %v2342 = vld [vmem:[#allocation5 + $0x3c00] sm:$0xff]
        %v2343 = vld [vmem:[#allocation5 + $0x3c08] sm:$0xff]
        %v2344 = vld [vmem:[#allocation5 + $0x3c10] sm:$0xff]
        %v2345 = vld [vmem:[#allocation5 + $0x3c18] sm:$0xff]
        %v2346 = vld [vmem:[#allocation5 + $0x3c20] sm:$0xff]
        %v2347 = vld [vmem:[#allocation5 + $0x3c28] sm:$0xff]
        %v2348 = vld [vmem:[#allocation5 + $0x3c30] sm:$0xff]
        %v2349 = vld [vmem:[#allocation5 + $0x3c38] sm:$0xff]
        %v2350 = vld [vmem:[#allocation5 + $0x3c40] sm:$0xff]
        %v2351 = vld [vmem:[#allocation5 + $0x3c48] sm:$0xff]
        %v2352 = vld [vmem:[#allocation5 + $0x3c50] sm:$0xff]
        %v2353 = vld [vmem:[#allocation5 + $0x3c58] sm:$0xff]
        %v2354 = vld [vmem:[#allocation5 + $0x3c60] sm:$0xff]
        %v2355 = vld [vmem:[#allocation5 + $0x3c68] sm:$0xff]
        %v2356 = vld [vmem:[#allocation5 + $0x3c70] sm:$0xff]
        %v2357 = vld [vmem:[#allocation5 + $0x3c78] sm:$0xff]
        %v2358 = vld [vmem:[#allocation5 + $0x3c80] sm:$0xff]
        %v2359 = vld [vmem:[#allocation5 + $0x3c88] sm:$0xff]
        %v2360 = vld [vmem:[#allocation5 + $0x3c90] sm:$0xff]
        %v2361 = vld [vmem:[#allocation5 + $0x3c98] sm:$0xff]
        %v2362 = vld [vmem:[#allocation5 + $0x3ca0] sm:$0xff]
        %v2363 = vld [vmem:[#allocation5 + $0x3ca8] sm:$0xff]
        %v2364 = vld [vmem:[#allocation5 + $0x3cb0] sm:$0xff]
        %v2365 = vld [vmem:[#allocation5 + $0x3cb8] sm:$0xff]
        %v2366 = vld [vmem:[#allocation5 + $0x3cc0] sm:$0xff]
        %v2367 = vld [vmem:[#allocation5 + $0x3cc8] sm:$0xff]
        %v2368 = vld [vmem:[#allocation5 + $0x3cd0] sm:$0xff]
        %v2369 = vld [vmem:[#allocation5 + $0x3cd8] sm:$0xff]
        %v2370 = vld [vmem:[#allocation5 + $0x3ce0] sm:$0xff]
        %v2371 = vld [vmem:[#allocation5 + $0x3ce8] sm:$0xff]
        %v2372 = vld [vmem:[#allocation5 + $0x3cf0] sm:$0xff]
        %v2373 = vld [vmem:[#allocation5 + $0x3cf8] sm:$0xff]
        %v2374 = vld [vmem:[#allocation5 + $0x3d00] sm:$0xff]
        %v2375 = vld [vmem:[#allocation5 + $0x3d08] sm:$0xff]
        %v2376 = vld [vmem:[#allocation5 + $0x3d10] sm:$0xff]
        %v2377 = vld [vmem:[#allocation5 + $0x3d18] sm:$0xff]
        %v2378 = vld [vmem:[#allocation5 + $0x3d20] sm:$0xff]
        %v2379 = vld [vmem:[#allocation5 + $0x3d28] sm:$0xff]
        %v2380 = vld [vmem:[#allocation5 + $0x3d30] sm:$0xff]
        %v2381 = vld [vmem:[#allocation5 + $0x3d38] sm:$0xff]
        %v2382 = vld [vmem:[#allocation5 + $0x3d40] sm:$0xff]
        %v2383 = vld [vmem:[#allocation5 + $0x3d48] sm:$0xff]
        %v2384 = vld [vmem:[#allocation5 + $0x3d50] sm:$0xff]
        %v2385 = vld [vmem:[#allocation5 + $0x3d58] sm:$0xff]
        %v2386 = vld [vmem:[#allocation5 + $0x3d60] sm:$0xff]
        %v2387 = vld [vmem:[#allocation5 + $0x3d68] sm:$0xff]
        %v2388 = vld [vmem:[#allocation5 + $0x3d70] sm:$0xff]
        %v2389 = vld [vmem:[#allocation5 + $0x3d78] sm:$0xff]
        %v2390 = vld [vmem:[#allocation5 + $0x3d80] sm:$0xff]
        %v2391 = vld [vmem:[#allocation5 + $0x3d88] sm:$0xff]
        %v2392 = vld [vmem:[#allocation5 + $0x3d90] sm:$0xff]
        %v2393 = vld [vmem:[#allocation5 + $0x3d98] sm:$0xff]
        %v2394 = vld [vmem:[#allocation5 + $0x3da0] sm:$0xff]
        %v2395 = vld [vmem:[#allocation5 + $0x3da8] sm:$0xff]
        %v2396 = vld [vmem:[#allocation5 + $0x3db0] sm:$0xff]
        %v2397 = vld [vmem:[#allocation5 + $0x3db8] sm:$0xff]
        %v2398 = vld [vmem:[#allocation5 + $0x3dc0] sm:$0xff]
        %v2399 = vld [vmem:[#allocation5 + $0x3dc8] sm:$0xff]
        %v2400 = vld [vmem:[#allocation5 + $0x3dd0] sm:$0xff]
        %v2401 = vld [vmem:[#allocation5 + $0x3dd8] sm:$0xff]
        %v2402 = vld [vmem:[#allocation5 + $0x3de0] sm:$0xff]
        %v2403 = vld [vmem:[#allocation5 + $0x3de8] sm:$0xff]
        %v2404 = vld [vmem:[#allocation5 + $0x3df0] sm:$0xff]
        %v2405 = vld [vmem:[#allocation5 + $0x3df8] sm:$0xff]
        %v2406 = vld [vmem:[#allocation5 + $0x3e00] sm:$0xff]
        %v2407 = vld [vmem:[#allocation5 + $0x3e08] sm:$0xff]
        %v2408 = vld [vmem:[#allocation5 + $0x3e10] sm:$0xff]
        %v2409 = vld [vmem:[#allocation5 + $0x3e18] sm:$0xff]
        %v2410 = vld [vmem:[#allocation5 + $0x3e20] sm:$0xff]
        %v2411 = vld [vmem:[#allocation5 + $0x3e28] sm:$0xff]
        %v2412 = vld [vmem:[#allocation5 + $0x3e30] sm:$0xff]
        %v2413 = vld [vmem:[#allocation5 + $0x3e38] sm:$0xff]
        %v2414 = vld [vmem:[#allocation5 + $0x3e40] sm:$0xff]
        %v2415 = vld [vmem:[#allocation5 + $0x3e48] sm:$0xff]
        %v2416 = vld [vmem:[#allocation5 + $0x3e50] sm:$0xff]
        %v2417 = vld [vmem:[#allocation5 + $0x3e58] sm:$0xff]
        %v2418 = vld [vmem:[#allocation5 + $0x3e60] sm:$0xff]
        %v2419 = vld [vmem:[#allocation5 + $0x3e68] sm:$0xff]
        %v2420 = vld [vmem:[#allocation5 + $0x3e70] sm:$0xff]
        %v2421 = vld [vmem:[#allocation5 + $0x3e78] sm:$0xff]
        %v2422 = vld [vmem:[#allocation5 + $0x3e80] sm:$0xff]
        %v2423 = vld [vmem:[#allocation5 + $0x3e88] sm:$0xff]
        %v2424 = vld [vmem:[#allocation5 + $0x3e90] sm:$0xff]
        %v2425 = vld [vmem:[#allocation5 + $0x3e98] sm:$0xff]
        %v2426 = vld [vmem:[#allocation5 + $0x3ea0] sm:$0xff]
        %v2427 = vld [vmem:[#allocation5 + $0x3ea8] sm:$0xff]
        %v2428 = vld [vmem:[#allocation5 + $0x3eb0] sm:$0xff]
        %v2429 = vld [vmem:[#allocation5 + $0x3eb8] sm:$0xff]
        %v2430 = vld [vmem:[#allocation5 + $0x3ec0] sm:$0xff]
        %v2431 = vld [vmem:[#allocation5 + $0x3ec8] sm:$0xff]
        %v2432 = vld [vmem:[#allocation5 + $0x3ed0] sm:$0xff]
        %v2433 = vld [vmem:[#allocation5 + $0x3ed8] sm:$0xff]
        %v2434 = vld [vmem:[#allocation5 + $0x3ee0] sm:$0xff]
        %v2435 = vld [vmem:[#allocation5 + $0x3ee8] sm:$0xff]
        %v2436 = vld [vmem:[#allocation5 + $0x3ef0] sm:$0xff]
        %v2437 = vld [vmem:[#allocation5 + $0x3ef8] sm:$0xff]
        %v2438 = vld [vmem:[#allocation5 + $0x3f00] sm:$0xff]
        %v2439 = vld [vmem:[#allocation5 + $0x3f08] sm:$0xff]
        %v2440 = vld [vmem:[#allocation5 + $0x3f10] sm:$0xff]
        %v2441 = vld [vmem:[#allocation5 + $0x3f18] sm:$0xff]
        %v2442 = vld [vmem:[#allocation5 + $0x3f20] sm:$0xff]
        %v2443 = vld [vmem:[#allocation5 + $0x3f28] sm:$0xff]
        %v2444 = vld [vmem:[#allocation5 + $0x3f30] sm:$0xff]
        %v2445 = vld [vmem:[#allocation5 + $0x3f38] sm:$0xff]
        %v2446 = vld [vmem:[#allocation5 + $0x3f40] sm:$0xff]
        %v2447 = vld [vmem:[#allocation5 + $0x3f48] sm:$0xff]
        %v2448 = vld [vmem:[#allocation5 + $0x3f50] sm:$0xff]
        %v2449 = vld [vmem:[#allocation5 + $0x3f58] sm:$0xff]
        %v2450 = vld [vmem:[#allocation5 + $0x3f60] sm:$0xff]
        %v2451 = vld [vmem:[#allocation5 + $0x3f68] sm:$0xff]
        %v2452 = vld [vmem:[#allocation5 + $0x3f70] sm:$0xff]
        %v2453 = vld [vmem:[#allocation5 + $0x3f78] sm:$0xff]
        %v2454 = vld [vmem:[#allocation5 + $0x3f80] sm:$0xff]
        %v2455 = vld [vmem:[#allocation5 + $0x3f88] sm:$0xff]
        %v2456 = vld [vmem:[#allocation5 + $0x3f90] sm:$0xff]
        %v2457 = vld [vmem:[#allocation5 + $0x3f98] sm:$0xff]
        %v2458 = vld [vmem:[#allocation5 + $0x3fa0] sm:$0xff]
        %v2459 = vld [vmem:[#allocation5 + $0x3fa8] sm:$0xff]
        %v2460 = vld [vmem:[#allocation5 + $0x3fb0] sm:$0xff]
        %v2461 = vld [vmem:[#allocation5 + $0x3fb8] sm:$0xff]
        %v2462 = vld [vmem:[#allocation5 + $0x3fc0] sm:$0xff]
        %v2463 = vld [vmem:[#allocation5 + $0x3fc8] sm:$0xff]
        %v2464 = vld [vmem:[#allocation5 + $0x3fd0] sm:$0xff]
        %v2465 = vld [vmem:[#allocation5 + $0x3fd8] sm:$0xff]
        %v2466 = vld [vmem:[#allocation5 + $0x3fe0] sm:$0xff]
        %v2467 = vld [vmem:[#allocation5 + $0x3fe8] sm:$0xff]
        %v2468 = vld [vmem:[#allocation5 + $0x3ff0] sm:$0xff]
        %v2469 = vld [vmem:[#allocation5 + $0x3ff8] sm:$0xff]
        %v2470 = vld [vmem:[#allocation5 + $0x4000] sm:$0xff]
        %v2471 = vld [vmem:[#allocation5 + $0x4008] sm:$0xff]
        %v2472 = vld [vmem:[#allocation5 + $0x4010] sm:$0xff]
        %v2473 = vld [vmem:[#allocation5 + $0x4018] sm:$0xff]
        %v2474 = vld [vmem:[#allocation5 + $0x4020] sm:$0xff]
        %v2475 = vld [vmem:[#allocation5 + $0x4028] sm:$0xff]
        %v2476 = vld [vmem:[#allocation5 + $0x4030] sm:$0xff]
        %v2477 = vld [vmem:[#allocation5 + $0x4038] sm:$0xff]
        %v2478 = vld [vmem:[#allocation5 + $0x4040] sm:$0xff]
        %v2479 = vld [vmem:[#allocation5 + $0x4048] sm:$0xff]
        %v2480 = vld [vmem:[#allocation5 + $0x4050] sm:$0xff]
        %v2481 = vld [vmem:[#allocation5 + $0x4058] sm:$0xff]
        %v2482 = vld [vmem:[#allocation5 + $0x4060] sm:$0xff]
        %v2483 = vld [vmem:[#allocation5 + $0x4068] sm:$0xff]
        %v2484 = vld [vmem:[#allocation5 + $0x4070] sm:$0xff]
        %v2485 = vld [vmem:[#allocation5 + $0x4078] sm:$0xff]
        %v2486 = vld [vmem:[#allocation5 + $0x4080] sm:$0xff]
        %v2487 = vld [vmem:[#allocation5 + $0x4088] sm:$0xff]
        %v2488 = vld [vmem:[#allocation5 + $0x4090] sm:$0xff]
        %v2489 = vld [vmem:[#allocation5 + $0x4098] sm:$0xff]
        %v2490 = vld [vmem:[#allocation5 + $0x40a0] sm:$0xff]
        %v2491 = vld [vmem:[#allocation5 + $0x40a8] sm:$0xff]
        %v2492 = vld [vmem:[#allocation5 + $0x40b0] sm:$0xff]
        %v2493 = vld [vmem:[#allocation5 + $0x40b8] sm:$0xff]
        %v2494 = vld [vmem:[#allocation5 + $0x40c0] sm:$0xff]
        %v2495 = vld [vmem:[#allocation5 + $0x40c8] sm:$0xff]
        %v2496 = vld [vmem:[#allocation5 + $0x40d0] sm:$0xff]
        %v2497 = vld [vmem:[#allocation5 + $0x40d8] sm:$0xff]
        %v2498 = vld [vmem:[#allocation5 + $0x40e0] sm:$0xff]
        %v2499 = vld [vmem:[#allocation5 + $0x40e8] sm:$0xff]
        %v2500 = vld [vmem:[#allocation5 + $0x40f0] sm:$0xff]
        %v2501 = vld [vmem:[#allocation5 + $0x40f8] sm:$0xff]
        %v2502 = vld [vmem:[#allocation5 + $0x4100] sm:$0xff]
        %v2503 = vld [vmem:[#allocation5 + $0x4108] sm:$0xff]
        %v2504 = vld [vmem:[#allocation5 + $0x4110] sm:$0xff]
        %v2505 = vld [vmem:[#allocation5 + $0x4118] sm:$0xff]
        %v2506 = vld [vmem:[#allocation5 + $0x4120] sm:$0xff]
        %v2507 = vld [vmem:[#allocation5 + $0x4128] sm:$0xff]
        %v2508 = vld [vmem:[#allocation5 + $0x4130] sm:$0xff]
        %v2509 = vld [vmem:[#allocation5 + $0x4138] sm:$0xff]
        %v2510 = vld [vmem:[#allocation5 + $0x4140] sm:$0xff]
        %v2511 = vld [vmem:[#allocation5 + $0x4148] sm:$0xff]
        %v2512 = vld [vmem:[#allocation5 + $0x4150] sm:$0xff]
        %v2513 = vld [vmem:[#allocation5 + $0x4158] sm:$0xff]
        %v2514 = vld [vmem:[#allocation5 + $0x4160] sm:$0xff]
        %v2515 = vld [vmem:[#allocation5 + $0x4168] sm:$0xff]
        %v2516 = vld [vmem:[#allocation5 + $0x4170] sm:$0xff]
        %v2517 = vld [vmem:[#allocation5 + $0x4178] sm:$0xff]
        %v2518 = vld [vmem:[#allocation5 + $0x4180] sm:$0xff]
        %v2519 = vld [vmem:[#allocation5 + $0x4188] sm:$0xff]
        %v2520 = vld [vmem:[#allocation5 + $0x4190] sm:$0xff]
        %v2521 = vld [vmem:[#allocation5 + $0x4198] sm:$0xff]
        %v2522 = vld [vmem:[#allocation5 + $0x41a0] sm:$0xff]
        %v2523 = vld [vmem:[#allocation5 + $0x41a8] sm:$0xff]
        %v2524 = vld [vmem:[#allocation5 + $0x41b0] sm:$0xff]
        %v2525 = vld [vmem:[#allocation5 + $0x41b8] sm:$0xff]
        %v2526 = vld [vmem:[#allocation5 + $0x41c0] sm:$0xff]
        %v2527 = vld [vmem:[#allocation5 + $0x41c8] sm:$0xff]
        %v2528 = vld [vmem:[#allocation5 + $0x41d0] sm:$0xff]
        %v2529 = vld [vmem:[#allocation5 + $0x41d8] sm:$0xff]
        %v2530 = vld [vmem:[#allocation5 + $0x41e0] sm:$0xff]
        %v2531 = vld [vmem:[#allocation5 + $0x41e8] sm:$0xff]
        %v2532 = vld [vmem:[#allocation5 + $0x41f0] sm:$0xff]
        %v2533 = vld [vmem:[#allocation5 + $0x41f8] sm:$0xff]
        %v2534 = vld [vmem:[#allocation5 + $0x4200] sm:$0xff]
        %v2535 = vld [vmem:[#allocation5 + $0x4208] sm:$0xff]
        %v2536 = vld [vmem:[#allocation5 + $0x4210] sm:$0xff]
        %v2537 = vld [vmem:[#allocation5 + $0x4218] sm:$0xff]
        %v2538 = vld [vmem:[#allocation5 + $0x4220] sm:$0xff]
        %v2539 = vld [vmem:[#allocation5 + $0x4228] sm:$0xff]
        %v2540 = vld [vmem:[#allocation5 + $0x4230] sm:$0xff]
        %v2541 = vld [vmem:[#allocation5 + $0x4238] sm:$0xff]
        %v2542 = vld [vmem:[#allocation5 + $0x4240] sm:$0xff]
        %v2543 = vld [vmem:[#allocation5 + $0x4248] sm:$0xff]
        %v2544 = vld [vmem:[#allocation5 + $0x4250] sm:$0xff]
        %v2545 = vld [vmem:[#allocation5 + $0x4258] sm:$0xff]
        %v2546 = vld [vmem:[#allocation5 + $0x4260] sm:$0xff]
        %v2547 = vld [vmem:[#allocation5 + $0x4268] sm:$0xff]
        %v2548 = vld [vmem:[#allocation5 + $0x4270] sm:$0xff]
        %v2549 = vld [vmem:[#allocation5 + $0x4278] sm:$0xff]
        %v2550 = vld [vmem:[#allocation5 + $0x4280] sm:$0x7f]
        %v2551 = vld [vmem:[#allocation5 + $0x4288] sm:$0x7f]
        %v2552 = vld [vmem:[#allocation5 + $0x4290] sm:$0x7f]
        %v2553 = vld [vmem:[#allocation5 + $0x4298] sm:$0x7f]
        %v2554 = vld [vmem:[#allocation7] sm:$0xf]
        %v2556 = vperm.slane %v2554, 0
        %v2557 = vperm.slane %v2554, 1
        %v2558 = vperm.slane %v2554, 2
        %v2559 = vperm.slane %v2554, 3
        %vm2564 = vcmask 318464
        %v2566 = vsel %vm2564, %v421, 0
        %vm2568 = vcmask 1046528
        %v2570 = vsel %vm2568, %v2550, 0
        %v2573 = vsel %vm2568, %v2551, 0
        %v2576 = vsel %vm2568, %v2552, 0
        %v2579 = vsel %vm2568, %v2553, 0
        %2581 = vmatpush.msra.mxu0 %v482
        %2582 = vmatpush.msra.mxu0 %v478
        %2583 = vmatpush.msra.mxu0 %v474
        %2584 = vmatpush.msra.mxu0 %v470
        %2585 = vmatpush.msra.mxu0 %v466
        %2586 = vmatpush.msra.mxu0 %v462
        %2587 = vmatpush.msra.mxu0 %v458
        %2588 = vmatpush.msra.mxu0 %v454
        %2589 = vmatpush.msra.mxu0 %v450
        %2590 = vmatpush.msra.mxu0 %v446
        %2591 = vmatpush.msra.mxu0 %v442
        %2592 = vmatpush.msra.mxu0 %v438
        %2593 = vmatpush.msra.mxu0 %v434
        %2594 = vmatpush.msra.mxu0 %v430
        %2595 = vmatpush.msra.mxu0 %v426
        %2596 = vmatpush.msra.mxu0 %v422
        %2597 = vmatmul.f32.gmra.mxu0 %v388
        %v2598 = vpop.f32.mrf.mxu0
        %v2599 = vadd.f32 %v2556, %v2598
        %2600 = vdwg.mxu0
        %2601 = vmatpush.msra.mxu0 %v546
        %2602 = vmatpush.msra.mxu0 %v542
        %2603 = vmatpush.msra.mxu0 %v538
        %2604 = vmatpush.msra.mxu0 %v534
        %2605 = vmatpush.msra.mxu0 %v530
        %2606 = vmatpush.msra.mxu0 %v526
        %2607 = vmatpush.msra.mxu0 %v522
        %2608 = vmatpush.msra.mxu0 %v518
        %2609 = vmatpush.msra.mxu0 %v514
        %2610 = vmatpush.msra.mxu0 %v510
        %2611 = vmatpush.msra.mxu0 %v506
        %2612 = vmatpush.msra.mxu0 %v502
        %2613 = vmatpush.msra.mxu0 %v498
        %2614 = vmatpush.msra.mxu0 %v494
        %2615 = vmatpush.msra.mxu0 %v490
        %2616 = vmatpush.msra.mxu0 %v486
        %2617 = vmatmul.f32.gmra.mxu0 %v389
        %v2618 = vpop.f32.mrf.mxu0
        %v2619 = vadd.f32 %v2599, %v2618
        %2620 = vdwg.mxu0
        %2621 = vmatpush.msra.mxu0 %v610
        %2622 = vmatpush.msra.mxu0 %v606
        %2623 = vmatpush.msra.mxu0 %v602
        %2624 = vmatpush.msra.mxu0 %v598
        %2625 = vmatpush.msra.mxu0 %v594
        %2626 = vmatpush.msra.mxu0 %v590
        %2627 = vmatpush.msra.mxu0 %v586
        %2628 = vmatpush.msra.mxu0 %v582
        %2629 = vmatpush.msra.mxu0 %v578
        %2630 = vmatpush.msra.mxu0 %v574
        %2631 = vmatpush.msra.mxu0 %v570
        %2632 = vmatpush.msra.mxu0 %v566
        %2633 = vmatpush.msra.mxu0 %v562
        %2634 = vmatpush.msra.mxu0 %v558
        %2635 = vmatpush.msra.mxu0 %v554
        %2636 = vmatpush.msra.mxu0 %v550
        %2637 = vmatmul.f32.gmra.mxu0 %v390
        %v2638 = vpop.f32.mrf.mxu0
        %v2639 = vadd.f32 %v2619, %v2638
        %2640 = vdwg.mxu0
        %2641 = vmatpush.msra.mxu0 %v674
        %2642 = vmatpush.msra.mxu0 %v670
        %2643 = vmatpush.msra.mxu0 %v666
        %2644 = vmatpush.msra.mxu0 %v662
        %2645 = vmatpush.msra.mxu0 %v658
        %2646 = vmatpush.msra.mxu0 %v654
        %2647 = vmatpush.msra.mxu0 %v650
        %2648 = vmatpush.msra.mxu0 %v646
        %2649 = vmatpush.msra.mxu0 %v642
        %2650 = vmatpush.msra.mxu0 %v638
        %2651 = vmatpush.msra.mxu0 %v634
        %2652 = vmatpush.msra.mxu0 %v630
        %2653 = vmatpush.msra.mxu0 %v626
        %2654 = vmatpush.msra.mxu0 %v622
        %2655 = vmatpush.msra.mxu0 %v618
        %2656 = vmatpush.msra.mxu0 %v614
        %2657 = vmatmul.f32.gmra.mxu0 %v391
        %v2658 = vpop.f32.mrf.mxu0
        %v2659 = vadd.f32 %v2639, %v2658
        %2660 = vdwg.mxu0
        %2661 = vmatpush.msra.mxu0 %v738
        %2662 = vmatpush.msra.mxu0 %v734
        %2663 = vmatpush.msra.mxu0 %v730
        %2664 = vmatpush.msra.mxu0 %v726
        %2665 = vmatpush.msra.mxu0 %v722
        %2666 = vmatpush.msra.mxu0 %v718
        %2667 = vmatpush.msra.mxu0 %v714
        %2668 = vmatpush.msra.mxu0 %v710
        %2669 = vmatpush.msra.mxu0 %v706
        %2670 = vmatpush.msra.mxu0 %v702
        %2671 = vmatpush.msra.mxu0 %v698
        %2672 = vmatpush.msra.mxu0 %v694
        %2673 = vmatpush.msra.mxu0 %v690
        %2674 = vmatpush.msra.mxu0 %v686
        %2675 = vmatpush.msra.mxu0 %v682
        %2676 = vmatpush.msra.mxu0 %v678
        %2677 = vmatmul.f32.gmra.mxu0 %v392
        %v2678 = vpop.f32.mrf.mxu0
        %v2679 = vadd.f32 %v2659, %v2678
        %2680 = vdwg.mxu0
        %2681 = vmatpush.msra.mxu0 %v802
        %2682 = vmatpush.msra.mxu0 %v798
        %2683 = vmatpush.msra.mxu0 %v794
        %2684 = vmatpush.msra.mxu0 %v790
        %2685 = vmatpush.msra.mxu0 %v786
        %2686 = vmatpush.msra.mxu0 %v782
        %2687 = vmatpush.msra.mxu0 %v778
        %2688 = vmatpush.msra.mxu0 %v774
        %2689 = vmatpush.msra.mxu0 %v770
        %2690 = vmatpush.msra.mxu0 %v766
        %2691 = vmatpush.msra.mxu0 %v762
        %2692 = vmatpush.msra.mxu0 %v758
        %2693 = vmatpush.msra.mxu0 %v754
        %2694 = vmatpush.msra.mxu0 %v750
        %2695 = vmatpush.msra.mxu0 %v746
        %2696 = vmatpush.msra.mxu0 %v742
        %2697 = vmatmul.f32.gmra.mxu0 %v393
        %v2698 = vpop.f32.mrf.mxu0
        %v2699 = vadd.f32 %v2679, %v2698
        %2700 = vdwg.mxu0
        %2701 = vmatpush.msra.mxu0 %v866
        %2702 = vmatpush.msra.mxu0 %v862
        %2703 = vmatpush.msra.mxu0 %v858
        %2704 = vmatpush.msra.mxu0 %v854
        %2705 = vmatpush.msra.mxu0 %v850
        %2706 = vmatpush.msra.mxu0 %v846
        %2707 = vmatpush.msra.mxu0 %v842
        %2708 = vmatpush.msra.mxu0 %v838
        %2709 = vmatpush.msra.mxu0 %v834
        %2710 = vmatpush.msra.mxu0 %v830
        %2711 = vmatpush.msra.mxu0 %v826
        %2712 = vmatpush.msra.mxu0 %v822
        %2713 = vmatpush.msra.mxu0 %v818
        %2714 = vmatpush.msra.mxu0 %v814
        %2715 = vmatpush.msra.mxu0 %v810
        %2716 = vmatpush.msra.mxu0 %v806
        %2717 = vmatmul.f32.gmra.mxu0 %v394
        %v2718 = vpop.f32.mrf.mxu0
        %v2719 = vadd.f32 %v2699, %v2718
        %2720 = vdwg.mxu0
        %2721 = vmatpush.msra.mxu0 %v930
        %2722 = vmatpush.msra.mxu0 %v926
        %2723 = vmatpush.msra.mxu0 %v922
        %2724 = vmatpush.msra.mxu0 %v918
        %2725 = vmatpush.msra.mxu0 %v914
        %2726 = vmatpush.msra.mxu0 %v910
        %2727 = vmatpush.msra.mxu0 %v906
        %2728 = vmatpush.msra.mxu0 %v902
        %2729 = vmatpush.msra.mxu0 %v898
        %2730 = vmatpush.msra.mxu0 %v894
        %2731 = vmatpush.msra.mxu0 %v890
        %2732 = vmatpush.msra.mxu0 %v886
        %2733 = vmatpush.msra.mxu0 %v882
        %2734 = vmatpush.msra.mxu0 %v878
        %2735 = vmatpush.msra.mxu0 %v874
        %2736 = vmatpush.msra.mxu0 %v870
        %2737 = vmatmul.f32.gmra.mxu0 %v395
        %v2738 = vpop.f32.mrf.mxu0
        %v2739 = vadd.f32 %v2719, %v2738
        %2740 = vdwg.mxu0
        %2741 = vmatpush.msra.mxu0 %v994
        %2742 = vmatpush.msra.mxu0 %v990
        %2743 = vmatpush.msra.mxu0 %v986
        %2744 = vmatpush.msra.mxu0 %v982
        %2745 = vmatpush.msra.mxu0 %v978
        %2746 = vmatpush.msra.mxu0 %v974
        %2747 = vmatpush.msra.mxu0 %v970
        %2748 = vmatpush.msra.mxu0 %v966
        %2749 = vmatpush.msra.mxu0 %v962
        %2750 = vmatpush.msra.mxu0 %v958
        %2751 = vmatpush.msra.mxu0 %v954
        %2752 = vmatpush.msra.mxu0 %v950
        %2753 = vmatpush.msra.mxu0 %v946
        %2754 = vmatpush.msra.mxu0 %v942
        %2755 = vmatpush.msra.mxu0 %v938
        %2756 = vmatpush.msra.mxu0 %v934
        %2757 = vmatmul.f32.gmra.mxu0 %v396
        %v2758 = vpop.f32.mrf.mxu0
        %v2759 = vadd.f32 %v2739, %v2758
        %2760 = vdwg.mxu0
        %2761 = vmatpush.msra.mxu0 %v1058
        %2762 = vmatpush.msra.mxu0 %v1054
        %2763 = vmatpush.msra.mxu0 %v1050
        %2764 = vmatpush.msra.mxu0 %v1046
        %2765 = vmatpush.msra.mxu0 %v1042
        %2766 = vmatpush.msra.mxu0 %v1038
        %2767 = vmatpush.msra.mxu0 %v1034
        %2768 = vmatpush.msra.mxu0 %v1030
        %2769 = vmatpush.msra.mxu0 %v1026
        %2770 = vmatpush.msra.mxu0 %v1022
        %2771 = vmatpush.msra.mxu0 %v1018
        %2772 = vmatpush.msra.mxu0 %v1014
        %2773 = vmatpush.msra.mxu0 %v1010
        %2774 = vmatpush.msra.mxu0 %v1006
        %2775 = vmatpush.msra.mxu0 %v1002
        %2776 = vmatpush.msra.mxu0 %v998
        %2777 = vmatmul.f32.gmra.mxu0 %v397
        %v2778 = vpop.f32.mrf.mxu0
        %v2779 = vadd.f32 %v2759, %v2778
        %2780 = vdwg.mxu0
        %2781 = vmatpush.msra.mxu0 %v1122
        %2782 = vmatpush.msra.mxu0 %v1118
        %2783 = vmatpush.msra.mxu0 %v1114
        %2784 = vmatpush.msra.mxu0 %v1110
        %2785 = vmatpush.msra.mxu0 %v1106
        %2786 = vmatpush.msra.mxu0 %v1102
        %2787 = vmatpush.msra.mxu0 %v1098
        %2788 = vmatpush.msra.mxu0 %v1094
        %2789 = vmatpush.msra.mxu0 %v1090
        %2790 = vmatpush.msra.mxu0 %v1086
        %2791 = vmatpush.msra.mxu0 %v1082
        %2792 = vmatpush.msra.mxu0 %v1078
        %2793 = vmatpush.msra.mxu0 %v1074
        %2794 = vmatpush.msra.mxu0 %v1070
        %2795 = vmatpush.msra.mxu0 %v1066
        %2796 = vmatpush.msra.mxu0 %v1062
        %2797 = vmatmul.f32.gmra.mxu0 %v398
        %v2798 = vpop.f32.mrf.mxu0
        %v2799 = vadd.f32 %v2779, %v2798
        %2800 = vdwg.mxu0
        %2801 = vmatpush.msra.mxu0 %v1186
        %2802 = vmatpush.msra.mxu0 %v1182
        %2803 = vmatpush.msra.mxu0 %v1178
        %2804 = vmatpush.msra.mxu0 %v1174
        %2805 = vmatpush.msra.mxu0 %v1170
        %2806 = vmatpush.msra.mxu0 %v1166
        %2807 = vmatpush.msra.mxu0 %v1162
        %2808 = vmatpush.msra.mxu0 %v1158
        %2809 = vmatpush.msra.mxu0 %v1154
        %2810 = vmatpush.msra.mxu0 %v1150
        %2811 = vmatpush.msra.mxu0 %v1146
        %2812 = vmatpush.msra.mxu0 %v1142
        %2813 = vmatpush.msra.mxu0 %v1138
        %2814 = vmatpush.msra.mxu0 %v1134
        %2815 = vmatpush.msra.mxu0 %v1130
        %2816 = vmatpush.msra.mxu0 %v1126
        %2817 = vmatmul.f32.gmra.mxu0 %v399
        %v2818 = vpop.f32.mrf.mxu0
        %v2819 = vadd.f32 %v2799, %v2818
        %2820 = vdwg.mxu0
        %2821 = vmatpush.msra.mxu0 %v1250
        %2822 = vmatpush.msra.mxu0 %v1246
        %2823 = vmatpush.msra.mxu0 %v1242
        %2824 = vmatpush.msra.mxu0 %v1238
        %2825 = vmatpush.msra.mxu0 %v1234
        %2826 = vmatpush.msra.mxu0 %v1230
        %2827 = vmatpush.msra.mxu0 %v1226
        %2828 = vmatpush.msra.mxu0 %v1222
        %2829 = vmatpush.msra.mxu0 %v1218
        %2830 = vmatpush.msra.mxu0 %v1214
        %2831 = vmatpush.msra.mxu0 %v1210
        %2832 = vmatpush.msra.mxu0 %v1206
        %2833 = vmatpush.msra.mxu0 %v1202
        %2834 = vmatpush.msra.mxu0 %v1198
        %2835 = vmatpush.msra.mxu0 %v1194
        %2836 = vmatpush.msra.mxu0 %v1190
        %2837 = vmatmul.f32.gmra.mxu0 %v400
        %v2838 = vpop.f32.mrf.mxu0
        %v2839 = vadd.f32 %v2819, %v2838
        %2840 = vdwg.mxu0
        %2841 = vmatpush.msra.mxu0 %v1314
        %2842 = vmatpush.msra.mxu0 %v1310
        %2843 = vmatpush.msra.mxu0 %v1306
        %2844 = vmatpush.msra.mxu0 %v1302
        %2845 = vmatpush.msra.mxu0 %v1298
        %2846 = vmatpush.msra.mxu0 %v1294
        %2847 = vmatpush.msra.mxu0 %v1290
        %2848 = vmatpush.msra.mxu0 %v1286
        %2849 = vmatpush.msra.mxu0 %v1282
        %2850 = vmatpush.msra.mxu0 %v1278
        %2851 = vmatpush.msra.mxu0 %v1274
        %2852 = vmatpush.msra.mxu0 %v1270
        %2853 = vmatpush.msra.mxu0 %v1266
        %2854 = vmatpush.msra.mxu0 %v1262
        %2855 = vmatpush.msra.mxu0 %v1258
        %2856 = vmatpush.msra.mxu0 %v1254
        %2857 = vmatmul.f32.gmra.mxu0 %v401
        %v2858 = vpop.f32.mrf.mxu0
        %v2859 = vadd.f32 %v2839, %v2858
        %2860 = vdwg.mxu0
        %2861 = vmatpush.msra.mxu0 %v1378
        %2862 = vmatpush.msra.mxu0 %v1374
        %2863 = vmatpush.msra.mxu0 %v1370
        %2864 = vmatpush.msra.mxu0 %v1366
        %2865 = vmatpush.msra.mxu0 %v1362
        %2866 = vmatpush.msra.mxu0 %v1358
        %2867 = vmatpush.msra.mxu0 %v1354
        %2868 = vmatpush.msra.mxu0 %v1350
        %2869 = vmatpush.msra.mxu0 %v1346
        %2870 = vmatpush.msra.mxu0 %v1342
        %2871 = vmatpush.msra.mxu0 %v1338
        %2872 = vmatpush.msra.mxu0 %v1334
        %2873 = vmatpush.msra.mxu0 %v1330
        %2874 = vmatpush.msra.mxu0 %v1326
        %2875 = vmatpush.msra.mxu0 %v1322
        %2876 = vmatpush.msra.mxu0 %v1318
        %2877 = vmatmul.f32.gmra.mxu0 %v402
        %v2878 = vpop.f32.mrf.mxu0
        %v2879 = vadd.f32 %v2859, %v2878
        %2880 = vdwg.mxu0
        %2881 = vmatpush.msra.mxu0 %v1442
        %2882 = vmatpush.msra.mxu0 %v1438
        %2883 = vmatpush.msra.mxu0 %v1434
        %2884 = vmatpush.msra.mxu0 %v1430
        %2885 = vmatpush.msra.mxu0 %v1426
        %2886 = vmatpush.msra.mxu0 %v1422
        %2887 = vmatpush.msra.mxu0 %v1418
        %2888 = vmatpush.msra.mxu0 %v1414
        %2889 = vmatpush.msra.mxu0 %v1410
        %2890 = vmatpush.msra.mxu0 %v1406
        %2891 = vmatpush.msra.mxu0 %v1402
        %2892 = vmatpush.msra.mxu0 %v1398
        %2893 = vmatpush.msra.mxu0 %v1394
        %2894 = vmatpush.msra.mxu0 %v1390
        %2895 = vmatpush.msra.mxu0 %v1386
        %2896 = vmatpush.msra.mxu0 %v1382
        %2897 = vmatmul.f32.gmra.mxu0 %v403
        %v2898 = vpop.f32.mrf.mxu0
        %v2899 = vadd.f32 %v2879, %v2898
        %2900 = vdwg.mxu0
        %2901 = vmatpush.msra.mxu0 %v1506
        %2902 = vmatpush.msra.mxu0 %v1502
        %2903 = vmatpush.msra.mxu0 %v1498
        %2904 = vmatpush.msra.mxu0 %v1494
        %2905 = vmatpush.msra.mxu0 %v1490
        %2906 = vmatpush.msra.mxu0 %v1486
        %2907 = vmatpush.msra.mxu0 %v1482
        %2908 = vmatpush.msra.mxu0 %v1478
        %2909 = vmatpush.msra.mxu0 %v1474
        %2910 = vmatpush.msra.mxu0 %v1470
        %2911 = vmatpush.msra.mxu0 %v1466
        %2912 = vmatpush.msra.mxu0 %v1462
        %2913 = vmatpush.msra.mxu0 %v1458
        %2914 = vmatpush.msra.mxu0 %v1454
        %2915 = vmatpush.msra.mxu0 %v1450
        %2916 = vmatpush.msra.mxu0 %v1446
        %2917 = vmatmul.f32.gmra.mxu0 %v404
        %v2918 = vpop.f32.mrf.mxu0
        %v2919 = vadd.f32 %v2899, %v2918
        %2920 = vdwg.mxu0
        %2921 = vmatpush.msra.mxu0 %v1570
        %2922 = vmatpush.msra.mxu0 %v1566
        %2923 = vmatpush.msra.mxu0 %v1562
        %2924 = vmatpush.msra.mxu0 %v1558
        %2925 = vmatpush.msra.mxu0 %v1554
        %2926 = vmatpush.msra.mxu0 %v1550
        %2927 = vmatpush.msra.mxu0 %v1546
        %2928 = vmatpush.msra.mxu0 %v1542
        %2929 = vmatpush.msra.mxu0 %v1538
        %2930 = vmatpush.msra.mxu0 %v1534
        %2931 = vmatpush.msra.mxu0 %v1530
        %2932 = vmatpush.msra.mxu0 %v1526
        %2933 = vmatpush.msra.mxu0 %v1522
        %2934 = vmatpush.msra.mxu0 %v1518
        %2935 = vmatpush.msra.mxu0 %v1514
        %2936 = vmatpush.msra.mxu0 %v1510
        %2937 = vmatmul.f32.gmra.mxu0 %v405
        %v2938 = vpop.f32.mrf.mxu0
        %v2939 = vadd.f32 %v2919, %v2938
        %2940 = vdwg.mxu0
        %2941 = vmatpush.msra.mxu0 %v1634
        %2942 = vmatpush.msra.mxu0 %v1630
        %2943 = vmatpush.msra.mxu0 %v1626
        %2944 = vmatpush.msra.mxu0 %v1622
        %2945 = vmatpush.msra.mxu0 %v1618
        %2946 = vmatpush.msra.mxu0 %v1614
        %2947 = vmatpush.msra.mxu0 %v1610
        %2948 = vmatpush.msra.mxu0 %v1606
        %2949 = vmatpush.msra.mxu0 %v1602
        %2950 = vmatpush.msra.mxu0 %v1598
        %2951 = vmatpush.msra.mxu0 %v1594
        %2952 = vmatpush.msra.mxu0 %v1590
        %2953 = vmatpush.msra.mxu0 %v1586
        %2954 = vmatpush.msra.mxu0 %v1582
        %2955 = vmatpush.msra.mxu0 %v1578
        %2956 = vmatpush.msra.mxu0 %v1574
        %2957 = vmatmul.f32.gmra.mxu0 %v406
        %v2958 = vpop.f32.mrf.mxu0
        %v2959 = vadd.f32 %v2939, %v2958
        %2960 = vdwg.mxu0
        %2961 = vmatpush.msra.mxu0 %v1698
        %2962 = vmatpush.msra.mxu0 %v1694
        %2963 = vmatpush.msra.mxu0 %v1690
        %2964 = vmatpush.msra.mxu0 %v1686
        %2965 = vmatpush.msra.mxu0 %v1682
        %2966 = vmatpush.msra.mxu0 %v1678
        %2967 = vmatpush.msra.mxu0 %v1674
        %2968 = vmatpush.msra.mxu0 %v1670
        %2969 = vmatpush.msra.mxu0 %v1666
        %2970 = vmatpush.msra.mxu0 %v1662
        %2971 = vmatpush.msra.mxu0 %v1658
        %2972 = vmatpush.msra.mxu0 %v1654
        %2973 = vmatpush.msra.mxu0 %v1650
        %2974 = vmatpush.msra.mxu0 %v1646
        %2975 = vmatpush.msra.mxu0 %v1642
        %2976 = vmatpush.msra.mxu0 %v1638
        %2977 = vmatmul.f32.gmra.mxu0 %v407
        %v2978 = vpop.f32.mrf.mxu0
        %v2979 = vadd.f32 %v2959, %v2978
        %2980 = vdwg.mxu0
        %2981 = vmatpush.msra.mxu0 %v1762
        %2982 = vmatpush.msra.mxu0 %v1758
        %2983 = vmatpush.msra.mxu0 %v1754
        %2984 = vmatpush.msra.mxu0 %v1750
        %2985 = vmatpush.msra.mxu0 %v1746
        %2986 = vmatpush.msra.mxu0 %v1742
        %2987 = vmatpush.msra.mxu0 %v1738
        %2988 = vmatpush.msra.mxu0 %v1734
        %2989 = vmatpush.msra.mxu0 %v1730
        %2990 = vmatpush.msra.mxu0 %v1726
        %2991 = vmatpush.msra.mxu0 %v1722
        %2992 = vmatpush.msra.mxu0 %v1718
        %2993 = vmatpush.msra.mxu0 %v1714
        %2994 = vmatpush.msra.mxu0 %v1710
        %2995 = vmatpush.msra.mxu0 %v1706
        %2996 = vmatpush.msra.mxu0 %v1702
        %2997 = vmatmul.f32.gmra.mxu0 %v408
        %v2998 = vpop.f32.mrf.mxu0
        %v2999 = vadd.f32 %v2979, %v2998
        %3000 = vdwg.mxu0
        %3001 = vmatpush.msra.mxu0 %v1826
        %3002 = vmatpush.msra.mxu0 %v1822
        %3003 = vmatpush.msra.mxu0 %v1818
        %3004 = vmatpush.msra.mxu0 %v1814
        %3005 = vmatpush.msra.mxu0 %v1810
        %3006 = vmatpush.msra.mxu0 %v1806
        %3007 = vmatpush.msra.mxu0 %v1802
        %3008 = vmatpush.msra.mxu0 %v1798
        %3009 = vmatpush.msra.mxu0 %v1794
        %3010 = vmatpush.msra.mxu0 %v1790
        %3011 = vmatpush.msra.mxu0 %v1786
        %3012 = vmatpush.msra.mxu0 %v1782
        %3013 = vmatpush.msra.mxu0 %v1778
        %3014 = vmatpush.msra.mxu0 %v1774
        %3015 = vmatpush.msra.mxu0 %v1770
        %3016 = vmatpush.msra.mxu0 %v1766
        %3017 = vmatmul.f32.gmra.mxu0 %v409
        %v3018 = vpop.f32.mrf.mxu0
        %v3019 = vadd.f32 %v2999, %v3018
        %3020 = vdwg.mxu0
        %3021 = vmatpush.msra.mxu0 %v1890
        %3022 = vmatpush.msra.mxu0 %v1886
        %3023 = vmatpush.msra.mxu0 %v1882
        %3024 = vmatpush.msra.mxu0 %v1878
        %3025 = vmatpush.msra.mxu0 %v1874
        %3026 = vmatpush.msra.mxu0 %v1870
        %3027 = vmatpush.msra.mxu0 %v1866
        %3028 = vmatpush.msra.mxu0 %v1862
        %3029 = vmatpush.msra.mxu0 %v1858
        %3030 = vmatpush.msra.mxu0 %v1854
        %3031 = vmatpush.msra.mxu0 %v1850
        %3032 = vmatpush.msra.mxu0 %v1846
        %3033 = vmatpush.msra.mxu0 %v1842
        %3034 = vmatpush.msra.mxu0 %v1838
        %3035 = vmatpush.msra.mxu0 %v1834
        %3036 = vmatpush.msra.mxu0 %v1830
        %3037 = vmatmul.f32.gmra.mxu0 %v410
        %v3038 = vpop.f32.mrf.mxu0
        %v3039 = vadd.f32 %v3019, %v3038
        %3040 = vdwg.mxu0
        %3041 = vmatpush.msra.mxu0 %v1954
        %3042 = vmatpush.msra.mxu0 %v1950
        %3043 = vmatpush.msra.mxu0 %v1946
        %3044 = vmatpush.msra.mxu0 %v1942
        %3045 = vmatpush.msra.mxu0 %v1938
        %3046 = vmatpush.msra.mxu0 %v1934
        %3047 = vmatpush.msra.mxu0 %v1930
        %3048 = vmatpush.msra.mxu0 %v1926
        %3049 = vmatpush.msra.mxu0 %v1922
        %3050 = vmatpush.msra.mxu0 %v1918
        %3051 = vmatpush.msra.mxu0 %v1914
        %3052 = vmatpush.msra.mxu0 %v1910
        %3053 = vmatpush.msra.mxu0 %v1906
        %3054 = vmatpush.msra.mxu0 %v1902
        %3055 = vmatpush.msra.mxu0 %v1898
        %3056 = vmatpush.msra.mxu0 %v1894
        %3057 = vmatmul.f32.gmra.mxu0 %v411
        %v3058 = vpop.f32.mrf.mxu0
        %v3059 = vadd.f32 %v3039, %v3058
        %3060 = vdwg.mxu0
        %3061 = vmatpush.msra.mxu0 %v2018
        %3062 = vmatpush.msra.mxu0 %v2014
        %3063 = vmatpush.msra.mxu0 %v2010
        %3064 = vmatpush.msra.mxu0 %v2006
        %3065 = vmatpush.msra.mxu0 %v2002
        %3066 = vmatpush.msra.mxu0 %v1998
        %3067 = vmatpush.msra.mxu0 %v1994
        %3068 = vmatpush.msra.mxu0 %v1990
        %3069 = vmatpush.msra.mxu0 %v1986
        %3070 = vmatpush.msra.mxu0 %v1982
        %3071 = vmatpush.msra.mxu0 %v1978
        %3072 = vmatpush.msra.mxu0 %v1974
        %3073 = vmatpush.msra.mxu0 %v1970
        %3074 = vmatpush.msra.mxu0 %v1966
        %3075 = vmatpush.msra.mxu0 %v1962
        %3076 = vmatpush.msra.mxu0 %v1958
        %3077 = vmatmul.f32.gmra.mxu0 %v412
        %v3078 = vpop.f32.mrf.mxu0
        %v3079 = vadd.f32 %v3059, %v3078
        %3080 = vdwg.mxu0
        %3081 = vmatpush.msra.mxu0 %v2082
        %3082 = vmatpush.msra.mxu0 %v2078
        %3083 = vmatpush.msra.mxu0 %v2074
        %3084 = vmatpush.msra.mxu0 %v2070
        %3085 = vmatpush.msra.mxu0 %v2066
        %3086 = vmatpush.msra.mxu0 %v2062
        %3087 = vmatpush.msra.mxu0 %v2058
        %3088 = vmatpush.msra.mxu0 %v2054
        %3089 = vmatpush.msra.mxu0 %v2050
        %3090 = vmatpush.msra.mxu0 %v2046
        %3091 = vmatpush.msra.mxu0 %v2042
        %3092 = vmatpush.msra.mxu0 %v2038
        %3093 = vmatpush.msra.mxu0 %v2034
        %3094 = vmatpush.msra.mxu0 %v2030
        %3095 = vmatpush.msra.mxu0 %v2026
        %3096 = vmatpush.msra.mxu0 %v2022
        %3097 = vmatmul.f32.gmra.mxu0 %v413
        %v3098 = vpop.f32.mrf.mxu0
        %v3099 = vadd.f32 %v3079, %v3098
        %3100 = vdwg.mxu0
        %3101 = vmatpush.msra.mxu0 %v2146
        %3102 = vmatpush.msra.mxu0 %v2142
        %3103 = vmatpush.msra.mxu0 %v2138
        %3104 = vmatpush.msra.mxu0 %v2134
        %3105 = vmatpush.msra.mxu0 %v2130
        %3106 = vmatpush.msra.mxu0 %v2126
        %3107 = vmatpush.msra.mxu0 %v2122
        %3108 = vmatpush.msra.mxu0 %v2118
        %3109 = vmatpush.msra.mxu0 %v2114
        %3110 = vmatpush.msra.mxu0 %v2110
        %3111 = vmatpush.msra.mxu0 %v2106
        %3112 = vmatpush.msra.mxu0 %v2102
        %3113 = vmatpush.msra.mxu0 %v2098
        %3114 = vmatpush.msra.mxu0 %v2094
        %3115 = vmatpush.msra.mxu0 %v2090
        %3116 = vmatpush.msra.mxu0 %v2086
        %3117 = vmatmul.f32.gmra.mxu0 %v414
        %v3118 = vpop.f32.mrf.mxu0
        %v3119 = vadd.f32 %v3099, %v3118
        %3120 = vdwg.mxu0
        %3121 = vmatpush.msra.mxu0 %v2210
        %3122 = vmatpush.msra.mxu0 %v2206
        %3123 = vmatpush.msra.mxu0 %v2202
        %3124 = vmatpush.msra.mxu0 %v2198
        %3125 = vmatpush.msra.mxu0 %v2194
        %3126 = vmatpush.msra.mxu0 %v2190
        %3127 = vmatpush.msra.mxu0 %v2186
        %3128 = vmatpush.msra.mxu0 %v2182
        %3129 = vmatpush.msra.mxu0 %v2178
        %3130 = vmatpush.msra.mxu0 %v2174
        %3131 = vmatpush.msra.mxu0 %v2170
        %3132 = vmatpush.msra.mxu0 %v2166
        %3133 = vmatpush.msra.mxu0 %v2162
        %3134 = vmatpush.msra.mxu0 %v2158
        %3135 = vmatpush.msra.mxu0 %v2154
        %3136 = vmatpush.msra.mxu0 %v2150
        %3137 = vmatmul.f32.gmra.mxu0 %v415
        %v3138 = vpop.f32.mrf.mxu0
        %v3139 = vadd.f32 %v3119, %v3138
        %3140 = vdwg.mxu0
        %3141 = vmatpush.msra.mxu0 %v2274
        %3142 = vmatpush.msra.mxu0 %v2270
        %3143 = vmatpush.msra.mxu0 %v2266
        %3144 = vmatpush.msra.mxu0 %v2262
        %3145 = vmatpush.msra.mxu0 %v2258
        %3146 = vmatpush.msra.mxu0 %v2254
        %3147 = vmatpush.msra.mxu0 %v2250
        %3148 = vmatpush.msra.mxu0 %v2246
        %3149 = vmatpush.msra.mxu0 %v2242
        %3150 = vmatpush.msra.mxu0 %v2238
        %3151 = vmatpush.msra.mxu0 %v2234
        %3152 = vmatpush.msra.mxu0 %v2230
        %3153 = vmatpush.msra.mxu0 %v2226
        %3154 = vmatpush.msra.mxu0 %v2222
        %3155 = vmatpush.msra.mxu0 %v2218
        %3156 = vmatpush.msra.mxu0 %v2214
        %3157 = vmatmul.f32.gmra.mxu0 %v416
        %v3158 = vpop.f32.mrf.mxu0
        %v3159 = vadd.f32 %v3139, %v3158
        %3160 = vdwg.mxu0
        %3161 = vmatpush.msra.mxu0 %v2338
        %3162 = vmatpush.msra.mxu0 %v2334
        %3163 = vmatpush.msra.mxu0 %v2330
        %3164 = vmatpush.msra.mxu0 %v2326
        %3165 = vmatpush.msra.mxu0 %v2322
        %3166 = vmatpush.msra.mxu0 %v2318
        %3167 = vmatpush.msra.mxu0 %v2314
        %3168 = vmatpush.msra.mxu0 %v2310
        %3169 = vmatpush.msra.mxu0 %v2306
        %3170 = vmatpush.msra.mxu0 %v2302
        %3171 = vmatpush.msra.mxu0 %v2298
        %3172 = vmatpush.msra.mxu0 %v2294
        %3173 = vmatpush.msra.mxu0 %v2290
        %3174 = vmatpush.msra.mxu0 %v2286
        %3175 = vmatpush.msra.mxu0 %v2282
        %3176 = vmatpush.msra.mxu0 %v2278
        %3177 = vmatmul.f32.gmra.mxu0 %v417
        %v3178 = vpop.f32.mrf.mxu0
        %v3179 = vadd.f32 %v3159, %v3178
        %3180 = vdwg.mxu0
        %3181 = vmatpush.msra.mxu0 %v2402
        %3182 = vmatpush.msra.mxu0 %v2398
        %3183 = vmatpush.msra.mxu0 %v2394
        %3184 = vmatpush.msra.mxu0 %v2390
        %3185 = vmatpush.msra.mxu0 %v2386
        %3186 = vmatpush.msra.mxu0 %v2382
        %3187 = vmatpush.msra.mxu0 %v2378
        %3188 = vmatpush.msra.mxu0 %v2374
        %3189 = vmatpush.msra.mxu0 %v2370
        %3190 = vmatpush.msra.mxu0 %v2366
        %3191 = vmatpush.msra.mxu0 %v2362
        %3192 = vmatpush.msra.mxu0 %v2358
        %3193 = vmatpush.msra.mxu0 %v2354
        %3194 = vmatpush.msra.mxu0 %v2350
        %3195 = vmatpush.msra.mxu0 %v2346
        %3196 = vmatpush.msra.mxu0 %v2342
        %3197 = vmatmul.f32.gmra.mxu0 %v418
        %v3198 = vpop.f32.mrf.mxu0
        %v3199 = vadd.f32 %v3179, %v3198
        %3200 = vdwg.mxu0
        %3201 = vmatpush.msra.mxu0 %v2466
        %3202 = vmatpush.msra.mxu0 %v2462
        %3203 = vmatpush.msra.mxu0 %v2458
        %3204 = vmatpush.msra.mxu0 %v2454
        %3205 = vmatpush.msra.mxu0 %v2450
        %3206 = vmatpush.msra.mxu0 %v2446
        %3207 = vmatpush.msra.mxu0 %v2442
        %3208 = vmatpush.msra.mxu0 %v2438
        %3209 = vmatpush.msra.mxu0 %v2434
        %3210 = vmatpush.msra.mxu0 %v2430
        %3211 = vmatpush.msra.mxu0 %v2426
        %3212 = vmatpush.msra.mxu0 %v2422
        %3213 = vmatpush.msra.mxu0 %v2418
        %3214 = vmatpush.msra.mxu0 %v2414
        %3215 = vmatpush.msra.mxu0 %v2410
        %3216 = vmatpush.msra.mxu0 %v2406
        %3217 = vmatmul.f32.gmra.mxu0 %v419
        %v3218 = vpop.f32.mrf.mxu0
        %v3219 = vadd.f32 %v3199, %v3218
        %3220 = vdwg.mxu0
        %3221 = vmatpush.msra.mxu0 %v2530
        %3222 = vmatpush.msra.mxu0 %v2526
        %3223 = vmatpush.msra.mxu0 %v2522
        %3224 = vmatpush.msra.mxu0 %v2518
        %3225 = vmatpush.msra.mxu0 %v2514
        %3226 = vmatpush.msra.mxu0 %v2510
        %3227 = vmatpush.msra.mxu0 %v2506
        %3228 = vmatpush.msra.mxu0 %v2502
        %3229 = vmatpush.msra.mxu0 %v2498
        %3230 = vmatpush.msra.mxu0 %v2494
        %3231 = vmatpush.msra.mxu0 %v2490
        %3232 = vmatpush.msra.mxu0 %v2486
        %3233 = vmatpush.msra.mxu0 %v2482
        %3234 = vmatpush.msra.mxu0 %v2478
        %3235 = vmatpush.msra.mxu0 %v2474
        %3236 = vmatpush.msra.mxu0 %v2470
        %3237 = vmatmul.f32.gmra.mxu0 %v420
        %v3238 = vpop.f32.mrf.mxu0
        %v3239 = vadd.f32 %v3219, %v3238
        %3240 = vdwg.mxu0
        %3241 = vmatpush.msra.mxu0 0.0
        %3242 = vmatpush.msra.mxu0 0.0
        %3243 = vmatpush.msra.mxu0 0.0
        %3244 = vmatpush.msra.mxu0 0.0
        %3245 = vmatpush.msra.mxu0 0.0
        %3246 = vmatpush.msra.mxu0 0.0
        %3247 = vmatpush.msra.mxu0 0.0
        %3248 = vmatpush.msra.mxu0 0.0
        %3249 = vmatpush.msra.mxu0 0.0
        %3250 = vmatpush.msra.mxu0 0.0
        %3251 = vmatpush.msra.mxu0 0.0
        %3252 = vmatpush.msra.mxu0 %v2570
        %3253 = vmatpush.msra.mxu0 %v2546
        %3254 = vmatpush.msra.mxu0 %v2542
        %3255 = vmatpush.msra.mxu0 %v2538
        %3256 = vmatpush.msra.mxu0 %v2534
        %3257 = vmatmul.f32.gmra.mxu0 %v2566
        %v3258 = vpop.f32.mrf.mxu0
        %v3259 = vadd.f32 %v3239, %v3258
        %3260 = vdwg.mxu0
        %3261 = vmatpush.msra.mxu0 %v483
        %3262 = vmatpush.msra.mxu0 %v479
        %3263 = vmatpush.msra.mxu0 %v475
        %3264 = vmatpush.msra.mxu0 %v471
        %3265 = vmatpush.msra.mxu0 %v467
        %3266 = vmatpush.msra.mxu0 %v463
        %3267 = vmatpush.msra.mxu0 %v459
        %3268 = vmatpush.msra.mxu0 %v455
        %3269 = vmatpush.msra.mxu0 %v451
        %3270 = vmatpush.msra.mxu0 %v447
        %3271 = vmatpush.msra.mxu0 %v443
        %3272 = vmatpush.msra.mxu0 %v439
        %3273 = vmatpush.msra.mxu0 %v435
        %3274 = vmatpush.msra.mxu0 %v431
        %3275 = vmatpush.msra.mxu0 %v427
        %3276 = vmatpush.msra.mxu0 %v423
        %3277 = vmatmul.f32.gmra.mxu0 %v388
        %v3278 = vpop.f32.mrf.mxu0
        %v3279 = vadd.f32 %v2557, %v3278
        %3280 = vdwg.mxu0
        %3281 = vmatpush.msra.mxu0 %v547
        %3282 = vmatpush.msra.mxu0 %v543
        %3283 = vmatpush.msra.mxu0 %v539
        %3284 = vmatpush.msra.mxu0 %v535
        %3285 = vmatpush.msra.mxu0 %v531
        %3286 = vmatpush.msra.mxu0 %v527
        %3287 = vmatpush.msra.mxu0 %v523
        %3288 = vmatpush.msra.mxu0 %v519
        %3289 = vmatpush.msra.mxu0 %v515
        %3290 = vmatpush.msra.mxu0 %v511
        %3291 = vmatpush.msra.mxu0 %v507
        %3292 = vmatpush.msra.mxu0 %v503
        %3293 = vmatpush.msra.mxu0 %v499
        %3294 = vmatpush.msra.mxu0 %v495
        %3295 = vmatpush.msra.mxu0 %v491
        %3296 = vmatpush.msra.mxu0 %v487
        %3297 = vmatmul.f32.gmra.mxu0 %v389
        %v3298 = vpop.f32.mrf.mxu0
        %v3299 = vadd.f32 %v3279, %v3298
        %3300 = vdwg.mxu0
        %3301 = vmatpush.msra.mxu0 %v611
        %3302 = vmatpush.msra.mxu0 %v607
        %3303 = vmatpush.msra.mxu0 %v603
        %3304 = vmatpush.msra.mxu0 %v599
        %3305 = vmatpush.msra.mxu0 %v595
        %3306 = vmatpush.msra.mxu0 %v591
        %3307 = vmatpush.msra.mxu0 %v587
        %3308 = vmatpush.msra.mxu0 %v583
        %3309 = vmatpush.msra.mxu0 %v579
        %3310 = vmatpush.msra.mxu0 %v575
        %3311 = vmatpush.msra.mxu0 %v571
        %3312 = vmatpush.msra.mxu0 %v567
        %3313 = vmatpush.msra.mxu0 %v563
        %3314 = vmatpush.msra.mxu0 %v559
        %3315 = vmatpush.msra.mxu0 %v555
        %3316 = vmatpush.msra.mxu0 %v551
        %3317 = vmatmul.f32.gmra.mxu0 %v390
        %v3318 = vpop.f32.mrf.mxu0
        %v3319 = vadd.f32 %v3299, %v3318
        %3320 = vdwg.mxu0
        %3321 = vmatpush.msra.mxu0 %v675
        %3322 = vmatpush.msra.mxu0 %v671
        %3323 = vmatpush.msra.mxu0 %v667
        %3324 = vmatpush.msra.mxu0 %v663
        %3325 = vmatpush.msra.mxu0 %v659
        %3326 = vmatpush.msra.mxu0 %v655
        %3327 = vmatpush.msra.mxu0 %v651
        %3328 = vmatpush.msra.mxu0 %v647
        %3329 = vmatpush.msra.mxu0 %v643
        %3330 = vmatpush.msra.mxu0 %v639
        %3331 = vmatpush.msra.mxu0 %v635
        %3332 = vmatpush.msra.mxu0 %v631
        %3333 = vmatpush.msra.mxu0 %v627
        %3334 = vmatpush.msra.mxu0 %v623
        %3335 = vmatpush.msra.mxu0 %v619
        %3336 = vmatpush.msra.mxu0 %v615
        %3337 = vmatmul.f32.gmra.mxu0 %v391
        %v3338 = vpop.f32.mrf.mxu0
        %v3339 = vadd.f32 %v3319, %v3338
        %3340 = vdwg.mxu0
        %3341 = vmatpush.msra.mxu0 %v739
        %3342 = vmatpush.msra.mxu0 %v735
        %3343 = vmatpush.msra.mxu0 %v731
        %3344 = vmatpush.msra.mxu0 %v727
        %3345 = vmatpush.msra.mxu0 %v723
        %3346 = vmatpush.msra.mxu0 %v719
        %3347 = vmatpush.msra.mxu0 %v715
        %3348 = vmatpush.msra.mxu0 %v711
        %3349 = vmatpush.msra.mxu0 %v707
        %3350 = vmatpush.msra.mxu0 %v703
        %3351 = vmatpush.msra.mxu0 %v699
        %3352 = vmatpush.msra.mxu0 %v695
        %3353 = vmatpush.msra.mxu0 %v691
        %3354 = vmatpush.msra.mxu0 %v687
        %3355 = vmatpush.msra.mxu0 %v683
        %3356 = vmatpush.msra.mxu0 %v679
        %3357 = vmatmul.f32.gmra.mxu0 %v392
        %v3358 = vpop.f32.mrf.mxu0
        %v3359 = vadd.f32 %v3339, %v3358
        %3360 = vdwg.mxu0
        %3361 = vmatpush.msra.mxu0 %v803
        %3362 = vmatpush.msra.mxu0 %v799
        %3363 = vmatpush.msra.mxu0 %v795
        %3364 = vmatpush.msra.mxu0 %v791
        %3365 = vmatpush.msra.mxu0 %v787
        %3366 = vmatpush.msra.mxu0 %v783
        %3367 = vmatpush.msra.mxu0 %v779
        %3368 = vmatpush.msra.mxu0 %v775
        %3369 = vmatpush.msra.mxu0 %v771
        %3370 = vmatpush.msra.mxu0 %v767
        %3371 = vmatpush.msra.mxu0 %v763
        %3372 = vmatpush.msra.mxu0 %v759
        %3373 = vmatpush.msra.mxu0 %v755
        %3374 = vmatpush.msra.mxu0 %v751
        %3375 = vmatpush.msra.mxu0 %v747
        %3376 = vmatpush.msra.mxu0 %v743
        %3377 = vmatmul.f32.gmra.mxu0 %v393
        %v3378 = vpop.f32.mrf.mxu0
        %v3379 = vadd.f32 %v3359, %v3378
        %3380 = vdwg.mxu0
        %3381 = vmatpush.msra.mxu0 %v867
        %3382 = vmatpush.msra.mxu0 %v863
        %3383 = vmatpush.msra.mxu0 %v859
        %3384 = vmatpush.msra.mxu0 %v855
        %3385 = vmatpush.msra.mxu0 %v851
        %3386 = vmatpush.msra.mxu0 %v847
        %3387 = vmatpush.msra.mxu0 %v843
        %3388 = vmatpush.msra.mxu0 %v839
        %3389 = vmatpush.msra.mxu0 %v835
        %3390 = vmatpush.msra.mxu0 %v831
        %3391 = vmatpush.msra.mxu0 %v827
        %3392 = vmatpush.msra.mxu0 %v823
        %3393 = vmatpush.msra.mxu0 %v819
        %3394 = vmatpush.msra.mxu0 %v815
        %3395 = vmatpush.msra.mxu0 %v811
        %3396 = vmatpush.msra.mxu0 %v807
        %3397 = vmatmul.f32.gmra.mxu0 %v394
        %v3398 = vpop.f32.mrf.mxu0
        %v3399 = vadd.f32 %v3379, %v3398
        %3400 = vdwg.mxu0
        %3401 = vmatpush.msra.mxu0 %v931
        %3402 = vmatpush.msra.mxu0 %v927
        %3403 = vmatpush.msra.mxu0 %v923
        %3404 = vmatpush.msra.mxu0 %v919
        %3405 = vmatpush.msra.mxu0 %v915
        %3406 = vmatpush.msra.mxu0 %v911
        %3407 = vmatpush.msra.mxu0 %v907
        %3408 = vmatpush.msra.mxu0 %v903
        %3409 = vmatpush.msra.mxu0 %v899
        %3410 = vmatpush.msra.mxu0 %v895
        %3411 = vmatpush.msra.mxu0 %v891
        %3412 = vmatpush.msra.mxu0 %v887
        %3413 = vmatpush.msra.mxu0 %v883
        %3414 = vmatpush.msra.mxu0 %v879
        %3415 = vmatpush.msra.mxu0 %v875
        %3416 = vmatpush.msra.mxu0 %v871
        %3417 = vmatmul.f32.gmra.mxu0 %v395
        %v3418 = vpop.f32.mrf.mxu0
        %v3419 = vadd.f32 %v3399, %v3418
        %3420 = vdwg.mxu0
        %3421 = vmatpush.msra.mxu0 %v995
        %3422 = vmatpush.msra.mxu0 %v991
        %3423 = vmatpush.msra.mxu0 %v987
        %3424 = vmatpush.msra.mxu0 %v983
        %3425 = vmatpush.msra.mxu0 %v979
        %3426 = vmatpush.msra.mxu0 %v975
        %3427 = vmatpush.msra.mxu0 %v971
        %3428 = vmatpush.msra.mxu0 %v967
        %3429 = vmatpush.msra.mxu0 %v963
        %3430 = vmatpush.msra.mxu0 %v959
        %3431 = vmatpush.msra.mxu0 %v955
        %3432 = vmatpush.msra.mxu0 %v951
        %3433 = vmatpush.msra.mxu0 %v947
        %3434 = vmatpush.msra.mxu0 %v943
        %3435 = vmatpush.msra.mxu0 %v939
        %3436 = vmatpush.msra.mxu0 %v935
        %3437 = vmatmul.f32.gmra.mxu0 %v396
        %v3438 = vpop.f32.mrf.mxu0
        %v3439 = vadd.f32 %v3419, %v3438
        %3440 = vdwg.mxu0
        %3441 = vmatpush.msra.mxu0 %v1059
        %3442 = vmatpush.msra.mxu0 %v1055
        %3443 = vmatpush.msra.mxu0 %v1051
        %3444 = vmatpush.msra.mxu0 %v1047
        %3445 = vmatpush.msra.mxu0 %v1043
        %3446 = vmatpush.msra.mxu0 %v1039
        %3447 = vmatpush.msra.mxu0 %v1035
        %3448 = vmatpush.msra.mxu0 %v1031
        %3449 = vmatpush.msra.mxu0 %v1027
        %3450 = vmatpush.msra.mxu0 %v1023
        %3451 = vmatpush.msra.mxu0 %v1019
        %3452 = vmatpush.msra.mxu0 %v1015
        %3453 = vmatpush.msra.mxu0 %v1011
        %3454 = vmatpush.msra.mxu0 %v1007
        %3455 = vmatpush.msra.mxu0 %v1003
        %3456 = vmatpush.msra.mxu0 %v999
        %3457 = vmatmul.f32.gmra.mxu0 %v397
        %v3458 = vpop.f32.mrf.mxu0
        %v3459 = vadd.f32 %v3439, %v3458
        %3460 = vdwg.mxu0
        %3461 = vmatpush.msra.mxu0 %v1123
        %3462 = vmatpush.msra.mxu0 %v1119
        %3463 = vmatpush.msra.mxu0 %v1115
        %3464 = vmatpush.msra.mxu0 %v1111
        %3465 = vmatpush.msra.mxu0 %v1107
        %3466 = vmatpush.msra.mxu0 %v1103
        %3467 = vmatpush.msra.mxu0 %v1099
        %3468 = vmatpush.msra.mxu0 %v1095
        %3469 = vmatpush.msra.mxu0 %v1091
        %3470 = vmatpush.msra.mxu0 %v1087
        %3471 = vmatpush.msra.mxu0 %v1083
        %3472 = vmatpush.msra.mxu0 %v1079
        %3473 = vmatpush.msra.mxu0 %v1075
        %3474 = vmatpush.msra.mxu0 %v1071
        %3475 = vmatpush.msra.mxu0 %v1067
        %3476 = vmatpush.msra.mxu0 %v1063
        %3477 = vmatmul.f32.gmra.mxu0 %v398
        %v3478 = vpop.f32.mrf.mxu0
        %v3479 = vadd.f32 %v3459, %v3478
        %3480 = vdwg.mxu0
        %3481 = vmatpush.msra.mxu0 %v1187
        %3482 = vmatpush.msra.mxu0 %v1183
        %3483 = vmatpush.msra.mxu0 %v1179
        %3484 = vmatpush.msra.mxu0 %v1175
        %3485 = vmatpush.msra.mxu0 %v1171
        %3486 = vmatpush.msra.mxu0 %v1167
        %3487 = vmatpush.msra.mxu0 %v1163
        %3488 = vmatpush.msra.mxu0 %v1159
        %3489 = vmatpush.msra.mxu0 %v1155
        %3490 = vmatpush.msra.mxu0 %v1151
        %3491 = vmatpush.msra.mxu0 %v1147
        %3492 = vmatpush.msra.mxu0 %v1143
        %3493 = vmatpush.msra.mxu0 %v1139
        %3494 = vmatpush.msra.mxu0 %v1135
        %3495 = vmatpush.msra.mxu0 %v1131
        %3496 = vmatpush.msra.mxu0 %v1127
        %3497 = vmatmul.f32.gmra.mxu0 %v399
        %v3498 = vpop.f32.mrf.mxu0
        %v3499 = vadd.f32 %v3479, %v3498
        %3500 = vdwg.mxu0
        %3501 = vmatpush.msra.mxu0 %v1251
        %3502 = vmatpush.msra.mxu0 %v1247
        %3503 = vmatpush.msra.mxu0 %v1243
        %3504 = vmatpush.msra.mxu0 %v1239
        %3505 = vmatpush.msra.mxu0 %v1235
        %3506 = vmatpush.msra.mxu0 %v1231
        %3507 = vmatpush.msra.mxu0 %v1227
        %3508 = vmatpush.msra.mxu0 %v1223
        %3509 = vmatpush.msra.mxu0 %v1219
        %3510 = vmatpush.msra.mxu0 %v1215
        %3511 = vmatpush.msra.mxu0 %v1211
        %3512 = vmatpush.msra.mxu0 %v1207
        %3513 = vmatpush.msra.mxu0 %v1203
        %3514 = vmatpush.msra.mxu0 %v1199
        %3515 = vmatpush.msra.mxu0 %v1195
        %3516 = vmatpush.msra.mxu0 %v1191
        %3517 = vmatmul.f32.gmra.mxu0 %v400
        %v3518 = vpop.f32.mrf.mxu0
        %v3519 = vadd.f32 %v3499, %v3518
        %3520 = vdwg.mxu0
        %3521 = vmatpush.msra.mxu0 %v1315
        %3522 = vmatpush.msra.mxu0 %v1311
        %3523 = vmatpush.msra.mxu0 %v1307
        %3524 = vmatpush.msra.mxu0 %v1303
        %3525 = vmatpush.msra.mxu0 %v1299
        %3526 = vmatpush.msra.mxu0 %v1295
        %3527 = vmatpush.msra.mxu0 %v1291
        %3528 = vmatpush.msra.mxu0 %v1287
        %3529 = vmatpush.msra.mxu0 %v1283
        %3530 = vmatpush.msra.mxu0 %v1279
        %3531 = vmatpush.msra.mxu0 %v1275
        %3532 = vmatpush.msra.mxu0 %v1271
        %3533 = vmatpush.msra.mxu0 %v1267
        %3534 = vmatpush.msra.mxu0 %v1263
        %3535 = vmatpush.msra.mxu0 %v1259
        %3536 = vmatpush.msra.mxu0 %v1255
        %3537 = vmatmul.f32.gmra.mxu0 %v401
        %v3538 = vpop.f32.mrf.mxu0
        %v3539 = vadd.f32 %v3519, %v3538
        %3540 = vdwg.mxu0
        %3541 = vmatpush.msra.mxu0 %v1379
        %3542 = vmatpush.msra.mxu0 %v1375
        %3543 = vmatpush.msra.mxu0 %v1371
        %3544 = vmatpush.msra.mxu0 %v1367
        %3545 = vmatpush.msra.mxu0 %v1363
        %3546 = vmatpush.msra.mxu0 %v1359
        %3547 = vmatpush.msra.mxu0 %v1355
        %3548 = vmatpush.msra.mxu0 %v1351
        %3549 = vmatpush.msra.mxu0 %v1347
        %3550 = vmatpush.msra.mxu0 %v1343
        %3551 = vmatpush.msra.mxu0 %v1339
        %3552 = vmatpush.msra.mxu0 %v1335
        %3553 = vmatpush.msra.mxu0 %v1331
        %3554 = vmatpush.msra.mxu0 %v1327
        %3555 = vmatpush.msra.mxu0 %v1323
        %3556 = vmatpush.msra.mxu0 %v1319
        %3557 = vmatmul.f32.gmra.mxu0 %v402
        %v3558 = vpop.f32.mrf.mxu0
        %v3559 = vadd.f32 %v3539, %v3558
        %3560 = vdwg.mxu0
        %3561 = vmatpush.msra.mxu0 %v1443
        %3562 = vmatpush.msra.mxu0 %v1439
        %3563 = vmatpush.msra.mxu0 %v1435
        %3564 = vmatpush.msra.mxu0 %v1431
        %3565 = vmatpush.msra.mxu0 %v1427
        %3566 = vmatpush.msra.mxu0 %v1423
        %3567 = vmatpush.msra.mxu0 %v1419
        %3568 = vmatpush.msra.mxu0 %v1415
        %3569 = vmatpush.msra.mxu0 %v1411
        %3570 = vmatpush.msra.mxu0 %v1407
        %3571 = vmatpush.msra.mxu0 %v1403
        %3572 = vmatpush.msra.mxu0 %v1399
        %3573 = vmatpush.msra.mxu0 %v1395
        %3574 = vmatpush.msra.mxu0 %v1391
        %3575 = vmatpush.msra.mxu0 %v1387
        %3576 = vmatpush.msra.mxu0 %v1383
        %3577 = vmatmul.f32.gmra.mxu0 %v403
        %v3578 = vpop.f32.mrf.mxu0
        %v3579 = vadd.f32 %v3559, %v3578
        %3580 = vdwg.mxu0
        %3581 = vmatpush.msra.mxu0 %v1507
        %3582 = vmatpush.msra.mxu0 %v1503
        %3583 = vmatpush.msra.mxu0 %v1499
        %3584 = vmatpush.msra.mxu0 %v1495
        %3585 = vmatpush.msra.mxu0 %v1491
        %3586 = vmatpush.msra.mxu0 %v1487
        %3587 = vmatpush.msra.mxu0 %v1483
        %3588 = vmatpush.msra.mxu0 %v1479
        %3589 = vmatpush.msra.mxu0 %v1475
        %3590 = vmatpush.msra.mxu0 %v1471
        %3591 = vmatpush.msra.mxu0 %v1467
        %3592 = vmatpush.msra.mxu0 %v1463
        %3593 = vmatpush.msra.mxu0 %v1459
        %3594 = vmatpush.msra.mxu0 %v1455
        %3595 = vmatpush.msra.mxu0 %v1451
        %3596 = vmatpush.msra.mxu0 %v1447
        %3597 = vmatmul.f32.gmra.mxu0 %v404
        %v3598 = vpop.f32.mrf.mxu0
        %v3599 = vadd.f32 %v3579, %v3598
        %3600 = vdwg.mxu0
        %3601 = vmatpush.msra.mxu0 %v1571
        %3602 = vmatpush.msra.mxu0 %v1567
        %3603 = vmatpush.msra.mxu0 %v1563
        %3604 = vmatpush.msra.mxu0 %v1559
        %3605 = vmatpush.msra.mxu0 %v1555
        %3606 = vmatpush.msra.mxu0 %v1551
        %3607 = vmatpush.msra.mxu0 %v1547
        %3608 = vmatpush.msra.mxu0 %v1543
        %3609 = vmatpush.msra.mxu0 %v1539
        %3610 = vmatpush.msra.mxu0 %v1535
        %3611 = vmatpush.msra.mxu0 %v1531
        %3612 = vmatpush.msra.mxu0 %v1527
        %3613 = vmatpush.msra.mxu0 %v1523
        %3614 = vmatpush.msra.mxu0 %v1519
        %3615 = vmatpush.msra.mxu0 %v1515
        %3616 = vmatpush.msra.mxu0 %v1511
        %3617 = vmatmul.f32.gmra.mxu0 %v405
        %v3618 = vpop.f32.mrf.mxu0
        %v3619 = vadd.f32 %v3599, %v3618
        %3620 = vdwg.mxu0
        %3621 = vmatpush.msra.mxu0 %v1635
        %3622 = vmatpush.msra.mxu0 %v1631
        %3623 = vmatpush.msra.mxu0 %v1627
        %3624 = vmatpush.msra.mxu0 %v1623
        %3625 = vmatpush.msra.mxu0 %v1619
        %3626 = vmatpush.msra.mxu0 %v1615
        %3627 = vmatpush.msra.mxu0 %v1611
        %3628 = vmatpush.msra.mxu0 %v1607
        %3629 = vmatpush.msra.mxu0 %v1603
        %3630 = vmatpush.msra.mxu0 %v1599
        %3631 = vmatpush.msra.mxu0 %v1595
        %3632 = vmatpush.msra.mxu0 %v1591
        %3633 = vmatpush.msra.mxu0 %v1587
        %3634 = vmatpush.msra.mxu0 %v1583
        %3635 = vmatpush.msra.mxu0 %v1579
        %3636 = vmatpush.msra.mxu0 %v1575
        %3637 = vmatmul.f32.gmra.mxu0 %v406
        %v3638 = vpop.f32.mrf.mxu0
        %v3639 = vadd.f32 %v3619, %v3638
        %3640 = vdwg.mxu0
        %3641 = vmatpush.msra.mxu0 %v1699
        %3642 = vmatpush.msra.mxu0 %v1695
        %3643 = vmatpush.msra.mxu0 %v1691
        %3644 = vmatpush.msra.mxu0 %v1687
        %3645 = vmatpush.msra.mxu0 %v1683
        %3646 = vmatpush.msra.mxu0 %v1679
        %3647 = vmatpush.msra.mxu0 %v1675
        %3648 = vmatpush.msra.mxu0 %v1671
        %3649 = vmatpush.msra.mxu0 %v1667
        %3650 = vmatpush.msra.mxu0 %v1663
        %3651 = vmatpush.msra.mxu0 %v1659
        %3652 = vmatpush.msra.mxu0 %v1655
        %3653 = vmatpush.msra.mxu0 %v1651
        %3654 = vmatpush.msra.mxu0 %v1647
        %3655 = vmatpush.msra.mxu0 %v1643
        %3656 = vmatpush.msra.mxu0 %v1639
        %3657 = vmatmul.f32.gmra.mxu0 %v407
        %v3658 = vpop.f32.mrf.mxu0
        %v3659 = vadd.f32 %v3639, %v3658
        %3660 = vdwg.mxu0
        %3661 = vmatpush.msra.mxu0 %v1763
        %3662 = vmatpush.msra.mxu0 %v1759
        %3663 = vmatpush.msra.mxu0 %v1755
        %3664 = vmatpush.msra.mxu0 %v1751
        %3665 = vmatpush.msra.mxu0 %v1747
        %3666 = vmatpush.msra.mxu0 %v1743
        %3667 = vmatpush.msra.mxu0 %v1739
        %3668 = vmatpush.msra.mxu0 %v1735
        %3669 = vmatpush.msra.mxu0 %v1731
        %3670 = vmatpush.msra.mxu0 %v1727
        %3671 = vmatpush.msra.mxu0 %v1723
        %3672 = vmatpush.msra.mxu0 %v1719
        %3673 = vmatpush.msra.mxu0 %v1715
        %3674 = vmatpush.msra.mxu0 %v1711
        %3675 = vmatpush.msra.mxu0 %v1707
        %3676 = vmatpush.msra.mxu0 %v1703
        %3677 = vmatmul.f32.gmra.mxu0 %v408
        %v3678 = vpop.f32.mrf.mxu0
        %v3679 = vadd.f32 %v3659, %v3678
        %3680 = vdwg.mxu0
        %3681 = vmatpush.msra.mxu0 %v1827
        %3682 = vmatpush.msra.mxu0 %v1823
        %3683 = vmatpush.msra.mxu0 %v1819
        %3684 = vmatpush.msra.mxu0 %v1815
        %3685 = vmatpush.msra.mxu0 %v1811
        %3686 = vmatpush.msra.mxu0 %v1807
        %3687 = vmatpush.msra.mxu0 %v1803
        %3688 = vmatpush.msra.mxu0 %v1799
        %3689 = vmatpush.msra.mxu0 %v1795
        %3690 = vmatpush.msra.mxu0 %v1791
        %3691 = vmatpush.msra.mxu0 %v1787
        %3692 = vmatpush.msra.mxu0 %v1783
        %3693 = vmatpush.msra.mxu0 %v1779
        %3694 = vmatpush.msra.mxu0 %v1775
        %3695 = vmatpush.msra.mxu0 %v1771
        %3696 = vmatpush.msra.mxu0 %v1767
        %3697 = vmatmul.f32.gmra.mxu0 %v409
        %v3698 = vpop.f32.mrf.mxu0
        %v3699 = vadd.f32 %v3679, %v3698
        %3700 = vdwg.mxu0
        %3701 = vmatpush.msra.mxu0 %v1891
        %3702 = vmatpush.msra.mxu0 %v1887
        %3703 = vmatpush.msra.mxu0 %v1883
        %3704 = vmatpush.msra.mxu0 %v1879
        %3705 = vmatpush.msra.mxu0 %v1875
        %3706 = vmatpush.msra.mxu0 %v1871
        %3707 = vmatpush.msra.mxu0 %v1867
        %3708 = vmatpush.msra.mxu0 %v1863
        %3709 = vmatpush.msra.mxu0 %v1859
        %3710 = vmatpush.msra.mxu0 %v1855
        %3711 = vmatpush.msra.mxu0 %v1851
        %3712 = vmatpush.msra.mxu0 %v1847
        %3713 = vmatpush.msra.mxu0 %v1843
        %3714 = vmatpush.msra.mxu0 %v1839
        %3715 = vmatpush.msra.mxu0 %v1835
        %3716 = vmatpush.msra.mxu0 %v1831
        %3717 = vmatmul.f32.gmra.mxu0 %v410
        %v3718 = vpop.f32.mrf.mxu0
        %v3719 = vadd.f32 %v3699, %v3718
        %3720 = vdwg.mxu0
        %3721 = vmatpush.msra.mxu0 %v1955
        %3722 = vmatpush.msra.mxu0 %v1951
        %3723 = vmatpush.msra.mxu0 %v1947
        %3724 = vmatpush.msra.mxu0 %v1943
        %3725 = vmatpush.msra.mxu0 %v1939
        %3726 = vmatpush.msra.mxu0 %v1935
        %3727 = vmatpush.msra.mxu0 %v1931
        %3728 = vmatpush.msra.mxu0 %v1927
        %3729 = vmatpush.msra.mxu0 %v1923
        %3730 = vmatpush.msra.mxu0 %v1919
        %3731 = vmatpush.msra.mxu0 %v1915
        %3732 = vmatpush.msra.mxu0 %v1911
        %3733 = vmatpush.msra.mxu0 %v1907
        %3734 = vmatpush.msra.mxu0 %v1903
        %3735 = vmatpush.msra.mxu0 %v1899
        %3736 = vmatpush.msra.mxu0 %v1895
        %3737 = vmatmul.f32.gmra.mxu0 %v411
        %v3738 = vpop.f32.mrf.mxu0
        %v3739 = vadd.f32 %v3719, %v3738
        %3740 = vdwg.mxu0
        %3741 = vmatpush.msra.mxu0 %v2019
        %3742 = vmatpush.msra.mxu0 %v2015
        %3743 = vmatpush.msra.mxu0 %v2011
        %3744 = vmatpush.msra.mxu0 %v2007
        %3745 = vmatpush.msra.mxu0 %v2003
        %3746 = vmatpush.msra.mxu0 %v1999
        %3747 = vmatpush.msra.mxu0 %v1995
        %3748 = vmatpush.msra.mxu0 %v1991
        %3749 = vmatpush.msra.mxu0 %v1987
        %3750 = vmatpush.msra.mxu0 %v1983
        %3751 = vmatpush.msra.mxu0 %v1979
        %3752 = vmatpush.msra.mxu0 %v1975
        %3753 = vmatpush.msra.mxu0 %v1971
        %3754 = vmatpush.msra.mxu0 %v1967
        %3755 = vmatpush.msra.mxu0 %v1963
        %3756 = vmatpush.msra.mxu0 %v1959
        %3757 = vmatmul.f32.gmra.mxu0 %v412
        %v3758 = vpop.f32.mrf.mxu0
        %v3759 = vadd.f32 %v3739, %v3758
        %3760 = vdwg.mxu0
        %3761 = vmatpush.msra.mxu0 %v2083
        %3762 = vmatpush.msra.mxu0 %v2079
        %3763 = vmatpush.msra.mxu0 %v2075
        %3764 = vmatpush.msra.mxu0 %v2071
        %3765 = vmatpush.msra.mxu0 %v2067
        %3766 = vmatpush.msra.mxu0 %v2063
        %3767 = vmatpush.msra.mxu0 %v2059
        %3768 = vmatpush.msra.mxu0 %v2055
        %3769 = vmatpush.msra.mxu0 %v2051
        %3770 = vmatpush.msra.mxu0 %v2047
        %3771 = vmatpush.msra.mxu0 %v2043
        %3772 = vmatpush.msra.mxu0 %v2039
        %3773 = vmatpush.msra.mxu0 %v2035
        %3774 = vmatpush.msra.mxu0 %v2031
        %3775 = vmatpush.msra.mxu0 %v2027
        %3776 = vmatpush.msra.mxu0 %v2023
        %3777 = vmatmul.f32.gmra.mxu0 %v413
        %v3778 = vpop.f32.mrf.mxu0
        %v3779 = vadd.f32 %v3759, %v3778
        %3780 = vdwg.mxu0
        %3781 = vmatpush.msra.mxu0 %v2147
        %3782 = vmatpush.msra.mxu0 %v2143
        %3783 = vmatpush.msra.mxu0 %v2139
        %3784 = vmatpush.msra.mxu0 %v2135
        %3785 = vmatpush.msra.mxu0 %v2131
        %3786 = vmatpush.msra.mxu0 %v2127
        %3787 = vmatpush.msra.mxu0 %v2123
        %3788 = vmatpush.msra.mxu0 %v2119
        %3789 = vmatpush.msra.mxu0 %v2115
        %3790 = vmatpush.msra.mxu0 %v2111
        %3791 = vmatpush.msra.mxu0 %v2107
        %3792 = vmatpush.msra.mxu0 %v2103
        %3793 = vmatpush.msra.mxu0 %v2099
        %3794 = vmatpush.msra.mxu0 %v2095
        %3795 = vmatpush.msra.mxu0 %v2091
        %3796 = vmatpush.msra.mxu0 %v2087
        %3797 = vmatmul.f32.gmra.mxu0 %v414
        %v3798 = vpop.f32.mrf.mxu0
        %v3799 = vadd.f32 %v3779, %v3798
        %3800 = vdwg.mxu0
        %3801 = vmatpush.msra.mxu0 %v2211
        %3802 = vmatpush.msra.mxu0 %v2207
        %3803 = vmatpush.msra.mxu0 %v2203
        %3804 = vmatpush.msra.mxu0 %v2199
        %3805 = vmatpush.msra.mxu0 %v2195
        %3806 = vmatpush.msra.mxu0 %v2191
        %3807 = vmatpush.msra.mxu0 %v2187
        %3808 = vmatpush.msra.mxu0 %v2183
        %3809 = vmatpush.msra.mxu0 %v2179
        %3810 = vmatpush.msra.mxu0 %v2175
        %3811 = vmatpush.msra.mxu0 %v2171
        %3812 = vmatpush.msra.mxu0 %v2167
        %3813 = vmatpush.msra.mxu0 %v2163
        %3814 = vmatpush.msra.mxu0 %v2159
        %3815 = vmatpush.msra.mxu0 %v2155
        %3816 = vmatpush.msra.mxu0 %v2151
        %3817 = vmatmul.f32.gmra.mxu0 %v415
        %v3818 = vpop.f32.mrf.mxu0
        %v3819 = vadd.f32 %v3799, %v3818
        %3820 = vdwg.mxu0
        %3821 = vmatpush.msra.mxu0 %v2275
        %3822 = vmatpush.msra.mxu0 %v2271
        %3823 = vmatpush.msra.mxu0 %v2267
        %3824 = vmatpush.msra.mxu0 %v2263
        %3825 = vmatpush.msra.mxu0 %v2259
        %3826 = vmatpush.msra.mxu0 %v2255
        %3827 = vmatpush.msra.mxu0 %v2251
        %3828 = vmatpush.msra.mxu0 %v2247
        %3829 = vmatpush.msra.mxu0 %v2243
        %3830 = vmatpush.msra.mxu0 %v2239
        %3831 = vmatpush.msra.mxu0 %v2235
        %3832 = vmatpush.msra.mxu0 %v2231
        %3833 = vmatpush.msra.mxu0 %v2227
        %3834 = vmatpush.msra.mxu0 %v2223
        %3835 = vmatpush.msra.mxu0 %v2219
        %3836 = vmatpush.msra.mxu0 %v2215
        %3837 = vmatmul.f32.gmra.mxu0 %v416
        %v3838 = vpop.f32.mrf.mxu0
        %v3839 = vadd.f32 %v3819, %v3838
        %3840 = vdwg.mxu0
        %3841 = vmatpush.msra.mxu0 %v2339
        %3842 = vmatpush.msra.mxu0 %v2335
        %3843 = vmatpush.msra.mxu0 %v2331
        %3844 = vmatpush.msra.mxu0 %v2327
        %3845 = vmatpush.msra.mxu0 %v2323
        %3846 = vmatpush.msra.mxu0 %v2319
        %3847 = vmatpush.msra.mxu0 %v2315
        %3848 = vmatpush.msra.mxu0 %v2311
        %3849 = vmatpush.msra.mxu0 %v2307
        %3850 = vmatpush.msra.mxu0 %v2303
        %3851 = vmatpush.msra.mxu0 %v2299
        %3852 = vmatpush.msra.mxu0 %v2295
        %3853 = vmatpush.msra.mxu0 %v2291
        %3854 = vmatpush.msra.mxu0 %v2287
        %3855 = vmatpush.msra.mxu0 %v2283
        %3856 = vmatpush.msra.mxu0 %v2279
        %3857 = vmatmul.f32.gmra.mxu0 %v417
        %v3858 = vpop.f32.mrf.mxu0
        %v3859 = vadd.f32 %v3839, %v3858
        %3860 = vdwg.mxu0
        %3861 = vmatpush.msra.mxu0 %v2403
        %3862 = vmatpush.msra.mxu0 %v2399
        %3863 = vmatpush.msra.mxu0 %v2395
        %3864 = vmatpush.msra.mxu0 %v2391
        %3865 = vmatpush.msra.mxu0 %v2387
        %3866 = vmatpush.msra.mxu0 %v2383
        %3867 = vmatpush.msra.mxu0 %v2379
        %3868 = vmatpush.msra.mxu0 %v2375
        %3869 = vmatpush.msra.mxu0 %v2371
        %3870 = vmatpush.msra.mxu0 %v2367
        %3871 = vmatpush.msra.mxu0 %v2363
        %3872 = vmatpush.msra.mxu0 %v2359
        %3873 = vmatpush.msra.mxu0 %v2355
        %3874 = vmatpush.msra.mxu0 %v2351
        %3875 = vmatpush.msra.mxu0 %v2347
        %3876 = vmatpush.msra.mxu0 %v2343
        %3877 = vmatmul.f32.gmra.mxu0 %v418
        %v3878 = vpop.f32.mrf.mxu0
        %v3879 = vadd.f32 %v3859, %v3878
        %3880 = vdwg.mxu0
        %3881 = vmatpush.msra.mxu0 %v2467
        %3882 = vmatpush.msra.mxu0 %v2463
        %3883 = vmatpush.msra.mxu0 %v2459
        %3884 = vmatpush.msra.mxu0 %v2455
        %3885 = vmatpush.msra.mxu0 %v2451
        %3886 = vmatpush.msra.mxu0 %v2447
        %3887 = vmatpush.msra.mxu0 %v2443
        %3888 = vmatpush.msra.mxu0 %v2439
        %3889 = vmatpush.msra.mxu0 %v2435
        %3890 = vmatpush.msra.mxu0 %v2431
        %3891 = vmatpush.msra.mxu0 %v2427
        %3892 = vmatpush.msra.mxu0 %v2423
        %3893 = vmatpush.msra.mxu0 %v2419
        %3894 = vmatpush.msra.mxu0 %v2415
        %3895 = vmatpush.msra.mxu0 %v2411
        %3896 = vmatpush.msra.mxu0 %v2407
        %3897 = vmatmul.f32.gmra.mxu0 %v419
        %v3898 = vpop.f32.mrf.mxu0
        %v3899 = vadd.f32 %v3879, %v3898
        %3900 = vdwg.mxu0
        %3901 = vmatpush.msra.mxu0 %v2531
        %3902 = vmatpush.msra.mxu0 %v2527
        %3903 = vmatpush.msra.mxu0 %v2523
        %3904 = vmatpush.msra.mxu0 %v2519
        %3905 = vmatpush.msra.mxu0 %v2515
        %3906 = vmatpush.msra.mxu0 %v2511
        %3907 = vmatpush.msra.mxu0 %v2507
        %3908 = vmatpush.msra.mxu0 %v2503
        %3909 = vmatpush.msra.mxu0 %v2499
        %3910 = vmatpush.msra.mxu0 %v2495
        %3911 = vmatpush.msra.mxu0 %v2491
        %3912 = vmatpush.msra.mxu0 %v2487
        %3913 = vmatpush.msra.mxu0 %v2483
        %3914 = vmatpush.msra.mxu0 %v2479
        %3915 = vmatpush.msra.mxu0 %v2475
        %3916 = vmatpush.msra.mxu0 %v2471
        %3917 = vmatmul.f32.gmra.mxu0 %v420
        %v3918 = vpop.f32.mrf.mxu0
        %v3919 = vadd.f32 %v3899, %v3918
        %3920 = vdwg.mxu0
        %3921 = vmatpush.msra.mxu0 0.0
        %3922 = vmatpush.msra.mxu0 0.0
        %3923 = vmatpush.msra.mxu0 0.0
        %3924 = vmatpush.msra.mxu0 0.0
        %3925 = vmatpush.msra.mxu0 0.0
        %3926 = vmatpush.msra.mxu0 0.0
        %3927 = vmatpush.msra.mxu0 0.0
        %3928 = vmatpush.msra.mxu0 0.0
        %3929 = vmatpush.msra.mxu0 0.0
        %3930 = vmatpush.msra.mxu0 0.0
        %3931 = vmatpush.msra.mxu0 0.0
        %3932 = vmatpush.msra.mxu0 %v2573
        %3933 = vmatpush.msra.mxu0 %v2547
        %3934 = vmatpush.msra.mxu0 %v2543
        %3935 = vmatpush.msra.mxu0 %v2539
        %3936 = vmatpush.msra.mxu0 %v2535
        %3937 = vmatmul.f32.gmra.mxu0 %v2566
        %v3938 = vpop.f32.mrf.mxu0
        %v3939 = vadd.f32 %v3919, %v3938
        %3940 = vdwg.mxu0
        %3941 = vmatpush.msra.mxu0 %v484
        %3942 = vmatpush.msra.mxu0 %v480
        %3943 = vmatpush.msra.mxu0 %v476
        %3944 = vmatpush.msra.mxu0 %v472
        %3945 = vmatpush.msra.mxu0 %v468
        %3946 = vmatpush.msra.mxu0 %v464
        %3947 = vmatpush.msra.mxu0 %v460
        %3948 = vmatpush.msra.mxu0 %v456
        %3949 = vmatpush.msra.mxu0 %v452
        %3950 = vmatpush.msra.mxu0 %v448
        %3951 = vmatpush.msra.mxu0 %v444
        %3952 = vmatpush.msra.mxu0 %v440
        %3953 = vmatpush.msra.mxu0 %v436
        %3954 = vmatpush.msra.mxu0 %v432
        %3955 = vmatpush.msra.mxu0 %v428
        %3956 = vmatpush.msra.mxu0 %v424
        %3957 = vmatmul.f32.gmra.mxu0 %v388
        %v3958 = vpop.f32.mrf.mxu0
        %v3959 = vadd.f32 %v2558, %v3958
        %3960 = vdwg.mxu0
        %3961 = vmatpush.msra.mxu0 %v548
        %3962 = vmatpush.msra.mxu0 %v544
        %3963 = vmatpush.msra.mxu0 %v540
        %3964 = vmatpush.msra.mxu0 %v536
        %3965 = vmatpush.msra.mxu0 %v532
        %3966 = vmatpush.msra.mxu0 %v528
        %3967 = vmatpush.msra.mxu0 %v524
        %3968 = vmatpush.msra.mxu0 %v520
        %3969 = vmatpush.msra.mxu0 %v516
        %3970 = vmatpush.msra.mxu0 %v512
        %3971 = vmatpush.msra.mxu0 %v508
        %3972 = vmatpush.msra.mxu0 %v504
        %3973 = vmatpush.msra.mxu0 %v500
        %3974 = vmatpush.msra.mxu0 %v496
        %3975 = vmatpush.msra.mxu0 %v492
        %3976 = vmatpush.msra.mxu0 %v488
        %3977 = vmatmul.f32.gmra.mxu0 %v389
        %v3978 = vpop.f32.mrf.mxu0
        %v3979 = vadd.f32 %v3959, %v3978
        %3980 = vdwg.mxu0
        %3981 = vmatpush.msra.mxu0 %v612
        %3982 = vmatpush.msra.mxu0 %v608
        %3983 = vmatpush.msra.mxu0 %v604
        %3984 = vmatpush.msra.mxu0 %v600
        %3985 = vmatpush.msra.mxu0 %v596
        %3986 = vmatpush.msra.mxu0 %v592
        %3987 = vmatpush.msra.mxu0 %v588
        %3988 = vmatpush.msra.mxu0 %v584
        %3989 = vmatpush.msra.mxu0 %v580
        %3990 = vmatpush.msra.mxu0 %v576
        %3991 = vmatpush.msra.mxu0 %v572
        %3992 = vmatpush.msra.mxu0 %v568
        %3993 = vmatpush.msra.mxu0 %v564
        %3994 = vmatpush.msra.mxu0 %v560
        %3995 = vmatpush.msra.mxu0 %v556
        %3996 = vmatpush.msra.mxu0 %v552
        %3997 = vmatmul.f32.gmra.mxu0 %v390
        %v3998 = vpop.f32.mrf.mxu0
        %v3999 = vadd.f32 %v3979, %v3998
        %4000 = vdwg.mxu0
        %4001 = vmatpush.msra.mxu0 %v676
        %4002 = vmatpush.msra.mxu0 %v672
        %4003 = vmatpush.msra.mxu0 %v668
        %4004 = vmatpush.msra.mxu0 %v664
        %4005 = vmatpush.msra.mxu0 %v660
        %4006 = vmatpush.msra.mxu0 %v656
        %4007 = vmatpush.msra.mxu0 %v652
        %4008 = vmatpush.msra.mxu0 %v648
        %4009 = vmatpush.msra.mxu0 %v644
        %4010 = vmatpush.msra.mxu0 %v640
        %4011 = vmatpush.msra.mxu0 %v636
        %4012 = vmatpush.msra.mxu0 %v632
        %4013 = vmatpush.msra.mxu0 %v628
        %4014 = vmatpush.msra.mxu0 %v624
        %4015 = vmatpush.msra.mxu0 %v620
        %4016 = vmatpush.msra.mxu0 %v616
        %4017 = vmatmul.f32.gmra.mxu0 %v391
        %v4018 = vpop.f32.mrf.mxu0
        %v4019 = vadd.f32 %v3999, %v4018
        %4020 = vdwg.mxu0
        %4021 = vmatpush.msra.mxu0 %v740
        %4022 = vmatpush.msra.mxu0 %v736
        %4023 = vmatpush.msra.mxu0 %v732
        %4024 = vmatpush.msra.mxu0 %v728
        %4025 = vmatpush.msra.mxu0 %v724
        %4026 = vmatpush.msra.mxu0 %v720
        %4027 = vmatpush.msra.mxu0 %v716
        %4028 = vmatpush.msra.mxu0 %v712
        %4029 = vmatpush.msra.mxu0 %v708
        %4030 = vmatpush.msra.mxu0 %v704
        %4031 = vmatpush.msra.mxu0 %v700
        %4032 = vmatpush.msra.mxu0 %v696
        %4033 = vmatpush.msra.mxu0 %v692
        %4034 = vmatpush.msra.mxu0 %v688
        %4035 = vmatpush.msra.mxu0 %v684
        %4036 = vmatpush.msra.mxu0 %v680
        %4037 = vmatmul.f32.gmra.mxu0 %v392
        %v4038 = vpop.f32.mrf.mxu0
        %v4039 = vadd.f32 %v4019, %v4038
        %4040 = vdwg.mxu0
        %4041 = vmatpush.msra.mxu0 %v804
        %4042 = vmatpush.msra.mxu0 %v800
        %4043 = vmatpush.msra.mxu0 %v796
        %4044 = vmatpush.msra.mxu0 %v792
        %4045 = vmatpush.msra.mxu0 %v788
        %4046 = vmatpush.msra.mxu0 %v784
        %4047 = vmatpush.msra.mxu0 %v780
        %4048 = vmatpush.msra.mxu0 %v776
        %4049 = vmatpush.msra.mxu0 %v772
        %4050 = vmatpush.msra.mxu0 %v768
        %4051 = vmatpush.msra.mxu0 %v764
        %4052 = vmatpush.msra.mxu0 %v760
        %4053 = vmatpush.msra.mxu0 %v756
        %4054 = vmatpush.msra.mxu0 %v752
        %4055 = vmatpush.msra.mxu0 %v748
        %4056 = vmatpush.msra.mxu0 %v744
        %4057 = vmatmul.f32.gmra.mxu0 %v393
        %v4058 = vpop.f32.mrf.mxu0
        %v4059 = vadd.f32 %v4039, %v4058
        %4060 = vdwg.mxu0
        %4061 = vmatpush.msra.mxu0 %v868
        %4062 = vmatpush.msra.mxu0 %v864
        %4063 = vmatpush.msra.mxu0 %v860
        %4064 = vmatpush.msra.mxu0 %v856
        %4065 = vmatpush.msra.mxu0 %v852
        %4066 = vmatpush.msra.mxu0 %v848
        %4067 = vmatpush.msra.mxu0 %v844
        %4068 = vmatpush.msra.mxu0 %v840
        %4069 = vmatpush.msra.mxu0 %v836
        %4070 = vmatpush.msra.mxu0 %v832
        %4071 = vmatpush.msra.mxu0 %v828
        %4072 = vmatpush.msra.mxu0 %v824
        %4073 = vmatpush.msra.mxu0 %v820
        %4074 = vmatpush.msra.mxu0 %v816
        %4075 = vmatpush.msra.mxu0 %v812
        %4076 = vmatpush.msra.mxu0 %v808
        %4077 = vmatmul.f32.gmra.mxu0 %v394
        %v4078 = vpop.f32.mrf.mxu0
        %v4079 = vadd.f32 %v4059, %v4078
        %4080 = vdwg.mxu0
        %4081 = vmatpush.msra.mxu0 %v932
        %4082 = vmatpush.msra.mxu0 %v928
        %4083 = vmatpush.msra.mxu0 %v924
        %4084 = vmatpush.msra.mxu0 %v920
        %4085 = vmatpush.msra.mxu0 %v916
        %4086 = vmatpush.msra.mxu0 %v912
        %4087 = vmatpush.msra.mxu0 %v908
        %4088 = vmatpush.msra.mxu0 %v904
        %4089 = vmatpush.msra.mxu0 %v900
        %4090 = vmatpush.msra.mxu0 %v896
        %4091 = vmatpush.msra.mxu0 %v892
        %4092 = vmatpush.msra.mxu0 %v888
        %4093 = vmatpush.msra.mxu0 %v884
        %4094 = vmatpush.msra.mxu0 %v880
        %4095 = vmatpush.msra.mxu0 %v876
        %4096 = vmatpush.msra.mxu0 %v872
        %4097 = vmatmul.f32.gmra.mxu0 %v395
        %v4098 = vpop.f32.mrf.mxu0
        %v4099 = vadd.f32 %v4079, %v4098
        %4100 = vdwg.mxu0
        %4101 = vmatpush.msra.mxu0 %v996
        %4102 = vmatpush.msra.mxu0 %v992
        %4103 = vmatpush.msra.mxu0 %v988
        %4104 = vmatpush.msra.mxu0 %v984
        %4105 = vmatpush.msra.mxu0 %v980
        %4106 = vmatpush.msra.mxu0 %v976
        %4107 = vmatpush.msra.mxu0 %v972
        %4108 = vmatpush.msra.mxu0 %v968
        %4109 = vmatpush.msra.mxu0 %v964
        %4110 = vmatpush.msra.mxu0 %v960
        %4111 = vmatpush.msra.mxu0 %v956
        %4112 = vmatpush.msra.mxu0 %v952
        %4113 = vmatpush.msra.mxu0 %v948
        %4114 = vmatpush.msra.mxu0 %v944
        %4115 = vmatpush.msra.mxu0 %v940
        %4116 = vmatpush.msra.mxu0 %v936
        %4117 = vmatmul.f32.gmra.mxu0 %v396
        %v4118 = vpop.f32.mrf.mxu0
        %v4119 = vadd.f32 %v4099, %v4118
        %4120 = vdwg.mxu0
        %4121 = vmatpush.msra.mxu0 %v1060
        %4122 = vmatpush.msra.mxu0 %v1056
        %4123 = vmatpush.msra.mxu0 %v1052
        %4124 = vmatpush.msra.mxu0 %v1048
        %4125 = vmatpush.msra.mxu0 %v1044
        %4126 = vmatpush.msra.mxu0 %v1040
        %4127 = vmatpush.msra.mxu0 %v1036
        %4128 = vmatpush.msra.mxu0 %v1032
        %4129 = vmatpush.msra.mxu0 %v1028
        %4130 = vmatpush.msra.mxu0 %v1024
        %4131 = vmatpush.msra.mxu0 %v1020
        %4132 = vmatpush.msra.mxu0 %v1016
        %4133 = vmatpush.msra.mxu0 %v1012
        %4134 = vmatpush.msra.mxu0 %v1008
        %4135 = vmatpush.msra.mxu0 %v1004
        %4136 = vmatpush.msra.mxu0 %v1000
        %4137 = vmatmul.f32.gmra.mxu0 %v397
        %v4138 = vpop.f32.mrf.mxu0
        %v4139 = vadd.f32 %v4119, %v4138
        %4140 = vdwg.mxu0
        %4141 = vmatpush.msra.mxu0 %v1124
        %4142 = vmatpush.msra.mxu0 %v1120
        %4143 = vmatpush.msra.mxu0 %v1116
        %4144 = vmatpush.msra.mxu0 %v1112
        %4145 = vmatpush.msra.mxu0 %v1108
        %4146 = vmatpush.msra.mxu0 %v1104
        %4147 = vmatpush.msra.mxu0 %v1100
        %4148 = vmatpush.msra.mxu0 %v1096
        %4149 = vmatpush.msra.mxu0 %v1092
        %4150 = vmatpush.msra.mxu0 %v1088
        %4151 = vmatpush.msra.mxu0 %v1084
        %4152 = vmatpush.msra.mxu0 %v1080
        %4153 = vmatpush.msra.mxu0 %v1076
        %4154 = vmatpush.msra.mxu0 %v1072
        %4155 = vmatpush.msra.mxu0 %v1068
        %4156 = vmatpush.msra.mxu0 %v1064
        %4157 = vmatmul.f32.gmra.mxu0 %v398
        %v4158 = vpop.f32.mrf.mxu0
        %v4159 = vadd.f32 %v4139, %v4158
        %4160 = vdwg.mxu0
        %4161 = vmatpush.msra.mxu0 %v1188
        %4162 = vmatpush.msra.mxu0 %v1184
        %4163 = vmatpush.msra.mxu0 %v1180
        %4164 = vmatpush.msra.mxu0 %v1176
        %4165 = vmatpush.msra.mxu0 %v1172
        %4166 = vmatpush.msra.mxu0 %v1168
        %4167 = vmatpush.msra.mxu0 %v1164
        %4168 = vmatpush.msra.mxu0 %v1160
        %4169 = vmatpush.msra.mxu0 %v1156
        %4170 = vmatpush.msra.mxu0 %v1152
        %4171 = vmatpush.msra.mxu0 %v1148
        %4172 = vmatpush.msra.mxu0 %v1144
        %4173 = vmatpush.msra.mxu0 %v1140
        %4174 = vmatpush.msra.mxu0 %v1136
        %4175 = vmatpush.msra.mxu0 %v1132
        %4176 = vmatpush.msra.mxu0 %v1128
        %4177 = vmatmul.f32.gmra.mxu0 %v399
        %v4178 = vpop.f32.mrf.mxu0
        %v4179 = vadd.f32 %v4159, %v4178
        %4180 = vdwg.mxu0
        %4181 = vmatpush.msra.mxu0 %v1252
        %4182 = vmatpush.msra.mxu0 %v1248
        %4183 = vmatpush.msra.mxu0 %v1244
        %4184 = vmatpush.msra.mxu0 %v1240
        %4185 = vmatpush.msra.mxu0 %v1236
        %4186 = vmatpush.msra.mxu0 %v1232
        %4187 = vmatpush.msra.mxu0 %v1228
        %4188 = vmatpush.msra.mxu0 %v1224
        %4189 = vmatpush.msra.mxu0 %v1220
        %4190 = vmatpush.msra.mxu0 %v1216
        %4191 = vmatpush.msra.mxu0 %v1212
        %4192 = vmatpush.msra.mxu0 %v1208
        %4193 = vmatpush.msra.mxu0 %v1204
        %4194 = vmatpush.msra.mxu0 %v1200
        %4195 = vmatpush.msra.mxu0 %v1196
        %4196 = vmatpush.msra.mxu0 %v1192
        %4197 = vmatmul.f32.gmra.mxu0 %v400
        %v4198 = vpop.f32.mrf.mxu0
        %v4199 = vadd.f32 %v4179, %v4198
        %4200 = vdwg.mxu0
        %4201 = vmatpush.msra.mxu0 %v1316
        %4202 = vmatpush.msra.mxu0 %v1312
        %4203 = vmatpush.msra.mxu0 %v1308
        %4204 = vmatpush.msra.mxu0 %v1304
        %4205 = vmatpush.msra.mxu0 %v1300
        %4206 = vmatpush.msra.mxu0 %v1296
        %4207 = vmatpush.msra.mxu0 %v1292
        %4208 = vmatpush.msra.mxu0 %v1288
        %4209 = vmatpush.msra.mxu0 %v1284
        %4210 = vmatpush.msra.mxu0 %v1280
        %4211 = vmatpush.msra.mxu0 %v1276
        %4212 = vmatpush.msra.mxu0 %v1272
        %4213 = vmatpush.msra.mxu0 %v1268
        %4214 = vmatpush.msra.mxu0 %v1264
        %4215 = vmatpush.msra.mxu0 %v1260
        %4216 = vmatpush.msra.mxu0 %v1256
        %4217 = vmatmul.f32.gmra.mxu0 %v401
        %v4218 = vpop.f32.mrf.mxu0
        %v4219 = vadd.f32 %v4199, %v4218
        %4220 = vdwg.mxu0
        %4221 = vmatpush.msra.mxu0 %v1380
        %4222 = vmatpush.msra.mxu0 %v1376
        %4223 = vmatpush.msra.mxu0 %v1372
        %4224 = vmatpush.msra.mxu0 %v1368
        %4225 = vmatpush.msra.mxu0 %v1364
        %4226 = vmatpush.msra.mxu0 %v1360
        %4227 = vmatpush.msra.mxu0 %v1356
        %4228 = vmatpush.msra.mxu0 %v1352
        %4229 = vmatpush.msra.mxu0 %v1348
        %4230 = vmatpush.msra.mxu0 %v1344
        %4231 = vmatpush.msra.mxu0 %v1340
        %4232 = vmatpush.msra.mxu0 %v1336
        %4233 = vmatpush.msra.mxu0 %v1332
        %4234 = vmatpush.msra.mxu0 %v1328
        %4235 = vmatpush.msra.mxu0 %v1324
        %4236 = vmatpush.msra.mxu0 %v1320
        %4237 = vmatmul.f32.gmra.mxu0 %v402
        %v4238 = vpop.f32.mrf.mxu0
        %v4239 = vadd.f32 %v4219, %v4238
        %4240 = vdwg.mxu0
        %4241 = vmatpush.msra.mxu0 %v1444
        %4242 = vmatpush.msra.mxu0 %v1440
        %4243 = vmatpush.msra.mxu0 %v1436
        %4244 = vmatpush.msra.mxu0 %v1432
        %4245 = vmatpush.msra.mxu0 %v1428
        %4246 = vmatpush.msra.mxu0 %v1424
        %4247 = vmatpush.msra.mxu0 %v1420
        %4248 = vmatpush.msra.mxu0 %v1416
        %4249 = vmatpush.msra.mxu0 %v1412
        %4250 = vmatpush.msra.mxu0 %v1408
        %4251 = vmatpush.msra.mxu0 %v1404
        %4252 = vmatpush.msra.mxu0 %v1400
        %4253 = vmatpush.msra.mxu0 %v1396
        %4254 = vmatpush.msra.mxu0 %v1392
        %4255 = vmatpush.msra.mxu0 %v1388
        %4256 = vmatpush.msra.mxu0 %v1384
        %4257 = vmatmul.f32.gmra.mxu0 %v403
        %v4258 = vpop.f32.mrf.mxu0
        %v4259 = vadd.f32 %v4239, %v4258
        %4260 = vdwg.mxu0
        %4261 = vmatpush.msra.mxu0 %v1508
        %4262 = vmatpush.msra.mxu0 %v1504
        %4263 = vmatpush.msra.mxu0 %v1500
        %4264 = vmatpush.msra.mxu0 %v1496
        %4265 = vmatpush.msra.mxu0 %v1492
        %4266 = vmatpush.msra.mxu0 %v1488
        %4267 = vmatpush.msra.mxu0 %v1484
        %4268 = vmatpush.msra.mxu0 %v1480
        %4269 = vmatpush.msra.mxu0 %v1476
        %4270 = vmatpush.msra.mxu0 %v1472
        %4271 = vmatpush.msra.mxu0 %v1468
        %4272 = vmatpush.msra.mxu0 %v1464
        %4273 = vmatpush.msra.mxu0 %v1460
        %4274 = vmatpush.msra.mxu0 %v1456
        %4275 = vmatpush.msra.mxu0 %v1452
        %4276 = vmatpush.msra.mxu0 %v1448
        %4277 = vmatmul.f32.gmra.mxu0 %v404
        %v4278 = vpop.f32.mrf.mxu0
        %v4279 = vadd.f32 %v4259, %v4278
        %4280 = vdwg.mxu0
        %4281 = vmatpush.msra.mxu0 %v1572
        %4282 = vmatpush.msra.mxu0 %v1568
        %4283 = vmatpush.msra.mxu0 %v1564
        %4284 = vmatpush.msra.mxu0 %v1560
        %4285 = vmatpush.msra.mxu0 %v1556
        %4286 = vmatpush.msra.mxu0 %v1552
        %4287 = vmatpush.msra.mxu0 %v1548
        %4288 = vmatpush.msra.mxu0 %v1544
        %4289 = vmatpush.msra.mxu0 %v1540
        %4290 = vmatpush.msra.mxu0 %v1536
        %4291 = vmatpush.msra.mxu0 %v1532
        %4292 = vmatpush.msra.mxu0 %v1528
        %4293 = vmatpush.msra.mxu0 %v1524
        %4294 = vmatpush.msra.mxu0 %v1520
        %4295 = vmatpush.msra.mxu0 %v1516
        %4296 = vmatpush.msra.mxu0 %v1512
        %4297 = vmatmul.f32.gmra.mxu0 %v405
        %v4298 = vpop.f32.mrf.mxu0
        %v4299 = vadd.f32 %v4279, %v4298
        %4300 = vdwg.mxu0
        %4301 = vmatpush.msra.mxu0 %v1636
        %4302 = vmatpush.msra.mxu0 %v1632
        %4303 = vmatpush.msra.mxu0 %v1628
        %4304 = vmatpush.msra.mxu0 %v1624
        %4305 = vmatpush.msra.mxu0 %v1620
        %4306 = vmatpush.msra.mxu0 %v1616
        %4307 = vmatpush.msra.mxu0 %v1612
        %4308 = vmatpush.msra.mxu0 %v1608
        %4309 = vmatpush.msra.mxu0 %v1604
        %4310 = vmatpush.msra.mxu0 %v1600
        %4311 = vmatpush.msra.mxu0 %v1596
        %4312 = vmatpush.msra.mxu0 %v1592
        %4313 = vmatpush.msra.mxu0 %v1588
        %4314 = vmatpush.msra.mxu0 %v1584
        %4315 = vmatpush.msra.mxu0 %v1580
        %4316 = vmatpush.msra.mxu0 %v1576
        %4317 = vmatmul.f32.gmra.mxu0 %v406
        %v4318 = vpop.f32.mrf.mxu0
        %v4319 = vadd.f32 %v4299, %v4318
        %4320 = vdwg.mxu0
        %4321 = vmatpush.msra.mxu0 %v1700
        %4322 = vmatpush.msra.mxu0 %v1696
        %4323 = vmatpush.msra.mxu0 %v1692
        %4324 = vmatpush.msra.mxu0 %v1688
        %4325 = vmatpush.msra.mxu0 %v1684
        %4326 = vmatpush.msra.mxu0 %v1680
        %4327 = vmatpush.msra.mxu0 %v1676
        %4328 = vmatpush.msra.mxu0 %v1672
        %4329 = vmatpush.msra.mxu0 %v1668
        %4330 = vmatpush.msra.mxu0 %v1664
        %4331 = vmatpush.msra.mxu0 %v1660
        %4332 = vmatpush.msra.mxu0 %v1656
        %4333 = vmatpush.msra.mxu0 %v1652
        %4334 = vmatpush.msra.mxu0 %v1648
        %4335 = vmatpush.msra.mxu0 %v1644
        %4336 = vmatpush.msra.mxu0 %v1640
        %4337 = vmatmul.f32.gmra.mxu0 %v407
        %v4338 = vpop.f32.mrf.mxu0
        %v4339 = vadd.f32 %v4319, %v4338
        %4340 = vdwg.mxu0
        %4341 = vmatpush.msra.mxu0 %v1764
        %4342 = vmatpush.msra.mxu0 %v1760
        %4343 = vmatpush.msra.mxu0 %v1756
        %4344 = vmatpush.msra.mxu0 %v1752
        %4345 = vmatpush.msra.mxu0 %v1748
        %4346 = vmatpush.msra.mxu0 %v1744
        %4347 = vmatpush.msra.mxu0 %v1740
        %4348 = vmatpush.msra.mxu0 %v1736
        %4349 = vmatpush.msra.mxu0 %v1732
        %4350 = vmatpush.msra.mxu0 %v1728
        %4351 = vmatpush.msra.mxu0 %v1724
        %4352 = vmatpush.msra.mxu0 %v1720
        %4353 = vmatpush.msra.mxu0 %v1716
        %4354 = vmatpush.msra.mxu0 %v1712
        %4355 = vmatpush.msra.mxu0 %v1708
        %4356 = vmatpush.msra.mxu0 %v1704
        %4357 = vmatmul.f32.gmra.mxu0 %v408
        %v4358 = vpop.f32.mrf.mxu0
        %v4359 = vadd.f32 %v4339, %v4358
        %4360 = vdwg.mxu0
        %4361 = vmatpush.msra.mxu0 %v1828
        %4362 = vmatpush.msra.mxu0 %v1824
        %4363 = vmatpush.msra.mxu0 %v1820
        %4364 = vmatpush.msra.mxu0 %v1816
        %4365 = vmatpush.msra.mxu0 %v1812
        %4366 = vmatpush.msra.mxu0 %v1808
        %4367 = vmatpush.msra.mxu0 %v1804
        %4368 = vmatpush.msra.mxu0 %v1800
        %4369 = vmatpush.msra.mxu0 %v1796
        %4370 = vmatpush.msra.mxu0 %v1792
        %4371 = vmatpush.msra.mxu0 %v1788
        %4372 = vmatpush.msra.mxu0 %v1784
        %4373 = vmatpush.msra.mxu0 %v1780
        %4374 = vmatpush.msra.mxu0 %v1776
        %4375 = vmatpush.msra.mxu0 %v1772
        %4376 = vmatpush.msra.mxu0 %v1768
        %4377 = vmatmul.f32.gmra.mxu0 %v409
        %v4378 = vpop.f32.mrf.mxu0
        %v4379 = vadd.f32 %v4359, %v4378
        %4380 = vdwg.mxu0
        %4381 = vmatpush.msra.mxu0 %v1892
        %4382 = vmatpush.msra.mxu0 %v1888
        %4383 = vmatpush.msra.mxu0 %v1884
        %4384 = vmatpush.msra.mxu0 %v1880
        %4385 = vmatpush.msra.mxu0 %v1876
        %4386 = vmatpush.msra.mxu0 %v1872
        %4387 = vmatpush.msra.mxu0 %v1868
        %4388 = vmatpush.msra.mxu0 %v1864
        %4389 = vmatpush.msra.mxu0 %v1860
        %4390 = vmatpush.msra.mxu0 %v1856
        %4391 = vmatpush.msra.mxu0 %v1852
        %4392 = vmatpush.msra.mxu0 %v1848
        %4393 = vmatpush.msra.mxu0 %v1844
        %4394 = vmatpush.msra.mxu0 %v1840
        %4395 = vmatpush.msra.mxu0 %v1836
        %4396 = vmatpush.msra.mxu0 %v1832
        %4397 = vmatmul.f32.gmra.mxu0 %v410
        %v4398 = vpop.f32.mrf.mxu0
        %v4399 = vadd.f32 %v4379, %v4398
        %4400 = vdwg.mxu0
        %4401 = vmatpush.msra.mxu0 %v1956
        %4402 = vmatpush.msra.mxu0 %v1952
        %4403 = vmatpush.msra.mxu0 %v1948
        %4404 = vmatpush.msra.mxu0 %v1944
        %4405 = vmatpush.msra.mxu0 %v1940
        %4406 = vmatpush.msra.mxu0 %v1936
        %4407 = vmatpush.msra.mxu0 %v1932
        %4408 = vmatpush.msra.mxu0 %v1928
        %4409 = vmatpush.msra.mxu0 %v1924
        %4410 = vmatpush.msra.mxu0 %v1920
        %4411 = vmatpush.msra.mxu0 %v1916
        %4412 = vmatpush.msra.mxu0 %v1912
        %4413 = vmatpush.msra.mxu0 %v1908
        %4414 = vmatpush.msra.mxu0 %v1904
        %4415 = vmatpush.msra.mxu0 %v1900
        %4416 = vmatpush.msra.mxu0 %v1896
        %4417 = vmatmul.f32.gmra.mxu0 %v411
        %v4418 = vpop.f32.mrf.mxu0
        %v4419 = vadd.f32 %v4399, %v4418
        %4420 = vdwg.mxu0
        %4421 = vmatpush.msra.mxu0 %v2020
        %4422 = vmatpush.msra.mxu0 %v2016
        %4423 = vmatpush.msra.mxu0 %v2012
        %4424 = vmatpush.msra.mxu0 %v2008
        %4425 = vmatpush.msra.mxu0 %v2004
        %4426 = vmatpush.msra.mxu0 %v2000
        %4427 = vmatpush.msra.mxu0 %v1996
        %4428 = vmatpush.msra.mxu0 %v1992
        %4429 = vmatpush.msra.mxu0 %v1988
        %4430 = vmatpush.msra.mxu0 %v1984
        %4431 = vmatpush.msra.mxu0 %v1980
        %4432 = vmatpush.msra.mxu0 %v1976
        %4433 = vmatpush.msra.mxu0 %v1972
        %4434 = vmatpush.msra.mxu0 %v1968
        %4435 = vmatpush.msra.mxu0 %v1964
        %4436 = vmatpush.msra.mxu0 %v1960
        %4437 = vmatmul.f32.gmra.mxu0 %v412
        %v4438 = vpop.f32.mrf.mxu0
        %v4439 = vadd.f32 %v4419, %v4438
        %4440 = vdwg.mxu0
        %4441 = vmatpush.msra.mxu0 %v2084
        %4442 = vmatpush.msra.mxu0 %v2080
        %4443 = vmatpush.msra.mxu0 %v2076
        %4444 = vmatpush.msra.mxu0 %v2072
        %4445 = vmatpush.msra.mxu0 %v2068
        %4446 = vmatpush.msra.mxu0 %v2064
        %4447 = vmatpush.msra.mxu0 %v2060
        %4448 = vmatpush.msra.mxu0 %v2056
        %4449 = vmatpush.msra.mxu0 %v2052
        %4450 = vmatpush.msra.mxu0 %v2048
        %4451 = vmatpush.msra.mxu0 %v2044
        %4452 = vmatpush.msra.mxu0 %v2040
        %4453 = vmatpush.msra.mxu0 %v2036
        %4454 = vmatpush.msra.mxu0 %v2032
        %4455 = vmatpush.msra.mxu0 %v2028
        %4456 = vmatpush.msra.mxu0 %v2024
        %4457 = vmatmul.f32.gmra.mxu0 %v413
        %v4458 = vpop.f32.mrf.mxu0
        %v4459 = vadd.f32 %v4439, %v4458
        %4460 = vdwg.mxu0
        %4461 = vmatpush.msra.mxu0 %v2148
        %4462 = vmatpush.msra.mxu0 %v2144
        %4463 = vmatpush.msra.mxu0 %v2140
        %4464 = vmatpush.msra.mxu0 %v2136
        %4465 = vmatpush.msra.mxu0 %v2132
        %4466 = vmatpush.msra.mxu0 %v2128
        %4467 = vmatpush.msra.mxu0 %v2124
        %4468 = vmatpush.msra.mxu0 %v2120
        %4469 = vmatpush.msra.mxu0 %v2116
        %4470 = vmatpush.msra.mxu0 %v2112
        %4471 = vmatpush.msra.mxu0 %v2108
        %4472 = vmatpush.msra.mxu0 %v2104
        %4473 = vmatpush.msra.mxu0 %v2100
        %4474 = vmatpush.msra.mxu0 %v2096
        %4475 = vmatpush.msra.mxu0 %v2092
        %4476 = vmatpush.msra.mxu0 %v2088
        %4477 = vmatmul.f32.gmra.mxu0 %v414
        %v4478 = vpop.f32.mrf.mxu0
        %v4479 = vadd.f32 %v4459, %v4478
        %4480 = vdwg.mxu0
        %4481 = vmatpush.msra.mxu0 %v2212
        %4482 = vmatpush.msra.mxu0 %v2208
        %4483 = vmatpush.msra.mxu0 %v2204
        %4484 = vmatpush.msra.mxu0 %v2200
        %4485 = vmatpush.msra.mxu0 %v2196
        %4486 = vmatpush.msra.mxu0 %v2192
        %4487 = vmatpush.msra.mxu0 %v2188
        %4488 = vmatpush.msra.mxu0 %v2184
        %4489 = vmatpush.msra.mxu0 %v2180
        %4490 = vmatpush.msra.mxu0 %v2176
        %4491 = vmatpush.msra.mxu0 %v2172
        %4492 = vmatpush.msra.mxu0 %v2168
        %4493 = vmatpush.msra.mxu0 %v2164
        %4494 = vmatpush.msra.mxu0 %v2160
        %4495 = vmatpush.msra.mxu0 %v2156
        %4496 = vmatpush.msra.mxu0 %v2152
        %4497 = vmatmul.f32.gmra.mxu0 %v415
        %v4498 = vpop.f32.mrf.mxu0
        %v4499 = vadd.f32 %v4479, %v4498
        %4500 = vdwg.mxu0
        %4501 = vmatpush.msra.mxu0 %v2276
        %4502 = vmatpush.msra.mxu0 %v2272
        %4503 = vmatpush.msra.mxu0 %v2268
        %4504 = vmatpush.msra.mxu0 %v2264
        %4505 = vmatpush.msra.mxu0 %v2260
        %4506 = vmatpush.msra.mxu0 %v2256
        %4507 = vmatpush.msra.mxu0 %v2252
        %4508 = vmatpush.msra.mxu0 %v2248
        %4509 = vmatpush.msra.mxu0 %v2244
        %4510 = vmatpush.msra.mxu0 %v2240
        %4511 = vmatpush.msra.mxu0 %v2236
        %4512 = vmatpush.msra.mxu0 %v2232
        %4513 = vmatpush.msra.mxu0 %v2228
        %4514 = vmatpush.msra.mxu0 %v2224
        %4515 = vmatpush.msra.mxu0 %v2220
        %4516 = vmatpush.msra.mxu0 %v2216
        %4517 = vmatmul.f32.gmra.mxu0 %v416
        %v4518 = vpop.f32.mrf.mxu0
        %v4519 = vadd.f32 %v4499, %v4518
        %4520 = vdwg.mxu0
        %4521 = vmatpush.msra.mxu0 %v2340
        %4522 = vmatpush.msra.mxu0 %v2336
        %4523 = vmatpush.msra.mxu0 %v2332
        %4524 = vmatpush.msra.mxu0 %v2328
        %4525 = vmatpush.msra.mxu0 %v2324
        %4526 = vmatpush.msra.mxu0 %v2320
        %4527 = vmatpush.msra.mxu0 %v2316
        %4528 = vmatpush.msra.mxu0 %v2312
        %4529 = vmatpush.msra.mxu0 %v2308
        %4530 = vmatpush.msra.mxu0 %v2304
        %4531 = vmatpush.msra.mxu0 %v2300
        %4532 = vmatpush.msra.mxu0 %v2296
        %4533 = vmatpush.msra.mxu0 %v2292
        %4534 = vmatpush.msra.mxu0 %v2288
        %4535 = vmatpush.msra.mxu0 %v2284
        %4536 = vmatpush.msra.mxu0 %v2280
        %4537 = vmatmul.f32.gmra.mxu0 %v417
        %v4538 = vpop.f32.mrf.mxu0
        %v4539 = vadd.f32 %v4519, %v4538
        %4540 = vdwg.mxu0
        %4541 = vmatpush.msra.mxu0 %v2404
        %4542 = vmatpush.msra.mxu0 %v2400
        %4543 = vmatpush.msra.mxu0 %v2396
        %4544 = vmatpush.msra.mxu0 %v2392
        %4545 = vmatpush.msra.mxu0 %v2388
        %4546 = vmatpush.msra.mxu0 %v2384
        %4547 = vmatpush.msra.mxu0 %v2380
        %4548 = vmatpush.msra.mxu0 %v2376
        %4549 = vmatpush.msra.mxu0 %v2372
        %4550 = vmatpush.msra.mxu0 %v2368
        %4551 = vmatpush.msra.mxu0 %v2364
        %4552 = vmatpush.msra.mxu0 %v2360
        %4553 = vmatpush.msra.mxu0 %v2356
        %4554 = vmatpush.msra.mxu0 %v2352
        %4555 = vmatpush.msra.mxu0 %v2348
        %4556 = vmatpush.msra.mxu0 %v2344
        %4557 = vmatmul.f32.gmra.mxu0 %v418
        %v4558 = vpop.f32.mrf.mxu0
        %v4559 = vadd.f32 %v4539, %v4558
        %4560 = vdwg.mxu0
        %4561 = vmatpush.msra.mxu0 %v2468
        %4562 = vmatpush.msra.mxu0 %v2464
        %4563 = vmatpush.msra.mxu0 %v2460
        %4564 = vmatpush.msra.mxu0 %v2456
        %4565 = vmatpush.msra.mxu0 %v2452
        %4566 = vmatpush.msra.mxu0 %v2448
        %4567 = vmatpush.msra.mxu0 %v2444
        %4568 = vmatpush.msra.mxu0 %v2440
        %4569 = vmatpush.msra.mxu0 %v2436
        %4570 = vmatpush.msra.mxu0 %v2432
        %4571 = vmatpush.msra.mxu0 %v2428
        %4572 = vmatpush.msra.mxu0 %v2424
        %4573 = vmatpush.msra.mxu0 %v2420
        %4574 = vmatpush.msra.mxu0 %v2416
        %4575 = vmatpush.msra.mxu0 %v2412
        %4576 = vmatpush.msra.mxu0 %v2408
        %4577 = vmatmul.f32.gmra.mxu0 %v419
        %v4578 = vpop.f32.mrf.mxu0
        %v4579 = vadd.f32 %v4559, %v4578
        %4580 = vdwg.mxu0
        %4581 = vmatpush.msra.mxu0 %v2532
        %4582 = vmatpush.msra.mxu0 %v2528
        %4583 = vmatpush.msra.mxu0 %v2524
        %4584 = vmatpush.msra.mxu0 %v2520
        %4585 = vmatpush.msra.mxu0 %v2516
        %4586 = vmatpush.msra.mxu0 %v2512
        %4587 = vmatpush.msra.mxu0 %v2508
        %4588 = vmatpush.msra.mxu0 %v2504
        %4589 = vmatpush.msra.mxu0 %v2500
        %4590 = vmatpush.msra.mxu0 %v2496
        %4591 = vmatpush.msra.mxu0 %v2492
        %4592 = vmatpush.msra.mxu0 %v2488
        %4593 = vmatpush.msra.mxu0 %v2484
        %4594 = vmatpush.msra.mxu0 %v2480
        %4595 = vmatpush.msra.mxu0 %v2476
        %4596 = vmatpush.msra.mxu0 %v2472
        %4597 = vmatmul.f32.gmra.mxu0 %v420
        %v4598 = vpop.f32.mrf.mxu0
        %v4599 = vadd.f32 %v4579, %v4598
        %4600 = vdwg.mxu0
        %4601 = vmatpush.msra.mxu0 0.0
        %4602 = vmatpush.msra.mxu0 0.0
        %4603 = vmatpush.msra.mxu0 0.0
        %4604 = vmatpush.msra.mxu0 0.0
        %4605 = vmatpush.msra.mxu0 0.0
        %4606 = vmatpush.msra.mxu0 0.0
        %4607 = vmatpush.msra.mxu0 0.0
        %4608 = vmatpush.msra.mxu0 0.0
        %4609 = vmatpush.msra.mxu0 0.0
        %4610 = vmatpush.msra.mxu0 0.0
        %4611 = vmatpush.msra.mxu0 0.0
        %4612 = vmatpush.msra.mxu0 %v2576
        %4613 = vmatpush.msra.mxu0 %v2548
        %4614 = vmatpush.msra.mxu0 %v2544
        %4615 = vmatpush.msra.mxu0 %v2540
        %4616 = vmatpush.msra.mxu0 %v2536
        %4617 = vmatmul.f32.gmra.mxu0 %v2566
        %v4618 = vpop.f32.mrf.mxu0
        %v4619 = vadd.f32 %v4599, %v4618
        %4620 = vdwg.mxu0
        %4621 = vmatpush.msra.mxu0 %v485
        %4622 = vmatpush.msra.mxu0 %v481
        %4623 = vmatpush.msra.mxu0 %v477
        %4624 = vmatpush.msra.mxu0 %v473
        %4625 = vmatpush.msra.mxu0 %v469
        %4626 = vmatpush.msra.mxu0 %v465
        %4627 = vmatpush.msra.mxu0 %v461
        %4628 = vmatpush.msra.mxu0 %v457
        %4629 = vmatpush.msra.mxu0 %v453
        %4630 = vmatpush.msra.mxu0 %v449
        %4631 = vmatpush.msra.mxu0 %v445
        %4632 = vmatpush.msra.mxu0 %v441
        %4633 = vmatpush.msra.mxu0 %v437
        %4634 = vmatpush.msra.mxu0 %v433
        %4635 = vmatpush.msra.mxu0 %v429
        %4636 = vmatpush.msra.mxu0 %v425
        %4637 = vmatmul.f32.gmra.mxu0 %v388
        %v4638 = vpop.f32.mrf.mxu0
        %v4639 = vadd.f32 %v2559, %v4638
        %4640 = vdwg.mxu0
        %4641 = vmatpush.msra.mxu0 %v549
        %4642 = vmatpush.msra.mxu0 %v545
        %4643 = vmatpush.msra.mxu0 %v541
        %4644 = vmatpush.msra.mxu0 %v537
        %4645 = vmatpush.msra.mxu0 %v533
        %4646 = vmatpush.msra.mxu0 %v529
        %4647 = vmatpush.msra.mxu0 %v525
        %4648 = vmatpush.msra.mxu0 %v521
        %4649 = vmatpush.msra.mxu0 %v517
        %4650 = vmatpush.msra.mxu0 %v513
        %4651 = vmatpush.msra.mxu0 %v509
        %4652 = vmatpush.msra.mxu0 %v505
        %4653 = vmatpush.msra.mxu0 %v501
        %4654 = vmatpush.msra.mxu0 %v497
        %4655 = vmatpush.msra.mxu0 %v493
        %4656 = vmatpush.msra.mxu0 %v489
        %4657 = vmatmul.f32.gmra.mxu0 %v389
        %v4658 = vpop.f32.mrf.mxu0
        %v4659 = vadd.f32 %v4639, %v4658
        %4660 = vdwg.mxu0
        %4661 = vmatpush.msra.mxu0 %v613
        %4662 = vmatpush.msra.mxu0 %v609
        %4663 = vmatpush.msra.mxu0 %v605
        %4664 = vmatpush.msra.mxu0 %v601
        %4665 = vmatpush.msra.mxu0 %v597
        %4666 = vmatpush.msra.mxu0 %v593
        %4667 = vmatpush.msra.mxu0 %v589
        %4668 = vmatpush.msra.mxu0 %v585
        %4669 = vmatpush.msra.mxu0 %v581
        %4670 = vmatpush.msra.mxu0 %v577
        %4671 = vmatpush.msra.mxu0 %v573
        %4672 = vmatpush.msra.mxu0 %v569
        %4673 = vmatpush.msra.mxu0 %v565
        %4674 = vmatpush.msra.mxu0 %v561
        %4675 = vmatpush.msra.mxu0 %v557
        %4676 = vmatpush.msra.mxu0 %v553
        %4677 = vmatmul.f32.gmra.mxu0 %v390
        %v4678 = vpop.f32.mrf.mxu0
        %v4679 = vadd.f32 %v4659, %v4678
        %4680 = vdwg.mxu0
        %4681 = vmatpush.msra.mxu0 %v677
        %4682 = vmatpush.msra.mxu0 %v673
        %4683 = vmatpush.msra.mxu0 %v669
        %4684 = vmatpush.msra.mxu0 %v665
        %4685 = vmatpush.msra.mxu0 %v661
        %4686 = vmatpush.msra.mxu0 %v657
        %4687 = vmatpush.msra.mxu0 %v653
        %4688 = vmatpush.msra.mxu0 %v649
        %4689 = vmatpush.msra.mxu0 %v645
        %4690 = vmatpush.msra.mxu0 %v641
        %4691 = vmatpush.msra.mxu0 %v637
        %4692 = vmatpush.msra.mxu0 %v633
        %4693 = vmatpush.msra.mxu0 %v629
        %4694 = vmatpush.msra.mxu0 %v625
        %4695 = vmatpush.msra.mxu0 %v621
        %4696 = vmatpush.msra.mxu0 %v617
        %4697 = vmatmul.f32.gmra.mxu0 %v391
        %v4698 = vpop.f32.mrf.mxu0
        %v4699 = vadd.f32 %v4679, %v4698
        %4700 = vdwg.mxu0
        %4701 = vmatpush.msra.mxu0 %v741
        %4702 = vmatpush.msra.mxu0 %v737
        %4703 = vmatpush.msra.mxu0 %v733
        %4704 = vmatpush.msra.mxu0 %v729
        %4705 = vmatpush.msra.mxu0 %v725
        %4706 = vmatpush.msra.mxu0 %v721
        %4707 = vmatpush.msra.mxu0 %v717
        %4708 = vmatpush.msra.mxu0 %v713
        %4709 = vmatpush.msra.mxu0 %v709
        %4710 = vmatpush.msra.mxu0 %v705
        %4711 = vmatpush.msra.mxu0 %v701
        %4712 = vmatpush.msra.mxu0 %v697
        %4713 = vmatpush.msra.mxu0 %v693
        %4714 = vmatpush.msra.mxu0 %v689
        %4715 = vmatpush.msra.mxu0 %v685
        %4716 = vmatpush.msra.mxu0 %v681
        %4717 = vmatmul.f32.gmra.mxu0 %v392
        %v4718 = vpop.f32.mrf.mxu0
        %v4719 = vadd.f32 %v4699, %v4718
        %4720 = vdwg.mxu0
        %4721 = vmatpush.msra.mxu0 %v805
        %4722 = vmatpush.msra.mxu0 %v801
        %4723 = vmatpush.msra.mxu0 %v797
        %4724 = vmatpush.msra.mxu0 %v793
        %4725 = vmatpush.msra.mxu0 %v789
        %4726 = vmatpush.msra.mxu0 %v785
        %4727 = vmatpush.msra.mxu0 %v781
        %4728 = vmatpush.msra.mxu0 %v777
        %4729 = vmatpush.msra.mxu0 %v773
        %4730 = vmatpush.msra.mxu0 %v769
        %4731 = vmatpush.msra.mxu0 %v765
        %4732 = vmatpush.msra.mxu0 %v761
        %4733 = vmatpush.msra.mxu0 %v757
        %4734 = vmatpush.msra.mxu0 %v753
        %4735 = vmatpush.msra.mxu0 %v749
        %4736 = vmatpush.msra.mxu0 %v745
        %4737 = vmatmul.f32.gmra.mxu0 %v393
        %v4738 = vpop.f32.mrf.mxu0
        %v4739 = vadd.f32 %v4719, %v4738
        %4740 = vdwg.mxu0
        %4741 = vmatpush.msra.mxu0 %v869
        %4742 = vmatpush.msra.mxu0 %v865
        %4743 = vmatpush.msra.mxu0 %v861
        %4744 = vmatpush.msra.mxu0 %v857
        %4745 = vmatpush.msra.mxu0 %v853
        %4746 = vmatpush.msra.mxu0 %v849
        %4747 = vmatpush.msra.mxu0 %v845
        %4748 = vmatpush.msra.mxu0 %v841
        %4749 = vmatpush.msra.mxu0 %v837
        %4750 = vmatpush.msra.mxu0 %v833
        %4751 = vmatpush.msra.mxu0 %v829
        %4752 = vmatpush.msra.mxu0 %v825
        %4753 = vmatpush.msra.mxu0 %v821
        %4754 = vmatpush.msra.mxu0 %v817
        %4755 = vmatpush.msra.mxu0 %v813
        %4756 = vmatpush.msra.mxu0 %v809
        %4757 = vmatmul.f32.gmra.mxu0 %v394
        %v4758 = vpop.f32.mrf.mxu0
        %v4759 = vadd.f32 %v4739, %v4758
        %4760 = vdwg.mxu0
        %4761 = vmatpush.msra.mxu0 %v933
        %4762 = vmatpush.msra.mxu0 %v929
        %4763 = vmatpush.msra.mxu0 %v925
        %4764 = vmatpush.msra.mxu0 %v921
        %4765 = vmatpush.msra.mxu0 %v917
        %4766 = vmatpush.msra.mxu0 %v913
        %4767 = vmatpush.msra.mxu0 %v909
        %4768 = vmatpush.msra.mxu0 %v905
        %4769 = vmatpush.msra.mxu0 %v901
        %4770 = vmatpush.msra.mxu0 %v897
        %4771 = vmatpush.msra.mxu0 %v893
        %4772 = vmatpush.msra.mxu0 %v889
        %4773 = vmatpush.msra.mxu0 %v885
        %4774 = vmatpush.msra.mxu0 %v881
        %4775 = vmatpush.msra.mxu0 %v877
        %4776 = vmatpush.msra.mxu0 %v873
        %4777 = vmatmul.f32.gmra.mxu0 %v395
        %v4778 = vpop.f32.mrf.mxu0
        %v4779 = vadd.f32 %v4759, %v4778
        %4780 = vdwg.mxu0
        %4781 = vmatpush.msra.mxu0 %v997
        %4782 = vmatpush.msra.mxu0 %v993
        %4783 = vmatpush.msra.mxu0 %v989
        %4784 = vmatpush.msra.mxu0 %v985
        %4785 = vmatpush.msra.mxu0 %v981
        %4786 = vmatpush.msra.mxu0 %v977
        %4787 = vmatpush.msra.mxu0 %v973
        %4788 = vmatpush.msra.mxu0 %v969
        %4789 = vmatpush.msra.mxu0 %v965
        %4790 = vmatpush.msra.mxu0 %v961
        %4791 = vmatpush.msra.mxu0 %v957
        %4792 = vmatpush.msra.mxu0 %v953
        %4793 = vmatpush.msra.mxu0 %v949
        %4794 = vmatpush.msra.mxu0 %v945
        %4795 = vmatpush.msra.mxu0 %v941
        %4796 = vmatpush.msra.mxu0 %v937
        %4797 = vmatmul.f32.gmra.mxu0 %v396
        %v4798 = vpop.f32.mrf.mxu0
        %v4799 = vadd.f32 %v4779, %v4798
        %4800 = vdwg.mxu0
        %4801 = vmatpush.msra.mxu0 %v1061
        %4802 = vmatpush.msra.mxu0 %v1057
        %4803 = vmatpush.msra.mxu0 %v1053
        %4804 = vmatpush.msra.mxu0 %v1049
        %4805 = vmatpush.msra.mxu0 %v1045
        %4806 = vmatpush.msra.mxu0 %v1041
        %4807 = vmatpush.msra.mxu0 %v1037
        %4808 = vmatpush.msra.mxu0 %v1033
        %4809 = vmatpush.msra.mxu0 %v1029
        %4810 = vmatpush.msra.mxu0 %v1025
        %4811 = vmatpush.msra.mxu0 %v1021
        %4812 = vmatpush.msra.mxu0 %v1017
        %4813 = vmatpush.msra.mxu0 %v1013
        %4814 = vmatpush.msra.mxu0 %v1009
        %4815 = vmatpush.msra.mxu0 %v1005
        %4816 = vmatpush.msra.mxu0 %v1001
        %4817 = vmatmul.f32.gmra.mxu0 %v397
        %v4818 = vpop.f32.mrf.mxu0
        %v4819 = vadd.f32 %v4799, %v4818
        %4820 = vdwg.mxu0
        %4821 = vmatpush.msra.mxu0 %v1125
        %4822 = vmatpush.msra.mxu0 %v1121
        %4823 = vmatpush.msra.mxu0 %v1117
        %4824 = vmatpush.msra.mxu0 %v1113
        %4825 = vmatpush.msra.mxu0 %v1109
        %4826 = vmatpush.msra.mxu0 %v1105
        %4827 = vmatpush.msra.mxu0 %v1101
        %4828 = vmatpush.msra.mxu0 %v1097
        %4829 = vmatpush.msra.mxu0 %v1093
        %4830 = vmatpush.msra.mxu0 %v1089
        %4831 = vmatpush.msra.mxu0 %v1085
        %4832 = vmatpush.msra.mxu0 %v1081
        %4833 = vmatpush.msra.mxu0 %v1077
        %4834 = vmatpush.msra.mxu0 %v1073
        %4835 = vmatpush.msra.mxu0 %v1069
        %4836 = vmatpush.msra.mxu0 %v1065
        %4837 = vmatmul.f32.gmra.mxu0 %v398
        %v4838 = vpop.f32.mrf.mxu0
        %v4839 = vadd.f32 %v4819, %v4838
        %4840 = vdwg.mxu0
        %4841 = vmatpush.msra.mxu0 %v1189
        %4842 = vmatpush.msra.mxu0 %v1185
        %4843 = vmatpush.msra.mxu0 %v1181
        %4844 = vmatpush.msra.mxu0 %v1177
        %4845 = vmatpush.msra.mxu0 %v1173
        %4846 = vmatpush.msra.mxu0 %v1169
        %4847 = vmatpush.msra.mxu0 %v1165
        %4848 = vmatpush.msra.mxu0 %v1161
        %4849 = vmatpush.msra.mxu0 %v1157
        %4850 = vmatpush.msra.mxu0 %v1153
        %4851 = vmatpush.msra.mxu0 %v1149
        %4852 = vmatpush.msra.mxu0 %v1145
        %4853 = vmatpush.msra.mxu0 %v1141
        %4854 = vmatpush.msra.mxu0 %v1137
        %4855 = vmatpush.msra.mxu0 %v1133
        %4856 = vmatpush.msra.mxu0 %v1129
        %4857 = vmatmul.f32.gmra.mxu0 %v399
        %v4858 = vpop.f32.mrf.mxu0
        %v4859 = vadd.f32 %v4839, %v4858
        %4860 = vdwg.mxu0
        %4861 = vmatpush.msra.mxu0 %v1253
        %4862 = vmatpush.msra.mxu0 %v1249
        %4863 = vmatpush.msra.mxu0 %v1245
        %4864 = vmatpush.msra.mxu0 %v1241
        %4865 = vmatpush.msra.mxu0 %v1237
        %4866 = vmatpush.msra.mxu0 %v1233
        %4867 = vmatpush.msra.mxu0 %v1229
        %4868 = vmatpush.msra.mxu0 %v1225
        %4869 = vmatpush.msra.mxu0 %v1221
        %4870 = vmatpush.msra.mxu0 %v1217
        %4871 = vmatpush.msra.mxu0 %v1213
        %4872 = vmatpush.msra.mxu0 %v1209
        %4873 = vmatpush.msra.mxu0 %v1205
        %4874 = vmatpush.msra.mxu0 %v1201
        %4875 = vmatpush.msra.mxu0 %v1197
        %4876 = vmatpush.msra.mxu0 %v1193
        %4877 = vmatmul.f32.gmra.mxu0 %v400
        %v4878 = vpop.f32.mrf.mxu0
        %v4879 = vadd.f32 %v4859, %v4878
        %4880 = vdwg.mxu0
        %4881 = vmatpush.msra.mxu0 %v1317
        %4882 = vmatpush.msra.mxu0 %v1313
        %4883 = vmatpush.msra.mxu0 %v1309
        %4884 = vmatpush.msra.mxu0 %v1305
        %4885 = vmatpush.msra.mxu0 %v1301
        %4886 = vmatpush.msra.mxu0 %v1297
        %4887 = vmatpush.msra.mxu0 %v1293
        %4888 = vmatpush.msra.mxu0 %v1289
        %4889 = vmatpush.msra.mxu0 %v1285
        %4890 = vmatpush.msra.mxu0 %v1281
        %4891 = vmatpush.msra.mxu0 %v1277
        %4892 = vmatpush.msra.mxu0 %v1273
        %4893 = vmatpush.msra.mxu0 %v1269
        %4894 = vmatpush.msra.mxu0 %v1265
        %4895 = vmatpush.msra.mxu0 %v1261
        %4896 = vmatpush.msra.mxu0 %v1257
        %4897 = vmatmul.f32.gmra.mxu0 %v401
        %v4898 = vpop.f32.mrf.mxu0
        %v4899 = vadd.f32 %v4879, %v4898
        %4900 = vdwg.mxu0
        %4901 = vmatpush.msra.mxu0 %v1381
        %4902 = vmatpush.msra.mxu0 %v1377
        %4903 = vmatpush.msra.mxu0 %v1373
        %4904 = vmatpush.msra.mxu0 %v1369
        %4905 = vmatpush.msra.mxu0 %v1365
        %4906 = vmatpush.msra.mxu0 %v1361
        %4907 = vmatpush.msra.mxu0 %v1357
        %4908 = vmatpush.msra.mxu0 %v1353
        %4909 = vmatpush.msra.mxu0 %v1349
        %4910 = vmatpush.msra.mxu0 %v1345
        %4911 = vmatpush.msra.mxu0 %v1341
        %4912 = vmatpush.msra.mxu0 %v1337
        %4913 = vmatpush.msra.mxu0 %v1333
        %4914 = vmatpush.msra.mxu0 %v1329
        %4915 = vmatpush.msra.mxu0 %v1325
        %4916 = vmatpush.msra.mxu0 %v1321
        %4917 = vmatmul.f32.gmra.mxu0 %v402
        %v4918 = vpop.f32.mrf.mxu0
        %v4919 = vadd.f32 %v4899, %v4918
        %4920 = vdwg.mxu0
        %4921 = vmatpush.msra.mxu0 %v1445
        %4922 = vmatpush.msra.mxu0 %v1441
        %4923 = vmatpush.msra.mxu0 %v1437
        %4924 = vmatpush.msra.mxu0 %v1433
        %4925 = vmatpush.msra.mxu0 %v1429
        %4926 = vmatpush.msra.mxu0 %v1425
        %4927 = vmatpush.msra.mxu0 %v1421
        %4928 = vmatpush.msra.mxu0 %v1417
        %4929 = vmatpush.msra.mxu0 %v1413
        %4930 = vmatpush.msra.mxu0 %v1409
        %4931 = vmatpush.msra.mxu0 %v1405
        %4932 = vmatpush.msra.mxu0 %v1401
        %4933 = vmatpush.msra.mxu0 %v1397
        %4934 = vmatpush.msra.mxu0 %v1393
        %4935 = vmatpush.msra.mxu0 %v1389
        %4936 = vmatpush.msra.mxu0 %v1385
        %4937 = vmatmul.f32.gmra.mxu0 %v403
        %v4938 = vpop.f32.mrf.mxu0
        %v4939 = vadd.f32 %v4919, %v4938
        %4940 = vdwg.mxu0
        %4941 = vmatpush.msra.mxu0 %v1509
        %4942 = vmatpush.msra.mxu0 %v1505
        %4943 = vmatpush.msra.mxu0 %v1501
        %4944 = vmatpush.msra.mxu0 %v1497
        %4945 = vmatpush.msra.mxu0 %v1493
        %4946 = vmatpush.msra.mxu0 %v1489
        %4947 = vmatpush.msra.mxu0 %v1485
        %4948 = vmatpush.msra.mxu0 %v1481
        %4949 = vmatpush.msra.mxu0 %v1477
        %4950 = vmatpush.msra.mxu0 %v1473
        %4951 = vmatpush.msra.mxu0 %v1469
        %4952 = vmatpush.msra.mxu0 %v1465
        %4953 = vmatpush.msra.mxu0 %v1461
        %4954 = vmatpush.msra.mxu0 %v1457
        %4955 = vmatpush.msra.mxu0 %v1453
        %4956 = vmatpush.msra.mxu0 %v1449
        %4957 = vmatmul.f32.gmra.mxu0 %v404
        %v4958 = vpop.f32.mrf.mxu0
        %v4959 = vadd.f32 %v4939, %v4958
        %4960 = vdwg.mxu0
        %4961 = vmatpush.msra.mxu0 %v1573
        %4962 = vmatpush.msra.mxu0 %v1569
        %4963 = vmatpush.msra.mxu0 %v1565
        %4964 = vmatpush.msra.mxu0 %v1561
        %4965 = vmatpush.msra.mxu0 %v1557
        %4966 = vmatpush.msra.mxu0 %v1553
        %4967 = vmatpush.msra.mxu0 %v1549
        %4968 = vmatpush.msra.mxu0 %v1545
        %4969 = vmatpush.msra.mxu0 %v1541
        %4970 = vmatpush.msra.mxu0 %v1537
        %4971 = vmatpush.msra.mxu0 %v1533
        %4972 = vmatpush.msra.mxu0 %v1529
        %4973 = vmatpush.msra.mxu0 %v1525
        %4974 = vmatpush.msra.mxu0 %v1521
        %4975 = vmatpush.msra.mxu0 %v1517
        %4976 = vmatpush.msra.mxu0 %v1513
        %4977 = vmatmul.f32.gmra.mxu0 %v405
        %v4978 = vpop.f32.mrf.mxu0
        %v4979 = vadd.f32 %v4959, %v4978
        %4980 = vdwg.mxu0
        %4981 = vmatpush.msra.mxu0 %v1637
        %4982 = vmatpush.msra.mxu0 %v1633
        %4983 = vmatpush.msra.mxu0 %v1629
        %4984 = vmatpush.msra.mxu0 %v1625
        %4985 = vmatpush.msra.mxu0 %v1621
        %4986 = vmatpush.msra.mxu0 %v1617
        %4987 = vmatpush.msra.mxu0 %v1613
        %4988 = vmatpush.msra.mxu0 %v1609
        %4989 = vmatpush.msra.mxu0 %v1605
        %4990 = vmatpush.msra.mxu0 %v1601
        %4991 = vmatpush.msra.mxu0 %v1597
        %4992 = vmatpush.msra.mxu0 %v1593
        %4993 = vmatpush.msra.mxu0 %v1589
        %4994 = vmatpush.msra.mxu0 %v1585
        %4995 = vmatpush.msra.mxu0 %v1581
        %4996 = vmatpush.msra.mxu0 %v1577
        %4997 = vmatmul.f32.gmra.mxu0 %v406
        %v4998 = vpop.f32.mrf.mxu0
        %v4999 = vadd.f32 %v4979, %v4998
        %5000 = vdwg.mxu0
        %5001 = vmatpush.msra.mxu0 %v1701
        %5002 = vmatpush.msra.mxu0 %v1697
        %5003 = vmatpush.msra.mxu0 %v1693
        %5004 = vmatpush.msra.mxu0 %v1689
        %5005 = vmatpush.msra.mxu0 %v1685
        %5006 = vmatpush.msra.mxu0 %v1681
        %5007 = vmatpush.msra.mxu0 %v1677
        %5008 = vmatpush.msra.mxu0 %v1673
        %5009 = vmatpush.msra.mxu0 %v1669
        %5010 = vmatpush.msra.mxu0 %v1665
        %5011 = vmatpush.msra.mxu0 %v1661
        %5012 = vmatpush.msra.mxu0 %v1657
        %5013 = vmatpush.msra.mxu0 %v1653
        %5014 = vmatpush.msra.mxu0 %v1649
        %5015 = vmatpush.msra.mxu0 %v1645
        %5016 = vmatpush.msra.mxu0 %v1641
        %5017 = vmatmul.f32.gmra.mxu0 %v407
        %v5018 = vpop.f32.mrf.mxu0
        %v5019 = vadd.f32 %v4999, %v5018
        %5020 = vdwg.mxu0
        %5021 = vmatpush.msra.mxu0 %v1765
        %5022 = vmatpush.msra.mxu0 %v1761
        %5023 = vmatpush.msra.mxu0 %v1757
        %5024 = vmatpush.msra.mxu0 %v1753
        %5025 = vmatpush.msra.mxu0 %v1749
        %5026 = vmatpush.msra.mxu0 %v1745
        %5027 = vmatpush.msra.mxu0 %v1741
        %5028 = vmatpush.msra.mxu0 %v1737
        %5029 = vmatpush.msra.mxu0 %v1733
        %5030 = vmatpush.msra.mxu0 %v1729
        %5031 = vmatpush.msra.mxu0 %v1725
        %5032 = vmatpush.msra.mxu0 %v1721
        %5033 = vmatpush.msra.mxu0 %v1717
        %5034 = vmatpush.msra.mxu0 %v1713
        %5035 = vmatpush.msra.mxu0 %v1709
        %5036 = vmatpush.msra.mxu0 %v1705
        %5037 = vmatmul.f32.gmra.mxu0 %v408
        %v5038 = vpop.f32.mrf.mxu0
        %v5039 = vadd.f32 %v5019, %v5038
        %5040 = vdwg.mxu0
        %5041 = vmatpush.msra.mxu0 %v1829
        %5042 = vmatpush.msra.mxu0 %v1825
        %5043 = vmatpush.msra.mxu0 %v1821
        %5044 = vmatpush.msra.mxu0 %v1817
        %5045 = vmatpush.msra.mxu0 %v1813
        %5046 = vmatpush.msra.mxu0 %v1809
        %5047 = vmatpush.msra.mxu0 %v1805
        %5048 = vmatpush.msra.mxu0 %v1801
        %5049 = vmatpush.msra.mxu0 %v1797
        %5050 = vmatpush.msra.mxu0 %v1793
        %5051 = vmatpush.msra.mxu0 %v1789
        %5052 = vmatpush.msra.mxu0 %v1785
        %5053 = vmatpush.msra.mxu0 %v1781
        %5054 = vmatpush.msra.mxu0 %v1777
        %5055 = vmatpush.msra.mxu0 %v1773
        %5056 = vmatpush.msra.mxu0 %v1769
        %5057 = vmatmul.f32.gmra.mxu0 %v409
        %v5058 = vpop.f32.mrf.mxu0
        %v5059 = vadd.f32 %v5039, %v5058
        %5060 = vdwg.mxu0
        %5061 = vmatpush.msra.mxu0 %v1893
        %5062 = vmatpush.msra.mxu0 %v1889
        %5063 = vmatpush.msra.mxu0 %v1885
        %5064 = vmatpush.msra.mxu0 %v1881
        %5065 = vmatpush.msra.mxu0 %v1877
        %5066 = vmatpush.msra.mxu0 %v1873
        %5067 = vmatpush.msra.mxu0 %v1869
        %5068 = vmatpush.msra.mxu0 %v1865
        %5069 = vmatpush.msra.mxu0 %v1861
        %5070 = vmatpush.msra.mxu0 %v1857
        %5071 = vmatpush.msra.mxu0 %v1853
        %5072 = vmatpush.msra.mxu0 %v1849
        %5073 = vmatpush.msra.mxu0 %v1845
        %5074 = vmatpush.msra.mxu0 %v1841
        %5075 = vmatpush.msra.mxu0 %v1837
        %5076 = vmatpush.msra.mxu0 %v1833
        %5077 = vmatmul.f32.gmra.mxu0 %v410
        %v5078 = vpop.f32.mrf.mxu0
        %v5079 = vadd.f32 %v5059, %v5078
        %5080 = vdwg.mxu0
        %5081 = vmatpush.msra.mxu0 %v1957
        %5082 = vmatpush.msra.mxu0 %v1953
        %5083 = vmatpush.msra.mxu0 %v1949
        %5084 = vmatpush.msra.mxu0 %v1945
        %5085 = vmatpush.msra.mxu0 %v1941
        %5086 = vmatpush.msra.mxu0 %v1937
        %5087 = vmatpush.msra.mxu0 %v1933
        %5088 = vmatpush.msra.mxu0 %v1929
        %5089 = vmatpush.msra.mxu0 %v1925
        %5090 = vmatpush.msra.mxu0 %v1921
        %5091 = vmatpush.msra.mxu0 %v1917
        %5092 = vmatpush.msra.mxu0 %v1913
        %5093 = vmatpush.msra.mxu0 %v1909
        %5094 = vmatpush.msra.mxu0 %v1905
        %5095 = vmatpush.msra.mxu0 %v1901
        %5096 = vmatpush.msra.mxu0 %v1897
        %5097 = vmatmul.f32.gmra.mxu0 %v411
        %v5098 = vpop.f32.mrf.mxu0
        %v5099 = vadd.f32 %v5079, %v5098
        %5100 = vdwg.mxu0
        %5101 = vmatpush.msra.mxu0 %v2021
        %5102 = vmatpush.msra.mxu0 %v2017
        %5103 = vmatpush.msra.mxu0 %v2013
        %5104 = vmatpush.msra.mxu0 %v2009
        %5105 = vmatpush.msra.mxu0 %v2005
        %5106 = vmatpush.msra.mxu0 %v2001
        %5107 = vmatpush.msra.mxu0 %v1997
        %5108 = vmatpush.msra.mxu0 %v1993
        %5109 = vmatpush.msra.mxu0 %v1989
        %5110 = vmatpush.msra.mxu0 %v1985
        %5111 = vmatpush.msra.mxu0 %v1981
        %5112 = vmatpush.msra.mxu0 %v1977
        %5113 = vmatpush.msra.mxu0 %v1973
        %5114 = vmatpush.msra.mxu0 %v1969
        %5115 = vmatpush.msra.mxu0 %v1965
        %5116 = vmatpush.msra.mxu0 %v1961
        %5117 = vmatmul.f32.gmra.mxu0 %v412
        %v5118 = vpop.f32.mrf.mxu0
        %v5119 = vadd.f32 %v5099, %v5118
        %5120 = vdwg.mxu0
        %5121 = vmatpush.msra.mxu0 %v2085
        %5122 = vmatpush.msra.mxu0 %v2081
        %5123 = vmatpush.msra.mxu0 %v2077
        %5124 = vmatpush.msra.mxu0 %v2073
        %5125 = vmatpush.msra.mxu0 %v2069
        %5126 = vmatpush.msra.mxu0 %v2065
        %5127 = vmatpush.msra.mxu0 %v2061
        %5128 = vmatpush.msra.mxu0 %v2057
        %5129 = vmatpush.msra.mxu0 %v2053
        %5130 = vmatpush.msra.mxu0 %v2049
        %5131 = vmatpush.msra.mxu0 %v2045
        %5132 = vmatpush.msra.mxu0 %v2041
        %5133 = vmatpush.msra.mxu0 %v2037
        %5134 = vmatpush.msra.mxu0 %v2033
        %5135 = vmatpush.msra.mxu0 %v2029
        %5136 = vmatpush.msra.mxu0 %v2025
        %5137 = vmatmul.f32.gmra.mxu0 %v413
        %v5138 = vpop.f32.mrf.mxu0
        %v5139 = vadd.f32 %v5119, %v5138
        %5140 = vdwg.mxu0
        %5141 = vmatpush.msra.mxu0 %v2149
        %5142 = vmatpush.msra.mxu0 %v2145
        %5143 = vmatpush.msra.mxu0 %v2141
        %5144 = vmatpush.msra.mxu0 %v2137
        %5145 = vmatpush.msra.mxu0 %v2133
        %5146 = vmatpush.msra.mxu0 %v2129
        %5147 = vmatpush.msra.mxu0 %v2125
        %5148 = vmatpush.msra.mxu0 %v2121
        %5149 = vmatpush.msra.mxu0 %v2117
        %5150 = vmatpush.msra.mxu0 %v2113
        %5151 = vmatpush.msra.mxu0 %v2109
        %5152 = vmatpush.msra.mxu0 %v2105
        %5153 = vmatpush.msra.mxu0 %v2101
        %5154 = vmatpush.msra.mxu0 %v2097
        %5155 = vmatpush.msra.mxu0 %v2093
        %5156 = vmatpush.msra.mxu0 %v2089
        %5157 = vmatmul.f32.gmra.mxu0 %v414
        %v5158 = vpop.f32.mrf.mxu0
        %v5159 = vadd.f32 %v5139, %v5158
        %5160 = vdwg.mxu0
        %5161 = vmatpush.msra.mxu0 %v2213
        %5162 = vmatpush.msra.mxu0 %v2209
        %5163 = vmatpush.msra.mxu0 %v2205
        %5164 = vmatpush.msra.mxu0 %v2201
        %5165 = vmatpush.msra.mxu0 %v2197
        %5166 = vmatpush.msra.mxu0 %v2193
        %5167 = vmatpush.msra.mxu0 %v2189
        %5168 = vmatpush.msra.mxu0 %v2185
        %5169 = vmatpush.msra.mxu0 %v2181
        %5170 = vmatpush.msra.mxu0 %v2177
        %5171 = vmatpush.msra.mxu0 %v2173
        %5172 = vmatpush.msra.mxu0 %v2169
        %5173 = vmatpush.msra.mxu0 %v2165
        %5174 = vmatpush.msra.mxu0 %v2161
        %5175 = vmatpush.msra.mxu0 %v2157
        %5176 = vmatpush.msra.mxu0 %v2153
        %5177 = vmatmul.f32.gmra.mxu0 %v415
        %v5178 = vpop.f32.mrf.mxu0
        %v5179 = vadd.f32 %v5159, %v5178
        %5180 = vdwg.mxu0
        %5181 = vmatpush.msra.mxu0 %v2277
        %5182 = vmatpush.msra.mxu0 %v2273
        %5183 = vmatpush.msra.mxu0 %v2269
        %5184 = vmatpush.msra.mxu0 %v2265
        %5185 = vmatpush.msra.mxu0 %v2261
        %5186 = vmatpush.msra.mxu0 %v2257
        %5187 = vmatpush.msra.mxu0 %v2253
        %5188 = vmatpush.msra.mxu0 %v2249
        %5189 = vmatpush.msra.mxu0 %v2245
        %5190 = vmatpush.msra.mxu0 %v2241
        %5191 = vmatpush.msra.mxu0 %v2237
        %5192 = vmatpush.msra.mxu0 %v2233
        %5193 = vmatpush.msra.mxu0 %v2229
        %5194 = vmatpush.msra.mxu0 %v2225
        %5195 = vmatpush.msra.mxu0 %v2221
        %5196 = vmatpush.msra.mxu0 %v2217
        %5197 = vmatmul.f32.gmra.mxu0 %v416
        %v5198 = vpop.f32.mrf.mxu0
        %v5199 = vadd.f32 %v5179, %v5198
        %5200 = vdwg.mxu0
        %5201 = vmatpush.msra.mxu0 %v2341
        %5202 = vmatpush.msra.mxu0 %v2337
        %5203 = vmatpush.msra.mxu0 %v2333
        %5204 = vmatpush.msra.mxu0 %v2329
        %5205 = vmatpush.msra.mxu0 %v2325
        %5206 = vmatpush.msra.mxu0 %v2321
        %5207 = vmatpush.msra.mxu0 %v2317
        %5208 = vmatpush.msra.mxu0 %v2313
        %5209 = vmatpush.msra.mxu0 %v2309
        %5210 = vmatpush.msra.mxu0 %v2305
        %5211 = vmatpush.msra.mxu0 %v2301
        %5212 = vmatpush.msra.mxu0 %v2297
        %5213 = vmatpush.msra.mxu0 %v2293
        %5214 = vmatpush.msra.mxu0 %v2289
        %5215 = vmatpush.msra.mxu0 %v2285
        %5216 = vmatpush.msra.mxu0 %v2281
        %5217 = vmatmul.f32.gmra.mxu0 %v417
        %v5218 = vpop.f32.mrf.mxu0
        %v5219 = vadd.f32 %v5199, %v5218
        %5220 = vdwg.mxu0
        %5221 = vmatpush.msra.mxu0 %v2405
        %5222 = vmatpush.msra.mxu0 %v2401
        %5223 = vmatpush.msra.mxu0 %v2397
        %5224 = vmatpush.msra.mxu0 %v2393
        %5225 = vmatpush.msra.mxu0 %v2389
        %5226 = vmatpush.msra.mxu0 %v2385
        %5227 = vmatpush.msra.mxu0 %v2381
        %5228 = vmatpush.msra.mxu0 %v2377
        %5229 = vmatpush.msra.mxu0 %v2373
        %5230 = vmatpush.msra.mxu0 %v2369
        %5231 = vmatpush.msra.mxu0 %v2365
        %5232 = vmatpush.msra.mxu0 %v2361
        %5233 = vmatpush.msra.mxu0 %v2357
        %5234 = vmatpush.msra.mxu0 %v2353
        %5235 = vmatpush.msra.mxu0 %v2349
        %5236 = vmatpush.msra.mxu0 %v2345
        %5237 = vmatmul.f32.gmra.mxu0 %v418
        %v5238 = vpop.f32.mrf.mxu0
        %v5239 = vadd.f32 %v5219, %v5238
        %5240 = vdwg.mxu0
        %5241 = vmatpush.msra.mxu0 %v2469
        %5242 = vmatpush.msra.mxu0 %v2465
        %5243 = vmatpush.msra.mxu0 %v2461
        %5244 = vmatpush.msra.mxu0 %v2457
        %5245 = vmatpush.msra.mxu0 %v2453
        %5246 = vmatpush.msra.mxu0 %v2449
        %5247 = vmatpush.msra.mxu0 %v2445
        %5248 = vmatpush.msra.mxu0 %v2441
        %5249 = vmatpush.msra.mxu0 %v2437
        %5250 = vmatpush.msra.mxu0 %v2433
        %5251 = vmatpush.msra.mxu0 %v2429
        %5252 = vmatpush.msra.mxu0 %v2425
        %5253 = vmatpush.msra.mxu0 %v2421
        %5254 = vmatpush.msra.mxu0 %v2417
        %5255 = vmatpush.msra.mxu0 %v2413
        %5256 = vmatpush.msra.mxu0 %v2409
        %5257 = vmatmul.f32.gmra.mxu0 %v419
        %v5258 = vpop.f32.mrf.mxu0
        %v5259 = vadd.f32 %v5239, %v5258
        %5260 = vdwg.mxu0
        %5261 = vmatpush.msra.mxu0 %v2533
        %5262 = vmatpush.msra.mxu0 %v2529
        %5263 = vmatpush.msra.mxu0 %v2525
        %5264 = vmatpush.msra.mxu0 %v2521
        %5265 = vmatpush.msra.mxu0 %v2517
        %5266 = vmatpush.msra.mxu0 %v2513
        %5267 = vmatpush.msra.mxu0 %v2509
        %5268 = vmatpush.msra.mxu0 %v2505
        %5269 = vmatpush.msra.mxu0 %v2501
        %5270 = vmatpush.msra.mxu0 %v2497
        %5271 = vmatpush.msra.mxu0 %v2493
        %5272 = vmatpush.msra.mxu0 %v2489
        %5273 = vmatpush.msra.mxu0 %v2485
        %5274 = vmatpush.msra.mxu0 %v2481
        %5275 = vmatpush.msra.mxu0 %v2477
        %5276 = vmatpush.msra.mxu0 %v2473
        %5277 = vmatmul.f32.gmra.mxu0 %v420
        %v5278 = vpop.f32.mrf.mxu0
        %v5279 = vadd.f32 %v5259, %v5278
        %5280 = vdwg.mxu0
        %5281 = vmatpush.msra.mxu0 0.0
        %5282 = vmatpush.msra.mxu0 0.0
        %5283 = vmatpush.msra.mxu0 0.0
        %5284 = vmatpush.msra.mxu0 0.0
        %5285 = vmatpush.msra.mxu0 0.0
        %5286 = vmatpush.msra.mxu0 0.0
        %5287 = vmatpush.msra.mxu0 0.0
        %5288 = vmatpush.msra.mxu0 0.0
        %5289 = vmatpush.msra.mxu0 0.0
        %5290 = vmatpush.msra.mxu0 0.0
        %5291 = vmatpush.msra.mxu0 0.0
        %5292 = vmatpush.msra.mxu0 %v2579
        %5293 = vmatpush.msra.mxu0 %v2549
        %5294 = vmatpush.msra.mxu0 %v2545
        %5295 = vmatpush.msra.mxu0 %v2541
        %5296 = vmatpush.msra.mxu0 %v2537
        %5297 = vmatmul.f32.gmra.mxu0 %v2566
        %v5298 = vpop.f32.mrf.mxu0
        %v5299 = vadd.f32 %v5279, %v5298
        %5300 = vdwg.mxu0
        %v5301 = vmax.f32 %v3259, 0.0
        %v5302 = vmax.f32 %v3939, 0.0
        %v5303 = vmax.f32 %v4619, 0.0
        %v5304 = vmax.f32 %v5299, 0.0
        %v5305 = vld [vmem:[#allocation8] sm:$0xff]
        %v5306 = vld [vmem:[#allocation8 + $0x8] sm:$0xff]
        %v5307 = vld [vmem:[#allocation8 + $0x10] sm:$0xff]
        %v5308 = vld [vmem:[#allocation8 + $0x18] sm:$0xff]
        %v5309 = vld [vmem:[#allocation8 + $0x20] sm:$0xff]
        %v5310 = vld [vmem:[#allocation8 + $0x28] sm:$0xff]
        %v5311 = vld [vmem:[#allocation8 + $0x30] sm:$0xff]
        %v5312 = vld [vmem:[#allocation8 + $0x38] sm:$0xff]
        %v5313 = vld [vmem:[#allocation8 + $0x40] sm:$0xff]
        %v5314 = vld [vmem:[#allocation8 + $0x48] sm:$0xff]
        %v5315 = vld [vmem:[#allocation8 + $0x50] sm:$0xff]
        %v5316 = vld [vmem:[#allocation8 + $0x58] sm:$0xff]
        %v5317 = vld [vmem:[#allocation8 + $0x60] sm:$0xff]
        %v5318 = vld [vmem:[#allocation8 + $0x68] sm:$0xff]
        %v5319 = vld [vmem:[#allocation8 + $0x70] sm:$0xff]
        %v5320 = vld [vmem:[#allocation8 + $0x78] sm:$0xff]
        %v5321 = vld [vmem:[#allocation8 + $0x80] sm:$0xff]
        %v5322 = vld [vmem:[#allocation8 + $0x88] sm:$0xff]
        %v5323 = vld [vmem:[#allocation8 + $0x90] sm:$0xff]
        %v5324 = vld [vmem:[#allocation8 + $0x98] sm:$0xff]
        %v5325 = vld [vmem:[#allocation8 + $0xa0] sm:$0xff]
        %v5326 = vld [vmem:[#allocation8 + $0xa8] sm:$0xff]
        %v5327 = vld [vmem:[#allocation8 + $0xb0] sm:$0xff]
        %v5328 = vld [vmem:[#allocation8 + $0xb8] sm:$0xff]
        %v5329 = vld [vmem:[#allocation8 + $0xc0] sm:$0xff]
        %v5330 = vld [vmem:[#allocation8 + $0xc8] sm:$0xff]
        %v5331 = vld [vmem:[#allocation8 + $0xd0] sm:$0xff]
        %v5332 = vld [vmem:[#allocation8 + $0xd8] sm:$0xff]
        %v5333 = vld [vmem:[#allocation8 + $0xe0] sm:$0xff]
        %v5334 = vld [vmem:[#allocation8 + $0xe8] sm:$0xff]
        %v5335 = vld [vmem:[#allocation8 + $0xf0] sm:$0xff]
        %v5336 = vld [vmem:[#allocation8 + $0xf8] sm:$0xff]
        %v5337 = vld [vmem:[#allocation8 + $0x100] sm:$0xff]
        %v5338 = vld [vmem:[#allocation8 + $0x108] sm:$0xff]
        %v5339 = vld [vmem:[#allocation8 + $0x110] sm:$0xff]
        %v5340 = vld [vmem:[#allocation8 + $0x118] sm:$0xff]
        %v5341 = vld [vmem:[#allocation8 + $0x120] sm:$0xff]
        %v5342 = vld [vmem:[#allocation8 + $0x128] sm:$0xff]
        %v5343 = vld [vmem:[#allocation8 + $0x130] sm:$0xff]
        %v5344 = vld [vmem:[#allocation8 + $0x138] sm:$0xff]
        %v5345 = vld [vmem:[#allocation8 + $0x140] sm:$0xff]
        %v5346 = vld [vmem:[#allocation8 + $0x148] sm:$0xff]
        %v5347 = vld [vmem:[#allocation8 + $0x150] sm:$0xff]
        %v5348 = vld [vmem:[#allocation8 + $0x158] sm:$0xff]
        %v5349 = vld [vmem:[#allocation8 + $0x160] sm:$0xff]
        %v5350 = vld [vmem:[#allocation8 + $0x168] sm:$0xff]
        %v5351 = vld [vmem:[#allocation8 + $0x170] sm:$0xff]
        %v5352 = vld [vmem:[#allocation8 + $0x178] sm:$0xff]
        %v5353 = vld [vmem:[#allocation8 + $0x180] sm:$0xff]
        %v5354 = vld [vmem:[#allocation8 + $0x188] sm:$0xff]
        %v5355 = vld [vmem:[#allocation8 + $0x190] sm:$0xff]
        %v5356 = vld [vmem:[#allocation8 + $0x198] sm:$0xff]
        %v5357 = vld [vmem:[#allocation8 + $0x1a0] sm:$0xff]
        %v5358 = vld [vmem:[#allocation8 + $0x1a8] sm:$0xff]
        %v5359 = vld [vmem:[#allocation8 + $0x1b0] sm:$0xff]
        %v5360 = vld [vmem:[#allocation8 + $0x1b8] sm:$0xff]
        %v5361 = vld [vmem:[#allocation8 + $0x1c0] sm:$0xff]
        %v5362 = vld [vmem:[#allocation8 + $0x1c8] sm:$0xff]
        %v5363 = vld [vmem:[#allocation8 + $0x1d0] sm:$0xff]
        %v5364 = vld [vmem:[#allocation8 + $0x1d8] sm:$0xff]
        %v5365 = vld [vmem:[#allocation8 + $0x1e0] sm:$0xff]
        %v5366 = vld [vmem:[#allocation8 + $0x1e8] sm:$0xff]
        %v5367 = vld [vmem:[#allocation8 + $0x1f0] sm:$0xff]
        %v5368 = vld [vmem:[#allocation8 + $0x1f8] sm:$0xff]
        %v5369 = vld [vmem:[#allocation8 + $0x200] sm:$0xff]
        %v5370 = vld [vmem:[#allocation8 + $0x208] sm:$0xff]
        %v5371 = vld [vmem:[#allocation8 + $0x210] sm:$0xff]
        %v5372 = vld [vmem:[#allocation8 + $0x218] sm:$0xff]
        %v5373 = vld [vmem:[#allocation8 + $0x220] sm:$0xff]
        %v5374 = vld [vmem:[#allocation8 + $0x228] sm:$0xff]
        %v5375 = vld [vmem:[#allocation8 + $0x230] sm:$0xff]
        %v5376 = vld [vmem:[#allocation8 + $0x238] sm:$0xff]
        %v5377 = vld [vmem:[#allocation8 + $0x240] sm:$0xff]
        %v5378 = vld [vmem:[#allocation8 + $0x248] sm:$0xff]
        %v5379 = vld [vmem:[#allocation8 + $0x250] sm:$0xff]
        %v5380 = vld [vmem:[#allocation8 + $0x258] sm:$0xff]
        %v5381 = vld [vmem:[#allocation8 + $0x260] sm:$0xff]
        %v5382 = vld [vmem:[#allocation8 + $0x268] sm:$0xff]
        %v5383 = vld [vmem:[#allocation8 + $0x270] sm:$0xff]
        %v5384 = vld [vmem:[#allocation8 + $0x278] sm:$0xff]
        %v5385 = vld [vmem:[#allocation8 + $0x280] sm:$0xff]
        %v5386 = vld [vmem:[#allocation8 + $0x288] sm:$0xff]
        %v5387 = vld [vmem:[#allocation8 + $0x290] sm:$0xff]
        %v5388 = vld [vmem:[#allocation8 + $0x298] sm:$0xff]
        %v5389 = vld [vmem:[#allocation8 + $0x2a0] sm:$0xff]
        %v5390 = vld [vmem:[#allocation8 + $0x2a8] sm:$0xff]
        %v5391 = vld [vmem:[#allocation8 + $0x2b0] sm:$0xff]
        %v5392 = vld [vmem:[#allocation8 + $0x2b8] sm:$0xff]
        %v5393 = vld [vmem:[#allocation8 + $0x2c0] sm:$0xff]
        %v5394 = vld [vmem:[#allocation8 + $0x2c8] sm:$0xff]
        %v5395 = vld [vmem:[#allocation8 + $0x2d0] sm:$0xff]
        %v5396 = vld [vmem:[#allocation8 + $0x2d8] sm:$0xff]
        %v5397 = vld [vmem:[#allocation8 + $0x2e0] sm:$0xff]
        %v5398 = vld [vmem:[#allocation8 + $0x2e8] sm:$0xff]
        %v5399 = vld [vmem:[#allocation8 + $0x2f0] sm:$0xff]
        %v5400 = vld [vmem:[#allocation8 + $0x2f8] sm:$0xff]
        %v5401 = vld [vmem:[#allocation8 + $0x300] sm:$0xff]
        %v5402 = vld [vmem:[#allocation8 + $0x308] sm:$0xff]
        %v5403 = vld [vmem:[#allocation8 + $0x310] sm:$0xff]
        %v5404 = vld [vmem:[#allocation8 + $0x318] sm:$0xff]
        %v5405 = vld [vmem:[#allocation8 + $0x320] sm:$0xff]
        %v5406 = vld [vmem:[#allocation8 + $0x328] sm:$0xff]
        %v5407 = vld [vmem:[#allocation8 + $0x330] sm:$0xff]
        %v5408 = vld [vmem:[#allocation8 + $0x338] sm:$0xff]
        %v5409 = vld [vmem:[#allocation8 + $0x340] sm:$0xff]
        %v5410 = vld [vmem:[#allocation8 + $0x348] sm:$0xff]
        %v5411 = vld [vmem:[#allocation8 + $0x350] sm:$0xff]
        %v5412 = vld [vmem:[#allocation8 + $0x358] sm:$0xff]
        %v5413 = vld [vmem:[#allocation8 + $0x360] sm:$0xff]
        %v5414 = vld [vmem:[#allocation8 + $0x368] sm:$0xff]
        %v5415 = vld [vmem:[#allocation8 + $0x370] sm:$0xff]
        %v5416 = vld [vmem:[#allocation8 + $0x378] sm:$0xff]
        %v5417 = vld [vmem:[#allocation8 + $0x380] sm:$0xff]
        %v5418 = vld [vmem:[#allocation8 + $0x388] sm:$0xff]
        %v5419 = vld [vmem:[#allocation8 + $0x390] sm:$0xff]
        %v5420 = vld [vmem:[#allocation8 + $0x398] sm:$0xff]
        %v5421 = vld [vmem:[#allocation8 + $0x3a0] sm:$0xff]
        %v5422 = vld [vmem:[#allocation8 + $0x3a8] sm:$0xff]
        %v5423 = vld [vmem:[#allocation8 + $0x3b0] sm:$0xff]
        %v5424 = vld [vmem:[#allocation8 + $0x3b8] sm:$0xff]
        %v5425 = vld [vmem:[#allocation8 + $0x3c0] sm:$0xff]
        %v5426 = vld [vmem:[#allocation8 + $0x3c8] sm:$0xff]
        %v5427 = vld [vmem:[#allocation8 + $0x3d0] sm:$0xff]
        %v5428 = vld [vmem:[#allocation8 + $0x3d8] sm:$0xff]
        %v5429 = vld [vmem:[#allocation8 + $0x3e0] sm:$0xff]
        %v5430 = vld [vmem:[#allocation8 + $0x3e8] sm:$0xff]
        %v5431 = vld [vmem:[#allocation8 + $0x3f0] sm:$0xff]
        %v5432 = vld [vmem:[#allocation8 + $0x3f8] sm:$0xff]
        %v5433 = vld [vmem:[#allocation8 + $0x400] sm:$0xff]
        %v5434 = vld [vmem:[#allocation8 + $0x408] sm:$0xff]
        %v5435 = vld [vmem:[#allocation8 + $0x410] sm:$0xff]
        %v5436 = vld [vmem:[#allocation8 + $0x418] sm:$0xff]
        %v5437 = vld [vmem:[#allocation8 + $0x420] sm:$0xff]
        %v5438 = vld [vmem:[#allocation8 + $0x428] sm:$0xff]
        %v5439 = vld [vmem:[#allocation8 + $0x430] sm:$0xff]
        %v5440 = vld [vmem:[#allocation8 + $0x438] sm:$0xff]
        %v5441 = vld [vmem:[#allocation8 + $0x440] sm:$0xff]
        %v5442 = vld [vmem:[#allocation8 + $0x448] sm:$0xff]
        %v5443 = vld [vmem:[#allocation8 + $0x450] sm:$0xff]
        %v5444 = vld [vmem:[#allocation8 + $0x458] sm:$0xff]
        %v5445 = vld [vmem:[#allocation8 + $0x460] sm:$0xff]
        %v5446 = vld [vmem:[#allocation8 + $0x468] sm:$0xff]
        %v5447 = vld [vmem:[#allocation8 + $0x470] sm:$0xff]
        %v5448 = vld [vmem:[#allocation8 + $0x478] sm:$0xff]
        %v5449 = vld [vmem:[#allocation8 + $0x480] sm:$0xff]
        %v5450 = vld [vmem:[#allocation8 + $0x488] sm:$0xff]
        %v5451 = vld [vmem:[#allocation8 + $0x490] sm:$0xff]
        %v5452 = vld [vmem:[#allocation8 + $0x498] sm:$0xff]
        %v5453 = vld [vmem:[#allocation8 + $0x4a0] sm:$0xff]
        %v5454 = vld [vmem:[#allocation8 + $0x4a8] sm:$0xff]
        %v5455 = vld [vmem:[#allocation8 + $0x4b0] sm:$0xff]
        %v5456 = vld [vmem:[#allocation8 + $0x4b8] sm:$0xff]
        %v5457 = vld [vmem:[#allocation8 + $0x4c0] sm:$0xff]
        %v5458 = vld [vmem:[#allocation8 + $0x4c8] sm:$0xff]
        %v5459 = vld [vmem:[#allocation8 + $0x4d0] sm:$0xff]
        %v5460 = vld [vmem:[#allocation8 + $0x4d8] sm:$0xff]
        %v5461 = vld [vmem:[#allocation8 + $0x4e0] sm:$0xff]
        %v5462 = vld [vmem:[#allocation8 + $0x4e8] sm:$0xff]
        %v5463 = vld [vmem:[#allocation8 + $0x4f0] sm:$0xff]
        %v5464 = vld [vmem:[#allocation8 + $0x4f8] sm:$0xff]
        %v5465 = vld [vmem:[#allocation8 + $0x500] sm:$0xff]
        %v5466 = vld [vmem:[#allocation8 + $0x508] sm:$0xff]
        %v5467 = vld [vmem:[#allocation8 + $0x510] sm:$0xff]
        %v5468 = vld [vmem:[#allocation8 + $0x518] sm:$0xff]
        %v5469 = vld [vmem:[#allocation8 + $0x520] sm:$0xff]
        %v5470 = vld [vmem:[#allocation8 + $0x528] sm:$0xff]
        %v5471 = vld [vmem:[#allocation8 + $0x530] sm:$0xff]
        %v5472 = vld [vmem:[#allocation8 + $0x538] sm:$0xff]
        %v5473 = vld [vmem:[#allocation8 + $0x540] sm:$0xff]
        %v5474 = vld [vmem:[#allocation8 + $0x548] sm:$0xff]
        %v5475 = vld [vmem:[#allocation8 + $0x550] sm:$0xff]
        %v5476 = vld [vmem:[#allocation8 + $0x558] sm:$0xff]
        %v5477 = vld [vmem:[#allocation8 + $0x560] sm:$0xff]
        %v5478 = vld [vmem:[#allocation8 + $0x568] sm:$0xff]
        %v5479 = vld [vmem:[#allocation8 + $0x570] sm:$0xff]
        %v5480 = vld [vmem:[#allocation8 + $0x578] sm:$0xff]
        %v5481 = vld [vmem:[#allocation8 + $0x580] sm:$0xff]
        %v5482 = vld [vmem:[#allocation8 + $0x588] sm:$0xff]
        %v5483 = vld [vmem:[#allocation8 + $0x590] sm:$0xff]
        %v5484 = vld [vmem:[#allocation8 + $0x598] sm:$0xff]
        %v5485 = vld [vmem:[#allocation8 + $0x5a0] sm:$0xff]
        %v5486 = vld [vmem:[#allocation8 + $0x5a8] sm:$0xff]
        %v5487 = vld [vmem:[#allocation8 + $0x5b0] sm:$0xff]
        %v5488 = vld [vmem:[#allocation8 + $0x5b8] sm:$0xff]
        %v5489 = vld [vmem:[#allocation8 + $0x5c0] sm:$0xff]
        %v5490 = vld [vmem:[#allocation8 + $0x5c8] sm:$0xff]
        %v5491 = vld [vmem:[#allocation8 + $0x5d0] sm:$0xff]
        %v5492 = vld [vmem:[#allocation8 + $0x5d8] sm:$0xff]
        %v5493 = vld [vmem:[#allocation8 + $0x5e0] sm:$0xff]
        %v5494 = vld [vmem:[#allocation8 + $0x5e8] sm:$0xff]
        %v5495 = vld [vmem:[#allocation8 + $0x5f0] sm:$0xff]
        %v5496 = vld [vmem:[#allocation8 + $0x5f8] sm:$0xff]
        %v5497 = vld [vmem:[#allocation8 + $0x600] sm:$0xff]
        %v5498 = vld [vmem:[#allocation8 + $0x608] sm:$0xff]
        %v5499 = vld [vmem:[#allocation8 + $0x610] sm:$0xff]
        %v5500 = vld [vmem:[#allocation8 + $0x618] sm:$0xff]
        %v5501 = vld [vmem:[#allocation8 + $0x620] sm:$0xff]
        %v5502 = vld [vmem:[#allocation8 + $0x628] sm:$0xff]
        %v5503 = vld [vmem:[#allocation8 + $0x630] sm:$0xff]
        %v5504 = vld [vmem:[#allocation8 + $0x638] sm:$0xff]
        %v5505 = vld [vmem:[#allocation8 + $0x640] sm:$0xff]
        %v5506 = vld [vmem:[#allocation8 + $0x648] sm:$0xff]
        %v5507 = vld [vmem:[#allocation8 + $0x650] sm:$0xff]
        %v5508 = vld [vmem:[#allocation8 + $0x658] sm:$0xff]
        %v5509 = vld [vmem:[#allocation8 + $0x660] sm:$0xff]
        %v5510 = vld [vmem:[#allocation8 + $0x668] sm:$0xff]
        %v5511 = vld [vmem:[#allocation8 + $0x670] sm:$0xff]
        %v5512 = vld [vmem:[#allocation8 + $0x678] sm:$0xff]
        %v5513 = vld [vmem:[#allocation8 + $0x680] sm:$0xff]
        %v5514 = vld [vmem:[#allocation8 + $0x688] sm:$0xff]
        %v5515 = vld [vmem:[#allocation8 + $0x690] sm:$0xff]
        %v5516 = vld [vmem:[#allocation8 + $0x698] sm:$0xff]
        %v5517 = vld [vmem:[#allocation8 + $0x6a0] sm:$0xff]
        %v5518 = vld [vmem:[#allocation8 + $0x6a8] sm:$0xff]
        %v5519 = vld [vmem:[#allocation8 + $0x6b0] sm:$0xff]
        %v5520 = vld [vmem:[#allocation8 + $0x6b8] sm:$0xff]
        %v5521 = vld [vmem:[#allocation8 + $0x6c0] sm:$0xff]
        %v5522 = vld [vmem:[#allocation8 + $0x6c8] sm:$0xff]
        %v5523 = vld [vmem:[#allocation8 + $0x6d0] sm:$0xff]
        %v5524 = vld [vmem:[#allocation8 + $0x6d8] sm:$0xff]
        %v5525 = vld [vmem:[#allocation8 + $0x6e0] sm:$0xff]
        %v5526 = vld [vmem:[#allocation8 + $0x6e8] sm:$0xff]
        %v5527 = vld [vmem:[#allocation8 + $0x6f0] sm:$0xff]
        %v5528 = vld [vmem:[#allocation8 + $0x6f8] sm:$0xff]
        %v5529 = vld [vmem:[#allocation8 + $0x700] sm:$0xff]
        %v5530 = vld [vmem:[#allocation8 + $0x708] sm:$0xff]
        %v5531 = vld [vmem:[#allocation8 + $0x710] sm:$0xff]
        %v5532 = vld [vmem:[#allocation8 + $0x718] sm:$0xff]
        %v5533 = vld [vmem:[#allocation8 + $0x720] sm:$0xff]
        %v5534 = vld [vmem:[#allocation8 + $0x728] sm:$0xff]
        %v5535 = vld [vmem:[#allocation8 + $0x730] sm:$0xff]
        %v5536 = vld [vmem:[#allocation8 + $0x738] sm:$0xff]
        %v5537 = vld [vmem:[#allocation8 + $0x740] sm:$0xff]
        %v5538 = vld [vmem:[#allocation8 + $0x748] sm:$0xff]
        %v5539 = vld [vmem:[#allocation8 + $0x750] sm:$0xff]
        %v5540 = vld [vmem:[#allocation8 + $0x758] sm:$0xff]
        %v5541 = vld [vmem:[#allocation8 + $0x760] sm:$0xff]
        %v5542 = vld [vmem:[#allocation8 + $0x768] sm:$0xff]
        %v5543 = vld [vmem:[#allocation8 + $0x770] sm:$0xff]
        %v5544 = vld [vmem:[#allocation8 + $0x778] sm:$0xff]
        %v5545 = vld [vmem:[#allocation8 + $0x780] sm:$0xff]
        %v5546 = vld [vmem:[#allocation8 + $0x788] sm:$0xff]
        %v5547 = vld [vmem:[#allocation8 + $0x790] sm:$0xff]
        %v5548 = vld [vmem:[#allocation8 + $0x798] sm:$0xff]
        %v5549 = vld [vmem:[#allocation8 + $0x7a0] sm:$0xff]
        %v5550 = vld [vmem:[#allocation8 + $0x7a8] sm:$0xff]
        %v5551 = vld [vmem:[#allocation8 + $0x7b0] sm:$0xff]
        %v5552 = vld [vmem:[#allocation8 + $0x7b8] sm:$0xff]
        %v5553 = vld [vmem:[#allocation8 + $0x7c0] sm:$0xff]
        %v5554 = vld [vmem:[#allocation8 + $0x7c8] sm:$0xff]
        %v5555 = vld [vmem:[#allocation8 + $0x7d0] sm:$0xff]
        %v5556 = vld [vmem:[#allocation8 + $0x7d8] sm:$0xff]
        %v5557 = vld [vmem:[#allocation8 + $0x7e0] sm:$0xff]
        %v5558 = vld [vmem:[#allocation8 + $0x7e8] sm:$0xff]
        %v5559 = vld [vmem:[#allocation8 + $0x7f0] sm:$0xff]
        %v5560 = vld [vmem:[#allocation8 + $0x7f8] sm:$0xff]
        %v5561 = vld [vmem:[#allocation10] sm:$0xf]
        %v5563 = vperm.slane %v5561, 0
        %v5564 = vperm.slane %v5561, 1
        %v5565 = vperm.slane %v5561, 2
        %v5566 = vperm.slane %v5561, 3
        %5571 = vmatpush.msra.mxu0 %v5365
        %5572 = vmatpush.msra.mxu0 %v5361
        %5573 = vmatpush.msra.mxu0 %v5357
        %5574 = vmatpush.msra.mxu0 %v5353
        %5575 = vmatpush.msra.mxu0 %v5349
        %5576 = vmatpush.msra.mxu0 %v5345
        %5577 = vmatpush.msra.mxu0 %v5341
        %5578 = vmatpush.msra.mxu0 %v5337
        %5579 = vmatpush.msra.mxu0 %v5333
        %5580 = vmatpush.msra.mxu0 %v5329
        %5581 = vmatpush.msra.mxu0 %v5325
        %5582 = vmatpush.msra.mxu0 %v5321
        %5583 = vmatpush.msra.mxu0 %v5317
        %5584 = vmatpush.msra.mxu0 %v5313
        %5585 = vmatpush.msra.mxu0 %v5309
        %5586 = vmatpush.msra.mxu0 %v5305
        %5587 = vmatmul.f32.gmra.mxu0 %v5301
        %v5588 = vpop.f32.mrf.mxu0
        %v5589 = vadd.f32 %v5563, %v5588
        %5590 = vdwg.mxu0
        %5591 = vmatpush.msra.mxu0 %v5429
        %5592 = vmatpush.msra.mxu0 %v5425
        %5593 = vmatpush.msra.mxu0 %v5421
        %5594 = vmatpush.msra.mxu0 %v5417
        %5595 = vmatpush.msra.mxu0 %v5413
        %5596 = vmatpush.msra.mxu0 %v5409
        %5597 = vmatpush.msra.mxu0 %v5405
        %5598 = vmatpush.msra.mxu0 %v5401
        %5599 = vmatpush.msra.mxu0 %v5397
        %5600 = vmatpush.msra.mxu0 %v5393
        %5601 = vmatpush.msra.mxu0 %v5389
        %5602 = vmatpush.msra.mxu0 %v5385
        %5603 = vmatpush.msra.mxu0 %v5381
        %5604 = vmatpush.msra.mxu0 %v5377
        %5605 = vmatpush.msra.mxu0 %v5373
        %5606 = vmatpush.msra.mxu0 %v5369
        %5607 = vmatmul.f32.gmra.mxu0 %v5302
        %v5608 = vpop.f32.mrf.mxu0
        %v5609 = vadd.f32 %v5589, %v5608
        %5610 = vdwg.mxu0
        %5611 = vmatpush.msra.mxu0 %v5493
        %5612 = vmatpush.msra.mxu0 %v5489
        %5613 = vmatpush.msra.mxu0 %v5485
        %5614 = vmatpush.msra.mxu0 %v5481
        %5615 = vmatpush.msra.mxu0 %v5477
        %5616 = vmatpush.msra.mxu0 %v5473
        %5617 = vmatpush.msra.mxu0 %v5469
        %5618 = vmatpush.msra.mxu0 %v5465
        %5619 = vmatpush.msra.mxu0 %v5461
        %5620 = vmatpush.msra.mxu0 %v5457
        %5621 = vmatpush.msra.mxu0 %v5453
        %5622 = vmatpush.msra.mxu0 %v5449
        %5623 = vmatpush.msra.mxu0 %v5445
        %5624 = vmatpush.msra.mxu0 %v5441
        %5625 = vmatpush.msra.mxu0 %v5437
        %5626 = vmatpush.msra.mxu0 %v5433
        %5627 = vmatmul.f32.gmra.mxu0 %v5303
        %v5628 = vpop.f32.mrf.mxu0
        %v5629 = vadd.f32 %v5609, %v5628
        %5630 = vdwg.mxu0
        %5631 = vmatpush.msra.mxu0 %v5557
        %5632 = vmatpush.msra.mxu0 %v5553
        %5633 = vmatpush.msra.mxu0 %v5549
        %5634 = vmatpush.msra.mxu0 %v5545
        %5635 = vmatpush.msra.mxu0 %v5541
        %5636 = vmatpush.msra.mxu0 %v5537
        %5637 = vmatpush.msra.mxu0 %v5533
        %5638 = vmatpush.msra.mxu0 %v5529
        %5639 = vmatpush.msra.mxu0 %v5525
        %5640 = vmatpush.msra.mxu0 %v5521
        %5641 = vmatpush.msra.mxu0 %v5517
        %5642 = vmatpush.msra.mxu0 %v5513
        %5643 = vmatpush.msra.mxu0 %v5509
        %5644 = vmatpush.msra.mxu0 %v5505
        %5645 = vmatpush.msra.mxu0 %v5501
        %5646 = vmatpush.msra.mxu0 %v5497
        %5647 = vmatmul.f32.gmra.mxu0 %v5304
        %v5648 = vpop.f32.mrf.mxu0
        %v5649 = vadd.f32 %v5629, %v5648
        %5650 = vdwg.mxu0
        %5651 = vmatpush.msra.mxu0 %v5366
        %5652 = vmatpush.msra.mxu0 %v5362
        %5653 = vmatpush.msra.mxu0 %v5358
        %5654 = vmatpush.msra.mxu0 %v5354
        %5655 = vmatpush.msra.mxu0 %v5350
        %5656 = vmatpush.msra.mxu0 %v5346
        %5657 = vmatpush.msra.mxu0 %v5342
        %5658 = vmatpush.msra.mxu0 %v5338
        %5659 = vmatpush.msra.mxu0 %v5334
        %5660 = vmatpush.msra.mxu0 %v5330
        %5661 = vmatpush.msra.mxu0 %v5326
        %5662 = vmatpush.msra.mxu0 %v5322
        %5663 = vmatpush.msra.mxu0 %v5318
        %5664 = vmatpush.msra.mxu0 %v5314
        %5665 = vmatpush.msra.mxu0 %v5310
        %5666 = vmatpush.msra.mxu0 %v5306
        %5667 = vmatmul.f32.gmra.mxu0 %v5301
        %v5668 = vpop.f32.mrf.mxu0
        %v5669 = vadd.f32 %v5564, %v5668
        %5670 = vdwg.mxu0
        %5671 = vmatpush.msra.mxu0 %v5430
        %5672 = vmatpush.msra.mxu0 %v5426
        %5673 = vmatpush.msra.mxu0 %v5422
        %5674 = vmatpush.msra.mxu0 %v5418
        %5675 = vmatpush.msra.mxu0 %v5414
        %5676 = vmatpush.msra.mxu0 %v5410
        %5677 = vmatpush.msra.mxu0 %v5406
        %5678 = vmatpush.msra.mxu0 %v5402
        %5679 = vmatpush.msra.mxu0 %v5398
        %5680 = vmatpush.msra.mxu0 %v5394
        %5681 = vmatpush.msra.mxu0 %v5390
        %5682 = vmatpush.msra.mxu0 %v5386
        %5683 = vmatpush.msra.mxu0 %v5382
        %5684 = vmatpush.msra.mxu0 %v5378
        %5685 = vmatpush.msra.mxu0 %v5374
        %5686 = vmatpush.msra.mxu0 %v5370
        %5687 = vmatmul.f32.gmra.mxu0 %v5302
        %v5688 = vpop.f32.mrf.mxu0
        %v5689 = vadd.f32 %v5669, %v5688
        %5690 = vdwg.mxu0
        %5691 = vmatpush.msra.mxu0 %v5494
        %5692 = vmatpush.msra.mxu0 %v5490
        %5693 = vmatpush.msra.mxu0 %v5486
        %5694 = vmatpush.msra.mxu0 %v5482
        %5695 = vmatpush.msra.mxu0 %v5478
        %5696 = vmatpush.msra.mxu0 %v5474
        %5697 = vmatpush.msra.mxu0 %v5470
        %5698 = vmatpush.msra.mxu0 %v5466
        %5699 = vmatpush.msra.mxu0 %v5462
        %5700 = vmatpush.msra.mxu0 %v5458
        %5701 = vmatpush.msra.mxu0 %v5454
        %5702 = vmatpush.msra.mxu0 %v5450
        %5703 = vmatpush.msra.mxu0 %v5446
        %5704 = vmatpush.msra.mxu0 %v5442
        %5705 = vmatpush.msra.mxu0 %v5438
        %5706 = vmatpush.msra.mxu0 %v5434
        %5707 = vmatmul.f32.gmra.mxu0 %v5303
        %v5708 = vpop.f32.mrf.mxu0
        %v5709 = vadd.f32 %v5689, %v5708
        %5710 = vdwg.mxu0
        %5711 = vmatpush.msra.mxu0 %v5558
        %5712 = vmatpush.msra.mxu0 %v5554
        %5713 = vmatpush.msra.mxu0 %v5550
        %5714 = vmatpush.msra.mxu0 %v5546
        %5715 = vmatpush.msra.mxu0 %v5542
        %5716 = vmatpush.msra.mxu0 %v5538
        %5717 = vmatpush.msra.mxu0 %v5534
        %5718 = vmatpush.msra.mxu0 %v5530
        %5719 = vmatpush.msra.mxu0 %v5526
        %5720 = vmatpush.msra.mxu0 %v5522
        %5721 = vmatpush.msra.mxu0 %v5518
        %5722 = vmatpush.msra.mxu0 %v5514
        %5723 = vmatpush.msra.mxu0 %v5510
        %5724 = vmatpush.msra.mxu0 %v5506
        %5725 = vmatpush.msra.mxu0 %v5502
        %5726 = vmatpush.msra.mxu0 %v5498
        %5727 = vmatmul.f32.gmra.mxu0 %v5304
        %v5728 = vpop.f32.mrf.mxu0
        %v5729 = vadd.f32 %v5709, %v5728
        %5730 = vdwg.mxu0
        %5731 = vmatpush.msra.mxu0 %v5367
        %5732 = vmatpush.msra.mxu0 %v5363
        %5733 = vmatpush.msra.mxu0 %v5359
        %5734 = vmatpush.msra.mxu0 %v5355
        %5735 = vmatpush.msra.mxu0 %v5351
        %5736 = vmatpush.msra.mxu0 %v5347
        %5737 = vmatpush.msra.mxu0 %v5343
        %5738 = vmatpush.msra.mxu0 %v5339
        %5739 = vmatpush.msra.mxu0 %v5335
        %5740 = vmatpush.msra.mxu0 %v5331
        %5741 = vmatpush.msra.mxu0 %v5327
        %5742 = vmatpush.msra.mxu0 %v5323
        %5743 = vmatpush.msra.mxu0 %v5319
        %5744 = vmatpush.msra.mxu0 %v5315
        %5745 = vmatpush.msra.mxu0 %v5311
        %5746 = vmatpush.msra.mxu0 %v5307
        %5747 = vmatmul.f32.gmra.mxu0 %v5301
        %v5748 = vpop.f32.mrf.mxu0
        %v5749 = vadd.f32 %v5565, %v5748
        %5750 = vdwg.mxu0
        %5751 = vmatpush.msra.mxu0 %v5431
        %5752 = vmatpush.msra.mxu0 %v5427
        %5753 = vmatpush.msra.mxu0 %v5423
        %5754 = vmatpush.msra.mxu0 %v5419
        %5755 = vmatpush.msra.mxu0 %v5415
        %5756 = vmatpush.msra.mxu0 %v5411
        %5757 = vmatpush.msra.mxu0 %v5407
        %5758 = vmatpush.msra.mxu0 %v5403
        %5759 = vmatpush.msra.mxu0 %v5399
        %5760 = vmatpush.msra.mxu0 %v5395
        %5761 = vmatpush.msra.mxu0 %v5391
        %5762 = vmatpush.msra.mxu0 %v5387
        %5763 = vmatpush.msra.mxu0 %v5383
        %5764 = vmatpush.msra.mxu0 %v5379
        %5765 = vmatpush.msra.mxu0 %v5375
        %5766 = vmatpush.msra.mxu0 %v5371
        %5767 = vmatmul.f32.gmra.mxu0 %v5302
        %v5768 = vpop.f32.mrf.mxu0
        %v5769 = vadd.f32 %v5749, %v5768
        %5770 = vdwg.mxu0
        %5771 = vmatpush.msra.mxu0 %v5495
        %5772 = vmatpush.msra.mxu0 %v5491
        %5773 = vmatpush.msra.mxu0 %v5487
        %5774 = vmatpush.msra.mxu0 %v5483
        %5775 = vmatpush.msra.mxu0 %v5479
        %5776 = vmatpush.msra.mxu0 %v5475
        %5777 = vmatpush.msra.mxu0 %v5471
        %5778 = vmatpush.msra.mxu0 %v5467
        %5779 = vmatpush.msra.mxu0 %v5463
        %5780 = vmatpush.msra.mxu0 %v5459
        %5781 = vmatpush.msra.mxu0 %v5455
        %5782 = vmatpush.msra.mxu0 %v5451
        %5783 = vmatpush.msra.mxu0 %v5447
        %5784 = vmatpush.msra.mxu0 %v5443
        %5785 = vmatpush.msra.mxu0 %v5439
        %5786 = vmatpush.msra.mxu0 %v5435
        %5787 = vmatmul.f32.gmra.mxu0 %v5303
        %v5788 = vpop.f32.mrf.mxu0
        %v5789 = vadd.f32 %v5769, %v5788
        %5790 = vdwg.mxu0
        %5791 = vmatpush.msra.mxu0 %v5559
        %5792 = vmatpush.msra.mxu0 %v5555
        %5793 = vmatpush.msra.mxu0 %v5551
        %5794 = vmatpush.msra.mxu0 %v5547
        %5795 = vmatpush.msra.mxu0 %v5543
        %5796 = vmatpush.msra.mxu0 %v5539
        %5797 = vmatpush.msra.mxu0 %v5535
        %5798 = vmatpush.msra.mxu0 %v5531
        %5799 = vmatpush.msra.mxu0 %v5527
        %5800 = vmatpush.msra.mxu0 %v5523
        %5801 = vmatpush.msra.mxu0 %v5519
        %5802 = vmatpush.msra.mxu0 %v5515
        %5803 = vmatpush.msra.mxu0 %v5511
        %5804 = vmatpush.msra.mxu0 %v5507
        %5805 = vmatpush.msra.mxu0 %v5503
        %5806 = vmatpush.msra.mxu0 %v5499
        %5807 = vmatmul.f32.gmra.mxu0 %v5304
        %v5808 = vpop.f32.mrf.mxu0
        %v5809 = vadd.f32 %v5789, %v5808
        %5810 = vdwg.mxu0
        %5811 = vmatpush.msra.mxu0 %v5368
        %5812 = vmatpush.msra.mxu0 %v5364
        %5813 = vmatpush.msra.mxu0 %v5360
        %5814 = vmatpush.msra.mxu0 %v5356
        %5815 = vmatpush.msra.mxu0 %v5352
        %5816 = vmatpush.msra.mxu0 %v5348
        %5817 = vmatpush.msra.mxu0 %v5344
        %5818 = vmatpush.msra.mxu0 %v5340
        %5819 = vmatpush.msra.mxu0 %v5336
        %5820 = vmatpush.msra.mxu0 %v5332
        %5821 = vmatpush.msra.mxu0 %v5328
        %5822 = vmatpush.msra.mxu0 %v5324
        %5823 = vmatpush.msra.mxu0 %v5320
        %5824 = vmatpush.msra.mxu0 %v5316
        %5825 = vmatpush.msra.mxu0 %v5312
        %5826 = vmatpush.msra.mxu0 %v5308
        %5827 = vmatmul.f32.gmra.mxu0 %v5301
        %v5828 = vpop.f32.mrf.mxu0
        %v5829 = vadd.f32 %v5566, %v5828
        %5830 = vdwg.mxu0
        %5831 = vmatpush.msra.mxu0 %v5432
        %5832 = vmatpush.msra.mxu0 %v5428
        %5833 = vmatpush.msra.mxu0 %v5424
        %5834 = vmatpush.msra.mxu0 %v5420
        %5835 = vmatpush.msra.mxu0 %v5416
        %5836 = vmatpush.msra.mxu0 %v5412
        %5837 = vmatpush.msra.mxu0 %v5408
        %5838 = vmatpush.msra.mxu0 %v5404
        %5839 = vmatpush.msra.mxu0 %v5400
        %5840 = vmatpush.msra.mxu0 %v5396
        %5841 = vmatpush.msra.mxu0 %v5392
        %5842 = vmatpush.msra.mxu0 %v5388
        %5843 = vmatpush.msra.mxu0 %v5384
        %5844 = vmatpush.msra.mxu0 %v5380
        %5845 = vmatpush.msra.mxu0 %v5376
        %5846 = vmatpush.msra.mxu0 %v5372
        %5847 = vmatmul.f32.gmra.mxu0 %v5302
        %v5848 = vpop.f32.mrf.mxu0
        %v5849 = vadd.f32 %v5829, %v5848
        %5850 = vdwg.mxu0
        %5851 = vmatpush.msra.mxu0 %v5496
        %5852 = vmatpush.msra.mxu0 %v5492
        %5853 = vmatpush.msra.mxu0 %v5488
        %5854 = vmatpush.msra.mxu0 %v5484
        %5855 = vmatpush.msra.mxu0 %v5480
        %5856 = vmatpush.msra.mxu0 %v5476
        %5857 = vmatpush.msra.mxu0 %v5472
        %5858 = vmatpush.msra.mxu0 %v5468
        %5859 = vmatpush.msra.mxu0 %v5464
        %5860 = vmatpush.msra.mxu0 %v5460
        %5861 = vmatpush.msra.mxu0 %v5456
        %5862 = vmatpush.msra.mxu0 %v5452
        %5863 = vmatpush.msra.mxu0 %v5448
        %5864 = vmatpush.msra.mxu0 %v5444
        %5865 = vmatpush.msra.mxu0 %v5440
        %5866 = vmatpush.msra.mxu0 %v5436
        %5867 = vmatmul.f32.gmra.mxu0 %v5303
        %v5868 = vpop.f32.mrf.mxu0
        %v5869 = vadd.f32 %v5849, %v5868
        %5870 = vdwg.mxu0
        %5871 = vmatpush.msra.mxu0 %v5560
        %5872 = vmatpush.msra.mxu0 %v5556
        %5873 = vmatpush.msra.mxu0 %v5552
        %5874 = vmatpush.msra.mxu0 %v5548
        %5875 = vmatpush.msra.mxu0 %v5544
        %5876 = vmatpush.msra.mxu0 %v5540
        %5877 = vmatpush.msra.mxu0 %v5536
        %5878 = vmatpush.msra.mxu0 %v5532
        %5879 = vmatpush.msra.mxu0 %v5528
        %5880 = vmatpush.msra.mxu0 %v5524
        %5881 = vmatpush.msra.mxu0 %v5520
        %5882 = vmatpush.msra.mxu0 %v5516
        %5883 = vmatpush.msra.mxu0 %v5512
        %5884 = vmatpush.msra.mxu0 %v5508
        %5885 = vmatpush.msra.mxu0 %v5504
        %5886 = vmatpush.msra.mxu0 %v5500
        %5887 = vmatmul.f32.gmra.mxu0 %v5304
        %v5888 = vpop.f32.mrf.mxu0
        %v5889 = vadd.f32 %v5869, %v5888
        %5890 = vdwg.mxu0
        %v5891 = vmax.f32 %v5649, 0.0
        %v5892 = vmax.f32 %v5729, 0.0
        %v5893 = vmax.f32 %v5809, 0.0
        %v5894 = vmax.f32 %v5889, 0.0
        %v5895 = vld [vmem:[#allocation11] sm:$0xf]
        %v5897 = vperm.slane %v5895, 0
        %v5898 = vperm.slane %v5895, 1
        %v5899 = vperm.slane %v5895, 2
        %v5900 = vperm.slane %v5895, 3
        %v5905 = vmul.f32 %v5891, %v5897
        %v5906 = vmul.f32 %v5892, %v5898
        %v5907 = vmul.f32 %v5893, %v5899
        %v5908 = vmul.f32 %v5894, %v5900
        %v5909 = vld [vmem:[#allocation13] sm:$0xf]
        %v5911 = vperm.slane %v5909, 0
        %v5912 = vperm.slane %v5909, 1
        %v5913 = vperm.slane %v5909, 2
        %v5914 = vperm.slane %v5909, 3
        %v5919 = vadd.f32 %v5905, %v5911
        %v5920 = vadd.f32 %v5906, %v5912
        %v5921 = vadd.f32 %v5907, %v5913
        %v5922 = vadd.f32 %v5908, %v5914
        %v5923 = vmax.f32 %v5919, 0.0
        %v5924 = vmax.f32 %v5920, 0.0
        %v5925 = vmax.f32 %v5921, 0.0
        %v5926 = vmax.f32 %v5922, 0.0
        %5927 = vst [vmem:[%s387] sm:$0xff] %v5923
        %5928 = vst [vmem:[%s387 + $0x8] sm:$0xff] %v5924
        %5929 = vst [vmem:[%s387 + $0x10] sm:$0xff] %v5925
        %5930 = vst [vmem:[%s387 + $0x18] sm:$0xff] %v5926
        %s5931 = sand.u32 %s187, 1
        %s5932 = scalar_lea.sflag [#allocation4], %s5931
        %s5933 = sand.u32 %s187, 1
        %s5934 = smul.addr %s5933, 32
        %s5935 = scalar_lea.vmem [#allocation14], %s5934
        // Predicated region
        $region77: #{tpu_custom_call.1} parent=47 // pred_check
          %p5936 = pneg %p197
        $region78: #{tpu_custom_call.1} parent=47 // pred_check_branch
          %5938 = sbr.rel (%p5936) target = $region80
        $region79: #{tpu_custom_call.1} parent=47 // pred_region
          %5940 = vsyncadd %s5932, 0
          %s5941 = smul.addr %s27, 4
          %s5942 = smul.addr %s5941, 8
          %s5943 = scalar_lea.hbm %s7, %s5942
          %s5945 = sshll.u32 %s5935, 4
          %s5946 = int_to_ptr.vmem [resolvable:$true] %s5945
          %s5947 = sshll.u32 %s5943, 4
          %s5948 = int_to_ptr.hbm [resolvable:$true] %s5947
          %5950 = dma.vmem_to_hbm [thread:$0]  %s5946, 512, %s5948, %s5932
        $region80: #{tpu_custom_call.1} parent=47 // pred_fallthru
          _
      $region48: #{tpu_custom_call.1} parent=5 // pred_fallthru
        _
      %p5951 = scmp.le.s32.totalorder 2, %s22
      // Predicated region
      $region81: #{tpu_custom_call.1} parent=5 // pred_check
        %p5952 = pneg %p5951
      $region82: #{tpu_custom_call.1} parent=5 // pred_check_branch
        %5954 = sbr.rel (%p5952) target = $region84
      $region83: #{tpu_custom_call.1} parent=5 // pred_region
        %s5955 = ssub.s32 %s22, 2
        // Predicated region
        $region85: #{tpu_custom_call.1} parent=83 // pred_check
          %p5956 = pneg %p203
        $region86: #{tpu_custom_call.1} parent=83 // pred_check_branch
          %5958 = sbr.rel (%p5956) target = $region88
        $region87: #{tpu_custom_call.1} parent=83 // pred_region
          %s5959 = sand.u32 %s188, 1
          %s5960 = scalar_lea.sflag [#allocation4], %s5959
          %s5961 = sand.u32 %s188, 1
          %s5962 = smul.addr %s5961, 32
          %s5963 = scalar_lea.vmem [#allocation14], %s5962
          %5965 = dma.done %s5960, 512
        $region88: #{tpu_custom_call.1} parent=83 // pred_fallthru
          _
      $region84: #{tpu_custom_call.1} parent=5 // pred_fallthru
        _
    $region6: #{tpu_custom_call.1} parent=1 // loop_footer
      %s26 = sadd.s32 1, %s22
    $region7: #{tpu_custom_call.1} parent=1 // loop_footer_branch
      %21 = sbr.rel target = $region3
    $region8: #{tpu_custom_call.1} parent=1 // loop_exit
      _
    %5966 = vsyncpa [#allocation3], 1
    %s5967 = scalar_lea.sflag [#allocation3], 1
    %5968 = vsyncpa %s5967, 1
    %5969 = vsyncpa [#allocation6], 1
    %5970 = vsyncpa [#allocation9], 1
    %5971 = vsyncpa [#allocation12], 1
    %5972 = vsyncpa [#allocation4], 1
    %s5973 = scalar_lea.sflag [#allocation4], 1
    %5974 = vsyncpa %s5973, 1

</llo_original>
